<compile_context>
chip_gen: v7x
topology: tpu7x:2x2x1
jax: 0.10.0
libtpu: 0.0.40
codegen_flags: <defaults>
</compile_context>

<pallas_src>
import functools

import jax
import jax.numpy as jnp
from jax.experimental import pallas as pl
from jax.experimental.pallas import tpu as pltpu

D_IN, H1, H2, H3, D_OUT = 600, 1024, 512, 256, 100
D_IN_PAD = 640     # fc1 K padded to a multiple of 128
D_OUT_PAD = 128    # fc4 N padded to 128 -> unmasked, lane-dense output stores
NEG_INF = -1e30    # bias for padded logit columns (drops out of softmax denom)


def _mlp_kernel(x_ref, w1_ref, b1_ref, w2_ref, b2_ref, w3_ref, b3_ref,
                w4_ref, b4_ref, out_ref):
    # fc1 + ReLU  (bf16 operands on the MXU, f32 accumulation / elementwise)
    h = jnp.dot(x_ref[...], w1_ref[...], preferred_element_type=jnp.float32)
    h = jnp.maximum(h + b1_ref[...], 0.0)
    # fc2 + ReLU
    h = jnp.dot(h.astype(jnp.bfloat16), w2_ref[...],
                preferred_element_type=jnp.float32)
    h = jnp.maximum(h + b2_ref[...], 0.0)
    # fc3 + ReLU
    h = jnp.dot(h.astype(jnp.bfloat16), w3_ref[...],
                preferred_element_type=jnp.float32)
    h = jnp.maximum(h + b3_ref[...], 0.0)
    # fc4 (logits; padded columns carry a ~-1e30 bias so exp() of them is 0)
    logits = jnp.dot(h.astype(jnp.bfloat16), w4_ref[...],
                     preferred_element_type=jnp.float32) + b4_ref[...]

    # log_softmax along the feature axis — matches F.log_softmax(x, dim=1)
    m = jnp.max(logits, axis=-1, keepdims=True)
    shifted = logits - m
    lse = jnp.log(jnp.sum(jnp.exp(shifted), axis=-1, keepdims=True))
    out_ref[...] = (shifted - lse).astype(out_ref.dtype)


@functools.partial(jax.jit, static_argnames=("batch_tile",))
def net_forward(x, params, batch_tile=128):
    """x: any shape with 600 trailing elements per row (mirrors x.view(-1, 600)).

    params: (w1,b1,...,w4,b4), weights stored transposed as f32 [in, out],
    biases as f32 [1, out]. Returns f32 [B, 100] log-probabilities.
    """
    x = x.reshape(-1, D_IN).astype(jnp.float32)
    B = x.shape[0]
    w1, b1, w2, b2, w3, b3, w4, b4 = params

    # ---- wrapper-side layout prep (padding + dtype), all zero-cost math-wise ----
    # K-pad fc1: x [B,600]->[B,640], w1 [600,.]->[640,.] (zeros -> same result).
    xp = jnp.pad(x, ((0, 0), (0, D_IN_PAD - D_IN)))
    w1p = jnp.pad(w1, ((0, D_IN_PAD - D_IN), (0, 0)))
    # N-pad fc4: zero weight columns, -1e30 bias on padded columns.
    w4p = jnp.pad(w4, ((0, 0), (0, D_OUT_PAD - D_OUT)))
    b4p = jnp.pad(b4, ((0, 0), (0, D_OUT_PAD - D_OUT)), constant_values=NEG_INF)
    # Batch-pad to a multiple of batch_tile (zero rows, sliced off at the end).
    num_tiles = -(-B // batch_tile)          # cdiv
    PB = num_tiles * batch_tile
    xp = jnp.pad(xp, ((0, PB - B), (0, 0)))
    # bf16 matmul operands (weights + input activations); biases stay f32.
    xp = xp.astype(jnp.bfloat16)
    w1p, w2b, w3b, w4p = (w.astype(jnp.bfloat16) for w in (w1p, w2, w3, w4p))

    def full_block(shape):
        # Weights/biases: single full block, identical for every grid step.
        return pl.BlockSpec(shape, lambda i: (0, 0))

    out = pl.pallas_call(
        _mlp_kernel,
        out_shape=jax.ShapeDtypeStruct((PB, D_OUT_PAD), jnp.float32),
        grid_spec=pltpu.PrefetchScalarGridSpec(
            num_scalar_prefetch=0,
            grid=(num_tiles,),
            in_specs=[
                pl.BlockSpec((batch_tile, D_IN_PAD), lambda i: (i, 0)),  # x tile
                full_block((D_IN_PAD, H1)), full_block((1, H1)),
                full_block((H1, H2)), full_block((1, H2)),
                full_block((H2, H3)), full_block((1, H3)),
                full_block((H3, D_OUT_PAD)), full_block((1, D_OUT_PAD)),
            ],
            out_specs=pl.BlockSpec((batch_tile, D_OUT_PAD), lambda i: (i, 0)),
        ),
        compiler_params=pltpu.CompilerParams(
            dimension_semantics=("parallel",),
            vmem_limit_bytes=48 << 20,   # fits v7x's 64 MiB per-TC VMEM
        ),
    )(xp, w1p, b1, w2b, b2, w3b, b3, w4p, b4p)

    return out[:B, :D_OUT]


def init_params(key):
    """nn.Linear-style init U(-1/sqrt(fan_in), +1/sqrt(fan_in)).

    Weights stored transposed as [in, out]; biases as [1, out]. All f32.
    """
    dims = [(D_IN, H1), (H1, H2), (H2, H3), (H3, D_OUT)]
    params = []
    for (fan_in, fan_out) in dims:
        key, kw, kb = jax.random.split(key, 3)
        bound = 1.0 / jnp.sqrt(fan_in)
        w = jax.random.uniform(kw, (fan_in, fan_out), jnp.float32, -bound, bound)
        b = jax.random.uniform(kb, (1, fan_out), jnp.float32, -bound, bound)
        params += [w, b]
    return tuple(params)


def _reference_forward(x, params):
    # Pure-JAX reference mirroring the kernel's bf16 matmul / f32 accumulation.
    x = x.reshape(-1, D_IN).astype(jnp.float32)
    w1, b1, w2, b2, w3, b3, w4, b4 = params

    def lin(a, w, b):
        return jnp.dot(a.astype(jnp.bfloat16), w.astype(jnp.bfloat16),
                       preferred_element_type=jnp.float32) + b

    h = jnp.maximum(lin(x, w1, b1), 0.0)
    h = jnp.maximum(lin(h, w2, b2), 0.0)
    h = jnp.maximum(lin(h, w3, b3), 0.0)
    logits = lin(h, w4, b4)
    return jax.nn.log_softmax(logits, axis=1)


if __name__ == "__main__":
    key = jax.random.PRNGKey(0)
    key, kx = jax.random.split(key)

    # Batch of 200: not a multiple of 128 (exercises the cdiv/padding path) and
    # gives a 2-step grid (both TensorCores on v7x).
    batch = 200
    x = jax.random.normal(kx, (batch, D_IN), dtype=jnp.float32)
    params = init_params(key)

    out = net_forward(x, params, batch_tile=128)
    out = jax.block_until_ready(out)

    ref = _reference_forward(x, params)
    assert out.shape == (batch, D_OUT)
    assert bool(jnp.all(jnp.isfinite(out))), "non-finite outputs"
    assert jnp.allclose(out, ref, atol=2e-2, rtol=2e-2), "mismatch vs reference"

    print("KERNEL_OK")
</pallas_src>

<mosaic_0001>
module attributes {stable_mosaic.version = 11 : i64} {
  func.func @_mlp_kernel(%arg0: i32, %arg1: memref<128x640xbf16, #tpu.memory_space<vmem>>, %arg2: memref<640x1024xbf16, #tpu.memory_space<vmem>>, %arg3: memref<1x1024xf32, #tpu.memory_space<vmem>>, %arg4: memref<1024x512xbf16, #tpu.memory_space<vmem>>, %arg5: memref<1x512xf32, #tpu.memory_space<vmem>>, %arg6: memref<512x256xbf16, #tpu.memory_space<vmem>>, %arg7: memref<1x256xf32, #tpu.memory_space<vmem>>, %arg8: memref<256x128xbf16, #tpu.memory_space<vmem>>, %arg9: memref<1x128xf32, #tpu.memory_space<vmem>>, %arg10: memref<128x128xf32, #tpu.memory_space<vmem>>) attributes {dimension_semantics = [#tpu.dimension_semantics<parallel>], iteration_bounds = array<i64: 2>, scalar_prefetch = 0 : i64, scratch_operands = 0 : i64, tpu.core_type = #tpu.core_type<tc>, window_params = [{transform_indices = @transform_0, window_bounds = array<i64: 128, 640>}, {pipeline_mode = #tpu.pipeline_mode<synchronous>, transform_indices = @transform_1, window_bounds = array<i64: 640, 1024>}, {pipeline_mode = #tpu.pipeline_mode<synchronous>, transform_indices = @transform_2, window_bounds = array<i64: 1, 1024>}, {pipeline_mode = #tpu.pipeline_mode<synchronous>, transform_indices = @transform_3, window_bounds = array<i64: 1024, 512>}, {pipeline_mode = #tpu.pipeline_mode<synchronous>, transform_indices = @transform_4, window_bounds = array<i64: 1, 512>}, {pipeline_mode = #tpu.pipeline_mode<synchronous>, transform_indices = @transform_5, window_bounds = array<i64: 512, 256>}, {pipeline_mode = #tpu.pipeline_mode<synchronous>, transform_indices = @transform_6, window_bounds = array<i64: 1, 256>}, {pipeline_mode = #tpu.pipeline_mode<synchronous>, transform_indices = @transform_7, window_bounds = array<i64: 256, 128>}, {pipeline_mode = #tpu.pipeline_mode<synchronous>, transform_indices = @transform_8, window_bounds = array<i64: 1, 128>}, {transform_indices = @transform_9, window_bounds = array<i64: 128, 128>}]} {
    %c0 = arith.constant 0 : index
    %c0_0 = arith.constant 0 : index
    %0 = vector.load %arg1[%c0, %c0_0] : memref<128x640xbf16, #tpu.memory_space<vmem>>, vector<128x640xbf16>
    %c0_1 = arith.constant 0 : index
    %c0_2 = arith.constant 0 : index
    %1 = vector.load %arg2[%c0_1, %c0_2] : memref<640x1024xbf16, #tpu.memory_space<vmem>>, vector<640x1024xbf16>
    %cst = arith.constant dense<0.000000e+00> : vector<128x1024xf32>
    %2 = tpu.matmul %0, %1, %cst {dimension_numbers = #tpu.dot_dimension_numbers<[1], [0], [0], [1], [0, 0, 1, 1], [], []>} : vector<128x640xbf16>, vector<640x1024xbf16>, vector<128x1024xf32> -> vector<128x1024xf32>
    %c0_3 = arith.constant 0 : index
    %c0_4 = arith.constant 0 : index
    %3 = vector.load %arg3[%c0_3, %c0_4] : memref<1x1024xf32, #tpu.memory_space<vmem>>, vector<1x1024xf32>
    %4 = vector.broadcast %3 : vector<1x1024xf32> to vector<128x1024xf32>
    %5 = arith.addf %2, %4 : vector<128x1024xf32>
    %cst_5 = arith.constant 0.000000e+00 : f32
    %6 = vector.broadcast %cst_5 : f32 to vector<128x1024xf32>
    %7 = arith.maximumf %5, %6 : vector<128x1024xf32>
    %8 = arith.truncf %7 : vector<128x1024xf32> to vector<128x1024xbf16>
    %c0_6 = arith.constant 0 : index
    %c0_7 = arith.constant 0 : index
    %9 = vector.load %arg4[%c0_6, %c0_7] : memref<1024x512xbf16, #tpu.memory_space<vmem>>, vector<1024x512xbf16>
    %cst_8 = arith.constant dense<0.000000e+00> : vector<128x512xf32>
    %10 = tpu.matmul %8, %9, %cst_8 {dimension_numbers = #tpu.dot_dimension_numbers<[1], [0], [0], [1], [0, 0, 1, 1], [], []>} : vector<128x1024xbf16>, vector<1024x512xbf16>, vector<128x512xf32> -> vector<128x512xf32>
    %c0_9 = arith.constant 0 : index
    %c0_10 = arith.constant 0 : index
    %11 = vector.load %arg5[%c0_9, %c0_10] : memref<1x512xf32, #tpu.memory_space<vmem>>, vector<1x512xf32>
    %12 = vector.broadcast %11 : vector<1x512xf32> to vector<128x512xf32>
    %13 = arith.addf %10, %12 : vector<128x512xf32>
    %cst_11 = arith.constant 0.000000e+00 : f32
    %14 = vector.broadcast %cst_11 : f32 to vector<128x512xf32>
    %15 = arith.maximumf %13, %14 : vector<128x512xf32>
    %16 = arith.truncf %15 : vector<128x512xf32> to vector<128x512xbf16>
    %c0_12 = arith.constant 0 : index
    %c0_13 = arith.constant 0 : index
    %17 = vector.load %arg6[%c0_12, %c0_13] : memref<512x256xbf16, #tpu.memory_space<vmem>>, vector<512x256xbf16>
    %cst_14 = arith.constant dense<0.000000e+00> : vector<128x256xf32>
    %18 = tpu.matmul %16, %17, %cst_14 {dimension_numbers = #tpu.dot_dimension_numbers<[1], [0], [0], [1], [0, 0, 1, 1], [], []>} : vector<128x512xbf16>, vector<512x256xbf16>, vector<128x256xf32> -> vector<128x256xf32>
    %c0_15 = arith.constant 0 : index
    %c0_16 = arith.constant 0 : index
    %19 = vector.load %arg7[%c0_15, %c0_16] : memref<1x256xf32, #tpu.memory_space<vmem>>, vector<1x256xf32>
    %20 = vector.broadcast %19 : vector<1x256xf32> to vector<128x256xf32>
    %21 = arith.addf %18, %20 : vector<128x256xf32>
    %cst_17 = arith.constant 0.000000e+00 : f32
    %22 = vector.broadcast %cst_17 : f32 to vector<128x256xf32>
    %23 = arith.maximumf %21, %22 : vector<128x256xf32>
    %24 = arith.truncf %23 : vector<128x256xf32> to vector<128x256xbf16>
    %c0_18 = arith.constant 0 : index
    %c0_19 = arith.constant 0 : index
    %25 = vector.load %arg8[%c0_18, %c0_19] : memref<256x128xbf16, #tpu.memory_space<vmem>>, vector<256x128xbf16>
    %cst_20 = arith.constant dense<0.000000e+00> : vector<128x128xf32>
    %26 = tpu.matmul %24, %25, %cst_20 {dimension_numbers = #tpu.dot_dimension_numbers<[1], [0], [0], [1], [0, 0, 1, 1], [], []>} : vector<128x256xbf16>, vector<256x128xbf16>, vector<128x128xf32> -> vector<128x128xf32>
    %c0_21 = arith.constant 0 : index
    %c0_22 = arith.constant 0 : index
    %27 = vector.load %arg9[%c0_21, %c0_22] : memref<1x128xf32, #tpu.memory_space<vmem>>, vector<1x128xf32>
    %28 = vector.broadcast %27 : vector<1x128xf32> to vector<128x128xf32>
    %29 = arith.addf %26, %28 : vector<128x128xf32>
    %cst_23 = arith.constant dense<0xFF800000> : vector<128xf32>
    %30 = vector.multi_reduction <maximumf>, %29, %cst_23 [1] : vector<128x128xf32> to vector<128xf32>
    %31 = vector.shape_cast %30 : vector<128xf32> to vector<128x1xf32>
    %32 = vector.broadcast %31 : vector<128x1xf32> to vector<128x128xf32>
    %33 = arith.subf %29, %32 : vector<128x128xf32>
    %34 = math.exp %33 : vector<128x128xf32>
    %cst_24 = arith.constant dense<0.000000e+00> : vector<128xf32>
    %35 = vector.multi_reduction <add>, %34, %cst_24 [1] : vector<128x128xf32> to vector<128xf32>
    %36 = vector.shape_cast %35 : vector<128xf32> to vector<128x1xf32>
    %37 = math.log %36 : vector<128x1xf32>
    %38 = vector.broadcast %37 : vector<128x1xf32> to vector<128x128xf32>
    %39 = arith.subf %33, %38 : vector<128x128xf32>
    %c0_25 = arith.constant 0 : index
    %c0_26 = arith.constant 0 : index
    %40 = vector.load %arg10[%c0_25, %c0_26] : memref<128x128xf32, #tpu.memory_space<vmem>>, vector<128x128xf32>
    tpu.vector_store %arg10[%c0_25, %c0_26], %39 {strides = array<i32>} : memref<128x128xf32, #tpu.memory_space<vmem>>, vector<128x128xf32>,
    return
  }
  func.func @transform_0(%arg0: i32) -> (i32, i32) {
    %c0_i32 = arith.constant 0 : i32
    %c0_i32_0 = arith.constant 0 : i32
    return %arg0, %c0_i32 : i32, i32
  }
  func.func @transform_1(%arg0: i32) -> (i32, i32) {
    %c0_i32 = arith.constant 0 : i32
    %c0_i32_0 = arith.constant 0 : i32
    %c0_i32_1 = arith.constant 0 : i32
    return %c0_i32, %c0_i32_0 : i32, i32
  }
  func.func @transform_2(%arg0: i32) -> (i32, i32) {
    %c0_i32 = arith.constant 0 : i32
    %c0_i32_0 = arith.constant 0 : i32
    %c0_i32_1 = arith.constant 0 : i32
    return %c0_i32, %c0_i32_0 : i32, i32
  }
  func.func @transform_3(%arg0: i32) -> (i32, i32) {
    %c0_i32 = arith.constant 0 : i32
    %c0_i32_0 = arith.constant 0 : i32
    %c0_i32_1 = arith.constant 0 : i32
    return %c0_i32, %c0_i32_0 : i32, i32
  }
  func.func @transform_4(%arg0: i32) -> (i32, i32) {
    %c0_i32 = arith.constant 0 : i32
    %c0_i32_0 = arith.constant 0 : i32
    %c0_i32_1 = arith.constant 0 : i32
    return %c0_i32, %c0_i32_0 : i32, i32
  }
  func.func @transform_5(%arg0: i32) -> (i32, i32) {
    %c0_i32 = arith.constant 0 : i32
    %c0_i32_0 = arith.constant 0 : i32
    %c0_i32_1 = arith.constant 0 : i32
    return %c0_i32, %c0_i32_0 : i32, i32
  }
  func.func @transform_6(%arg0: i32) -> (i32, i32) {
    %c0_i32 = arith.constant 0 : i32
    %c0_i32_0 = arith.constant 0 : i32
    %c0_i32_1 = arith.constant 0 : i32
    return %c0_i32, %c0_i32_0 : i32, i32
  }
  func.func @transform_7(%arg0: i32) -> (i32, i32) {
    %c0_i32 = arith.constant 0 : i32
    %c0_i32_0 = arith.constant 0 : i32
    %c0_i32_1 = arith.constant 0 : i32
    return %c0_i32, %c0_i32_0 : i32, i32
  }
  func.func @transform_8(%arg0: i32) -> (i32, i32) {
    %c0_i32 = arith.constant 0 : i32
    %c0_i32_0 = arith.constant 0 : i32
    %c0_i32_1 = arith.constant 0 : i32
    return %c0_i32, %c0_i32_0 : i32, i32
  }
  func.func @transform_9(%arg0: i32) -> (i32, i32) {
    %c0_i32 = arith.constant 0 : i32
    %c0_i32_0 = arith.constant 0 : i32
    return %arg0, %c0_i32 : i32, i32
  }
}

</mosaic_0001>

<llo_original>
// kernel: net_forward.1
$region0: #{net_forward.1}
  #allocation0 [shape = 'u32[]', space=smem, size = 0x4, offset = 0x4, fixed_abs, tag = 'smem constant byte address 0x4 - core index']
  #allocation1 [shape = 'u32[144,128]{1,0:T(1,128)}', space=vmem, size = 0x12000, scoped, tag = 'internal scratch']
  %s0 = inlined_call_operand.vmem [shape: bf16[256,640], index: 0, kind: input, shape index: {}]
  %s1 = inlined_call_operand.vmem [shape: bf16[640,1024], index: 1, kind: input, shape index: {}]
  %s2 = inlined_call_operand.vmem [shape: f32[1,1024], index: 2, kind: input, shape index: {}]
  %s3 = inlined_call_operand.vmem [shape: bf16[1024,512], index: 3, kind: input, shape index: {}]
  %s4 = inlined_call_operand.vmem [shape: f32[1,512], index: 4, kind: input, shape index: {}]
  %s5 = inlined_call_operand.vmem [shape: bf16[512,256], index: 5, kind: input, shape index: {}]
  %s6 = inlined_call_operand.vmem [shape: f32[1,256], index: 6, kind: input, shape index: {}]
  %s7 = inlined_call_operand.vmem [shape: bf16[256,128], index: 7, kind: input, shape index: {}]
  %s8 = inlined_call_operand.vmem [shape: f32[1,128], index: 8, kind: input, shape index: {}]
  %s9 = inlined_call_operand.vmem [shape: f32[256,128], index: 9, kind: output, shape index: {}]
  %s10 = sld [smem:[#allocation0]]
  $region69: #{net_forward.1} parent=0
    _
  %s12 = ssub.s32 1, %s10
  %s13 = scalar_select 0, %s12, %s10
  loop: start=0, step=1, limit=4
  $region2: #{net_forward.1} parent=0 // loop_pre_header
    _
  $region3: #{net_forward.1} parent=0 // loop_header
    %s15 = sphi 0, %s19
    %p16 = scmp.ge.s32.totalorder %s15, 4
    %s25 = sphi 0, %s27
    %s28 = sphi 0, %s25
    %s29 = sphi 0, %s28
    %s45 = sphi 0, %s29
    %s49 = sphi 0, %s49
    %s51 = sphi 0, %s49
    %s52 = sphi 0, %s51
    %s66 = sphi 0, %s52
    %s70 = sphi 0, %s70
    %s72 = sphi 0, %s70
    %s73 = sphi 0, %s72
    %s87 = sphi 0, %s73
    %s91 = sphi 0, %s91
    %s93 = sphi 0, %s91
    %s94 = sphi 0, %s93
    %s108 = sphi 0, %s94
    %s112 = sphi 0, %s112
    %s114 = sphi 0, %s112
    %s115 = sphi 0, %s114
    %s129 = sphi 0, %s115
    %s133 = sphi 0, %s133
    %s135 = sphi 0, %s133
    %s136 = sphi 0, %s135
    %s150 = sphi 0, %s136
    %s154 = sphi 0, %s154
    %s156 = sphi 0, %s154
    %s157 = sphi 0, %s156
    %s171 = sphi 0, %s157
    %s175 = sphi 0, %s175
    %s177 = sphi 0, %s175
    %s178 = sphi 0, %s177
    %s192 = sphi 0, %s178
    %s196 = sphi 0, %s196
    %s198 = sphi 0, %s196
    %s199 = sphi 0, %s198
    %s213 = sphi 0, %s199
    %s219 = sphi 0, %s221
    %s222 = sphi 0, %s219
    %s223 = sphi 0, %s222
    %s239 = sphi 0, %s223
  $region4: #{net_forward.1} parent=0 // loop_header_branch
    %18 = sbr.rel (%p16) target = $region8
  $region5: #{net_forward.1} parent=0 // loop_body
    %s20 = ssub.s32 %s15, 1
    %s21 = ssub.s32 %s15, 2
    %s22 = sadd.s32 %s15, 1
    %s23 = ssub.s32 %s15, %s22
    %p24 = scmp.eq.s32.totalorder %s23, 0
    %s26 = sadd.s32 %s25, 1
    %s27 = scalar_select %p24, %s25, %s26
    %p30 = pneg %p24
    %p31 = scmp.eq.s32.totalorder %s15, 1
    %p32 = por %p30, %p31
    %p33 = scmp.ne.s32.totalorder %s25, %s28
    %p34 = scmp.eq.s32.totalorder %s15, 0
    %p35 = por %p33, %p34
    %p36 = scmp.ne.s32.totalorder %s25, %s28
    %p37 = scmp.eq.s32.totalorder %s20, 1
    %p38 = por %p36, %p37
    %p39 = scmp.ne.s32.totalorder %s28, %s29
    %p40 = scmp.eq.s32.totalorder %s20, 0
    %p41 = por %p39, %p40
    %p42 = scmp.ne.s32.totalorder %s28, %s29
    %p43 = scmp.eq.s32.totalorder %s21, 1
    %p44 = por %p42, %p43
    %p46 = scmp.ne.s32.totalorder %s29, %s45
    %p47 = scmp.eq.s32.totalorder %s21, 0
    %p48 = por %p46, %p47
    %s50 = sadd.s32 %s49, 1
    %p53 = scmp.eq.s32.totalorder %s15, 1
    %p54 = scmp.ne.s32.totalorder %s49, %s51
    %p55 = scmp.eq.s32.totalorder %s15, 0
    %p56 = por %p54, %p55
    %p57 = scmp.ne.s32.totalorder %s49, %s51
    %p58 = scmp.eq.s32.totalorder %s20, 1
    %p59 = por %p57, %p58
    %p60 = scmp.ne.s32.totalorder %s51, %s52
    %p61 = scmp.eq.s32.totalorder %s20, 0
    %p62 = por %p60, %p61
    %p63 = scmp.ne.s32.totalorder %s51, %s52
    %p64 = scmp.eq.s32.totalorder %s21, 1
    %p65 = por %p63, %p64
    %p67 = scmp.ne.s32.totalorder %s52, %s66
    %p68 = scmp.eq.s32.totalorder %s21, 0
    %p69 = por %p67, %p68
    %s71 = sadd.s32 %s70, 1
    %p74 = scmp.eq.s32.totalorder %s15, 1
    %p75 = scmp.ne.s32.totalorder %s70, %s72
    %p76 = scmp.eq.s32.totalorder %s15, 0
    %p77 = por %p75, %p76
    %p78 = scmp.ne.s32.totalorder %s70, %s72
    %p79 = scmp.eq.s32.totalorder %s20, 1
    %p80 = por %p78, %p79
    %p81 = scmp.ne.s32.totalorder %s72, %s73
    %p82 = scmp.eq.s32.totalorder %s20, 0
    %p83 = por %p81, %p82
    %p84 = scmp.ne.s32.totalorder %s72, %s73
    %p85 = scmp.eq.s32.totalorder %s21, 1
    %p86 = por %p84, %p85
    %p88 = scmp.ne.s32.totalorder %s73, %s87
    %p89 = scmp.eq.s32.totalorder %s21, 0
    %p90 = por %p88, %p89
    %s92 = sadd.s32 %s91, 1
    %p95 = scmp.eq.s32.totalorder %s15, 1
    %p96 = scmp.ne.s32.totalorder %s91, %s93
    %p97 = scmp.eq.s32.totalorder %s15, 0
    %p98 = por %p96, %p97
    %p99 = scmp.ne.s32.totalorder %s91, %s93
    %p100 = scmp.eq.s32.totalorder %s20, 1
    %p101 = por %p99, %p100
    %p102 = scmp.ne.s32.totalorder %s93, %s94
    %p103 = scmp.eq.s32.totalorder %s20, 0
    %p104 = por %p102, %p103
    %p105 = scmp.ne.s32.totalorder %s93, %s94
    %p106 = scmp.eq.s32.totalorder %s21, 1
    %p107 = por %p105, %p106
    %p109 = scmp.ne.s32.totalorder %s94, %s108
    %p110 = scmp.eq.s32.totalorder %s21, 0
    %p111 = por %p109, %p110
    %s113 = sadd.s32 %s112, 1
    %p116 = scmp.eq.s32.totalorder %s15, 1
    %p117 = scmp.ne.s32.totalorder %s112, %s114
    %p118 = scmp.eq.s32.totalorder %s15, 0
    %p119 = por %p117, %p118
    %p120 = scmp.ne.s32.totalorder %s112, %s114
    %p121 = scmp.eq.s32.totalorder %s20, 1
    %p122 = por %p120, %p121
    %p123 = scmp.ne.s32.totalorder %s114, %s115
    %p124 = scmp.eq.s32.totalorder %s20, 0
    %p125 = por %p123, %p124
    %p126 = scmp.ne.s32.totalorder %s114, %s115
    %p127 = scmp.eq.s32.totalorder %s21, 1
    %p128 = por %p126, %p127
    %p130 = scmp.ne.s32.totalorder %s115, %s129
    %p131 = scmp.eq.s32.totalorder %s21, 0
    %p132 = por %p130, %p131
    %s134 = sadd.s32 %s133, 1
    %p137 = scmp.eq.s32.totalorder %s15, 1
    %p138 = scmp.ne.s32.totalorder %s133, %s135
    %p139 = scmp.eq.s32.totalorder %s15, 0
    %p140 = por %p138, %p139
    %p141 = scmp.ne.s32.totalorder %s133, %s135
    %p142 = scmp.eq.s32.totalorder %s20, 1
    %p143 = por %p141, %p142
    %p144 = scmp.ne.s32.totalorder %s135, %s136
    %p145 = scmp.eq.s32.totalorder %s20, 0
    %p146 = por %p144, %p145
    %p147 = scmp.ne.s32.totalorder %s135, %s136
    %p148 = scmp.eq.s32.totalorder %s21, 1
    %p149 = por %p147, %p148
    %p151 = scmp.ne.s32.totalorder %s136, %s150
    %p152 = scmp.eq.s32.totalorder %s21, 0
    %p153 = por %p151, %p152
    %s155 = sadd.s32 %s154, 1
    %p158 = scmp.eq.s32.totalorder %s15, 1
    %p159 = scmp.ne.s32.totalorder %s154, %s156
    %p160 = scmp.eq.s32.totalorder %s15, 0
    %p161 = por %p159, %p160
    %p162 = scmp.ne.s32.totalorder %s154, %s156
    %p163 = scmp.eq.s32.totalorder %s20, 1
    %p164 = por %p162, %p163
    %p165 = scmp.ne.s32.totalorder %s156, %s157
    %p166 = scmp.eq.s32.totalorder %s20, 0
    %p167 = por %p165, %p166
    %p168 = scmp.ne.s32.totalorder %s156, %s157
    %p169 = scmp.eq.s32.totalorder %s21, 1
    %p170 = por %p168, %p169
    %p172 = scmp.ne.s32.totalorder %s157, %s171
    %p173 = scmp.eq.s32.totalorder %s21, 0
    %p174 = por %p172, %p173
    %s176 = sadd.s32 %s175, 1
    %p179 = scmp.eq.s32.totalorder %s15, 1
    %p180 = scmp.ne.s32.totalorder %s175, %s177
    %p181 = scmp.eq.s32.totalorder %s15, 0
    %p182 = por %p180, %p181
    %p183 = scmp.ne.s32.totalorder %s175, %s177
    %p184 = scmp.eq.s32.totalorder %s20, 1
    %p185 = por %p183, %p184
    %p186 = scmp.ne.s32.totalorder %s177, %s178
    %p187 = scmp.eq.s32.totalorder %s20, 0
    %p188 = por %p186, %p187
    %p189 = scmp.ne.s32.totalorder %s177, %s178
    %p190 = scmp.eq.s32.totalorder %s21, 1
    %p191 = por %p189, %p190
    %p193 = scmp.ne.s32.totalorder %s178, %s192
    %p194 = scmp.eq.s32.totalorder %s21, 0
    %p195 = por %p193, %p194
    %s197 = sadd.s32 %s196, 1
    %p200 = scmp.eq.s32.totalorder %s15, 1
    %p201 = scmp.ne.s32.totalorder %s196, %s198
    %p202 = scmp.eq.s32.totalorder %s15, 0
    %p203 = por %p201, %p202
    %p204 = scmp.ne.s32.totalorder %s196, %s198
    %p205 = scmp.eq.s32.totalorder %s20, 1
    %p206 = por %p204, %p205
    %p207 = scmp.ne.s32.totalorder %s198, %s199
    %p208 = scmp.eq.s32.totalorder %s20, 0
    %p209 = por %p207, %p208
    %p210 = scmp.ne.s32.totalorder %s198, %s199
    %p211 = scmp.eq.s32.totalorder %s21, 1
    %p212 = por %p210, %p211
    %p214 = scmp.ne.s32.totalorder %s199, %s213
    %p215 = scmp.eq.s32.totalorder %s21, 0
    %p216 = por %p214, %p215
    %s217 = ssub.s32 %s15, %s22
    %p218 = scmp.eq.s32.totalorder %s217, 0
    %s220 = sadd.s32 %s219, 1
    %s221 = scalar_select %p218, %s219, %s220
    %p224 = pneg %p218
    %p225 = scmp.eq.s32.totalorder %s15, 1
    %p226 = por %p224, %p225
    %p227 = scmp.ne.s32.totalorder %s219, %s222
    %p228 = scmp.eq.s32.totalorder %s15, 0
    %p229 = por %p227, %p228
    %p230 = scmp.ne.s32.totalorder %s219, %s222
    %p231 = scmp.eq.s32.totalorder %s20, 1
    %p232 = por %p230, %p231
    %p233 = scmp.ne.s32.totalorder %s222, %s223
    %p234 = scmp.eq.s32.totalorder %s20, 0
    %p235 = por %p233, %p234
    %p236 = scmp.ne.s32.totalorder %s222, %s223
    %p237 = scmp.eq.s32.totalorder %s21, 1
    %p238 = por %p236, %p237
    %p240 = scmp.ne.s32.totalorder %s223, %s239
    %p241 = scmp.eq.s32.totalorder %s21, 0
    %p242 = por %p240, %p241
    %p243 = scmp.le.s32.totalorder 1, %s15
    %p244 = scmp.lt.s32.totalorder %s15, 3
    %p245 = pnand %p243, %p244
    %p246 = pneg %p245
    // Predicated region
    $region9: #{net_forward.1} parent=5 // pred_check
      _
    $region10: #{net_forward.1} parent=5 // pred_check_branch
      %248 = sbr.rel (%p245) target = $region12
    $region11: #{net_forward.1} parent=5 // pred_region
      %s249 = ssub.s32 %s15, 1
      // Predicated region
      $region13: #{net_forward.1} parent=11 // pred_check
        %p250 = pneg %p62
      $region14: #{net_forward.1} parent=11 // pred_check_branch
        %252 = sbr.rel (%p250) target = $region16
      $region15: #{net_forward.1} parent=11 // pred_region
        _
      $region16: #{net_forward.1} parent=11 // pred_fallthru
        _
      // Predicated region
      $region17: #{net_forward.1} parent=11 // pred_check
        %p253 = pneg %p83
      $region18: #{net_forward.1} parent=11 // pred_check_branch
        %255 = sbr.rel (%p253) target = $region20
      $region19: #{net_forward.1} parent=11 // pred_region
        _
      $region20: #{net_forward.1} parent=11 // pred_fallthru
        _
      // Predicated region
      $region21: #{net_forward.1} parent=11 // pred_check
        %p256 = pneg %p104
      $region22: #{net_forward.1} parent=11 // pred_check_branch
        %258 = sbr.rel (%p256) target = $region24
      $region23: #{net_forward.1} parent=11 // pred_region
        _
      $region24: #{net_forward.1} parent=11 // pred_fallthru
        _
      // Predicated region
      $region25: #{net_forward.1} parent=11 // pred_check
        %p259 = pneg %p125
      $region26: #{net_forward.1} parent=11 // pred_check_branch
        %261 = sbr.rel (%p259) target = $region28
      $region27: #{net_forward.1} parent=11 // pred_region
        _
      $region28: #{net_forward.1} parent=11 // pred_fallthru
        _
      // Predicated region
      $region29: #{net_forward.1} parent=11 // pred_check
        %p262 = pneg %p146
      $region30: #{net_forward.1} parent=11 // pred_check_branch
        %264 = sbr.rel (%p262) target = $region32
      $region31: #{net_forward.1} parent=11 // pred_region
        _
      $region32: #{net_forward.1} parent=11 // pred_fallthru
        _
      // Predicated region
      $region33: #{net_forward.1} parent=11 // pred_check
        %p265 = pneg %p167
      $region34: #{net_forward.1} parent=11 // pred_check_branch
        %267 = sbr.rel (%p265) target = $region36
      $region35: #{net_forward.1} parent=11 // pred_region
        _
      $region36: #{net_forward.1} parent=11 // pred_fallthru
        _
      // Predicated region
      $region37: #{net_forward.1} parent=11 // pred_check
        %p268 = pneg %p188
      $region38: #{net_forward.1} parent=11 // pred_check_branch
        %270 = sbr.rel (%p268) target = $region40
      $region39: #{net_forward.1} parent=11 // pred_region
        _
      $region40: #{net_forward.1} parent=11 // pred_fallthru
        _
      // Predicated region
      $region41: #{net_forward.1} parent=11 // pred_check
        %p271 = pneg %p209
      $region42: #{net_forward.1} parent=11 // pred_check_branch
        %273 = sbr.rel (%p271) target = $region44
      $region43: #{net_forward.1} parent=11 // pred_region
        _
      $region44: #{net_forward.1} parent=11 // pred_fallthru
        _
    $region12: #{net_forward.1} parent=5 // pred_fallthru
      _
    %p274 = scmp.lt.s32.totalorder %s15, 2
    // Predicated region
    $region45: #{net_forward.1} parent=5 // pred_check
      %p275 = pneg %p274
    $region46: #{net_forward.1} parent=5 // pred_check_branch
      %277 = sbr.rel (%p275) target = $region48
    $region47: #{net_forward.1} parent=5 // pred_region
      // Predicated region
      $region49: #{net_forward.1} parent=47 // pred_check
        %p278 = pneg %p35
      $region50: #{net_forward.1} parent=47 // pred_check_branch
        %280 = sbr.rel (%p278) target = $region52
      $region51: #{net_forward.1} parent=47 // pred_region
        %s281 = smul.u32 16, %s15
        %p282 = scmp.lt.s32.totalorder %s281, 31
        %s283 = scalar_select %p282, %s281, 31
        %s284 = smul.addr %s283, 5
        %s285 = smul.addr %s284, 4
        %s286 = scalar_lea.vmem %s0, %s285
        %s287 = smul.u32 16, %s15
      $region52: #{net_forward.1} parent=47 // pred_fallthru
        _
    $region48: #{net_forward.1} parent=5 // pred_fallthru
      _
    %p288 = scmp.le.s32.totalorder 1, %s15
    %p289 = scmp.lt.s32.totalorder %s15, 3
    %p290 = pnand %p288, %p289
    %p291 = pneg %p290
    // Predicated region
    $region53: #{net_forward.1} parent=5 // pred_check
      _
    $region54: #{net_forward.1} parent=5 // pred_check_branch
      %293 = sbr.rel (%p290) target = $region56
    $region55: #{net_forward.1} parent=5 // pred_region
      %s294 = ssub.s32 %s15, 1
      %s295 = smul.u32 16, %s20
      %p296 = scmp.lt.s32.totalorder %s295, 31
      %s297 = scalar_select %p296, %s295, 31
      %s298 = smul.addr %s297, 5
      %s299 = smul.addr %s298, 4
      %s300 = scalar_lea.vmem %s0, %s299
      %p301 = pneg %p41
      %p302 = pneg %p38
      %p303 = pneg %p62
      %p304 = pneg %p59
      %p305 = pneg %p83
      %p306 = pneg %p80
      %p307 = pneg %p104
      %p308 = pneg %p101
      %p309 = pneg %p125
      %p310 = pneg %p122
      %p311 = pneg %p146
      %p312 = pneg %p143
      %p313 = pneg %p167
      %p314 = pneg %p164
      %p315 = pneg %p188
      %p316 = pneg %p185
      %p317 = pneg %p209
      %p318 = pneg %p206
      %p319 = pneg %p235
      %p320 = pneg %p232
      %s321 = smul.u32 16, %s20
      %p322 = scmp.lt.s32.totalorder %s321, 31
      %s323 = scalar_select %p322, %s321, 31
      %s324 = smul.addr %s323, 8
      %s325 = scalar_lea.vmem %s9, %s324
      %s326 = smul.u32 16, %s20
      %p327 = scmp.lt.s32.totalorder %s326, 31
      %s328 = scalar_select %p327, %s326, 31
      %s329 = smul.addr %s328, 5
      %s330 = smul.addr %s329, 4
      %s331 = scalar_lea.vmem %s0, %s330
      %s332 = smul.u32 16, %s20
      %s333 = smul.u32 16, %s20
      %p334 = scmp.lt.s32.totalorder %s333, 31
      %s335 = scalar_select %p334, %s333, 31
      %s336 = smul.addr %s335, 8
      %s337 = scalar_lea.vmem %s9, %s336
      %s338 = smul.u32 16, %s20
      %v340 = vld [vmem:[%s331] sm:$0xff]
      %v341 = vld [vmem:[%s331 + $0x8] sm:$0xff]
      %v342 = vld [vmem:[%s331 + $0x10] sm:$0xf]
      %v343 = vld [vmem:[%s331 + $0x14] sm:$0xff]
      %v344 = vld [vmem:[%s331 + $0x1c] sm:$0xff]
      %v345 = vld [vmem:[%s331 + $0x24] sm:$0xf]
      %v346 = vld [vmem:[%s331 + $0x28] sm:$0xff]
      %v347 = vld [vmem:[%s331 + $0x30] sm:$0xff]
      %v348 = vld [vmem:[%s331 + $0x38] sm:$0xf]
      %v349 = vld [vmem:[%s331 + $0x3c] sm:$0xff]
      %v350 = vld [vmem:[%s331 + $0x44] sm:$0xff]
      %v351 = vld [vmem:[%s331 + $0x4c] sm:$0xf]
      %v352 = vld [vmem:[%s331 + $0x50] sm:$0xff]
      %v353 = vld [vmem:[%s331 + $0x58] sm:$0xff]
      %v354 = vld [vmem:[%s331 + $0x60] sm:$0xf]
      %v355 = vld [vmem:[%s331 + $0x64] sm:$0xff]
      %v356 = vld [vmem:[%s331 + $0x6c] sm:$0xff]
      %v357 = vld [vmem:[%s331 + $0x74] sm:$0xf]
      %v358 = vld [vmem:[%s331 + $0x78] sm:$0xff]
      %v359 = vld [vmem:[%s331 + $0x80] sm:$0xff]
      %v360 = vld [vmem:[%s331 + $0x88] sm:$0xf]
      %v361 = vld [vmem:[%s331 + $0x8c] sm:$0xff]
      %v362 = vld [vmem:[%s331 + $0x94] sm:$0xff]
      %v363 = vld [vmem:[%s331 + $0x9c] sm:$0xf]
      %v364 = vld [vmem:[%s331 + $0xa0] sm:$0xff]
      %v365 = vld [vmem:[%s331 + $0xa8] sm:$0xff]
      %v366 = vld [vmem:[%s331 + $0xb0] sm:$0xf]
      %v367 = vld [vmem:[%s331 + $0xb4] sm:$0xff]
      %v368 = vld [vmem:[%s331 + $0xbc] sm:$0xff]
      %v369 = vld [vmem:[%s331 + $0xc4] sm:$0xf]
      %v370 = vld [vmem:[%s331 + $0xc8] sm:$0xff]
      %v371 = vld [vmem:[%s331 + $0xd0] sm:$0xff]
      %v372 = vld [vmem:[%s331 + $0xd8] sm:$0xf]
      %v373 = vld [vmem:[%s331 + $0xdc] sm:$0xff]
      %v374 = vld [vmem:[%s331 + $0xe4] sm:$0xff]
      %v375 = vld [vmem:[%s331 + $0xec] sm:$0xf]
      %v376 = vld [vmem:[%s331 + $0xf0] sm:$0xff]
      %v377 = vld [vmem:[%s331 + $0xf8] sm:$0xff]
      %v378 = vld [vmem:[%s331 + $0x100] sm:$0xf]
      %v379 = vld [vmem:[%s331 + $0x104] sm:$0xff]
      %v380 = vld [vmem:[%s331 + $0x10c] sm:$0xff]
      %v381 = vld [vmem:[%s331 + $0x114] sm:$0xf]
      %v382 = vld [vmem:[%s331 + $0x118] sm:$0xff]
      %v383 = vld [vmem:[%s331 + $0x120] sm:$0xff]
      %v384 = vld [vmem:[%s331 + $0x128] sm:$0xf]
      %v385 = vld [vmem:[%s331 + $0x12c] sm:$0xff]
      %v386 = vld [vmem:[%s331 + $0x134] sm:$0xff]
      %v387 = vld [vmem:[%s331 + $0x13c] sm:$0xf]
      %v388 = vld [vmem:[%s1] sm:$0xff]
      %v389 = vld [vmem:[%s1 + $0x8] sm:$0xff]
      %v390 = vld [vmem:[%s1 + $0x10] sm:$0xff]
      %v391 = vld [vmem:[%s1 + $0x18] sm:$0xff]
      %v392 = vld [vmem:[%s1 + $0x20] sm:$0xff]
      %v393 = vld [vmem:[%s1 + $0x28] sm:$0xff]
      %v394 = vld [vmem:[%s1 + $0x30] sm:$0xff]
      %v395 = vld [vmem:[%s1 + $0x38] sm:$0xff]
      %v396 = vld [vmem:[%s1 + $0x40] sm:$0xff]
      %v397 = vld [vmem:[%s1 + $0x48] sm:$0xff]
      %v398 = vld [vmem:[%s1 + $0x50] sm:$0xff]
      %v399 = vld [vmem:[%s1 + $0x58] sm:$0xff]
      %v400 = vld [vmem:[%s1 + $0x60] sm:$0xff]
      %v401 = vld [vmem:[%s1 + $0x68] sm:$0xff]
      %v402 = vld [vmem:[%s1 + $0x70] sm:$0xff]
      %v403 = vld [vmem:[%s1 + $0x78] sm:$0xff]
      %v404 = vld [vmem:[%s1 + $0x80] sm:$0xff]
      %v405 = vld [vmem:[%s1 + $0x88] sm:$0xff]
      %v406 = vld [vmem:[%s1 + $0x90] sm:$0xff]
      %v407 = vld [vmem:[%s1 + $0x98] sm:$0xff]
      %v408 = vld [vmem:[%s1 + $0xa0] sm:$0xff]
      %v409 = vld [vmem:[%s1 + $0xa8] sm:$0xff]
      %v410 = vld [vmem:[%s1 + $0xb0] sm:$0xff]
      %v411 = vld [vmem:[%s1 + $0xb8] sm:$0xff]
      %v412 = vld [vmem:[%s1 + $0xc0] sm:$0xff]
      %v413 = vld [vmem:[%s1 + $0xc8] sm:$0xff]
      %v414 = vld [vmem:[%s1 + $0xd0] sm:$0xff]
      %v415 = vld [vmem:[%s1 + $0xd8] sm:$0xff]
      %v416 = vld [vmem:[%s1 + $0xe0] sm:$0xff]
      %v417 = vld [vmem:[%s1 + $0xe8] sm:$0xff]
      %v418 = vld [vmem:[%s1 + $0xf0] sm:$0xff]
      %v419 = vld [vmem:[%s1 + $0xf8] sm:$0xff]
      %v420 = vld [vmem:[%s1 + $0x100] sm:$0xff]
      %v421 = vld [vmem:[%s1 + $0x108] sm:$0xff]
      %v422 = vld [vmem:[%s1 + $0x110] sm:$0xff]
      %v423 = vld [vmem:[%s1 + $0x118] sm:$0xff]
      %v424 = vld [vmem:[%s1 + $0x120] sm:$0xff]
      %v425 = vld [vmem:[%s1 + $0x128] sm:$0xff]
      %v426 = vld [vmem:[%s1 + $0x130] sm:$0xff]
      %v427 = vld [vmem:[%s1 + $0x138] sm:$0xff]
      %v428 = vld [vmem:[%s1 + $0x140] sm:$0xff]
      %v429 = vld [vmem:[%s1 + $0x148] sm:$0xff]
      %v430 = vld [vmem:[%s1 + $0x150] sm:$0xff]
      %v431 = vld [vmem:[%s1 + $0x158] sm:$0xff]
      %v432 = vld [vmem:[%s1 + $0x160] sm:$0xff]
      %v433 = vld [vmem:[%s1 + $0x168] sm:$0xff]
      %v434 = vld [vmem:[%s1 + $0x170] sm:$0xff]
      %v435 = vld [vmem:[%s1 + $0x178] sm:$0xff]
      %v436 = vld [vmem:[%s1 + $0x180] sm:$0xff]
      %v437 = vld [vmem:[%s1 + $0x188] sm:$0xff]
      %v438 = vld [vmem:[%s1 + $0x190] sm:$0xff]
      %v439 = vld [vmem:[%s1 + $0x198] sm:$0xff]
      %v440 = vld [vmem:[%s1 + $0x1a0] sm:$0xff]
      %v441 = vld [vmem:[%s1 + $0x1a8] sm:$0xff]
      %v442 = vld [vmem:[%s1 + $0x1b0] sm:$0xff]
      %v443 = vld [vmem:[%s1 + $0x1b8] sm:$0xff]
      %v444 = vld [vmem:[%s1 + $0x1c0] sm:$0xff]
      %v445 = vld [vmem:[%s1 + $0x1c8] sm:$0xff]
      %v446 = vld [vmem:[%s1 + $0x1d0] sm:$0xff]
      %v447 = vld [vmem:[%s1 + $0x1d8] sm:$0xff]
      %v448 = vld [vmem:[%s1 + $0x1e0] sm:$0xff]
      %v449 = vld [vmem:[%s1 + $0x1e8] sm:$0xff]
      %v450 = vld [vmem:[%s1 + $0x1f0] sm:$0xff]
      %v451 = vld [vmem:[%s1 + $0x1f8] sm:$0xff]
      %v452 = vld [vmem:[%s1 + $0x200] sm:$0xff]
      %v453 = vld [vmem:[%s1 + $0x208] sm:$0xff]
      %v454 = vld [vmem:[%s1 + $0x210] sm:$0xff]
      %v455 = vld [vmem:[%s1 + $0x218] sm:$0xff]
      %v456 = vld [vmem:[%s1 + $0x220] sm:$0xff]
      %v457 = vld [vmem:[%s1 + $0x228] sm:$0xff]
      %v458 = vld [vmem:[%s1 + $0x230] sm:$0xff]
      %v459 = vld [vmem:[%s1 + $0x238] sm:$0xff]
      %v460 = vld [vmem:[%s1 + $0x240] sm:$0xff]
      %v461 = vld [vmem:[%s1 + $0x248] sm:$0xff]
      %v462 = vld [vmem:[%s1 + $0x250] sm:$0xff]
      %v463 = vld [vmem:[%s1 + $0x258] sm:$0xff]
      %v464 = vld [vmem:[%s1 + $0x260] sm:$0xff]
      %v465 = vld [vmem:[%s1 + $0x268] sm:$0xff]
      %v466 = vld [vmem:[%s1 + $0x270] sm:$0xff]
      %v467 = vld [vmem:[%s1 + $0x278] sm:$0xff]
      %v468 = vld [vmem:[%s1 + $0x280] sm:$0xff]
      %v469 = vld [vmem:[%s1 + $0x288] sm:$0xff]
      %v470 = vld [vmem:[%s1 + $0x290] sm:$0xff]
      %v471 = vld [vmem:[%s1 + $0x298] sm:$0xff]
      %v472 = vld [vmem:[%s1 + $0x2a0] sm:$0xff]
      %v473 = vld [vmem:[%s1 + $0x2a8] sm:$0xff]
      %v474 = vld [vmem:[%s1 + $0x2b0] sm:$0xff]
      %v475 = vld [vmem:[%s1 + $0x2b8] sm:$0xff]
      %v476 = vld [vmem:[%s1 + $0x2c0] sm:$0xff]
      %v477 = vld [vmem:[%s1 + $0x2c8] sm:$0xff]
      %v478 = vld [vmem:[%s1 + $0x2d0] sm:$0xff]
      %v479 = vld [vmem:[%s1 + $0x2d8] sm:$0xff]
      %v480 = vld [vmem:[%s1 + $0x2e0] sm:$0xff]
      %v481 = vld [vmem:[%s1 + $0x2e8] sm:$0xff]
      %v482 = vld [vmem:[%s1 + $0x2f0] sm:$0xff]
      %v483 = vld [vmem:[%s1 + $0x2f8] sm:$0xff]
      %v484 = vld [vmem:[%s1 + $0x300] sm:$0xff]
      %v485 = vld [vmem:[%s1 + $0x308] sm:$0xff]
      %v486 = vld [vmem:[%s1 + $0x310] sm:$0xff]
      %v487 = vld [vmem:[%s1 + $0x318] sm:$0xff]
      %v488 = vld [vmem:[%s1 + $0x320] sm:$0xff]
      %v489 = vld [vmem:[%s1 + $0x328] sm:$0xff]
      %v490 = vld [vmem:[%s1 + $0x330] sm:$0xff]
      %v491 = vld [vmem:[%s1 + $0x338] sm:$0xff]
      %v492 = vld [vmem:[%s1 + $0x340] sm:$0xff]
      %v493 = vld [vmem:[%s1 + $0x348] sm:$0xff]
      %v494 = vld [vmem:[%s1 + $0x350] sm:$0xff]
      %v495 = vld [vmem:[%s1 + $0x358] sm:$0xff]
      %v496 = vld [vmem:[%s1 + $0x360] sm:$0xff]
      %v497 = vld [vmem:[%s1 + $0x368] sm:$0xff]
      %v498 = vld [vmem:[%s1 + $0x370] sm:$0xff]
      %v499 = vld [vmem:[%s1 + $0x378] sm:$0xff]
      %v500 = vld [vmem:[%s1 + $0x380] sm:$0xff]
      %v501 = vld [vmem:[%s1 + $0x388] sm:$0xff]
      %v502 = vld [vmem:[%s1 + $0x390] sm:$0xff]
      %v503 = vld [vmem:[%s1 + $0x398] sm:$0xff]
      %v504 = vld [vmem:[%s1 + $0x3a0] sm:$0xff]
      %v505 = vld [vmem:[%s1 + $0x3a8] sm:$0xff]
      %v506 = vld [vmem:[%s1 + $0x3b0] sm:$0xff]
      %v507 = vld [vmem:[%s1 + $0x3b8] sm:$0xff]
      %v508 = vld [vmem:[%s1 + $0x3c0] sm:$0xff]
      %v509 = vld [vmem:[%s1 + $0x3c8] sm:$0xff]
      %v510 = vld [vmem:[%s1 + $0x3d0] sm:$0xff]
      %v511 = vld [vmem:[%s1 + $0x3d8] sm:$0xff]
      %v512 = vld [vmem:[%s1 + $0x3e0] sm:$0xff]
      %v513 = vld [vmem:[%s1 + $0x3e8] sm:$0xff]
      %v514 = vld [vmem:[%s1 + $0x3f0] sm:$0xff]
      %v515 = vld [vmem:[%s1 + $0x3f8] sm:$0xff]
      %v516 = vld [vmem:[%s1 + $0x400] sm:$0xff]
      %v517 = vld [vmem:[%s1 + $0x408] sm:$0xff]
      %v518 = vld [vmem:[%s1 + $0x410] sm:$0xff]
      %v519 = vld [vmem:[%s1 + $0x418] sm:$0xff]
      %v520 = vld [vmem:[%s1 + $0x420] sm:$0xff]
      %v521 = vld [vmem:[%s1 + $0x428] sm:$0xff]
      %v522 = vld [vmem:[%s1 + $0x430] sm:$0xff]
      %v523 = vld [vmem:[%s1 + $0x438] sm:$0xff]
      %v524 = vld [vmem:[%s1 + $0x440] sm:$0xff]
      %v525 = vld [vmem:[%s1 + $0x448] sm:$0xff]
      %v526 = vld [vmem:[%s1 + $0x450] sm:$0xff]
      %v527 = vld [vmem:[%s1 + $0x458] sm:$0xff]
      %v528 = vld [vmem:[%s1 + $0x460] sm:$0xff]
      %v529 = vld [vmem:[%s1 + $0x468] sm:$0xff]
      %v530 = vld [vmem:[%s1 + $0x470] sm:$0xff]
      %v531 = vld [vmem:[%s1 + $0x478] sm:$0xff]
      %v532 = vld [vmem:[%s1 + $0x480] sm:$0xff]
      %v533 = vld [vmem:[%s1 + $0x488] sm:$0xff]
      %v534 = vld [vmem:[%s1 + $0x490] sm:$0xff]
      %v535 = vld [vmem:[%s1 + $0x498] sm:$0xff]
      %v536 = vld [vmem:[%s1 + $0x4a0] sm:$0xff]
      %v537 = vld [vmem:[%s1 + $0x4a8] sm:$0xff]
      %v538 = vld [vmem:[%s1 + $0x4b0] sm:$0xff]
      %v539 = vld [vmem:[%s1 + $0x4b8] sm:$0xff]
      %v540 = vld [vmem:[%s1 + $0x4c0] sm:$0xff]
      %v541 = vld [vmem:[%s1 + $0x4c8] sm:$0xff]
      %v542 = vld [vmem:[%s1 + $0x4d0] sm:$0xff]
      %v543 = vld [vmem:[%s1 + $0x4d8] sm:$0xff]
      %v544 = vld [vmem:[%s1 + $0x4e0] sm:$0xff]
      %v545 = vld [vmem:[%s1 + $0x4e8] sm:$0xff]
      %v546 = vld [vmem:[%s1 + $0x4f0] sm:$0xff]
      %v547 = vld [vmem:[%s1 + $0x4f8] sm:$0xff]
      %v548 = vld [vmem:[%s1 + $0x500] sm:$0xff]
      %v549 = vld [vmem:[%s1 + $0x508] sm:$0xff]
      %v550 = vld [vmem:[%s1 + $0x510] sm:$0xff]
      %v551 = vld [vmem:[%s1 + $0x518] sm:$0xff]
      %v552 = vld [vmem:[%s1 + $0x520] sm:$0xff]
      %v553 = vld [vmem:[%s1 + $0x528] sm:$0xff]
      %v554 = vld [vmem:[%s1 + $0x530] sm:$0xff]
      %v555 = vld [vmem:[%s1 + $0x538] sm:$0xff]
      %v556 = vld [vmem:[%s1 + $0x540] sm:$0xff]
      %v557 = vld [vmem:[%s1 + $0x548] sm:$0xff]
      %v558 = vld [vmem:[%s1 + $0x550] sm:$0xff]
      %v559 = vld [vmem:[%s1 + $0x558] sm:$0xff]
      %v560 = vld [vmem:[%s1 + $0x560] sm:$0xff]
      %v561 = vld [vmem:[%s1 + $0x568] sm:$0xff]
      %v562 = vld [vmem:[%s1 + $0x570] sm:$0xff]
      %v563 = vld [vmem:[%s1 + $0x578] sm:$0xff]
      %v564 = vld [vmem:[%s1 + $0x580] sm:$0xff]
      %v565 = vld [vmem:[%s1 + $0x588] sm:$0xff]
      %v566 = vld [vmem:[%s1 + $0x590] sm:$0xff]
      %v567 = vld [vmem:[%s1 + $0x598] sm:$0xff]
      %v568 = vld [vmem:[%s1 + $0x5a0] sm:$0xff]
      %v569 = vld [vmem:[%s1 + $0x5a8] sm:$0xff]
      %v570 = vld [vmem:[%s1 + $0x5b0] sm:$0xff]
      %v571 = vld [vmem:[%s1 + $0x5b8] sm:$0xff]
      %v572 = vld [vmem:[%s1 + $0x5c0] sm:$0xff]
      %v573 = vld [vmem:[%s1 + $0x5c8] sm:$0xff]
      %v574 = vld [vmem:[%s1 + $0x5d0] sm:$0xff]
      %v575 = vld [vmem:[%s1 + $0x5d8] sm:$0xff]
      %v576 = vld [vmem:[%s1 + $0x5e0] sm:$0xff]
      %v577 = vld [vmem:[%s1 + $0x5e8] sm:$0xff]
      %v578 = vld [vmem:[%s1 + $0x5f0] sm:$0xff]
      %v579 = vld [vmem:[%s1 + $0x5f8] sm:$0xff]
      %v580 = vld [vmem:[%s1 + $0x600] sm:$0xff]
      %v581 = vld [vmem:[%s1 + $0x608] sm:$0xff]
      %v582 = vld [vmem:[%s1 + $0x610] sm:$0xff]
      %v583 = vld [vmem:[%s1 + $0x618] sm:$0xff]
      %v584 = vld [vmem:[%s1 + $0x620] sm:$0xff]
      %v585 = vld [vmem:[%s1 + $0x628] sm:$0xff]
      %v586 = vld [vmem:[%s1 + $0x630] sm:$0xff]
      %v587 = vld [vmem:[%s1 + $0x638] sm:$0xff]
      %v588 = vld [vmem:[%s1 + $0x640] sm:$0xff]
      %v589 = vld [vmem:[%s1 + $0x648] sm:$0xff]
      %v590 = vld [vmem:[%s1 + $0x650] sm:$0xff]
      %v591 = vld [vmem:[%s1 + $0x658] sm:$0xff]
      %v592 = vld [vmem:[%s1 + $0x660] sm:$0xff]
      %v593 = vld [vmem:[%s1 + $0x668] sm:$0xff]
      %v594 = vld [vmem:[%s1 + $0x670] sm:$0xff]
      %v595 = vld [vmem:[%s1 + $0x678] sm:$0xff]
      %v596 = vld [vmem:[%s1 + $0x680] sm:$0xff]
      %v597 = vld [vmem:[%s1 + $0x688] sm:$0xff]
      %v598 = vld [vmem:[%s1 + $0x690] sm:$0xff]
      %v599 = vld [vmem:[%s1 + $0x698] sm:$0xff]
      %v600 = vld [vmem:[%s1 + $0x6a0] sm:$0xff]
      %v601 = vld [vmem:[%s1 + $0x6a8] sm:$0xff]
      %v602 = vld [vmem:[%s1 + $0x6b0] sm:$0xff]
      %v603 = vld [vmem:[%s1 + $0x6b8] sm:$0xff]
      %v604 = vld [vmem:[%s1 + $0x6c0] sm:$0xff]
      %v605 = vld [vmem:[%s1 + $0x6c8] sm:$0xff]
      %v606 = vld [vmem:[%s1 + $0x6d0] sm:$0xff]
      %v607 = vld [vmem:[%s1 + $0x6d8] sm:$0xff]
      %v608 = vld [vmem:[%s1 + $0x6e0] sm:$0xff]
      %v609 = vld [vmem:[%s1 + $0x6e8] sm:$0xff]
      %v610 = vld [vmem:[%s1 + $0x6f0] sm:$0xff]
      %v611 = vld [vmem:[%s1 + $0x6f8] sm:$0xff]
      %v612 = vld [vmem:[%s1 + $0x700] sm:$0xff]
      %v613 = vld [vmem:[%s1 + $0x708] sm:$0xff]
      %v614 = vld [vmem:[%s1 + $0x710] sm:$0xff]
      %v615 = vld [vmem:[%s1 + $0x718] sm:$0xff]
      %v616 = vld [vmem:[%s1 + $0x720] sm:$0xff]
      %v617 = vld [vmem:[%s1 + $0x728] sm:$0xff]
      %v618 = vld [vmem:[%s1 + $0x730] sm:$0xff]
      %v619 = vld [vmem:[%s1 + $0x738] sm:$0xff]
      %v620 = vld [vmem:[%s1 + $0x740] sm:$0xff]
      %v621 = vld [vmem:[%s1 + $0x748] sm:$0xff]
      %v622 = vld [vmem:[%s1 + $0x750] sm:$0xff]
      %v623 = vld [vmem:[%s1 + $0x758] sm:$0xff]
      %v624 = vld [vmem:[%s1 + $0x760] sm:$0xff]
      %v625 = vld [vmem:[%s1 + $0x768] sm:$0xff]
      %v626 = vld [vmem:[%s1 + $0x770] sm:$0xff]
      %v627 = vld [vmem:[%s1 + $0x778] sm:$0xff]
      %v628 = vld [vmem:[%s1 + $0x780] sm:$0xff]
      %v629 = vld [vmem:[%s1 + $0x788] sm:$0xff]
      %v630 = vld [vmem:[%s1 + $0x790] sm:$0xff]
      %v631 = vld [vmem:[%s1 + $0x798] sm:$0xff]
      %v632 = vld [vmem:[%s1 + $0x7a0] sm:$0xff]
      %v633 = vld [vmem:[%s1 + $0x7a8] sm:$0xff]
      %v634 = vld [vmem:[%s1 + $0x7b0] sm:$0xff]
      %v635 = vld [vmem:[%s1 + $0x7b8] sm:$0xff]
      %v636 = vld [vmem:[%s1 + $0x7c0] sm:$0xff]
      %v637 = vld [vmem:[%s1 + $0x7c8] sm:$0xff]
      %v638 = vld [vmem:[%s1 + $0x7d0] sm:$0xff]
      %v639 = vld [vmem:[%s1 + $0x7d8] sm:$0xff]
      %v640 = vld [vmem:[%s1 + $0x7e0] sm:$0xff]
      %v641 = vld [vmem:[%s1 + $0x7e8] sm:$0xff]
      %v642 = vld [vmem:[%s1 + $0x7f0] sm:$0xff]
      %v643 = vld [vmem:[%s1 + $0x7f8] sm:$0xff]
      %v644 = vld [vmem:[%s1 + $0x800] sm:$0xff]
      %v645 = vld [vmem:[%s1 + $0x808] sm:$0xff]
      %v646 = vld [vmem:[%s1 + $0x810] sm:$0xff]
      %v647 = vld [vmem:[%s1 + $0x818] sm:$0xff]
      %v648 = vld [vmem:[%s1 + $0x820] sm:$0xff]
      %v649 = vld [vmem:[%s1 + $0x828] sm:$0xff]
      %v650 = vld [vmem:[%s1 + $0x830] sm:$0xff]
      %v651 = vld [vmem:[%s1 + $0x838] sm:$0xff]
      %v652 = vld [vmem:[%s1 + $0x840] sm:$0xff]
      %v653 = vld [vmem:[%s1 + $0x848] sm:$0xff]
      %v654 = vld [vmem:[%s1 + $0x850] sm:$0xff]
      %v655 = vld [vmem:[%s1 + $0x858] sm:$0xff]
      %v656 = vld [vmem:[%s1 + $0x860] sm:$0xff]
      %v657 = vld [vmem:[%s1 + $0x868] sm:$0xff]
      %v658 = vld [vmem:[%s1 + $0x870] sm:$0xff]
      %v659 = vld [vmem:[%s1 + $0x878] sm:$0xff]
      %v660 = vld [vmem:[%s1 + $0x880] sm:$0xff]
      %v661 = vld [vmem:[%s1 + $0x888] sm:$0xff]
      %v662 = vld [vmem:[%s1 + $0x890] sm:$0xff]
      %v663 = vld [vmem:[%s1 + $0x898] sm:$0xff]
      %v664 = vld [vmem:[%s1 + $0x8a0] sm:$0xff]
      %v665 = vld [vmem:[%s1 + $0x8a8] sm:$0xff]
      %v666 = vld [vmem:[%s1 + $0x8b0] sm:$0xff]
      %v667 = vld [vmem:[%s1 + $0x8b8] sm:$0xff]
      %v668 = vld [vmem:[%s1 + $0x8c0] sm:$0xff]
      %v669 = vld [vmem:[%s1 + $0x8c8] sm:$0xff]
      %v670 = vld [vmem:[%s1 + $0x8d0] sm:$0xff]
      %v671 = vld [vmem:[%s1 + $0x8d8] sm:$0xff]
      %v672 = vld [vmem:[%s1 + $0x8e0] sm:$0xff]
      %v673 = vld [vmem:[%s1 + $0x8e8] sm:$0xff]
      %v674 = vld [vmem:[%s1 + $0x8f0] sm:$0xff]
      %v675 = vld [vmem:[%s1 + $0x8f8] sm:$0xff]
      %v676 = vld [vmem:[%s1 + $0x900] sm:$0xff]
      %v677 = vld [vmem:[%s1 + $0x908] sm:$0xff]
      %v678 = vld [vmem:[%s1 + $0x910] sm:$0xff]
      %v679 = vld [vmem:[%s1 + $0x918] sm:$0xff]
      %v680 = vld [vmem:[%s1 + $0x920] sm:$0xff]
      %v681 = vld [vmem:[%s1 + $0x928] sm:$0xff]
      %v682 = vld [vmem:[%s1 + $0x930] sm:$0xff]
      %v683 = vld [vmem:[%s1 + $0x938] sm:$0xff]
      %v684 = vld [vmem:[%s1 + $0x940] sm:$0xff]
      %v685 = vld [vmem:[%s1 + $0x948] sm:$0xff]
      %v686 = vld [vmem:[%s1 + $0x950] sm:$0xff]
      %v687 = vld [vmem:[%s1 + $0x958] sm:$0xff]
      %v688 = vld [vmem:[%s1 + $0x960] sm:$0xff]
      %v689 = vld [vmem:[%s1 + $0x968] sm:$0xff]
      %v690 = vld [vmem:[%s1 + $0x970] sm:$0xff]
      %v691 = vld [vmem:[%s1 + $0x978] sm:$0xff]
      %v692 = vld [vmem:[%s1 + $0x980] sm:$0xff]
      %v693 = vld [vmem:[%s1 + $0x988] sm:$0xff]
      %v694 = vld [vmem:[%s1 + $0x990] sm:$0xff]
      %v695 = vld [vmem:[%s1 + $0x998] sm:$0xff]
      %v696 = vld [vmem:[%s1 + $0x9a0] sm:$0xff]
      %v697 = vld [vmem:[%s1 + $0x9a8] sm:$0xff]
      %v698 = vld [vmem:[%s1 + $0x9b0] sm:$0xff]
      %v699 = vld [vmem:[%s1 + $0x9b8] sm:$0xff]
      %v700 = vld [vmem:[%s1 + $0x9c0] sm:$0xff]
      %v701 = vld [vmem:[%s1 + $0x9c8] sm:$0xff]
      %v702 = vld [vmem:[%s1 + $0x9d0] sm:$0xff]
      %v703 = vld [vmem:[%s1 + $0x9d8] sm:$0xff]
      %v704 = vld [vmem:[%s1 + $0x9e0] sm:$0xff]
      %v705 = vld [vmem:[%s1 + $0x9e8] sm:$0xff]
      %v706 = vld [vmem:[%s1 + $0x9f0] sm:$0xff]
      %v707 = vld [vmem:[%s1 + $0x9f8] sm:$0xff]
      %v708 = vld [vmem:[%s2] sm:$0xff]
      %v710 = vlaneseq
      %v711 = vshrl.u32 %v710, 7
      %v712 = vsub.s32 0, %v711
      %v713 = vrot.slane %v708, %v712
      %v714 = vlaneseq
      %v715 = vshrl.u32 %v714, 7
      %v716 = vsub.s32 1, %v715
      %v717 = vrot.slane %v708, %v716
      %v718 = vlaneseq
      %v719 = vshrl.u32 %v718, 7
      %v720 = vsub.s32 2, %v719
      %v721 = vrot.slane %v708, %v720
      %v722 = vlaneseq
      %v723 = vshrl.u32 %v722, 7
      %v724 = vsub.s32 3, %v723
      %v725 = vrot.slane %v708, %v724
      %v726 = vlaneseq
      %v727 = vshrl.u32 %v726, 7
      %v728 = vsub.s32 4, %v727
      %v729 = vrot.slane %v708, %v728
      %v730 = vlaneseq
      %v731 = vshrl.u32 %v730, 7
      %v732 = vsub.s32 5, %v731
      %v733 = vrot.slane %v708, %v732
      %v734 = vlaneseq
      %v735 = vshrl.u32 %v734, 7
      %v736 = vsub.s32 6, %v735
      %v737 = vrot.slane %v708, %v736
      %v738 = vlaneseq
      %v739 = vshrl.u32 %v738, 7
      %v740 = vsub.s32 7, %v739
      %v741 = vrot.slane %v708, %v740
      %v798 = vunpack.c.l.b16 %v340
      %v799 = vunpack.c.h.b16 %v340
      %v800 = vunpack.c.l.b16 %v341
      %v801 = vunpack.c.h.b16 %v341
      %v802 = vunpack.c.l.b16 %v342
      %v803 = vunpack.c.l.b16 %v343
      %v804 = vunpack.c.h.b16 %v343
      %v805 = vunpack.c.l.b16 %v344
      %v806 = vunpack.c.h.b16 %v344
      %v807 = vunpack.c.l.b16 %v345
      %v808 = vunpack.c.l.b16 %v346
      %v809 = vunpack.c.h.b16 %v346
      %v810 = vunpack.c.l.b16 %v347
      %v811 = vunpack.c.h.b16 %v347
      %v812 = vunpack.c.l.b16 %v348
      %v813 = vunpack.c.l.b16 %v349
      %v814 = vunpack.c.h.b16 %v349
      %v815 = vunpack.c.l.b16 %v350
      %v816 = vunpack.c.h.b16 %v350
      %v817 = vunpack.c.l.b16 %v351
      %v818 = vunpack.c.l.b16 %v352
      %v819 = vunpack.c.h.b16 %v352
      %v820 = vunpack.c.l.b16 %v353
      %v821 = vunpack.c.h.b16 %v353
      %v822 = vunpack.c.l.b16 %v354
      %v823 = vunpack.c.l.b16 %v355
      %v824 = vunpack.c.h.b16 %v355
      %v825 = vunpack.c.l.b16 %v356
      %v826 = vunpack.c.h.b16 %v356
      %v827 = vunpack.c.l.b16 %v357
      %v828 = vunpack.c.l.b16 %v358
      %v829 = vunpack.c.h.b16 %v358
      %v830 = vunpack.c.l.b16 %v359
      %v831 = vunpack.c.h.b16 %v359
      %v832 = vunpack.c.l.b16 %v360
      %v833 = vunpack.c.l.b16 %v361
      %v834 = vunpack.c.h.b16 %v361
      %v835 = vunpack.c.l.b16 %v362
      %v836 = vunpack.c.h.b16 %v362
      %v837 = vunpack.c.l.b16 %v363
      %v838 = vunpack.c.l.b16 %v364
      %v839 = vunpack.c.h.b16 %v364
      %v840 = vunpack.c.l.b16 %v365
      %v841 = vunpack.c.h.b16 %v365
      %v842 = vunpack.c.l.b16 %v366
      %v843 = vunpack.c.l.b16 %v367
      %v844 = vunpack.c.h.b16 %v367
      %v845 = vunpack.c.l.b16 %v368
      %v846 = vunpack.c.h.b16 %v368
      %v847 = vunpack.c.l.b16 %v369
      %v848 = vunpack.c.l.b16 %v370
      %v849 = vunpack.c.h.b16 %v370
      %v850 = vunpack.c.l.b16 %v371
      %v851 = vunpack.c.h.b16 %v371
      %v852 = vunpack.c.l.b16 %v372
      %v853 = vunpack.c.l.b16 %v373
      %v854 = vunpack.c.h.b16 %v373
      %v855 = vunpack.c.l.b16 %v374
      %v856 = vunpack.c.h.b16 %v374
      %v857 = vunpack.c.l.b16 %v375
      %v858 = vunpack.c.l.b16 %v376
      %v859 = vunpack.c.h.b16 %v376
      %v860 = vunpack.c.l.b16 %v377
      %v861 = vunpack.c.h.b16 %v377
      %v862 = vunpack.c.l.b16 %v378
      %v863 = vunpack.c.l.b16 %v379
      %v864 = vunpack.c.h.b16 %v379
      %v865 = vunpack.c.l.b16 %v380
      %v866 = vunpack.c.h.b16 %v380
      %v867 = vunpack.c.l.b16 %v381
      %v868 = vunpack.c.l.b16 %v382
      %v869 = vunpack.c.h.b16 %v382
      %v870 = vunpack.c.l.b16 %v383
      %v871 = vunpack.c.h.b16 %v383
      %v872 = vunpack.c.l.b16 %v384
      %v873 = vunpack.c.l.b16 %v385
      %v874 = vunpack.c.h.b16 %v385
      %v875 = vunpack.c.l.b16 %v386
      %v876 = vunpack.c.h.b16 %v386
      %v877 = vunpack.c.l.b16 %v387
      %v878 = vpack.c.b16 %v803, %v798
      %v879 = vpack.c.b16 %v804, %v799
      %v880 = vpack.c.b16 %v805, %v800
      %v881 = vpack.c.b16 %v806, %v801
      %v882 = vpack.c.b16 %v807, %v802
      %v883 = vpack.c.b16 %v813, %v808
      %v884 = vpack.c.b16 %v814, %v809
      %v885 = vpack.c.b16 %v815, %v810
      %v886 = vpack.c.b16 %v816, %v811
      %v887 = vpack.c.b16 %v817, %v812
      %v888 = vpack.c.b16 %v823, %v818
      %v889 = vpack.c.b16 %v824, %v819
      %v890 = vpack.c.b16 %v825, %v820
      %v891 = vpack.c.b16 %v826, %v821
      %v892 = vpack.c.b16 %v827, %v822
      %v893 = vpack.c.b16 %v833, %v828
      %v894 = vpack.c.b16 %v834, %v829
      %v895 = vpack.c.b16 %v835, %v830
      %v896 = vpack.c.b16 %v836, %v831
      %v897 = vpack.c.b16 %v837, %v832
      %v898 = vpack.c.b16 %v843, %v838
      %v899 = vpack.c.b16 %v844, %v839
      %v900 = vpack.c.b16 %v845, %v840
      %v901 = vpack.c.b16 %v846, %v841
      %v902 = vpack.c.b16 %v847, %v842
      %v903 = vpack.c.b16 %v853, %v848
      %v904 = vpack.c.b16 %v854, %v849
      %v905 = vpack.c.b16 %v855, %v850
      %v906 = vpack.c.b16 %v856, %v851
      %v907 = vpack.c.b16 %v857, %v852
      %v908 = vpack.c.b16 %v863, %v858
      %v909 = vpack.c.b16 %v864, %v859
      %v910 = vpack.c.b16 %v865, %v860
      %v911 = vpack.c.b16 %v866, %v861
      %v912 = vpack.c.b16 %v867, %v862
      %v913 = vpack.c.b16 %v873, %v868
      %v914 = vpack.c.b16 %v874, %v869
      %v915 = vpack.c.b16 %v875, %v870
      %v916 = vpack.c.b16 %v876, %v871
      %v917 = vpack.c.b16 %v877, %v872
      %v1278 = vunpack.c.l.b16 %v388
      %v1279 = vunpack.c.h.b16 %v388
      %v1280 = vunpack.c.l.b16 %v389
      %v1281 = vunpack.c.h.b16 %v389
      %v1282 = vunpack.c.l.b16 %v390
      %v1283 = vunpack.c.h.b16 %v390
      %v1284 = vunpack.c.l.b16 %v391
      %v1285 = vunpack.c.h.b16 %v391
      %v1286 = vunpack.c.l.b16 %v392
      %v1287 = vunpack.c.h.b16 %v392
      %v1288 = vunpack.c.l.b16 %v393
      %v1289 = vunpack.c.h.b16 %v393
      %v1290 = vunpack.c.l.b16 %v394
      %v1291 = vunpack.c.h.b16 %v394
      %v1292 = vunpack.c.l.b16 %v395
      %v1293 = vunpack.c.h.b16 %v395
      %v1294 = vunpack.c.l.b16 %v396
      %v1295 = vunpack.c.h.b16 %v396
      %v1296 = vunpack.c.l.b16 %v397
      %v1297 = vunpack.c.h.b16 %v397
      %v1298 = vunpack.c.l.b16 %v398
      %v1299 = vunpack.c.h.b16 %v398
      %v1300 = vunpack.c.l.b16 %v399
      %v1301 = vunpack.c.h.b16 %v399
      %v1302 = vunpack.c.l.b16 %v400
      %v1303 = vunpack.c.h.b16 %v400
      %v1304 = vunpack.c.l.b16 %v401
      %v1305 = vunpack.c.h.b16 %v401
      %v1306 = vunpack.c.l.b16 %v402
      %v1307 = vunpack.c.h.b16 %v402
      %v1308 = vunpack.c.l.b16 %v403
      %v1309 = vunpack.c.h.b16 %v403
      %v1310 = vunpack.c.l.b16 %v404
      %v1311 = vunpack.c.h.b16 %v404
      %v1312 = vunpack.c.l.b16 %v405
      %v1313 = vunpack.c.h.b16 %v405
      %v1314 = vunpack.c.l.b16 %v406
      %v1315 = vunpack.c.h.b16 %v406
      %v1316 = vunpack.c.l.b16 %v407
      %v1317 = vunpack.c.h.b16 %v407
      %v1318 = vunpack.c.l.b16 %v408
      %v1319 = vunpack.c.h.b16 %v408
      %v1320 = vunpack.c.l.b16 %v409
      %v1321 = vunpack.c.h.b16 %v409
      %v1322 = vunpack.c.l.b16 %v410
      %v1323 = vunpack.c.h.b16 %v410
      %v1324 = vunpack.c.l.b16 %v411
      %v1325 = vunpack.c.h.b16 %v411
      %v1326 = vunpack.c.l.b16 %v412
      %v1327 = vunpack.c.h.b16 %v412
      %v1328 = vunpack.c.l.b16 %v413
      %v1329 = vunpack.c.h.b16 %v413
      %v1330 = vunpack.c.l.b16 %v414
      %v1331 = vunpack.c.h.b16 %v414
      %v1332 = vunpack.c.l.b16 %v415
      %v1333 = vunpack.c.h.b16 %v415
      %v1334 = vunpack.c.l.b16 %v416
      %v1335 = vunpack.c.h.b16 %v416
      %v1336 = vunpack.c.l.b16 %v417
      %v1337 = vunpack.c.h.b16 %v417
      %v1338 = vunpack.c.l.b16 %v418
      %v1339 = vunpack.c.h.b16 %v418
      %v1340 = vunpack.c.l.b16 %v419
      %v1341 = vunpack.c.h.b16 %v419
      %v1342 = vunpack.c.l.b16 %v420
      %v1343 = vunpack.c.h.b16 %v420
      %v1344 = vunpack.c.l.b16 %v421
      %v1345 = vunpack.c.h.b16 %v421
      %v1346 = vunpack.c.l.b16 %v422
      %v1347 = vunpack.c.h.b16 %v422
      %v1348 = vunpack.c.l.b16 %v423
      %v1349 = vunpack.c.h.b16 %v423
      %v1350 = vunpack.c.l.b16 %v424
      %v1351 = vunpack.c.h.b16 %v424
      %v1352 = vunpack.c.l.b16 %v425
      %v1353 = vunpack.c.h.b16 %v425
      %v1354 = vunpack.c.l.b16 %v426
      %v1355 = vunpack.c.h.b16 %v426
      %v1356 = vunpack.c.l.b16 %v427
      %v1357 = vunpack.c.h.b16 %v427
      %v1358 = vunpack.c.l.b16 %v428
      %v1359 = vunpack.c.h.b16 %v428
      %v1360 = vunpack.c.l.b16 %v429
      %v1361 = vunpack.c.h.b16 %v429
      %v1362 = vunpack.c.l.b16 %v430
      %v1363 = vunpack.c.h.b16 %v430
      %v1364 = vunpack.c.l.b16 %v431
      %v1365 = vunpack.c.h.b16 %v431
      %v1366 = vunpack.c.l.b16 %v432
      %v1367 = vunpack.c.h.b16 %v432
      %v1368 = vunpack.c.l.b16 %v433
      %v1369 = vunpack.c.h.b16 %v433
      %v1370 = vunpack.c.l.b16 %v434
      %v1371 = vunpack.c.h.b16 %v434
      %v1372 = vunpack.c.l.b16 %v435
      %v1373 = vunpack.c.h.b16 %v435
      %v1374 = vunpack.c.l.b16 %v436
      %v1375 = vunpack.c.h.b16 %v436
      %v1376 = vunpack.c.l.b16 %v437
      %v1377 = vunpack.c.h.b16 %v437
      %v1378 = vunpack.c.l.b16 %v438
      %v1379 = vunpack.c.h.b16 %v438
      %v1380 = vunpack.c.l.b16 %v439
      %v1381 = vunpack.c.h.b16 %v439
      %v1382 = vunpack.c.l.b16 %v440
      %v1383 = vunpack.c.h.b16 %v440
      %v1384 = vunpack.c.l.b16 %v441
      %v1385 = vunpack.c.h.b16 %v441
      %v1386 = vunpack.c.l.b16 %v442
      %v1387 = vunpack.c.h.b16 %v442
      %v1388 = vunpack.c.l.b16 %v443
      %v1389 = vunpack.c.h.b16 %v443
      %v1390 = vunpack.c.l.b16 %v444
      %v1391 = vunpack.c.h.b16 %v444
      %v1392 = vunpack.c.l.b16 %v445
      %v1393 = vunpack.c.h.b16 %v445
      %v1394 = vunpack.c.l.b16 %v446
      %v1395 = vunpack.c.h.b16 %v446
      %v1396 = vunpack.c.l.b16 %v447
      %v1397 = vunpack.c.h.b16 %v447
      %v1398 = vunpack.c.l.b16 %v448
      %v1399 = vunpack.c.h.b16 %v448
      %v1400 = vunpack.c.l.b16 %v449
      %v1401 = vunpack.c.h.b16 %v449
      %v1402 = vunpack.c.l.b16 %v450
      %v1403 = vunpack.c.h.b16 %v450
      %v1404 = vunpack.c.l.b16 %v451
      %v1405 = vunpack.c.h.b16 %v451
      %v1406 = vunpack.c.l.b16 %v452
      %v1407 = vunpack.c.h.b16 %v452
      %v1408 = vunpack.c.l.b16 %v453
      %v1409 = vunpack.c.h.b16 %v453
      %v1410 = vunpack.c.l.b16 %v454
      %v1411 = vunpack.c.h.b16 %v454
      %v1412 = vunpack.c.l.b16 %v455
      %v1413 = vunpack.c.h.b16 %v455
      %v1414 = vunpack.c.l.b16 %v456
      %v1415 = vunpack.c.h.b16 %v456
      %v1416 = vunpack.c.l.b16 %v457
      %v1417 = vunpack.c.h.b16 %v457
      %v1418 = vunpack.c.l.b16 %v458
      %v1419 = vunpack.c.h.b16 %v458
      %v1420 = vunpack.c.l.b16 %v459
      %v1421 = vunpack.c.h.b16 %v459
      %v1422 = vunpack.c.l.b16 %v460
      %v1423 = vunpack.c.h.b16 %v460
      %v1424 = vunpack.c.l.b16 %v461
      %v1425 = vunpack.c.h.b16 %v461
      %v1426 = vunpack.c.l.b16 %v462
      %v1427 = vunpack.c.h.b16 %v462
      %v1428 = vunpack.c.l.b16 %v463
      %v1429 = vunpack.c.h.b16 %v463
      %v1430 = vunpack.c.l.b16 %v464
      %v1431 = vunpack.c.h.b16 %v464
      %v1432 = vunpack.c.l.b16 %v465
      %v1433 = vunpack.c.h.b16 %v465
      %v1434 = vunpack.c.l.b16 %v466
      %v1435 = vunpack.c.h.b16 %v466
      %v1436 = vunpack.c.l.b16 %v467
      %v1437 = vunpack.c.h.b16 %v467
      %v1438 = vunpack.c.l.b16 %v468
      %v1439 = vunpack.c.h.b16 %v468
      %v1440 = vunpack.c.l.b16 %v469
      %v1441 = vunpack.c.h.b16 %v469
      %v1442 = vunpack.c.l.b16 %v470
      %v1443 = vunpack.c.h.b16 %v470
      %v1444 = vunpack.c.l.b16 %v471
      %v1445 = vunpack.c.h.b16 %v471
      %v1446 = vunpack.c.l.b16 %v472
      %v1447 = vunpack.c.h.b16 %v472
      %v1448 = vunpack.c.l.b16 %v473
      %v1449 = vunpack.c.h.b16 %v473
      %v1450 = vunpack.c.l.b16 %v474
      %v1451 = vunpack.c.h.b16 %v474
      %v1452 = vunpack.c.l.b16 %v475
      %v1453 = vunpack.c.h.b16 %v475
      %v1454 = vunpack.c.l.b16 %v476
      %v1455 = vunpack.c.h.b16 %v476
      %v1456 = vunpack.c.l.b16 %v477
      %v1457 = vunpack.c.h.b16 %v477
      %v1458 = vunpack.c.l.b16 %v478
      %v1459 = vunpack.c.h.b16 %v478
      %v1460 = vunpack.c.l.b16 %v479
      %v1461 = vunpack.c.h.b16 %v479
      %v1462 = vunpack.c.l.b16 %v480
      %v1463 = vunpack.c.h.b16 %v480
      %v1464 = vunpack.c.l.b16 %v481
      %v1465 = vunpack.c.h.b16 %v481
      %v1466 = vunpack.c.l.b16 %v482
      %v1467 = vunpack.c.h.b16 %v482
      %v1468 = vunpack.c.l.b16 %v483
      %v1469 = vunpack.c.h.b16 %v483
      %v1470 = vunpack.c.l.b16 %v484
      %v1471 = vunpack.c.h.b16 %v484
      %v1472 = vunpack.c.l.b16 %v485
      %v1473 = vunpack.c.h.b16 %v485
      %v1474 = vunpack.c.l.b16 %v486
      %v1475 = vunpack.c.h.b16 %v486
      %v1476 = vunpack.c.l.b16 %v487
      %v1477 = vunpack.c.h.b16 %v487
      %v1478 = vunpack.c.l.b16 %v488
      %v1479 = vunpack.c.h.b16 %v488
      %v1480 = vunpack.c.l.b16 %v489
      %v1481 = vunpack.c.h.b16 %v489
      %v1482 = vunpack.c.l.b16 %v490
      %v1483 = vunpack.c.h.b16 %v490
      %v1484 = vunpack.c.l.b16 %v491
      %v1485 = vunpack.c.h.b16 %v491
      %v1486 = vunpack.c.l.b16 %v492
      %v1487 = vunpack.c.h.b16 %v492
      %v1488 = vunpack.c.l.b16 %v493
      %v1489 = vunpack.c.h.b16 %v493
      %v1490 = vunpack.c.l.b16 %v494
      %v1491 = vunpack.c.h.b16 %v494
      %v1492 = vunpack.c.l.b16 %v495
      %v1493 = vunpack.c.h.b16 %v495
      %v1494 = vunpack.c.l.b16 %v496
      %v1495 = vunpack.c.h.b16 %v496
      %v1496 = vunpack.c.l.b16 %v497
      %v1497 = vunpack.c.h.b16 %v497
      %v1498 = vunpack.c.l.b16 %v498
      %v1499 = vunpack.c.h.b16 %v498
      %v1500 = vunpack.c.l.b16 %v499
      %v1501 = vunpack.c.h.b16 %v499
      %v1502 = vunpack.c.l.b16 %v500
      %v1503 = vunpack.c.h.b16 %v500
      %v1504 = vunpack.c.l.b16 %v501
      %v1505 = vunpack.c.h.b16 %v501
      %v1506 = vunpack.c.l.b16 %v502
      %v1507 = vunpack.c.h.b16 %v502
      %v1508 = vunpack.c.l.b16 %v503
      %v1509 = vunpack.c.h.b16 %v503
      %v1510 = vunpack.c.l.b16 %v504
      %v1511 = vunpack.c.h.b16 %v504
      %v1512 = vunpack.c.l.b16 %v505
      %v1513 = vunpack.c.h.b16 %v505
      %v1514 = vunpack.c.l.b16 %v506
      %v1515 = vunpack.c.h.b16 %v506
      %v1516 = vunpack.c.l.b16 %v507
      %v1517 = vunpack.c.h.b16 %v507
      %v1518 = vunpack.c.l.b16 %v508
      %v1519 = vunpack.c.h.b16 %v508
      %v1520 = vunpack.c.l.b16 %v509
      %v1521 = vunpack.c.h.b16 %v509
      %v1522 = vunpack.c.l.b16 %v510
      %v1523 = vunpack.c.h.b16 %v510
      %v1524 = vunpack.c.l.b16 %v511
      %v1525 = vunpack.c.h.b16 %v511
      %v1526 = vunpack.c.l.b16 %v512
      %v1527 = vunpack.c.h.b16 %v512
      %v1528 = vunpack.c.l.b16 %v513
      %v1529 = vunpack.c.h.b16 %v513
      %v1530 = vunpack.c.l.b16 %v514
      %v1531 = vunpack.c.h.b16 %v514
      %v1532 = vunpack.c.l.b16 %v515
      %v1533 = vunpack.c.h.b16 %v515
      %v1534 = vunpack.c.l.b16 %v516
      %v1535 = vunpack.c.h.b16 %v516
      %v1536 = vunpack.c.l.b16 %v517
      %v1537 = vunpack.c.h.b16 %v517
      %v1538 = vunpack.c.l.b16 %v518
      %v1539 = vunpack.c.h.b16 %v518
      %v1540 = vunpack.c.l.b16 %v519
      %v1541 = vunpack.c.h.b16 %v519
      %v1542 = vunpack.c.l.b16 %v520
      %v1543 = vunpack.c.h.b16 %v520
      %v1544 = vunpack.c.l.b16 %v521
      %v1545 = vunpack.c.h.b16 %v521
      %v1546 = vunpack.c.l.b16 %v522
      %v1547 = vunpack.c.h.b16 %v522
      %v1548 = vunpack.c.l.b16 %v523
      %v1549 = vunpack.c.h.b16 %v523
      %v1550 = vunpack.c.l.b16 %v524
      %v1551 = vunpack.c.h.b16 %v524
      %v1552 = vunpack.c.l.b16 %v525
      %v1553 = vunpack.c.h.b16 %v525
      %v1554 = vunpack.c.l.b16 %v526
      %v1555 = vunpack.c.h.b16 %v526
      %v1556 = vunpack.c.l.b16 %v527
      %v1557 = vunpack.c.h.b16 %v527
      %v1558 = vunpack.c.l.b16 %v528
      %v1559 = vunpack.c.h.b16 %v528
      %v1560 = vunpack.c.l.b16 %v529
      %v1561 = vunpack.c.h.b16 %v529
      %v1562 = vunpack.c.l.b16 %v530
      %v1563 = vunpack.c.h.b16 %v530
      %v1564 = vunpack.c.l.b16 %v531
      %v1565 = vunpack.c.h.b16 %v531
      %v1566 = vunpack.c.l.b16 %v532
      %v1567 = vunpack.c.h.b16 %v532
      %v1568 = vunpack.c.l.b16 %v533
      %v1569 = vunpack.c.h.b16 %v533
      %v1570 = vunpack.c.l.b16 %v534
      %v1571 = vunpack.c.h.b16 %v534
      %v1572 = vunpack.c.l.b16 %v535
      %v1573 = vunpack.c.h.b16 %v535
      %v1574 = vunpack.c.l.b16 %v536
      %v1575 = vunpack.c.h.b16 %v536
      %v1576 = vunpack.c.l.b16 %v537
      %v1577 = vunpack.c.h.b16 %v537
      %v1578 = vunpack.c.l.b16 %v538
      %v1579 = vunpack.c.h.b16 %v538
      %v1580 = vunpack.c.l.b16 %v539
      %v1581 = vunpack.c.h.b16 %v539
      %v1582 = vunpack.c.l.b16 %v540
      %v1583 = vunpack.c.h.b16 %v540
      %v1584 = vunpack.c.l.b16 %v541
      %v1585 = vunpack.c.h.b16 %v541
      %v1586 = vunpack.c.l.b16 %v542
      %v1587 = vunpack.c.h.b16 %v542
      %v1588 = vunpack.c.l.b16 %v543
      %v1589 = vunpack.c.h.b16 %v543
      %v1590 = vunpack.c.l.b16 %v544
      %v1591 = vunpack.c.h.b16 %v544
      %v1592 = vunpack.c.l.b16 %v545
      %v1593 = vunpack.c.h.b16 %v545
      %v1594 = vunpack.c.l.b16 %v546
      %v1595 = vunpack.c.h.b16 %v546
      %v1596 = vunpack.c.l.b16 %v547
      %v1597 = vunpack.c.h.b16 %v547
      %v1598 = vunpack.c.l.b16 %v548
      %v1599 = vunpack.c.h.b16 %v548
      %v1600 = vunpack.c.l.b16 %v549
      %v1601 = vunpack.c.h.b16 %v549
      %v1602 = vunpack.c.l.b16 %v550
      %v1603 = vunpack.c.h.b16 %v550
      %v1604 = vunpack.c.l.b16 %v551
      %v1605 = vunpack.c.h.b16 %v551
      %v1606 = vunpack.c.l.b16 %v552
      %v1607 = vunpack.c.h.b16 %v552
      %v1608 = vunpack.c.l.b16 %v553
      %v1609 = vunpack.c.h.b16 %v553
      %v1610 = vunpack.c.l.b16 %v554
      %v1611 = vunpack.c.h.b16 %v554
      %v1612 = vunpack.c.l.b16 %v555
      %v1613 = vunpack.c.h.b16 %v555
      %v1614 = vunpack.c.l.b16 %v556
      %v1615 = vunpack.c.h.b16 %v556
      %v1616 = vunpack.c.l.b16 %v557
      %v1617 = vunpack.c.h.b16 %v557
      %v1618 = vunpack.c.l.b16 %v558
      %v1619 = vunpack.c.h.b16 %v558
      %v1620 = vunpack.c.l.b16 %v559
      %v1621 = vunpack.c.h.b16 %v559
      %v1622 = vunpack.c.l.b16 %v560
      %v1623 = vunpack.c.h.b16 %v560
      %v1624 = vunpack.c.l.b16 %v561
      %v1625 = vunpack.c.h.b16 %v561
      %v1626 = vunpack.c.l.b16 %v562
      %v1627 = vunpack.c.h.b16 %v562
      %v1628 = vunpack.c.l.b16 %v563
      %v1629 = vunpack.c.h.b16 %v563
      %v1630 = vunpack.c.l.b16 %v564
      %v1631 = vunpack.c.h.b16 %v564
      %v1632 = vunpack.c.l.b16 %v565
      %v1633 = vunpack.c.h.b16 %v565
      %v1634 = vunpack.c.l.b16 %v566
      %v1635 = vunpack.c.h.b16 %v566
      %v1636 = vunpack.c.l.b16 %v567
      %v1637 = vunpack.c.h.b16 %v567
      %v1638 = vunpack.c.l.b16 %v568
      %v1639 = vunpack.c.h.b16 %v568
      %v1640 = vunpack.c.l.b16 %v569
      %v1641 = vunpack.c.h.b16 %v569
      %v1642 = vunpack.c.l.b16 %v570
      %v1643 = vunpack.c.h.b16 %v570
      %v1644 = vunpack.c.l.b16 %v571
      %v1645 = vunpack.c.h.b16 %v571
      %v1646 = vunpack.c.l.b16 %v572
      %v1647 = vunpack.c.h.b16 %v572
      %v1648 = vunpack.c.l.b16 %v573
      %v1649 = vunpack.c.h.b16 %v573
      %v1650 = vunpack.c.l.b16 %v574
      %v1651 = vunpack.c.h.b16 %v574
      %v1652 = vunpack.c.l.b16 %v575
      %v1653 = vunpack.c.h.b16 %v575
      %v1654 = vunpack.c.l.b16 %v576
      %v1655 = vunpack.c.h.b16 %v576
      %v1656 = vunpack.c.l.b16 %v577
      %v1657 = vunpack.c.h.b16 %v577
      %v1658 = vunpack.c.l.b16 %v578
      %v1659 = vunpack.c.h.b16 %v578
      %v1660 = vunpack.c.l.b16 %v579
      %v1661 = vunpack.c.h.b16 %v579
      %v1662 = vunpack.c.l.b16 %v580
      %v1663 = vunpack.c.h.b16 %v580
      %v1664 = vunpack.c.l.b16 %v581
      %v1665 = vunpack.c.h.b16 %v581
      %v1666 = vunpack.c.l.b16 %v582
      %v1667 = vunpack.c.h.b16 %v582
      %v1668 = vunpack.c.l.b16 %v583
      %v1669 = vunpack.c.h.b16 %v583
      %v1670 = vunpack.c.l.b16 %v584
      %v1671 = vunpack.c.h.b16 %v584
      %v1672 = vunpack.c.l.b16 %v585
      %v1673 = vunpack.c.h.b16 %v585
      %v1674 = vunpack.c.l.b16 %v586
      %v1675 = vunpack.c.h.b16 %v586
      %v1676 = vunpack.c.l.b16 %v587
      %v1677 = vunpack.c.h.b16 %v587
      %v1678 = vunpack.c.l.b16 %v588
      %v1679 = vunpack.c.h.b16 %v588
      %v1680 = vunpack.c.l.b16 %v589
      %v1681 = vunpack.c.h.b16 %v589
      %v1682 = vunpack.c.l.b16 %v590
      %v1683 = vunpack.c.h.b16 %v590
      %v1684 = vunpack.c.l.b16 %v591
      %v1685 = vunpack.c.h.b16 %v591
      %v1686 = vunpack.c.l.b16 %v592
      %v1687 = vunpack.c.h.b16 %v592
      %v1688 = vunpack.c.l.b16 %v593
      %v1689 = vunpack.c.h.b16 %v593
      %v1690 = vunpack.c.l.b16 %v594
      %v1691 = vunpack.c.h.b16 %v594
      %v1692 = vunpack.c.l.b16 %v595
      %v1693 = vunpack.c.h.b16 %v595
      %v1694 = vunpack.c.l.b16 %v596
      %v1695 = vunpack.c.h.b16 %v596
      %v1696 = vunpack.c.l.b16 %v597
      %v1697 = vunpack.c.h.b16 %v597
      %v1698 = vunpack.c.l.b16 %v598
      %v1699 = vunpack.c.h.b16 %v598
      %v1700 = vunpack.c.l.b16 %v599
      %v1701 = vunpack.c.h.b16 %v599
      %v1702 = vunpack.c.l.b16 %v600
      %v1703 = vunpack.c.h.b16 %v600
      %v1704 = vunpack.c.l.b16 %v601
      %v1705 = vunpack.c.h.b16 %v601
      %v1706 = vunpack.c.l.b16 %v602
      %v1707 = vunpack.c.h.b16 %v602
      %v1708 = vunpack.c.l.b16 %v603
      %v1709 = vunpack.c.h.b16 %v603
      %v1710 = vunpack.c.l.b16 %v604
      %v1711 = vunpack.c.h.b16 %v604
      %v1712 = vunpack.c.l.b16 %v605
      %v1713 = vunpack.c.h.b16 %v605
      %v1714 = vunpack.c.l.b16 %v606
      %v1715 = vunpack.c.h.b16 %v606
      %v1716 = vunpack.c.l.b16 %v607
      %v1717 = vunpack.c.h.b16 %v607
      %v1718 = vunpack.c.l.b16 %v608
      %v1719 = vunpack.c.h.b16 %v608
      %v1720 = vunpack.c.l.b16 %v609
      %v1721 = vunpack.c.h.b16 %v609
      %v1722 = vunpack.c.l.b16 %v610
      %v1723 = vunpack.c.h.b16 %v610
      %v1724 = vunpack.c.l.b16 %v611
      %v1725 = vunpack.c.h.b16 %v611
      %v1726 = vunpack.c.l.b16 %v612
      %v1727 = vunpack.c.h.b16 %v612
      %v1728 = vunpack.c.l.b16 %v613
      %v1729 = vunpack.c.h.b16 %v613
      %v1730 = vunpack.c.l.b16 %v614
      %v1731 = vunpack.c.h.b16 %v614
      %v1732 = vunpack.c.l.b16 %v615
      %v1733 = vunpack.c.h.b16 %v615
      %v1734 = vunpack.c.l.b16 %v616
      %v1735 = vunpack.c.h.b16 %v616
      %v1736 = vunpack.c.l.b16 %v617
      %v1737 = vunpack.c.h.b16 %v617
      %v1738 = vunpack.c.l.b16 %v618
      %v1739 = vunpack.c.h.b16 %v618
      %v1740 = vunpack.c.l.b16 %v619
      %v1741 = vunpack.c.h.b16 %v619
      %v1742 = vunpack.c.l.b16 %v620
      %v1743 = vunpack.c.h.b16 %v620
      %v1744 = vunpack.c.l.b16 %v621
      %v1745 = vunpack.c.h.b16 %v621
      %v1746 = vunpack.c.l.b16 %v622
      %v1747 = vunpack.c.h.b16 %v622
      %v1748 = vunpack.c.l.b16 %v623
      %v1749 = vunpack.c.h.b16 %v623
      %v1750 = vunpack.c.l.b16 %v624
      %v1751 = vunpack.c.h.b16 %v624
      %v1752 = vunpack.c.l.b16 %v625
      %v1753 = vunpack.c.h.b16 %v625
      %v1754 = vunpack.c.l.b16 %v626
      %v1755 = vunpack.c.h.b16 %v626
      %v1756 = vunpack.c.l.b16 %v627
      %v1757 = vunpack.c.h.b16 %v627
      %v1758 = vunpack.c.l.b16 %v628
      %v1759 = vunpack.c.h.b16 %v628
      %v1760 = vunpack.c.l.b16 %v629
      %v1761 = vunpack.c.h.b16 %v629
      %v1762 = vunpack.c.l.b16 %v630
      %v1763 = vunpack.c.h.b16 %v630
      %v1764 = vunpack.c.l.b16 %v631
      %v1765 = vunpack.c.h.b16 %v631
      %v1766 = vunpack.c.l.b16 %v632
      %v1767 = vunpack.c.h.b16 %v632
      %v1768 = vunpack.c.l.b16 %v633
      %v1769 = vunpack.c.h.b16 %v633
      %v1770 = vunpack.c.l.b16 %v634
      %v1771 = vunpack.c.h.b16 %v634
      %v1772 = vunpack.c.l.b16 %v635
      %v1773 = vunpack.c.h.b16 %v635
      %v1774 = vunpack.c.l.b16 %v636
      %v1775 = vunpack.c.h.b16 %v636
      %v1776 = vunpack.c.l.b16 %v637
      %v1777 = vunpack.c.h.b16 %v637
      %v1778 = vunpack.c.l.b16 %v638
      %v1779 = vunpack.c.h.b16 %v638
      %v1780 = vunpack.c.l.b16 %v639
      %v1781 = vunpack.c.h.b16 %v639
      %v1782 = vunpack.c.l.b16 %v640
      %v1783 = vunpack.c.h.b16 %v640
      %v1784 = vunpack.c.l.b16 %v641
      %v1785 = vunpack.c.h.b16 %v641
      %v1786 = vunpack.c.l.b16 %v642
      %v1787 = vunpack.c.h.b16 %v642
      %v1788 = vunpack.c.l.b16 %v643
      %v1789 = vunpack.c.h.b16 %v643
      %v1790 = vunpack.c.l.b16 %v644
      %v1791 = vunpack.c.h.b16 %v644
      %v1792 = vunpack.c.l.b16 %v645
      %v1793 = vunpack.c.h.b16 %v645
      %v1794 = vunpack.c.l.b16 %v646
      %v1795 = vunpack.c.h.b16 %v646
      %v1796 = vunpack.c.l.b16 %v647
      %v1797 = vunpack.c.h.b16 %v647
      %v1798 = vunpack.c.l.b16 %v648
      %v1799 = vunpack.c.h.b16 %v648
      %v1800 = vunpack.c.l.b16 %v649
      %v1801 = vunpack.c.h.b16 %v649
      %v1802 = vunpack.c.l.b16 %v650
      %v1803 = vunpack.c.h.b16 %v650
      %v1804 = vunpack.c.l.b16 %v651
      %v1805 = vunpack.c.h.b16 %v651
      %v1806 = vunpack.c.l.b16 %v652
      %v1807 = vunpack.c.h.b16 %v652
      %v1808 = vunpack.c.l.b16 %v653
      %v1809 = vunpack.c.h.b16 %v653
      %v1810 = vunpack.c.l.b16 %v654
      %v1811 = vunpack.c.h.b16 %v654
      %v1812 = vunpack.c.l.b16 %v655
      %v1813 = vunpack.c.h.b16 %v655
      %v1814 = vunpack.c.l.b16 %v656
      %v1815 = vunpack.c.h.b16 %v656
      %v1816 = vunpack.c.l.b16 %v657
      %v1817 = vunpack.c.h.b16 %v657
      %v1818 = vunpack.c.l.b16 %v658
      %v1819 = vunpack.c.h.b16 %v658
      %v1820 = vunpack.c.l.b16 %v659
      %v1821 = vunpack.c.h.b16 %v659
      %v1822 = vunpack.c.l.b16 %v660
      %v1823 = vunpack.c.h.b16 %v660
      %v1824 = vunpack.c.l.b16 %v661
      %v1825 = vunpack.c.h.b16 %v661
      %v1826 = vunpack.c.l.b16 %v662
      %v1827 = vunpack.c.h.b16 %v662
      %v1828 = vunpack.c.l.b16 %v663
      %v1829 = vunpack.c.h.b16 %v663
      %v1830 = vunpack.c.l.b16 %v664
      %v1831 = vunpack.c.h.b16 %v664
      %v1832 = vunpack.c.l.b16 %v665
      %v1833 = vunpack.c.h.b16 %v665
      %v1834 = vunpack.c.l.b16 %v666
      %v1835 = vunpack.c.h.b16 %v666
      %v1836 = vunpack.c.l.b16 %v667
      %v1837 = vunpack.c.h.b16 %v667
      %v1838 = vunpack.c.l.b16 %v668
      %v1839 = vunpack.c.h.b16 %v668
      %v1840 = vunpack.c.l.b16 %v669
      %v1841 = vunpack.c.h.b16 %v669
      %v1842 = vunpack.c.l.b16 %v670
      %v1843 = vunpack.c.h.b16 %v670
      %v1844 = vunpack.c.l.b16 %v671
      %v1845 = vunpack.c.h.b16 %v671
      %v1846 = vunpack.c.l.b16 %v672
      %v1847 = vunpack.c.h.b16 %v672
      %v1848 = vunpack.c.l.b16 %v673
      %v1849 = vunpack.c.h.b16 %v673
      %v1850 = vunpack.c.l.b16 %v674
      %v1851 = vunpack.c.h.b16 %v674
      %v1852 = vunpack.c.l.b16 %v675
      %v1853 = vunpack.c.h.b16 %v675
      %v1854 = vunpack.c.l.b16 %v676
      %v1855 = vunpack.c.h.b16 %v676
      %v1856 = vunpack.c.l.b16 %v677
      %v1857 = vunpack.c.h.b16 %v677
      %v1858 = vunpack.c.l.b16 %v678
      %v1859 = vunpack.c.h.b16 %v678
      %v1860 = vunpack.c.l.b16 %v679
      %v1861 = vunpack.c.h.b16 %v679
      %v1862 = vunpack.c.l.b16 %v680
      %v1863 = vunpack.c.h.b16 %v680
      %v1864 = vunpack.c.l.b16 %v681
      %v1865 = vunpack.c.h.b16 %v681
      %v1866 = vunpack.c.l.b16 %v682
      %v1867 = vunpack.c.h.b16 %v682
      %v1868 = vunpack.c.l.b16 %v683
      %v1869 = vunpack.c.h.b16 %v683
      %v1870 = vunpack.c.l.b16 %v684
      %v1871 = vunpack.c.h.b16 %v684
      %v1872 = vunpack.c.l.b16 %v685
      %v1873 = vunpack.c.h.b16 %v685
      %v1874 = vunpack.c.l.b16 %v686
      %v1875 = vunpack.c.h.b16 %v686
      %v1876 = vunpack.c.l.b16 %v687
      %v1877 = vunpack.c.h.b16 %v687
      %v1878 = vunpack.c.l.b16 %v688
      %v1879 = vunpack.c.h.b16 %v688
      %v1880 = vunpack.c.l.b16 %v689
      %v1881 = vunpack.c.h.b16 %v689
      %v1882 = vunpack.c.l.b16 %v690
      %v1883 = vunpack.c.h.b16 %v690
      %v1884 = vunpack.c.l.b16 %v691
      %v1885 = vunpack.c.h.b16 %v691
      %v1886 = vunpack.c.l.b16 %v692
      %v1887 = vunpack.c.h.b16 %v692
      %v1888 = vunpack.c.l.b16 %v693
      %v1889 = vunpack.c.h.b16 %v693
      %v1890 = vunpack.c.l.b16 %v694
      %v1891 = vunpack.c.h.b16 %v694
      %v1892 = vunpack.c.l.b16 %v695
      %v1893 = vunpack.c.h.b16 %v695
      %v1894 = vunpack.c.l.b16 %v696
      %v1895 = vunpack.c.h.b16 %v696
      %v1896 = vunpack.c.l.b16 %v697
      %v1897 = vunpack.c.h.b16 %v697
      %v1898 = vunpack.c.l.b16 %v698
      %v1899 = vunpack.c.h.b16 %v698
      %v1900 = vunpack.c.l.b16 %v699
      %v1901 = vunpack.c.h.b16 %v699
      %v1902 = vunpack.c.l.b16 %v700
      %v1903 = vunpack.c.h.b16 %v700
      %v1904 = vunpack.c.l.b16 %v701
      %v1905 = vunpack.c.h.b16 %v701
      %v1906 = vunpack.c.l.b16 %v702
      %v1907 = vunpack.c.h.b16 %v702
      %v1908 = vunpack.c.l.b16 %v703
      %v1909 = vunpack.c.h.b16 %v703
      %v1910 = vunpack.c.l.b16 %v704
      %v1911 = vunpack.c.h.b16 %v704
      %v1912 = vunpack.c.l.b16 %v705
      %v1913 = vunpack.c.h.b16 %v705
      %v1914 = vunpack.c.l.b16 %v706
      %v1915 = vunpack.c.h.b16 %v706
      %v1916 = vunpack.c.l.b16 %v707
      %v1917 = vunpack.c.h.b16 %v707
      %v1918 = vpack.c.b16 %v1286, %v1278
      %v1919 = vpack.c.b16 %v1287, %v1279
      %v1920 = vpack.c.b16 %v1288, %v1280
      %v1921 = vpack.c.b16 %v1289, %v1281
      %v1922 = vpack.c.b16 %v1290, %v1282
      %v1923 = vpack.c.b16 %v1291, %v1283
      %v1924 = vpack.c.b16 %v1292, %v1284
      %v1925 = vpack.c.b16 %v1293, %v1285
      %v1926 = vpack.c.b16 %v1302, %v1294
      %v1927 = vpack.c.b16 %v1303, %v1295
      %v1928 = vpack.c.b16 %v1304, %v1296
      %v1929 = vpack.c.b16 %v1305, %v1297
      %v1930 = vpack.c.b16 %v1306, %v1298
      %v1931 = vpack.c.b16 %v1307, %v1299
      %v1932 = vpack.c.b16 %v1308, %v1300
      %v1933 = vpack.c.b16 %v1309, %v1301
      %v1934 = vpack.c.b16 %v1318, %v1310
      %v1935 = vpack.c.b16 %v1319, %v1311
      %v1936 = vpack.c.b16 %v1320, %v1312
      %v1937 = vpack.c.b16 %v1321, %v1313
      %v1938 = vpack.c.b16 %v1322, %v1314
      %v1939 = vpack.c.b16 %v1323, %v1315
      %v1940 = vpack.c.b16 %v1324, %v1316
      %v1941 = vpack.c.b16 %v1325, %v1317
      %v1942 = vpack.c.b16 %v1334, %v1326
      %v1943 = vpack.c.b16 %v1335, %v1327
      %v1944 = vpack.c.b16 %v1336, %v1328
      %v1945 = vpack.c.b16 %v1337, %v1329
      %v1946 = vpack.c.b16 %v1338, %v1330
      %v1947 = vpack.c.b16 %v1339, %v1331
      %v1948 = vpack.c.b16 %v1340, %v1332
      %v1949 = vpack.c.b16 %v1341, %v1333
      %v1950 = vpack.c.b16 %v1350, %v1342
      %v1951 = vpack.c.b16 %v1351, %v1343
      %v1952 = vpack.c.b16 %v1352, %v1344
      %v1953 = vpack.c.b16 %v1353, %v1345
      %v1954 = vpack.c.b16 %v1354, %v1346
      %v1955 = vpack.c.b16 %v1355, %v1347
      %v1956 = vpack.c.b16 %v1356, %v1348
      %v1957 = vpack.c.b16 %v1357, %v1349
      %v1958 = vpack.c.b16 %v1366, %v1358
      %v1959 = vpack.c.b16 %v1367, %v1359
      %v1960 = vpack.c.b16 %v1368, %v1360
      %v1961 = vpack.c.b16 %v1369, %v1361
      %v1962 = vpack.c.b16 %v1370, %v1362
      %v1963 = vpack.c.b16 %v1371, %v1363
      %v1964 = vpack.c.b16 %v1372, %v1364
      %v1965 = vpack.c.b16 %v1373, %v1365
      %v1966 = vpack.c.b16 %v1382, %v1374
      %v1967 = vpack.c.b16 %v1383, %v1375
      %v1968 = vpack.c.b16 %v1384, %v1376
      %v1969 = vpack.c.b16 %v1385, %v1377
      %v1970 = vpack.c.b16 %v1386, %v1378
      %v1971 = vpack.c.b16 %v1387, %v1379
      %v1972 = vpack.c.b16 %v1388, %v1380
      %v1973 = vpack.c.b16 %v1389, %v1381
      %v1974 = vpack.c.b16 %v1398, %v1390
      %v1975 = vpack.c.b16 %v1399, %v1391
      %v1976 = vpack.c.b16 %v1400, %v1392
      %v1977 = vpack.c.b16 %v1401, %v1393
      %v1978 = vpack.c.b16 %v1402, %v1394
      %v1979 = vpack.c.b16 %v1403, %v1395
      %v1980 = vpack.c.b16 %v1404, %v1396
      %v1981 = vpack.c.b16 %v1405, %v1397
      %v1982 = vpack.c.b16 %v1414, %v1406
      %v1983 = vpack.c.b16 %v1415, %v1407
      %v1984 = vpack.c.b16 %v1416, %v1408
      %v1985 = vpack.c.b16 %v1417, %v1409
      %v1986 = vpack.c.b16 %v1418, %v1410
      %v1987 = vpack.c.b16 %v1419, %v1411
      %v1988 = vpack.c.b16 %v1420, %v1412
      %v1989 = vpack.c.b16 %v1421, %v1413
      %v1990 = vpack.c.b16 %v1430, %v1422
      %v1991 = vpack.c.b16 %v1431, %v1423
      %v1992 = vpack.c.b16 %v1432, %v1424
      %v1993 = vpack.c.b16 %v1433, %v1425
      %v1994 = vpack.c.b16 %v1434, %v1426
      %v1995 = vpack.c.b16 %v1435, %v1427
      %v1996 = vpack.c.b16 %v1436, %v1428
      %v1997 = vpack.c.b16 %v1437, %v1429
      %v1998 = vpack.c.b16 %v1446, %v1438
      %v1999 = vpack.c.b16 %v1447, %v1439
      %v2000 = vpack.c.b16 %v1448, %v1440
      %v2001 = vpack.c.b16 %v1449, %v1441
      %v2002 = vpack.c.b16 %v1450, %v1442
      %v2003 = vpack.c.b16 %v1451, %v1443
      %v2004 = vpack.c.b16 %v1452, %v1444
      %v2005 = vpack.c.b16 %v1453, %v1445
      %v2006 = vpack.c.b16 %v1462, %v1454
      %v2007 = vpack.c.b16 %v1463, %v1455
      %v2008 = vpack.c.b16 %v1464, %v1456
      %v2009 = vpack.c.b16 %v1465, %v1457
      %v2010 = vpack.c.b16 %v1466, %v1458
      %v2011 = vpack.c.b16 %v1467, %v1459
      %v2012 = vpack.c.b16 %v1468, %v1460
      %v2013 = vpack.c.b16 %v1469, %v1461
      %v2014 = vpack.c.b16 %v1478, %v1470
      %v2015 = vpack.c.b16 %v1479, %v1471
      %v2016 = vpack.c.b16 %v1480, %v1472
      %v2017 = vpack.c.b16 %v1481, %v1473
      %v2018 = vpack.c.b16 %v1482, %v1474
      %v2019 = vpack.c.b16 %v1483, %v1475
      %v2020 = vpack.c.b16 %v1484, %v1476
      %v2021 = vpack.c.b16 %v1485, %v1477
      %v2022 = vpack.c.b16 %v1494, %v1486
      %v2023 = vpack.c.b16 %v1495, %v1487
      %v2024 = vpack.c.b16 %v1496, %v1488
      %v2025 = vpack.c.b16 %v1497, %v1489
      %v2026 = vpack.c.b16 %v1498, %v1490
      %v2027 = vpack.c.b16 %v1499, %v1491
      %v2028 = vpack.c.b16 %v1500, %v1492
      %v2029 = vpack.c.b16 %v1501, %v1493
      %v2030 = vpack.c.b16 %v1510, %v1502
      %v2031 = vpack.c.b16 %v1511, %v1503
      %v2032 = vpack.c.b16 %v1512, %v1504
      %v2033 = vpack.c.b16 %v1513, %v1505
      %v2034 = vpack.c.b16 %v1514, %v1506
      %v2035 = vpack.c.b16 %v1515, %v1507
      %v2036 = vpack.c.b16 %v1516, %v1508
      %v2037 = vpack.c.b16 %v1517, %v1509
      %v2038 = vpack.c.b16 %v1526, %v1518
      %v2039 = vpack.c.b16 %v1527, %v1519
      %v2040 = vpack.c.b16 %v1528, %v1520
      %v2041 = vpack.c.b16 %v1529, %v1521
      %v2042 = vpack.c.b16 %v1530, %v1522
      %v2043 = vpack.c.b16 %v1531, %v1523
      %v2044 = vpack.c.b16 %v1532, %v1524
      %v2045 = vpack.c.b16 %v1533, %v1525
      %v2046 = vpack.c.b16 %v1542, %v1534
      %v2047 = vpack.c.b16 %v1543, %v1535
      %v2048 = vpack.c.b16 %v1544, %v1536
      %v2049 = vpack.c.b16 %v1545, %v1537
      %v2050 = vpack.c.b16 %v1546, %v1538
      %v2051 = vpack.c.b16 %v1547, %v1539
      %v2052 = vpack.c.b16 %v1548, %v1540
      %v2053 = vpack.c.b16 %v1549, %v1541
      %v2054 = vpack.c.b16 %v1558, %v1550
      %v2055 = vpack.c.b16 %v1559, %v1551
      %v2056 = vpack.c.b16 %v1560, %v1552
      %v2057 = vpack.c.b16 %v1561, %v1553
      %v2058 = vpack.c.b16 %v1562, %v1554
      %v2059 = vpack.c.b16 %v1563, %v1555
      %v2060 = vpack.c.b16 %v1564, %v1556
      %v2061 = vpack.c.b16 %v1565, %v1557
      %v2062 = vpack.c.b16 %v1574, %v1566
      %v2063 = vpack.c.b16 %v1575, %v1567
      %v2064 = vpack.c.b16 %v1576, %v1568
      %v2065 = vpack.c.b16 %v1577, %v1569
      %v2066 = vpack.c.b16 %v1578, %v1570
      %v2067 = vpack.c.b16 %v1579, %v1571
      %v2068 = vpack.c.b16 %v1580, %v1572
      %v2069 = vpack.c.b16 %v1581, %v1573
      %v2070 = vpack.c.b16 %v1590, %v1582
      %v2071 = vpack.c.b16 %v1591, %v1583
      %v2072 = vpack.c.b16 %v1592, %v1584
      %v2073 = vpack.c.b16 %v1593, %v1585
      %v2074 = vpack.c.b16 %v1594, %v1586
      %v2075 = vpack.c.b16 %v1595, %v1587
      %v2076 = vpack.c.b16 %v1596, %v1588
      %v2077 = vpack.c.b16 %v1597, %v1589
      %v2078 = vpack.c.b16 %v1606, %v1598
      %v2079 = vpack.c.b16 %v1607, %v1599
      %v2080 = vpack.c.b16 %v1608, %v1600
      %v2081 = vpack.c.b16 %v1609, %v1601
      %v2082 = vpack.c.b16 %v1610, %v1602
      %v2083 = vpack.c.b16 %v1611, %v1603
      %v2084 = vpack.c.b16 %v1612, %v1604
      %v2085 = vpack.c.b16 %v1613, %v1605
      %v2086 = vpack.c.b16 %v1622, %v1614
      %v2087 = vpack.c.b16 %v1623, %v1615
      %v2088 = vpack.c.b16 %v1624, %v1616
      %v2089 = vpack.c.b16 %v1625, %v1617
      %v2090 = vpack.c.b16 %v1626, %v1618
      %v2091 = vpack.c.b16 %v1627, %v1619
      %v2092 = vpack.c.b16 %v1628, %v1620
      %v2093 = vpack.c.b16 %v1629, %v1621
      %v2094 = vpack.c.b16 %v1638, %v1630
      %v2095 = vpack.c.b16 %v1639, %v1631
      %v2096 = vpack.c.b16 %v1640, %v1632
      %v2097 = vpack.c.b16 %v1641, %v1633
      %v2098 = vpack.c.b16 %v1642, %v1634
      %v2099 = vpack.c.b16 %v1643, %v1635
      %v2100 = vpack.c.b16 %v1644, %v1636
      %v2101 = vpack.c.b16 %v1645, %v1637
      %v2102 = vpack.c.b16 %v1654, %v1646
      %v2103 = vpack.c.b16 %v1655, %v1647
      %v2104 = vpack.c.b16 %v1656, %v1648
      %v2105 = vpack.c.b16 %v1657, %v1649
      %v2106 = vpack.c.b16 %v1658, %v1650
      %v2107 = vpack.c.b16 %v1659, %v1651
      %v2108 = vpack.c.b16 %v1660, %v1652
      %v2109 = vpack.c.b16 %v1661, %v1653
      %v2110 = vpack.c.b16 %v1670, %v1662
      %v2111 = vpack.c.b16 %v1671, %v1663
      %v2112 = vpack.c.b16 %v1672, %v1664
      %v2113 = vpack.c.b16 %v1673, %v1665
      %v2114 = vpack.c.b16 %v1674, %v1666
      %v2115 = vpack.c.b16 %v1675, %v1667
      %v2116 = vpack.c.b16 %v1676, %v1668
      %v2117 = vpack.c.b16 %v1677, %v1669
      %v2118 = vpack.c.b16 %v1686, %v1678
      %v2119 = vpack.c.b16 %v1687, %v1679
      %v2120 = vpack.c.b16 %v1688, %v1680
      %v2121 = vpack.c.b16 %v1689, %v1681
      %v2122 = vpack.c.b16 %v1690, %v1682
      %v2123 = vpack.c.b16 %v1691, %v1683
      %v2124 = vpack.c.b16 %v1692, %v1684
      %v2125 = vpack.c.b16 %v1693, %v1685
      %v2126 = vpack.c.b16 %v1702, %v1694
      %v2127 = vpack.c.b16 %v1703, %v1695
      %v2128 = vpack.c.b16 %v1704, %v1696
      %v2129 = vpack.c.b16 %v1705, %v1697
      %v2130 = vpack.c.b16 %v1706, %v1698
      %v2131 = vpack.c.b16 %v1707, %v1699
      %v2132 = vpack.c.b16 %v1708, %v1700
      %v2133 = vpack.c.b16 %v1709, %v1701
      %v2134 = vpack.c.b16 %v1718, %v1710
      %v2135 = vpack.c.b16 %v1719, %v1711
      %v2136 = vpack.c.b16 %v1720, %v1712
      %v2137 = vpack.c.b16 %v1721, %v1713
      %v2138 = vpack.c.b16 %v1722, %v1714
      %v2139 = vpack.c.b16 %v1723, %v1715
      %v2140 = vpack.c.b16 %v1724, %v1716
      %v2141 = vpack.c.b16 %v1725, %v1717
      %v2142 = vpack.c.b16 %v1734, %v1726
      %v2143 = vpack.c.b16 %v1735, %v1727
      %v2144 = vpack.c.b16 %v1736, %v1728
      %v2145 = vpack.c.b16 %v1737, %v1729
      %v2146 = vpack.c.b16 %v1738, %v1730
      %v2147 = vpack.c.b16 %v1739, %v1731
      %v2148 = vpack.c.b16 %v1740, %v1732
      %v2149 = vpack.c.b16 %v1741, %v1733
      %v2150 = vpack.c.b16 %v1750, %v1742
      %v2151 = vpack.c.b16 %v1751, %v1743
      %v2152 = vpack.c.b16 %v1752, %v1744
      %v2153 = vpack.c.b16 %v1753, %v1745
      %v2154 = vpack.c.b16 %v1754, %v1746
      %v2155 = vpack.c.b16 %v1755, %v1747
      %v2156 = vpack.c.b16 %v1756, %v1748
      %v2157 = vpack.c.b16 %v1757, %v1749
      %v2158 = vpack.c.b16 %v1766, %v1758
      %v2159 = vpack.c.b16 %v1767, %v1759
      %v2160 = vpack.c.b16 %v1768, %v1760
      %v2161 = vpack.c.b16 %v1769, %v1761
      %v2162 = vpack.c.b16 %v1770, %v1762
      %v2163 = vpack.c.b16 %v1771, %v1763
      %v2164 = vpack.c.b16 %v1772, %v1764
      %v2165 = vpack.c.b16 %v1773, %v1765
      %v2166 = vpack.c.b16 %v1782, %v1774
      %v2167 = vpack.c.b16 %v1783, %v1775
      %v2168 = vpack.c.b16 %v1784, %v1776
      %v2169 = vpack.c.b16 %v1785, %v1777
      %v2170 = vpack.c.b16 %v1786, %v1778
      %v2171 = vpack.c.b16 %v1787, %v1779
      %v2172 = vpack.c.b16 %v1788, %v1780
      %v2173 = vpack.c.b16 %v1789, %v1781
      %v2174 = vpack.c.b16 %v1798, %v1790
      %v2175 = vpack.c.b16 %v1799, %v1791
      %v2176 = vpack.c.b16 %v1800, %v1792
      %v2177 = vpack.c.b16 %v1801, %v1793
      %v2178 = vpack.c.b16 %v1802, %v1794
      %v2179 = vpack.c.b16 %v1803, %v1795
      %v2180 = vpack.c.b16 %v1804, %v1796
      %v2181 = vpack.c.b16 %v1805, %v1797
      %v2182 = vpack.c.b16 %v1814, %v1806
      %v2183 = vpack.c.b16 %v1815, %v1807
      %v2184 = vpack.c.b16 %v1816, %v1808
      %v2185 = vpack.c.b16 %v1817, %v1809
      %v2186 = vpack.c.b16 %v1818, %v1810
      %v2187 = vpack.c.b16 %v1819, %v1811
      %v2188 = vpack.c.b16 %v1820, %v1812
      %v2189 = vpack.c.b16 %v1821, %v1813
      %v2190 = vpack.c.b16 %v1830, %v1822
      %v2191 = vpack.c.b16 %v1831, %v1823
      %v2192 = vpack.c.b16 %v1832, %v1824
      %v2193 = vpack.c.b16 %v1833, %v1825
      %v2194 = vpack.c.b16 %v1834, %v1826
      %v2195 = vpack.c.b16 %v1835, %v1827
      %v2196 = vpack.c.b16 %v1836, %v1828
      %v2197 = vpack.c.b16 %v1837, %v1829
      %v2198 = vpack.c.b16 %v1846, %v1838
      %v2199 = vpack.c.b16 %v1847, %v1839
      %v2200 = vpack.c.b16 %v1848, %v1840
      %v2201 = vpack.c.b16 %v1849, %v1841
      %v2202 = vpack.c.b16 %v1850, %v1842
      %v2203 = vpack.c.b16 %v1851, %v1843
      %v2204 = vpack.c.b16 %v1852, %v1844
      %v2205 = vpack.c.b16 %v1853, %v1845
      %v2206 = vpack.c.b16 %v1862, %v1854
      %v2207 = vpack.c.b16 %v1863, %v1855
      %v2208 = vpack.c.b16 %v1864, %v1856
      %v2209 = vpack.c.b16 %v1865, %v1857
      %v2210 = vpack.c.b16 %v1866, %v1858
      %v2211 = vpack.c.b16 %v1867, %v1859
      %v2212 = vpack.c.b16 %v1868, %v1860
      %v2213 = vpack.c.b16 %v1869, %v1861
      %v2214 = vpack.c.b16 %v1878, %v1870
      %v2215 = vpack.c.b16 %v1879, %v1871
      %v2216 = vpack.c.b16 %v1880, %v1872
      %v2217 = vpack.c.b16 %v1881, %v1873
      %v2218 = vpack.c.b16 %v1882, %v1874
      %v2219 = vpack.c.b16 %v1883, %v1875
      %v2220 = vpack.c.b16 %v1884, %v1876
      %v2221 = vpack.c.b16 %v1885, %v1877
      %v2222 = vpack.c.b16 %v1894, %v1886
      %v2223 = vpack.c.b16 %v1895, %v1887
      %v2224 = vpack.c.b16 %v1896, %v1888
      %v2225 = vpack.c.b16 %v1897, %v1889
      %v2226 = vpack.c.b16 %v1898, %v1890
      %v2227 = vpack.c.b16 %v1899, %v1891
      %v2228 = vpack.c.b16 %v1900, %v1892
      %v2229 = vpack.c.b16 %v1901, %v1893
      %v2230 = vpack.c.b16 %v1910, %v1902
      %v2231 = vpack.c.b16 %v1911, %v1903
      %v2232 = vpack.c.b16 %v1912, %v1904
      %v2233 = vpack.c.b16 %v1913, %v1905
      %v2234 = vpack.c.b16 %v1914, %v1906
      %v2235 = vpack.c.b16 %v1915, %v1907
      %v2236 = vpack.c.b16 %v1916, %v1908
      %v2237 = vpack.c.b16 %v1917, %v1909
      %2558 = vmatprep.subr.bf16.mxu0 %v1919
      %2559 = vmatpush1.bf16.msra.mxu0 %v1918
      %2560 = vmatprep.subr.bf16.mxu0 %v1927
      %2561 = vmatpush1.bf16.msra.mxu0 %v1926
      %2562 = vmatprep.subr.bf16.mxu0 %v1935
      %2563 = vmatpush1.bf16.msra.mxu0 %v1934
      %2564 = vmatprep.subr.bf16.mxu0 %v1943
      %2565 = vmatpush1.bf16.msra.mxu0 %v1942
      %2566 = vmatprep.subr.bf16.mxu0 %v1951
      %2567 = vmatpush1.bf16.msra.mxu0 %v1950
      %2568 = vmatprep.subr.bf16.mxu0 %v1959
      %2569 = vmatpush1.bf16.msra.mxu0 %v1958
      %2570 = vmatprep.subr.bf16.mxu0 %v1967
      %2571 = vmatpush1.bf16.msra.mxu0 %v1966
      %2572 = vmatprep.subr.bf16.mxu0 %v1975
      %2573 = vmatpush1.bf16.msra.mxu0 %v1974
      %2574 = vmatprep.subr.bf16.mxu0 %v1983
      %2575 = vmatpush1.bf16.msra.mxu0 %v1982
      %2576 = vmatprep.subr.bf16.mxu0 %v1991
      %2577 = vmatpush1.bf16.msra.mxu0 %v1990
      %2578 = vmatprep.subr.bf16.mxu0 %v1999
      %2579 = vmatpush1.bf16.msra.mxu0 %v1998
      %2580 = vmatprep.subr.bf16.mxu0 %v2007
      %2581 = vmatpush1.bf16.msra.mxu0 %v2006
      %2582 = vmatprep.subr.bf16.mxu0 %v2015
      %2583 = vmatpush1.bf16.msra.mxu0 %v2014
      %2584 = vmatprep.subr.bf16.mxu0 %v2023
      %2585 = vmatpush1.bf16.msra.mxu0 %v2022
      %2586 = vmatprep.subr.bf16.mxu0 %v2031
      %2587 = vmatpush1.bf16.msra.mxu0 %v2030
      %2588 = vmatprep.subr.bf16.mxu0 %v2039
      %2589 = vmatpush1.bf16.msra.mxu0 %v2038
      %2590 = vmatprep.mubr.bf16.mxu0 %v879
      %2591 = vmatmul.mubr.bf16.gmra.mrb[0].mxu0 %v878
      %v2592 = vpop.f32.mrb[0].mxu0
      %v2593 = vadd.f32 %v713, %v2592
      %v2594 = vpop.f32.mrb[0].mxu0
      %v2595 = vadd.f32 %v717, %v2594
      %v2596 = vpop.f32.mrb[0].mxu0
      %v2597 = vadd.f32 %v713, %v2596
      %v2598 = vpop.f32.mrb[0].mxu0
      %v2599 = vadd.f32 %v717, %v2598
      %2600 = vmatprep.mubr.bf16.mxu0 %v884
      %2601 = vmatmul.mubr.bf16.gmra.mrb[0].mxu0 %v883
      %v2602 = vpop.f32.mrb[0].mxu0
      %v2603 = vadd.f32 %v713, %v2602
      %v2604 = vpop.f32.mrb[0].mxu0
      %v2605 = vadd.f32 %v717, %v2604
      %v2606 = vpop.f32.mrb[0].mxu0
      %v2607 = vadd.f32 %v713, %v2606
      %v2608 = vpop.f32.mrb[0].mxu0
      %v2609 = vadd.f32 %v717, %v2608
      %2610 = vmatprep.mubr.bf16.mxu0 %v889
      %2611 = vmatmul.mubr.bf16.gmra.mrb[0].mxu0 %v888
      %v2612 = vpop.f32.mrb[0].mxu0
      %v2613 = vadd.f32 %v713, %v2612
      %v2614 = vpop.f32.mrb[0].mxu0
      %v2615 = vadd.f32 %v717, %v2614
      %v2616 = vpop.f32.mrb[0].mxu0
      %v2617 = vadd.f32 %v713, %v2616
      %v2618 = vpop.f32.mrb[0].mxu0
      %v2619 = vadd.f32 %v717, %v2618
      %2620 = vmatprep.mubr.bf16.mxu0 %v894
      %2621 = vmatmul.mubr.bf16.gmra.mrb[0].mxu0 %v893
      %v2622 = vpop.f32.mrb[0].mxu0
      %v2623 = vadd.f32 %v713, %v2622
      %v2624 = vpop.f32.mrb[0].mxu0
      %v2625 = vadd.f32 %v717, %v2624
      %v2626 = vpop.f32.mrb[0].mxu0
      %v2627 = vadd.f32 %v713, %v2626
      %v2628 = vpop.f32.mrb[0].mxu0
      %v2629 = vadd.f32 %v717, %v2628
      %2630 = vmatprep.mubr.bf16.mxu0 %v899
      %2631 = vmatmul.mubr.bf16.gmra.mrb[0].mxu0 %v898
      %v2632 = vpop.f32.mrb[0].mxu0
      %v2633 = vadd.f32 %v713, %v2632
      %v2634 = vpop.f32.mrb[0].mxu0
      %v2635 = vadd.f32 %v717, %v2634
      %v2636 = vpop.f32.mrb[0].mxu0
      %v2637 = vadd.f32 %v713, %v2636
      %v2638 = vpop.f32.mrb[0].mxu0
      %v2639 = vadd.f32 %v717, %v2638
      %2640 = vmatprep.mubr.bf16.mxu0 %v904
      %2641 = vmatmul.mubr.bf16.gmra.mrb[0].mxu0 %v903
      %v2642 = vpop.f32.mrb[0].mxu0
      %v2643 = vadd.f32 %v713, %v2642
      %v2644 = vpop.f32.mrb[0].mxu0
      %v2645 = vadd.f32 %v717, %v2644
      %v2646 = vpop.f32.mrb[0].mxu0
      %v2647 = vadd.f32 %v713, %v2646
      %v2648 = vpop.f32.mrb[0].mxu0
      %v2649 = vadd.f32 %v717, %v2648
      %2650 = vmatprep.mubr.bf16.mxu0 %v909
      %2651 = vmatmul.mubr.bf16.gmra.mrb[0].mxu0 %v908
      %v2652 = vpop.f32.mrb[0].mxu0
      %v2653 = vadd.f32 %v713, %v2652
      %v2654 = vpop.f32.mrb[0].mxu0
      %v2655 = vadd.f32 %v717, %v2654
      %v2656 = vpop.f32.mrb[0].mxu0
      %v2657 = vadd.f32 %v713, %v2656
      %v2658 = vpop.f32.mrb[0].mxu0
      %v2659 = vadd.f32 %v717, %v2658
      %2660 = vmatprep.mubr.bf16.mxu0 %v914
      %2661 = vmatmul.mubr.bf16.gmra.mrb[0].mxu0 %v913
      %v2662 = vpop.f32.mrb[0].mxu0
      %v2663 = vadd.f32 %v713, %v2662
      %v2664 = vpop.f32.mrb[0].mxu0
      %v2665 = vadd.f32 %v717, %v2664
      %v2666 = vpop.f32.mrb[0].mxu0
      %v2667 = vadd.f32 %v713, %v2666
      %v2668 = vpop.f32.mrb[0].mxu0
      %v2669 = vadd.f32 %v717, %v2668
      %2670 = vdwg.mxu0
      %2671 = vmatprep.subr.bf16.mxu0 %v2047
      %2672 = vmatpush1.bf16.msra.mxu0 %v2046
      %2673 = vmatprep.subr.bf16.mxu0 %v2055
      %2674 = vmatpush1.bf16.msra.mxu0 %v2054
      %2675 = vmatprep.subr.bf16.mxu0 %v2063
      %2676 = vmatpush1.bf16.msra.mxu0 %v2062
      %2677 = vmatprep.subr.bf16.mxu0 %v2071
      %2678 = vmatpush1.bf16.msra.mxu0 %v2070
      %2679 = vmatprep.subr.bf16.mxu0 %v2079
      %2680 = vmatpush1.bf16.msra.mxu0 %v2078
      %2681 = vmatprep.subr.bf16.mxu0 %v2087
      %2682 = vmatpush1.bf16.msra.mxu0 %v2086
      %2683 = vmatprep.subr.bf16.mxu0 %v2095
      %2684 = vmatpush1.bf16.msra.mxu0 %v2094
      %2685 = vmatprep.subr.bf16.mxu0 %v2103
      %2686 = vmatpush1.bf16.msra.mxu0 %v2102
      %2687 = vmatprep.subr.bf16.mxu0 %v2111
      %2688 = vmatpush1.bf16.msra.mxu0 %v2110
      %2689 = vmatprep.subr.bf16.mxu0 %v2119
      %2690 = vmatpush1.bf16.msra.mxu0 %v2118
      %2691 = vmatprep.subr.bf16.mxu0 %v2127
      %2692 = vmatpush1.bf16.msra.mxu0 %v2126
      %2693 = vmatprep.subr.bf16.mxu0 %v2135
      %2694 = vmatpush1.bf16.msra.mxu0 %v2134
      %2695 = vmatprep.subr.bf16.mxu0 %v2143
      %2696 = vmatpush1.bf16.msra.mxu0 %v2142
      %2697 = vmatprep.subr.bf16.mxu0 %v2151
      %2698 = vmatpush1.bf16.msra.mxu0 %v2150
      %2699 = vmatprep.subr.bf16.mxu0 %v2159
      %2700 = vmatpush1.bf16.msra.mxu0 %v2158
      %2701 = vmatprep.subr.bf16.mxu0 %v2167
      %2702 = vmatpush1.bf16.msra.mxu0 %v2166
      %2703 = vmatprep.mubr.bf16.mxu0 %v881
      %2704 = vmatmul.mubr.bf16.gmra.mrb[0].mxu0 %v880
      %v2705 = vpop.f32.mrb[0].mxu0
      %v2706 = vadd.f32 %v2593, %v2705
      %v2707 = vpop.f32.mrb[0].mxu0
      %v2708 = vadd.f32 %v2595, %v2707
      %v2709 = vpop.f32.mrb[0].mxu0
      %v2710 = vadd.f32 %v2597, %v2709
      %v2711 = vpop.f32.mrb[0].mxu0
      %v2712 = vadd.f32 %v2599, %v2711
      %2713 = vmatprep.mubr.bf16.mxu0 %v886
      %2714 = vmatmul.mubr.bf16.gmra.mrb[0].mxu0 %v885
      %v2715 = vpop.f32.mrb[0].mxu0
      %v2716 = vadd.f32 %v2603, %v2715
      %v2717 = vpop.f32.mrb[0].mxu0
      %v2718 = vadd.f32 %v2605, %v2717
      %v2719 = vpop.f32.mrb[0].mxu0
      %v2720 = vadd.f32 %v2607, %v2719
      %v2721 = vpop.f32.mrb[0].mxu0
      %v2722 = vadd.f32 %v2609, %v2721
      %2723 = vmatprep.mubr.bf16.mxu0 %v891
      %2724 = vmatmul.mubr.bf16.gmra.mrb[0].mxu0 %v890
      %v2725 = vpop.f32.mrb[0].mxu0
      %v2726 = vadd.f32 %v2613, %v2725
      %v2727 = vpop.f32.mrb[0].mxu0
      %v2728 = vadd.f32 %v2615, %v2727
      %v2729 = vpop.f32.mrb[0].mxu0
      %v2730 = vadd.f32 %v2617, %v2729
      %v2731 = vpop.f32.mrb[0].mxu0
      %v2732 = vadd.f32 %v2619, %v2731
      %2733 = vmatprep.mubr.bf16.mxu0 %v896
      %2734 = vmatmul.mubr.bf16.gmra.mrb[0].mxu0 %v895
      %v2735 = vpop.f32.mrb[0].mxu0
      %v2736 = vadd.f32 %v2623, %v2735
      %v2737 = vpop.f32.mrb[0].mxu0
      %v2738 = vadd.f32 %v2625, %v2737
      %v2739 = vpop.f32.mrb[0].mxu0
      %v2740 = vadd.f32 %v2627, %v2739
      %v2741 = vpop.f32.mrb[0].mxu0
      %v2742 = vadd.f32 %v2629, %v2741
      %2743 = vmatprep.mubr.bf16.mxu0 %v901
      %2744 = vmatmul.mubr.bf16.gmra.mrb[0].mxu0 %v900
      %v2745 = vpop.f32.mrb[0].mxu0
      %v2746 = vadd.f32 %v2633, %v2745
      %v2747 = vpop.f32.mrb[0].mxu0
      %v2748 = vadd.f32 %v2635, %v2747
      %v2749 = vpop.f32.mrb[0].mxu0
      %v2750 = vadd.f32 %v2637, %v2749
      %v2751 = vpop.f32.mrb[0].mxu0
      %v2752 = vadd.f32 %v2639, %v2751
      %2753 = vmatprep.mubr.bf16.mxu0 %v906
      %2754 = vmatmul.mubr.bf16.gmra.mrb[0].mxu0 %v905
      %v2755 = vpop.f32.mrb[0].mxu0
      %v2756 = vadd.f32 %v2643, %v2755
      %v2757 = vpop.f32.mrb[0].mxu0
      %v2758 = vadd.f32 %v2645, %v2757
      %v2759 = vpop.f32.mrb[0].mxu0
      %v2760 = vadd.f32 %v2647, %v2759
      %v2761 = vpop.f32.mrb[0].mxu0
      %v2762 = vadd.f32 %v2649, %v2761
      %2763 = vmatprep.mubr.bf16.mxu0 %v911
      %2764 = vmatmul.mubr.bf16.gmra.mrb[0].mxu0 %v910
      %v2765 = vpop.f32.mrb[0].mxu0
      %v2766 = vadd.f32 %v2653, %v2765
      %v2767 = vpop.f32.mrb[0].mxu0
      %v2768 = vadd.f32 %v2655, %v2767
      %v2769 = vpop.f32.mrb[0].mxu0
      %v2770 = vadd.f32 %v2657, %v2769
      %v2771 = vpop.f32.mrb[0].mxu0
      %v2772 = vadd.f32 %v2659, %v2771
      %2773 = vmatprep.mubr.bf16.mxu0 %v916
      %2774 = vmatmul.mubr.bf16.gmra.mrb[0].mxu0 %v915
      %v2775 = vpop.f32.mrb[0].mxu0
      %v2776 = vadd.f32 %v2663, %v2775
      %v2777 = vpop.f32.mrb[0].mxu0
      %v2778 = vadd.f32 %v2665, %v2777
      %v2779 = vpop.f32.mrb[0].mxu0
      %v2780 = vadd.f32 %v2667, %v2779
      %v2781 = vpop.f32.mrb[0].mxu0
      %v2782 = vadd.f32 %v2669, %v2781
      %2783 = vdwg.mxu0
      %2784 = vmatprep.subr.bf16.mxu0 %v2175
      %2785 = vmatpush1.bf16.msra.mxu0 %v2174
      %2786 = vmatprep.subr.bf16.mxu0 %v2183
      %2787 = vmatpush1.bf16.msra.mxu0 %v2182
      %2788 = vmatprep.subr.bf16.mxu0 %v2191
      %2789 = vmatpush1.bf16.msra.mxu0 %v2190
      %2790 = vmatprep.subr.bf16.mxu0 %v2199
      %2791 = vmatpush1.bf16.msra.mxu0 %v2198
      %2792 = vmatprep.subr.bf16.mxu0 %v2207
      %2793 = vmatpush1.bf16.msra.mxu0 %v2206
      %2794 = vmatprep.subr.bf16.mxu0 %v2215
      %2795 = vmatpush1.bf16.msra.mxu0 %v2214
      %2796 = vmatprep.subr.bf16.mxu0 %v2223
      %2797 = vmatpush1.bf16.msra.mxu0 %v2222
      %2798 = vmatprep.subr.bf16.mxu0 %v2231
      %2799 = vmatpush1.bf16.msra.mxu0 %v2230
      %2800 = vmatprep.subr.bf16.mxu0 0
      %2801 = vmatpush1.bf16.msra.mxu0 0
      %2802 = vmatprep.subr.bf16.mxu0 0
      %2803 = vmatpush1.bf16.msra.mxu0 0
      %2804 = vmatprep.subr.bf16.mxu0 0
      %2805 = vmatpush1.bf16.msra.mxu0 0
      %2806 = vmatprep.subr.bf16.mxu0 0
      %2807 = vmatpush1.bf16.msra.mxu0 0
      %2808 = vmatprep.subr.bf16.mxu0 0
      %2809 = vmatpush1.bf16.msra.mxu0 0
      %2810 = vmatprep.subr.bf16.mxu0 0
      %2811 = vmatpush1.bf16.msra.mxu0 0
      %2812 = vmatprep.subr.bf16.mxu0 0
      %2813 = vmatpush1.bf16.msra.mxu0 0
      %2814 = vmatprep.subr.bf16.mxu0 0
      %2815 = vmatpush1.bf16.msra.mxu0 0
      %2816 = vmatprep.mubr.bf16.mxu0 0
      %2817 = vmatmul.mubr.bf16.gmra.mrb[0].mxu0 %v882
      %v2818 = vpop.f32.mrb[0].mxu0
      %v2819 = vadd.f32 %v2706, %v2818
      %v2820 = vpop.f32.mrb[0].mxu0
      %v2821 = vadd.f32 %v2708, %v2820
      %v2822 = vpop.f32.mrb[0].mxu0
      %v2823 = vadd.f32 %v2710, %v2822
      %v2824 = vpop.f32.mrb[0].mxu0
      %v2825 = vadd.f32 %v2712, %v2824
      %2826 = vmatprep.mubr.bf16.mxu0 0
      %2827 = vmatmul.mubr.bf16.gmra.mrb[0].mxu0 %v887
      %v2828 = vpop.f32.mrb[0].mxu0
      %v2829 = vadd.f32 %v2716, %v2828
      %v2830 = vpop.f32.mrb[0].mxu0
      %v2831 = vadd.f32 %v2718, %v2830
      %v2832 = vpop.f32.mrb[0].mxu0
      %v2833 = vadd.f32 %v2720, %v2832
      %v2834 = vpop.f32.mrb[0].mxu0
      %v2835 = vadd.f32 %v2722, %v2834
      %2836 = vmatprep.mubr.bf16.mxu0 0
      %2837 = vmatmul.mubr.bf16.gmra.mrb[0].mxu0 %v892
      %v2838 = vpop.f32.mrb[0].mxu0
      %v2839 = vadd.f32 %v2726, %v2838
      %v2840 = vpop.f32.mrb[0].mxu0
      %v2841 = vadd.f32 %v2728, %v2840
      %v2842 = vpop.f32.mrb[0].mxu0
      %v2843 = vadd.f32 %v2730, %v2842
      %v2844 = vpop.f32.mrb[0].mxu0
      %v2845 = vadd.f32 %v2732, %v2844
      %2846 = vmatprep.mubr.bf16.mxu0 0
      %2847 = vmatmul.mubr.bf16.gmra.mrb[0].mxu0 %v897
      %v2848 = vpop.f32.mrb[0].mxu0
      %v2849 = vadd.f32 %v2736, %v2848
      %v2850 = vpop.f32.mrb[0].mxu0
      %v2851 = vadd.f32 %v2738, %v2850
      %v2852 = vpop.f32.mrb[0].mxu0
      %v2853 = vadd.f32 %v2740, %v2852
      %v2854 = vpop.f32.mrb[0].mxu0
      %v2855 = vadd.f32 %v2742, %v2854
      %2856 = vmatprep.mubr.bf16.mxu0 0
      %2857 = vmatmul.mubr.bf16.gmra.mrb[0].mxu0 %v902
      %v2858 = vpop.f32.mrb[0].mxu0
      %v2859 = vadd.f32 %v2746, %v2858
      %v2860 = vpop.f32.mrb[0].mxu0
      %v2861 = vadd.f32 %v2748, %v2860
      %v2862 = vpop.f32.mrb[0].mxu0
      %v2863 = vadd.f32 %v2750, %v2862
      %v2864 = vpop.f32.mrb[0].mxu0
      %v2865 = vadd.f32 %v2752, %v2864
      %2866 = vmatprep.mubr.bf16.mxu0 0
      %2867 = vmatmul.mubr.bf16.gmra.mrb[0].mxu0 %v907
      %v2868 = vpop.f32.mrb[0].mxu0
      %v2869 = vadd.f32 %v2756, %v2868
      %v2870 = vpop.f32.mrb[0].mxu0
      %v2871 = vadd.f32 %v2758, %v2870
      %v2872 = vpop.f32.mrb[0].mxu0
      %v2873 = vadd.f32 %v2760, %v2872
      %v2874 = vpop.f32.mrb[0].mxu0
      %v2875 = vadd.f32 %v2762, %v2874
      %2876 = vmatprep.mubr.bf16.mxu0 0
      %2877 = vmatmul.mubr.bf16.gmra.mrb[0].mxu0 %v912
      %v2878 = vpop.f32.mrb[0].mxu0
      %v2879 = vadd.f32 %v2766, %v2878
      %v2880 = vpop.f32.mrb[0].mxu0
      %v2881 = vadd.f32 %v2768, %v2880
      %v2882 = vpop.f32.mrb[0].mxu0
      %v2883 = vadd.f32 %v2770, %v2882
      %v2884 = vpop.f32.mrb[0].mxu0
      %v2885 = vadd.f32 %v2772, %v2884
      %2886 = vmatprep.mubr.bf16.mxu0 0
      %2887 = vmatmul.mubr.bf16.gmra.mrb[0].mxu0 %v917
      %v2888 = vpop.f32.mrb[0].mxu0
      %v2889 = vadd.f32 %v2776, %v2888
      %v2890 = vpop.f32.mrb[0].mxu0
      %v2891 = vadd.f32 %v2778, %v2890
      %v2892 = vpop.f32.mrb[0].mxu0
      %v2893 = vadd.f32 %v2780, %v2892
      %v2894 = vpop.f32.mrb[0].mxu0
      %v2895 = vadd.f32 %v2782, %v2894
      %2896 = vdwg.mxu0
      %2897 = vmatprep.subr.bf16.mxu0 %v1921
      %2898 = vmatpush1.bf16.msra.mxu0 %v1920
      %2899 = vmatprep.subr.bf16.mxu0 %v1929
      %2900 = vmatpush1.bf16.msra.mxu0 %v1928
      %2901 = vmatprep.subr.bf16.mxu0 %v1937
      %2902 = vmatpush1.bf16.msra.mxu0 %v1936
      %2903 = vmatprep.subr.bf16.mxu0 %v1945
      %2904 = vmatpush1.bf16.msra.mxu0 %v1944
      %2905 = vmatprep.subr.bf16.mxu0 %v1953
      %2906 = vmatpush1.bf16.msra.mxu0 %v1952
      %2907 = vmatprep.subr.bf16.mxu0 %v1961
      %2908 = vmatpush1.bf16.msra.mxu0 %v1960
      %2909 = vmatprep.subr.bf16.mxu0 %v1969
      %2910 = vmatpush1.bf16.msra.mxu0 %v1968
      %2911 = vmatprep.subr.bf16.mxu0 %v1977
      %2912 = vmatpush1.bf16.msra.mxu0 %v1976
      %2913 = vmatprep.subr.bf16.mxu0 %v1985
      %2914 = vmatpush1.bf16.msra.mxu0 %v1984
      %2915 = vmatprep.subr.bf16.mxu0 %v1993
      %2916 = vmatpush1.bf16.msra.mxu0 %v1992
      %2917 = vmatprep.subr.bf16.mxu0 %v2001
      %2918 = vmatpush1.bf16.msra.mxu0 %v2000
      %2919 = vmatprep.subr.bf16.mxu0 %v2009
      %2920 = vmatpush1.bf16.msra.mxu0 %v2008
      %2921 = vmatprep.subr.bf16.mxu0 %v2017
      %2922 = vmatpush1.bf16.msra.mxu0 %v2016
      %2923 = vmatprep.subr.bf16.mxu0 %v2025
      %2924 = vmatpush1.bf16.msra.mxu0 %v2024
      %2925 = vmatprep.subr.bf16.mxu0 %v2033
      %2926 = vmatpush1.bf16.msra.mxu0 %v2032
      %2927 = vmatprep.subr.bf16.mxu0 %v2041
      %2928 = vmatpush1.bf16.msra.mxu0 %v2040
      %2929 = vmatprep.mubr.bf16.mxu0 %v879
      %2930 = vmatmul.mubr.bf16.gmra.mrb[0].mxu0 %v878
      %v2931 = vpop.f32.mrb[0].mxu0
      %v2932 = vadd.f32 %v721, %v2931
      %v2933 = vpop.f32.mrb[0].mxu0
      %v2934 = vadd.f32 %v725, %v2933
      %v2935 = vpop.f32.mrb[0].mxu0
      %v2936 = vadd.f32 %v721, %v2935
      %v2937 = vpop.f32.mrb[0].mxu0
      %v2938 = vadd.f32 %v725, %v2937
      %2939 = vmatprep.mubr.bf16.mxu0 %v884
      %2940 = vmatmul.mubr.bf16.gmra.mrb[0].mxu0 %v883
      %v2941 = vpop.f32.mrb[0].mxu0
      %v2942 = vadd.f32 %v721, %v2941
      %v2943 = vpop.f32.mrb[0].mxu0
      %v2944 = vadd.f32 %v725, %v2943
      %v2945 = vpop.f32.mrb[0].mxu0
      %v2946 = vadd.f32 %v721, %v2945
      %v2947 = vpop.f32.mrb[0].mxu0
      %v2948 = vadd.f32 %v725, %v2947
      %2949 = vmatprep.mubr.bf16.mxu0 %v889
      %2950 = vmatmul.mubr.bf16.gmra.mrb[0].mxu0 %v888
      %v2951 = vpop.f32.mrb[0].mxu0
      %v2952 = vadd.f32 %v721, %v2951
      %v2953 = vpop.f32.mrb[0].mxu0
      %v2954 = vadd.f32 %v725, %v2953
      %v2955 = vpop.f32.mrb[0].mxu0
      %v2956 = vadd.f32 %v721, %v2955
      %v2957 = vpop.f32.mrb[0].mxu0
      %v2958 = vadd.f32 %v725, %v2957
      %2959 = vmatprep.mubr.bf16.mxu0 %v894
      %2960 = vmatmul.mubr.bf16.gmra.mrb[0].mxu0 %v893
      %v2961 = vpop.f32.mrb[0].mxu0
      %v2962 = vadd.f32 %v721, %v2961
      %v2963 = vpop.f32.mrb[0].mxu0
      %v2964 = vadd.f32 %v725, %v2963
      %v2965 = vpop.f32.mrb[0].mxu0
      %v2966 = vadd.f32 %v721, %v2965
      %v2967 = vpop.f32.mrb[0].mxu0
      %v2968 = vadd.f32 %v725, %v2967
      %2969 = vmatprep.mubr.bf16.mxu0 %v899
      %2970 = vmatmul.mubr.bf16.gmra.mrb[0].mxu0 %v898
      %v2971 = vpop.f32.mrb[0].mxu0
      %v2972 = vadd.f32 %v721, %v2971
      %v2973 = vpop.f32.mrb[0].mxu0
      %v2974 = vadd.f32 %v725, %v2973
      %v2975 = vpop.f32.mrb[0].mxu0
      %v2976 = vadd.f32 %v721, %v2975
      %v2977 = vpop.f32.mrb[0].mxu0
      %v2978 = vadd.f32 %v725, %v2977
      %2979 = vmatprep.mubr.bf16.mxu0 %v904
      %2980 = vmatmul.mubr.bf16.gmra.mrb[0].mxu0 %v903
      %v2981 = vpop.f32.mrb[0].mxu0
      %v2982 = vadd.f32 %v721, %v2981
      %v2983 = vpop.f32.mrb[0].mxu0
      %v2984 = vadd.f32 %v725, %v2983
      %v2985 = vpop.f32.mrb[0].mxu0
      %v2986 = vadd.f32 %v721, %v2985
      %v2987 = vpop.f32.mrb[0].mxu0
      %v2988 = vadd.f32 %v725, %v2987
      %2989 = vmatprep.mubr.bf16.mxu0 %v909
      %2990 = vmatmul.mubr.bf16.gmra.mrb[0].mxu0 %v908
      %v2991 = vpop.f32.mrb[0].mxu0
      %v2992 = vadd.f32 %v721, %v2991
      %v2993 = vpop.f32.mrb[0].mxu0
      %v2994 = vadd.f32 %v725, %v2993
      %v2995 = vpop.f32.mrb[0].mxu0
      %v2996 = vadd.f32 %v721, %v2995
      %v2997 = vpop.f32.mrb[0].mxu0
      %v2998 = vadd.f32 %v725, %v2997
      %2999 = vmatprep.mubr.bf16.mxu0 %v914
      %3000 = vmatmul.mubr.bf16.gmra.mrb[0].mxu0 %v913
      %v3001 = vpop.f32.mrb[0].mxu0
      %v3002 = vadd.f32 %v721, %v3001
      %v3003 = vpop.f32.mrb[0].mxu0
      %v3004 = vadd.f32 %v725, %v3003
      %v3005 = vpop.f32.mrb[0].mxu0
      %v3006 = vadd.f32 %v721, %v3005
      %v3007 = vpop.f32.mrb[0].mxu0
      %v3008 = vadd.f32 %v725, %v3007
      %3009 = vdwg.mxu0
      %3010 = vmatprep.subr.bf16.mxu0 %v2049
      %3011 = vmatpush1.bf16.msra.mxu0 %v2048
      %3012 = vmatprep.subr.bf16.mxu0 %v2057
      %3013 = vmatpush1.bf16.msra.mxu0 %v2056
      %3014 = vmatprep.subr.bf16.mxu0 %v2065
      %3015 = vmatpush1.bf16.msra.mxu0 %v2064
      %3016 = vmatprep.subr.bf16.mxu0 %v2073
      %3017 = vmatpush1.bf16.msra.mxu0 %v2072
      %3018 = vmatprep.subr.bf16.mxu0 %v2081
      %3019 = vmatpush1.bf16.msra.mxu0 %v2080
      %3020 = vmatprep.subr.bf16.mxu0 %v2089
      %3021 = vmatpush1.bf16.msra.mxu0 %v2088
      %3022 = vmatprep.subr.bf16.mxu0 %v2097
      %3023 = vmatpush1.bf16.msra.mxu0 %v2096
      %3024 = vmatprep.subr.bf16.mxu0 %v2105
      %3025 = vmatpush1.bf16.msra.mxu0 %v2104
      %3026 = vmatprep.subr.bf16.mxu0 %v2113
      %3027 = vmatpush1.bf16.msra.mxu0 %v2112
      %3028 = vmatprep.subr.bf16.mxu0 %v2121
      %3029 = vmatpush1.bf16.msra.mxu0 %v2120
      %3030 = vmatprep.subr.bf16.mxu0 %v2129
      %3031 = vmatpush1.bf16.msra.mxu0 %v2128
      %3032 = vmatprep.subr.bf16.mxu0 %v2137
      %3033 = vmatpush1.bf16.msra.mxu0 %v2136
      %3034 = vmatprep.subr.bf16.mxu0 %v2145
      %3035 = vmatpush1.bf16.msra.mxu0 %v2144
      %3036 = vmatprep.subr.bf16.mxu0 %v2153
      %3037 = vmatpush1.bf16.msra.mxu0 %v2152
      %3038 = vmatprep.subr.bf16.mxu0 %v2161
      %3039 = vmatpush1.bf16.msra.mxu0 %v2160
      %3040 = vmatprep.subr.bf16.mxu0 %v2169
      %3041 = vmatpush1.bf16.msra.mxu0 %v2168
      %3042 = vmatprep.mubr.bf16.mxu0 %v881
      %3043 = vmatmul.mubr.bf16.gmra.mrb[0].mxu0 %v880
      %v3044 = vpop.f32.mrb[0].mxu0
      %v3045 = vadd.f32 %v2932, %v3044
      %v3046 = vpop.f32.mrb[0].mxu0
      %v3047 = vadd.f32 %v2934, %v3046
      %v3048 = vpop.f32.mrb[0].mxu0
      %v3049 = vadd.f32 %v2936, %v3048
      %v3050 = vpop.f32.mrb[0].mxu0
      %v3051 = vadd.f32 %v2938, %v3050
      %3052 = vmatprep.mubr.bf16.mxu0 %v886
      %3053 = vmatmul.mubr.bf16.gmra.mrb[0].mxu0 %v885
      %v3054 = vpop.f32.mrb[0].mxu0
      %v3055 = vadd.f32 %v2942, %v3054
      %v3056 = vpop.f32.mrb[0].mxu0
      %v3057 = vadd.f32 %v2944, %v3056
      %v3058 = vpop.f32.mrb[0].mxu0
      %v3059 = vadd.f32 %v2946, %v3058
      %v3060 = vpop.f32.mrb[0].mxu0
      %v3061 = vadd.f32 %v2948, %v3060
      %3062 = vmatprep.mubr.bf16.mxu0 %v891
      %3063 = vmatmul.mubr.bf16.gmra.mrb[0].mxu0 %v890
      %v3064 = vpop.f32.mrb[0].mxu0
      %v3065 = vadd.f32 %v2952, %v3064
      %v3066 = vpop.f32.mrb[0].mxu0
      %v3067 = vadd.f32 %v2954, %v3066
      %v3068 = vpop.f32.mrb[0].mxu0
      %v3069 = vadd.f32 %v2956, %v3068
      %v3070 = vpop.f32.mrb[0].mxu0
      %v3071 = vadd.f32 %v2958, %v3070
      %3072 = vmatprep.mubr.bf16.mxu0 %v896
      %3073 = vmatmul.mubr.bf16.gmra.mrb[0].mxu0 %v895
      %v3074 = vpop.f32.mrb[0].mxu0
      %v3075 = vadd.f32 %v2962, %v3074
      %v3076 = vpop.f32.mrb[0].mxu0
      %v3077 = vadd.f32 %v2964, %v3076
      %v3078 = vpop.f32.mrb[0].mxu0
      %v3079 = vadd.f32 %v2966, %v3078
      %v3080 = vpop.f32.mrb[0].mxu0
      %v3081 = vadd.f32 %v2968, %v3080
      %3082 = vmatprep.mubr.bf16.mxu0 %v901
      %3083 = vmatmul.mubr.bf16.gmra.mrb[0].mxu0 %v900
      %v3084 = vpop.f32.mrb[0].mxu0
      %v3085 = vadd.f32 %v2972, %v3084
      %v3086 = vpop.f32.mrb[0].mxu0
      %v3087 = vadd.f32 %v2974, %v3086
      %v3088 = vpop.f32.mrb[0].mxu0
      %v3089 = vadd.f32 %v2976, %v3088
      %v3090 = vpop.f32.mrb[0].mxu0
      %v3091 = vadd.f32 %v2978, %v3090
      %3092 = vmatprep.mubr.bf16.mxu0 %v906
      %3093 = vmatmul.mubr.bf16.gmra.mrb[0].mxu0 %v905
      %v3094 = vpop.f32.mrb[0].mxu0
      %v3095 = vadd.f32 %v2982, %v3094
      %v3096 = vpop.f32.mrb[0].mxu0
      %v3097 = vadd.f32 %v2984, %v3096
      %v3098 = vpop.f32.mrb[0].mxu0
      %v3099 = vadd.f32 %v2986, %v3098
      %v3100 = vpop.f32.mrb[0].mxu0
      %v3101 = vadd.f32 %v2988, %v3100
      %3102 = vmatprep.mubr.bf16.mxu0 %v911
      %3103 = vmatmul.mubr.bf16.gmra.mrb[0].mxu0 %v910
      %v3104 = vpop.f32.mrb[0].mxu0
      %v3105 = vadd.f32 %v2992, %v3104
      %v3106 = vpop.f32.mrb[0].mxu0
      %v3107 = vadd.f32 %v2994, %v3106
      %v3108 = vpop.f32.mrb[0].mxu0
      %v3109 = vadd.f32 %v2996, %v3108
      %v3110 = vpop.f32.mrb[0].mxu0
      %v3111 = vadd.f32 %v2998, %v3110
      %3112 = vmatprep.mubr.bf16.mxu0 %v916
      %3113 = vmatmul.mubr.bf16.gmra.mrb[0].mxu0 %v915
      %v3114 = vpop.f32.mrb[0].mxu0
      %v3115 = vadd.f32 %v3002, %v3114
      %v3116 = vpop.f32.mrb[0].mxu0
      %v3117 = vadd.f32 %v3004, %v3116
      %v3118 = vpop.f32.mrb[0].mxu0
      %v3119 = vadd.f32 %v3006, %v3118
      %v3120 = vpop.f32.mrb[0].mxu0
      %v3121 = vadd.f32 %v3008, %v3120
      %3122 = vdwg.mxu0
      %3123 = vmatprep.subr.bf16.mxu0 %v2177
      %3124 = vmatpush1.bf16.msra.mxu0 %v2176
      %3125 = vmatprep.subr.bf16.mxu0 %v2185
      %3126 = vmatpush1.bf16.msra.mxu0 %v2184
      %3127 = vmatprep.subr.bf16.mxu0 %v2193
      %3128 = vmatpush1.bf16.msra.mxu0 %v2192
      %3129 = vmatprep.subr.bf16.mxu0 %v2201
      %3130 = vmatpush1.bf16.msra.mxu0 %v2200
      %3131 = vmatprep.subr.bf16.mxu0 %v2209
      %3132 = vmatpush1.bf16.msra.mxu0 %v2208
      %3133 = vmatprep.subr.bf16.mxu0 %v2217
      %3134 = vmatpush1.bf16.msra.mxu0 %v2216
      %3135 = vmatprep.subr.bf16.mxu0 %v2225
      %3136 = vmatpush1.bf16.msra.mxu0 %v2224
      %3137 = vmatprep.subr.bf16.mxu0 %v2233
      %3138 = vmatpush1.bf16.msra.mxu0 %v2232
      %3139 = vmatprep.subr.bf16.mxu0 0
      %3140 = vmatpush1.bf16.msra.mxu0 0
      %3141 = vmatprep.subr.bf16.mxu0 0
      %3142 = vmatpush1.bf16.msra.mxu0 0
      %3143 = vmatprep.subr.bf16.mxu0 0
      %3144 = vmatpush1.bf16.msra.mxu0 0
      %3145 = vmatprep.subr.bf16.mxu0 0
      %3146 = vmatpush1.bf16.msra.mxu0 0
      %3147 = vmatprep.subr.bf16.mxu0 0
      %3148 = vmatpush1.bf16.msra.mxu0 0
      %3149 = vmatprep.subr.bf16.mxu0 0
      %3150 = vmatpush1.bf16.msra.mxu0 0
      %3151 = vmatprep.subr.bf16.mxu0 0
      %3152 = vmatpush1.bf16.msra.mxu0 0
      %3153 = vmatprep.subr.bf16.mxu0 0
      %3154 = vmatpush1.bf16.msra.mxu0 0
      %3155 = vmatprep.mubr.bf16.mxu0 0
      %3156 = vmatmul.mubr.bf16.gmra.mrb[0].mxu0 %v882
      %v3157 = vpop.f32.mrb[0].mxu0
      %v3158 = vadd.f32 %v3045, %v3157
      %v3159 = vpop.f32.mrb[0].mxu0
      %v3160 = vadd.f32 %v3047, %v3159
      %v3161 = vpop.f32.mrb[0].mxu0
      %v3162 = vadd.f32 %v3049, %v3161
      %v3163 = vpop.f32.mrb[0].mxu0
      %v3164 = vadd.f32 %v3051, %v3163
      %3165 = vmatprep.mubr.bf16.mxu0 0
      %3166 = vmatmul.mubr.bf16.gmra.mrb[0].mxu0 %v887
      %v3167 = vpop.f32.mrb[0].mxu0
      %v3168 = vadd.f32 %v3055, %v3167
      %v3169 = vpop.f32.mrb[0].mxu0
      %v3170 = vadd.f32 %v3057, %v3169
      %v3171 = vpop.f32.mrb[0].mxu0
      %v3172 = vadd.f32 %v3059, %v3171
      %v3173 = vpop.f32.mrb[0].mxu0
      %v3174 = vadd.f32 %v3061, %v3173
      %3175 = vmatprep.mubr.bf16.mxu0 0
      %3176 = vmatmul.mubr.bf16.gmra.mrb[0].mxu0 %v892
      %v3177 = vpop.f32.mrb[0].mxu0
      %v3178 = vadd.f32 %v3065, %v3177
      %v3179 = vpop.f32.mrb[0].mxu0
      %v3180 = vadd.f32 %v3067, %v3179
      %v3181 = vpop.f32.mrb[0].mxu0
      %v3182 = vadd.f32 %v3069, %v3181
      %v3183 = vpop.f32.mrb[0].mxu0
      %v3184 = vadd.f32 %v3071, %v3183
      %3185 = vmatprep.mubr.bf16.mxu0 0
      %3186 = vmatmul.mubr.bf16.gmra.mrb[0].mxu0 %v897
      %v3187 = vpop.f32.mrb[0].mxu0
      %v3188 = vadd.f32 %v3075, %v3187
      %v3189 = vpop.f32.mrb[0].mxu0
      %v3190 = vadd.f32 %v3077, %v3189
      %v3191 = vpop.f32.mrb[0].mxu0
      %v3192 = vadd.f32 %v3079, %v3191
      %v3193 = vpop.f32.mrb[0].mxu0
      %v3194 = vadd.f32 %v3081, %v3193
      %3195 = vmatprep.mubr.bf16.mxu0 0
      %3196 = vmatmul.mubr.bf16.gmra.mrb[0].mxu0 %v902
      %v3197 = vpop.f32.mrb[0].mxu0
      %v3198 = vadd.f32 %v3085, %v3197
      %v3199 = vpop.f32.mrb[0].mxu0
      %v3200 = vadd.f32 %v3087, %v3199
      %v3201 = vpop.f32.mrb[0].mxu0
      %v3202 = vadd.f32 %v3089, %v3201
      %v3203 = vpop.f32.mrb[0].mxu0
      %v3204 = vadd.f32 %v3091, %v3203
      %3205 = vmatprep.mubr.bf16.mxu0 0
      %3206 = vmatmul.mubr.bf16.gmra.mrb[0].mxu0 %v907
      %v3207 = vpop.f32.mrb[0].mxu0
      %v3208 = vadd.f32 %v3095, %v3207
      %v3209 = vpop.f32.mrb[0].mxu0
      %v3210 = vadd.f32 %v3097, %v3209
      %v3211 = vpop.f32.mrb[0].mxu0
      %v3212 = vadd.f32 %v3099, %v3211
      %v3213 = vpop.f32.mrb[0].mxu0
      %v3214 = vadd.f32 %v3101, %v3213
      %3215 = vmatprep.mubr.bf16.mxu0 0
      %3216 = vmatmul.mubr.bf16.gmra.mrb[0].mxu0 %v912
      %v3217 = vpop.f32.mrb[0].mxu0
      %v3218 = vadd.f32 %v3105, %v3217
      %v3219 = vpop.f32.mrb[0].mxu0
      %v3220 = vadd.f32 %v3107, %v3219
      %v3221 = vpop.f32.mrb[0].mxu0
      %v3222 = vadd.f32 %v3109, %v3221
      %v3223 = vpop.f32.mrb[0].mxu0
      %v3224 = vadd.f32 %v3111, %v3223
      %3225 = vmatprep.mubr.bf16.mxu0 0
      %3226 = vmatmul.mubr.bf16.gmra.mrb[0].mxu0 %v917
      %v3227 = vpop.f32.mrb[0].mxu0
      %v3228 = vadd.f32 %v3115, %v3227
      %v3229 = vpop.f32.mrb[0].mxu0
      %v3230 = vadd.f32 %v3117, %v3229
      %v3231 = vpop.f32.mrb[0].mxu0
      %v3232 = vadd.f32 %v3119, %v3231
      %v3233 = vpop.f32.mrb[0].mxu0
      %v3234 = vadd.f32 %v3121, %v3233
      %3235 = vdwg.mxu0
      %3236 = vmatprep.subr.bf16.mxu0 %v1923
      %3237 = vmatpush1.bf16.msra.mxu0 %v1922
      %3238 = vmatprep.subr.bf16.mxu0 %v1931
      %3239 = vmatpush1.bf16.msra.mxu0 %v1930
      %3240 = vmatprep.subr.bf16.mxu0 %v1939
      %3241 = vmatpush1.bf16.msra.mxu0 %v1938
      %3242 = vmatprep.subr.bf16.mxu0 %v1947
      %3243 = vmatpush1.bf16.msra.mxu0 %v1946
      %3244 = vmatprep.subr.bf16.mxu0 %v1955
      %3245 = vmatpush1.bf16.msra.mxu0 %v1954
      %3246 = vmatprep.subr.bf16.mxu0 %v1963
      %3247 = vmatpush1.bf16.msra.mxu0 %v1962
      %3248 = vmatprep.subr.bf16.mxu0 %v1971
      %3249 = vmatpush1.bf16.msra.mxu0 %v1970
      %3250 = vmatprep.subr.bf16.mxu0 %v1979
      %3251 = vmatpush1.bf16.msra.mxu0 %v1978
      %3252 = vmatprep.subr.bf16.mxu0 %v1987
      %3253 = vmatpush1.bf16.msra.mxu0 %v1986
      %3254 = vmatprep.subr.bf16.mxu0 %v1995
      %3255 = vmatpush1.bf16.msra.mxu0 %v1994
      %3256 = vmatprep.subr.bf16.mxu0 %v2003
      %3257 = vmatpush1.bf16.msra.mxu0 %v2002
      %3258 = vmatprep.subr.bf16.mxu0 %v2011
      %3259 = vmatpush1.bf16.msra.mxu0 %v2010
      %3260 = vmatprep.subr.bf16.mxu0 %v2019
      %3261 = vmatpush1.bf16.msra.mxu0 %v2018
      %3262 = vmatprep.subr.bf16.mxu0 %v2027
      %3263 = vmatpush1.bf16.msra.mxu0 %v2026
      %3264 = vmatprep.subr.bf16.mxu0 %v2035
      %3265 = vmatpush1.bf16.msra.mxu0 %v2034
      %3266 = vmatprep.subr.bf16.mxu0 %v2043
      %3267 = vmatpush1.bf16.msra.mxu0 %v2042
      %3268 = vmatprep.mubr.bf16.mxu0 %v879
      %3269 = vmatmul.mubr.bf16.gmra.mrb[0].mxu0 %v878
      %v3270 = vpop.f32.mrb[0].mxu0
      %v3271 = vadd.f32 %v729, %v3270
      %v3272 = vpop.f32.mrb[0].mxu0
      %v3273 = vadd.f32 %v733, %v3272
      %v3274 = vpop.f32.mrb[0].mxu0
      %v3275 = vadd.f32 %v729, %v3274
      %v3276 = vpop.f32.mrb[0].mxu0
      %v3277 = vadd.f32 %v733, %v3276
      %3278 = vmatprep.mubr.bf16.mxu0 %v884
      %3279 = vmatmul.mubr.bf16.gmra.mrb[0].mxu0 %v883
      %v3280 = vpop.f32.mrb[0].mxu0
      %v3281 = vadd.f32 %v729, %v3280
      %v3282 = vpop.f32.mrb[0].mxu0
      %v3283 = vadd.f32 %v733, %v3282
      %v3284 = vpop.f32.mrb[0].mxu0
      %v3285 = vadd.f32 %v729, %v3284
      %v3286 = vpop.f32.mrb[0].mxu0
      %v3287 = vadd.f32 %v733, %v3286
      %3288 = vmatprep.mubr.bf16.mxu0 %v889
      %3289 = vmatmul.mubr.bf16.gmra.mrb[0].mxu0 %v888
      %v3290 = vpop.f32.mrb[0].mxu0
      %v3291 = vadd.f32 %v729, %v3290
      %v3292 = vpop.f32.mrb[0].mxu0
      %v3293 = vadd.f32 %v733, %v3292
      %v3294 = vpop.f32.mrb[0].mxu0
      %v3295 = vadd.f32 %v729, %v3294
      %v3296 = vpop.f32.mrb[0].mxu0
      %v3297 = vadd.f32 %v733, %v3296
      %3298 = vmatprep.mubr.bf16.mxu0 %v894
      %3299 = vmatmul.mubr.bf16.gmra.mrb[0].mxu0 %v893
      %v3300 = vpop.f32.mrb[0].mxu0
      %v3301 = vadd.f32 %v729, %v3300
      %v3302 = vpop.f32.mrb[0].mxu0
      %v3303 = vadd.f32 %v733, %v3302
      %v3304 = vpop.f32.mrb[0].mxu0
      %v3305 = vadd.f32 %v729, %v3304
      %v3306 = vpop.f32.mrb[0].mxu0
      %v3307 = vadd.f32 %v733, %v3306
      %3308 = vmatprep.mubr.bf16.mxu0 %v899
      %3309 = vmatmul.mubr.bf16.gmra.mrb[0].mxu0 %v898
      %v3310 = vpop.f32.mrb[0].mxu0
      %v3311 = vadd.f32 %v729, %v3310
      %v3312 = vpop.f32.mrb[0].mxu0
      %v3313 = vadd.f32 %v733, %v3312
      %v3314 = vpop.f32.mrb[0].mxu0
      %v3315 = vadd.f32 %v729, %v3314
      %v3316 = vpop.f32.mrb[0].mxu0
      %v3317 = vadd.f32 %v733, %v3316
      %3318 = vmatprep.mubr.bf16.mxu0 %v904
      %3319 = vmatmul.mubr.bf16.gmra.mrb[0].mxu0 %v903
      %v3320 = vpop.f32.mrb[0].mxu0
      %v3321 = vadd.f32 %v729, %v3320
      %v3322 = vpop.f32.mrb[0].mxu0
      %v3323 = vadd.f32 %v733, %v3322
      %v3324 = vpop.f32.mrb[0].mxu0
      %v3325 = vadd.f32 %v729, %v3324
      %v3326 = vpop.f32.mrb[0].mxu0
      %v3327 = vadd.f32 %v733, %v3326
      %3328 = vmatprep.mubr.bf16.mxu0 %v909
      %3329 = vmatmul.mubr.bf16.gmra.mrb[0].mxu0 %v908
      %v3330 = vpop.f32.mrb[0].mxu0
      %v3331 = vadd.f32 %v729, %v3330
      %v3332 = vpop.f32.mrb[0].mxu0
      %v3333 = vadd.f32 %v733, %v3332
      %v3334 = vpop.f32.mrb[0].mxu0
      %v3335 = vadd.f32 %v729, %v3334
      %v3336 = vpop.f32.mrb[0].mxu0
      %v3337 = vadd.f32 %v733, %v3336
      %3338 = vmatprep.mubr.bf16.mxu0 %v914
      %3339 = vmatmul.mubr.bf16.gmra.mrb[0].mxu0 %v913
      %v3340 = vpop.f32.mrb[0].mxu0
      %v3341 = vadd.f32 %v729, %v3340
      %v3342 = vpop.f32.mrb[0].mxu0
      %v3343 = vadd.f32 %v733, %v3342
      %v3344 = vpop.f32.mrb[0].mxu0
      %v3345 = vadd.f32 %v729, %v3344
      %v3346 = vpop.f32.mrb[0].mxu0
      %v3347 = vadd.f32 %v733, %v3346
      %3348 = vdwg.mxu0
      %3349 = vmatprep.subr.bf16.mxu0 %v2051
      %3350 = vmatpush1.bf16.msra.mxu0 %v2050
      %3351 = vmatprep.subr.bf16.mxu0 %v2059
      %3352 = vmatpush1.bf16.msra.mxu0 %v2058
      %3353 = vmatprep.subr.bf16.mxu0 %v2067
      %3354 = vmatpush1.bf16.msra.mxu0 %v2066
      %3355 = vmatprep.subr.bf16.mxu0 %v2075
      %3356 = vmatpush1.bf16.msra.mxu0 %v2074
      %3357 = vmatprep.subr.bf16.mxu0 %v2083
      %3358 = vmatpush1.bf16.msra.mxu0 %v2082
      %3359 = vmatprep.subr.bf16.mxu0 %v2091
      %3360 = vmatpush1.bf16.msra.mxu0 %v2090
      %3361 = vmatprep.subr.bf16.mxu0 %v2099
      %3362 = vmatpush1.bf16.msra.mxu0 %v2098
      %3363 = vmatprep.subr.bf16.mxu0 %v2107
      %3364 = vmatpush1.bf16.msra.mxu0 %v2106
      %3365 = vmatprep.subr.bf16.mxu0 %v2115
      %3366 = vmatpush1.bf16.msra.mxu0 %v2114
      %3367 = vmatprep.subr.bf16.mxu0 %v2123
      %3368 = vmatpush1.bf16.msra.mxu0 %v2122
      %3369 = vmatprep.subr.bf16.mxu0 %v2131
      %3370 = vmatpush1.bf16.msra.mxu0 %v2130
      %3371 = vmatprep.subr.bf16.mxu0 %v2139
      %3372 = vmatpush1.bf16.msra.mxu0 %v2138
      %3373 = vmatprep.subr.bf16.mxu0 %v2147
      %3374 = vmatpush1.bf16.msra.mxu0 %v2146
      %3375 = vmatprep.subr.bf16.mxu0 %v2155
      %3376 = vmatpush1.bf16.msra.mxu0 %v2154
      %3377 = vmatprep.subr.bf16.mxu0 %v2163
      %3378 = vmatpush1.bf16.msra.mxu0 %v2162
      %3379 = vmatprep.subr.bf16.mxu0 %v2171
      %3380 = vmatpush1.bf16.msra.mxu0 %v2170
      %3381 = vmatprep.mubr.bf16.mxu0 %v881
      %3382 = vmatmul.mubr.bf16.gmra.mrb[0].mxu0 %v880
      %v3383 = vpop.f32.mrb[0].mxu0
      %v3384 = vadd.f32 %v3271, %v3383
      %v3385 = vpop.f32.mrb[0].mxu0
      %v3386 = vadd.f32 %v3273, %v3385
      %v3387 = vpop.f32.mrb[0].mxu0
      %v3388 = vadd.f32 %v3275, %v3387
      %v3389 = vpop.f32.mrb[0].mxu0
      %v3390 = vadd.f32 %v3277, %v3389
      %3391 = vmatprep.mubr.bf16.mxu0 %v886
      %3392 = vmatmul.mubr.bf16.gmra.mrb[0].mxu0 %v885
      %v3393 = vpop.f32.mrb[0].mxu0
      %v3394 = vadd.f32 %v3281, %v3393
      %v3395 = vpop.f32.mrb[0].mxu0
      %v3396 = vadd.f32 %v3283, %v3395
      %v3397 = vpop.f32.mrb[0].mxu0
      %v3398 = vadd.f32 %v3285, %v3397
      %v3399 = vpop.f32.mrb[0].mxu0
      %v3400 = vadd.f32 %v3287, %v3399
      %3401 = vmatprep.mubr.bf16.mxu0 %v891
      %3402 = vmatmul.mubr.bf16.gmra.mrb[0].mxu0 %v890
      %v3403 = vpop.f32.mrb[0].mxu0
      %v3404 = vadd.f32 %v3291, %v3403
      %v3405 = vpop.f32.mrb[0].mxu0
      %v3406 = vadd.f32 %v3293, %v3405
      %v3407 = vpop.f32.mrb[0].mxu0
      %v3408 = vadd.f32 %v3295, %v3407
      %v3409 = vpop.f32.mrb[0].mxu0
      %v3410 = vadd.f32 %v3297, %v3409
      %3411 = vmatprep.mubr.bf16.mxu0 %v896
      %3412 = vmatmul.mubr.bf16.gmra.mrb[0].mxu0 %v895
      %v3413 = vpop.f32.mrb[0].mxu0
      %v3414 = vadd.f32 %v3301, %v3413
      %v3415 = vpop.f32.mrb[0].mxu0
      %v3416 = vadd.f32 %v3303, %v3415
      %v3417 = vpop.f32.mrb[0].mxu0
      %v3418 = vadd.f32 %v3305, %v3417
      %v3419 = vpop.f32.mrb[0].mxu0
      %v3420 = vadd.f32 %v3307, %v3419
      %3421 = vmatprep.mubr.bf16.mxu0 %v901
      %3422 = vmatmul.mubr.bf16.gmra.mrb[0].mxu0 %v900
      %v3423 = vpop.f32.mrb[0].mxu0
      %v3424 = vadd.f32 %v3311, %v3423
      %v3425 = vpop.f32.mrb[0].mxu0
      %v3426 = vadd.f32 %v3313, %v3425
      %v3427 = vpop.f32.mrb[0].mxu0
      %v3428 = vadd.f32 %v3315, %v3427
      %v3429 = vpop.f32.mrb[0].mxu0
      %v3430 = vadd.f32 %v3317, %v3429
      %3431 = vmatprep.mubr.bf16.mxu0 %v906
      %3432 = vmatmul.mubr.bf16.gmra.mrb[0].mxu0 %v905
      %v3433 = vpop.f32.mrb[0].mxu0
      %v3434 = vadd.f32 %v3321, %v3433
      %v3435 = vpop.f32.mrb[0].mxu0
      %v3436 = vadd.f32 %v3323, %v3435
      %v3437 = vpop.f32.mrb[0].mxu0
      %v3438 = vadd.f32 %v3325, %v3437
      %v3439 = vpop.f32.mrb[0].mxu0
      %v3440 = vadd.f32 %v3327, %v3439
      %3441 = vmatprep.mubr.bf16.mxu0 %v911
      %3442 = vmatmul.mubr.bf16.gmra.mrb[0].mxu0 %v910
      %v3443 = vpop.f32.mrb[0].mxu0
      %v3444 = vadd.f32 %v3331, %v3443
      %v3445 = vpop.f32.mrb[0].mxu0
      %v3446 = vadd.f32 %v3333, %v3445
      %v3447 = vpop.f32.mrb[0].mxu0
      %v3448 = vadd.f32 %v3335, %v3447
      %v3449 = vpop.f32.mrb[0].mxu0
      %v3450 = vadd.f32 %v3337, %v3449
      %3451 = vmatprep.mubr.bf16.mxu0 %v916
      %3452 = vmatmul.mubr.bf16.gmra.mrb[0].mxu0 %v915
      %v3453 = vpop.f32.mrb[0].mxu0
      %v3454 = vadd.f32 %v3341, %v3453
      %v3455 = vpop.f32.mrb[0].mxu0
      %v3456 = vadd.f32 %v3343, %v3455
      %v3457 = vpop.f32.mrb[0].mxu0
      %v3458 = vadd.f32 %v3345, %v3457
      %v3459 = vpop.f32.mrb[0].mxu0
      %v3460 = vadd.f32 %v3347, %v3459
      %3461 = vdwg.mxu0
      %3462 = vmatprep.subr.bf16.mxu0 %v2179
      %3463 = vmatpush1.bf16.msra.mxu0 %v2178
      %3464 = vmatprep.subr.bf16.mxu0 %v2187
      %3465 = vmatpush1.bf16.msra.mxu0 %v2186
      %3466 = vmatprep.subr.bf16.mxu0 %v2195
      %3467 = vmatpush1.bf16.msra.mxu0 %v2194
      %3468 = vmatprep.subr.bf16.mxu0 %v2203
      %3469 = vmatpush1.bf16.msra.mxu0 %v2202
      %3470 = vmatprep.subr.bf16.mxu0 %v2211
      %3471 = vmatpush1.bf16.msra.mxu0 %v2210
      %3472 = vmatprep.subr.bf16.mxu0 %v2219
      %3473 = vmatpush1.bf16.msra.mxu0 %v2218
      %3474 = vmatprep.subr.bf16.mxu0 %v2227
      %3475 = vmatpush1.bf16.msra.mxu0 %v2226
      %3476 = vmatprep.subr.bf16.mxu0 %v2235
      %3477 = vmatpush1.bf16.msra.mxu0 %v2234
      %3478 = vmatprep.subr.bf16.mxu0 0
      %3479 = vmatpush1.bf16.msra.mxu0 0
      %3480 = vmatprep.subr.bf16.mxu0 0
      %3481 = vmatpush1.bf16.msra.mxu0 0
      %3482 = vmatprep.subr.bf16.mxu0 0
      %3483 = vmatpush1.bf16.msra.mxu0 0
      %3484 = vmatprep.subr.bf16.mxu0 0
      %3485 = vmatpush1.bf16.msra.mxu0 0
      %3486 = vmatprep.subr.bf16.mxu0 0
      %3487 = vmatpush1.bf16.msra.mxu0 0
      %3488 = vmatprep.subr.bf16.mxu0 0
      %3489 = vmatpush1.bf16.msra.mxu0 0
      %3490 = vmatprep.subr.bf16.mxu0 0
      %3491 = vmatpush1.bf16.msra.mxu0 0
      %3492 = vmatprep.subr.bf16.mxu0 0
      %3493 = vmatpush1.bf16.msra.mxu0 0
      %3494 = vmatprep.mubr.bf16.mxu0 0
      %3495 = vmatmul.mubr.bf16.gmra.mrb[0].mxu0 %v882
      %v3496 = vpop.f32.mrb[0].mxu0
      %v3497 = vadd.f32 %v3384, %v3496
      %v3498 = vpop.f32.mrb[0].mxu0
      %v3499 = vadd.f32 %v3386, %v3498
      %v3500 = vpop.f32.mrb[0].mxu0
      %v3501 = vadd.f32 %v3388, %v3500
      %v3502 = vpop.f32.mrb[0].mxu0
      %v3503 = vadd.f32 %v3390, %v3502
      %3504 = vmatprep.mubr.bf16.mxu0 0
      %3505 = vmatmul.mubr.bf16.gmra.mrb[0].mxu0 %v887
      %v3506 = vpop.f32.mrb[0].mxu0
      %v3507 = vadd.f32 %v3394, %v3506
      %v3508 = vpop.f32.mrb[0].mxu0
      %v3509 = vadd.f32 %v3396, %v3508
      %v3510 = vpop.f32.mrb[0].mxu0
      %v3511 = vadd.f32 %v3398, %v3510
      %v3512 = vpop.f32.mrb[0].mxu0
      %v3513 = vadd.f32 %v3400, %v3512
      %3514 = vmatprep.mubr.bf16.mxu0 0
      %3515 = vmatmul.mubr.bf16.gmra.mrb[0].mxu0 %v892
      %v3516 = vpop.f32.mrb[0].mxu0
      %v3517 = vadd.f32 %v3404, %v3516
      %v3518 = vpop.f32.mrb[0].mxu0
      %v3519 = vadd.f32 %v3406, %v3518
      %v3520 = vpop.f32.mrb[0].mxu0
      %v3521 = vadd.f32 %v3408, %v3520
      %v3522 = vpop.f32.mrb[0].mxu0
      %v3523 = vadd.f32 %v3410, %v3522
      %3524 = vmatprep.mubr.bf16.mxu0 0
      %3525 = vmatmul.mubr.bf16.gmra.mrb[0].mxu0 %v897
      %v3526 = vpop.f32.mrb[0].mxu0
      %v3527 = vadd.f32 %v3414, %v3526
      %v3528 = vpop.f32.mrb[0].mxu0
      %v3529 = vadd.f32 %v3416, %v3528
      %v3530 = vpop.f32.mrb[0].mxu0
      %v3531 = vadd.f32 %v3418, %v3530
      %v3532 = vpop.f32.mrb[0].mxu0
      %v3533 = vadd.f32 %v3420, %v3532
      %3534 = vmatprep.mubr.bf16.mxu0 0
      %3535 = vmatmul.mubr.bf16.gmra.mrb[0].mxu0 %v902
      %v3536 = vpop.f32.mrb[0].mxu0
      %v3537 = vadd.f32 %v3424, %v3536
      %v3538 = vpop.f32.mrb[0].mxu0
      %v3539 = vadd.f32 %v3426, %v3538
      %v3540 = vpop.f32.mrb[0].mxu0
      %v3541 = vadd.f32 %v3428, %v3540
      %v3542 = vpop.f32.mrb[0].mxu0
      %v3543 = vadd.f32 %v3430, %v3542
      %3544 = vmatprep.mubr.bf16.mxu0 0
      %3545 = vmatmul.mubr.bf16.gmra.mrb[0].mxu0 %v907
      %v3546 = vpop.f32.mrb[0].mxu0
      %v3547 = vadd.f32 %v3434, %v3546
      %v3548 = vpop.f32.mrb[0].mxu0
      %v3549 = vadd.f32 %v3436, %v3548
      %v3550 = vpop.f32.mrb[0].mxu0
      %v3551 = vadd.f32 %v3438, %v3550
      %v3552 = vpop.f32.mrb[0].mxu0
      %v3553 = vadd.f32 %v3440, %v3552
      %3554 = vmatprep.mubr.bf16.mxu0 0
      %3555 = vmatmul.mubr.bf16.gmra.mrb[0].mxu0 %v912
      %v3556 = vpop.f32.mrb[0].mxu0
      %v3557 = vadd.f32 %v3444, %v3556
      %v3558 = vpop.f32.mrb[0].mxu0
      %v3559 = vadd.f32 %v3446, %v3558
      %v3560 = vpop.f32.mrb[0].mxu0
      %v3561 = vadd.f32 %v3448, %v3560
      %v3562 = vpop.f32.mrb[0].mxu0
      %v3563 = vadd.f32 %v3450, %v3562
      %3564 = vmatprep.mubr.bf16.mxu0 0
      %3565 = vmatmul.mubr.bf16.gmra.mrb[0].mxu0 %v917
      %v3566 = vpop.f32.mrb[0].mxu0
      %v3567 = vadd.f32 %v3454, %v3566
      %v3568 = vpop.f32.mrb[0].mxu0
      %v3569 = vadd.f32 %v3456, %v3568
      %v3570 = vpop.f32.mrb[0].mxu0
      %v3571 = vadd.f32 %v3458, %v3570
      %v3572 = vpop.f32.mrb[0].mxu0
      %v3573 = vadd.f32 %v3460, %v3572
      %3574 = vdwg.mxu0
      %3575 = vmatprep.subr.bf16.mxu0 %v1925
      %3576 = vmatpush1.bf16.msra.mxu0 %v1924
      %3577 = vmatprep.subr.bf16.mxu0 %v1933
      %3578 = vmatpush1.bf16.msra.mxu0 %v1932
      %3579 = vmatprep.subr.bf16.mxu0 %v1941
      %3580 = vmatpush1.bf16.msra.mxu0 %v1940
      %3581 = vmatprep.subr.bf16.mxu0 %v1949
      %3582 = vmatpush1.bf16.msra.mxu0 %v1948
      %3583 = vmatprep.subr.bf16.mxu0 %v1957
      %3584 = vmatpush1.bf16.msra.mxu0 %v1956
      %3585 = vmatprep.subr.bf16.mxu0 %v1965
      %3586 = vmatpush1.bf16.msra.mxu0 %v1964
      %3587 = vmatprep.subr.bf16.mxu0 %v1973
      %3588 = vmatpush1.bf16.msra.mxu0 %v1972
      %3589 = vmatprep.subr.bf16.mxu0 %v1981
      %3590 = vmatpush1.bf16.msra.mxu0 %v1980
      %3591 = vmatprep.subr.bf16.mxu0 %v1989
      %3592 = vmatpush1.bf16.msra.mxu0 %v1988
      %3593 = vmatprep.subr.bf16.mxu0 %v1997
      %3594 = vmatpush1.bf16.msra.mxu0 %v1996
      %3595 = vmatprep.subr.bf16.mxu0 %v2005
      %3596 = vmatpush1.bf16.msra.mxu0 %v2004
      %3597 = vmatprep.subr.bf16.mxu0 %v2013
      %3598 = vmatpush1.bf16.msra.mxu0 %v2012
      %3599 = vmatprep.subr.bf16.mxu0 %v2021
      %3600 = vmatpush1.bf16.msra.mxu0 %v2020
      %3601 = vmatprep.subr.bf16.mxu0 %v2029
      %3602 = vmatpush1.bf16.msra.mxu0 %v2028
      %3603 = vmatprep.subr.bf16.mxu0 %v2037
      %3604 = vmatpush1.bf16.msra.mxu0 %v2036
      %3605 = vmatprep.subr.bf16.mxu0 %v2045
      %3606 = vmatpush1.bf16.msra.mxu0 %v2044
      %3607 = vmatprep.mubr.bf16.mxu0 %v879
      %3608 = vmatmul.mubr.bf16.gmra.mrb[0].mxu0 %v878
      %v3609 = vpop.f32.mrb[0].mxu0
      %v3610 = vadd.f32 %v737, %v3609
      %v3611 = vpop.f32.mrb[0].mxu0
      %v3612 = vadd.f32 %v741, %v3611
      %v3613 = vpop.f32.mrb[0].mxu0
      %v3614 = vadd.f32 %v737, %v3613
      %v3615 = vpop.f32.mrb[0].mxu0
      %v3616 = vadd.f32 %v741, %v3615
      %3617 = vmatprep.mubr.bf16.mxu0 %v884
      %3618 = vmatmul.mubr.bf16.gmra.mrb[0].mxu0 %v883
      %v3619 = vpop.f32.mrb[0].mxu0
      %v3620 = vadd.f32 %v737, %v3619
      %v3621 = vpop.f32.mrb[0].mxu0
      %v3622 = vadd.f32 %v741, %v3621
      %v3623 = vpop.f32.mrb[0].mxu0
      %v3624 = vadd.f32 %v737, %v3623
      %v3625 = vpop.f32.mrb[0].mxu0
      %v3626 = vadd.f32 %v741, %v3625
      %3627 = vmatprep.mubr.bf16.mxu0 %v889
      %3628 = vmatmul.mubr.bf16.gmra.mrb[0].mxu0 %v888
      %v3629 = vpop.f32.mrb[0].mxu0
      %v3630 = vadd.f32 %v737, %v3629
      %v3631 = vpop.f32.mrb[0].mxu0
      %v3632 = vadd.f32 %v741, %v3631
      %v3633 = vpop.f32.mrb[0].mxu0
      %v3634 = vadd.f32 %v737, %v3633
      %v3635 = vpop.f32.mrb[0].mxu0
      %v3636 = vadd.f32 %v741, %v3635
      %3637 = vmatprep.mubr.bf16.mxu0 %v894
      %3638 = vmatmul.mubr.bf16.gmra.mrb[0].mxu0 %v893
      %v3639 = vpop.f32.mrb[0].mxu0
      %v3640 = vadd.f32 %v737, %v3639
      %v3641 = vpop.f32.mrb[0].mxu0
      %v3642 = vadd.f32 %v741, %v3641
      %v3643 = vpop.f32.mrb[0].mxu0
      %v3644 = vadd.f32 %v737, %v3643
      %v3645 = vpop.f32.mrb[0].mxu0
      %v3646 = vadd.f32 %v741, %v3645
      %3647 = vmatprep.mubr.bf16.mxu0 %v899
      %3648 = vmatmul.mubr.bf16.gmra.mrb[0].mxu0 %v898
      %v3649 = vpop.f32.mrb[0].mxu0
      %v3650 = vadd.f32 %v737, %v3649
      %v3651 = vpop.f32.mrb[0].mxu0
      %v3652 = vadd.f32 %v741, %v3651
      %v3653 = vpop.f32.mrb[0].mxu0
      %v3654 = vadd.f32 %v737, %v3653
      %v3655 = vpop.f32.mrb[0].mxu0
      %v3656 = vadd.f32 %v741, %v3655
      %3657 = vmatprep.mubr.bf16.mxu0 %v904
      %3658 = vmatmul.mubr.bf16.gmra.mrb[0].mxu0 %v903
      %v3659 = vpop.f32.mrb[0].mxu0
      %v3660 = vadd.f32 %v737, %v3659
      %v3661 = vpop.f32.mrb[0].mxu0
      %v3662 = vadd.f32 %v741, %v3661
      %v3663 = vpop.f32.mrb[0].mxu0
      %v3664 = vadd.f32 %v737, %v3663
      %v3665 = vpop.f32.mrb[0].mxu0
      %v3666 = vadd.f32 %v741, %v3665
      %3667 = vmatprep.mubr.bf16.mxu0 %v909
      %3668 = vmatmul.mubr.bf16.gmra.mrb[0].mxu0 %v908
      %v3669 = vpop.f32.mrb[0].mxu0
      %v3670 = vadd.f32 %v737, %v3669
      %v3671 = vpop.f32.mrb[0].mxu0
      %v3672 = vadd.f32 %v741, %v3671
      %v3673 = vpop.f32.mrb[0].mxu0
      %v3674 = vadd.f32 %v737, %v3673
      %v3675 = vpop.f32.mrb[0].mxu0
      %v3676 = vadd.f32 %v741, %v3675
      %3677 = vmatprep.mubr.bf16.mxu0 %v914
      %3678 = vmatmul.mubr.bf16.gmra.mrb[0].mxu0 %v913
      %v3679 = vpop.f32.mrb[0].mxu0
      %v3680 = vadd.f32 %v737, %v3679
      %v3681 = vpop.f32.mrb[0].mxu0
      %v3682 = vadd.f32 %v741, %v3681
      %v3683 = vpop.f32.mrb[0].mxu0
      %v3684 = vadd.f32 %v737, %v3683
      %v3685 = vpop.f32.mrb[0].mxu0
      %v3686 = vadd.f32 %v741, %v3685
      %3687 = vdwg.mxu0
      %3688 = vmatprep.subr.bf16.mxu0 %v2053
      %3689 = vmatpush1.bf16.msra.mxu0 %v2052
      %3690 = vmatprep.subr.bf16.mxu0 %v2061
      %3691 = vmatpush1.bf16.msra.mxu0 %v2060
      %3692 = vmatprep.subr.bf16.mxu0 %v2069
      %3693 = vmatpush1.bf16.msra.mxu0 %v2068
      %3694 = vmatprep.subr.bf16.mxu0 %v2077
      %3695 = vmatpush1.bf16.msra.mxu0 %v2076
      %3696 = vmatprep.subr.bf16.mxu0 %v2085
      %3697 = vmatpush1.bf16.msra.mxu0 %v2084
      %3698 = vmatprep.subr.bf16.mxu0 %v2093
      %3699 = vmatpush1.bf16.msra.mxu0 %v2092
      %3700 = vmatprep.subr.bf16.mxu0 %v2101
      %3701 = vmatpush1.bf16.msra.mxu0 %v2100
      %3702 = vmatprep.subr.bf16.mxu0 %v2109
      %3703 = vmatpush1.bf16.msra.mxu0 %v2108
      %3704 = vmatprep.subr.bf16.mxu0 %v2117
      %3705 = vmatpush1.bf16.msra.mxu0 %v2116
      %3706 = vmatprep.subr.bf16.mxu0 %v2125
      %3707 = vmatpush1.bf16.msra.mxu0 %v2124
      %3708 = vmatprep.subr.bf16.mxu0 %v2133
      %3709 = vmatpush1.bf16.msra.mxu0 %v2132
      %3710 = vmatprep.subr.bf16.mxu0 %v2141
      %3711 = vmatpush1.bf16.msra.mxu0 %v2140
      %3712 = vmatprep.subr.bf16.mxu0 %v2149
      %3713 = vmatpush1.bf16.msra.mxu0 %v2148
      %3714 = vmatprep.subr.bf16.mxu0 %v2157
      %3715 = vmatpush1.bf16.msra.mxu0 %v2156
      %3716 = vmatprep.subr.bf16.mxu0 %v2165
      %3717 = vmatpush1.bf16.msra.mxu0 %v2164
      %3718 = vmatprep.subr.bf16.mxu0 %v2173
      %3719 = vmatpush1.bf16.msra.mxu0 %v2172
      %3720 = vmatprep.mubr.bf16.mxu0 %v881
      %3721 = vmatmul.mubr.bf16.gmra.mrb[0].mxu0 %v880
      %v3722 = vpop.f32.mrb[0].mxu0
      %v3723 = vadd.f32 %v3610, %v3722
      %v3724 = vpop.f32.mrb[0].mxu0
      %v3725 = vadd.f32 %v3612, %v3724
      %v3726 = vpop.f32.mrb[0].mxu0
      %v3727 = vadd.f32 %v3614, %v3726
      %v3728 = vpop.f32.mrb[0].mxu0
      %v3729 = vadd.f32 %v3616, %v3728
      %3730 = vmatprep.mubr.bf16.mxu0 %v886
      %3731 = vmatmul.mubr.bf16.gmra.mrb[0].mxu0 %v885
      %v3732 = vpop.f32.mrb[0].mxu0
      %v3733 = vadd.f32 %v3620, %v3732
      %v3734 = vpop.f32.mrb[0].mxu0
      %v3735 = vadd.f32 %v3622, %v3734
      %v3736 = vpop.f32.mrb[0].mxu0
      %v3737 = vadd.f32 %v3624, %v3736
      %v3738 = vpop.f32.mrb[0].mxu0
      %v3739 = vadd.f32 %v3626, %v3738
      %3740 = vmatprep.mubr.bf16.mxu0 %v891
      %3741 = vmatmul.mubr.bf16.gmra.mrb[0].mxu0 %v890
      %v3742 = vpop.f32.mrb[0].mxu0
      %v3743 = vadd.f32 %v3630, %v3742
      %v3744 = vpop.f32.mrb[0].mxu0
      %v3745 = vadd.f32 %v3632, %v3744
      %v3746 = vpop.f32.mrb[0].mxu0
      %v3747 = vadd.f32 %v3634, %v3746
      %v3748 = vpop.f32.mrb[0].mxu0
      %v3749 = vadd.f32 %v3636, %v3748
      %3750 = vmatprep.mubr.bf16.mxu0 %v896
      %3751 = vmatmul.mubr.bf16.gmra.mrb[0].mxu0 %v895
      %v3752 = vpop.f32.mrb[0].mxu0
      %v3753 = vadd.f32 %v3640, %v3752
      %v3754 = vpop.f32.mrb[0].mxu0
      %v3755 = vadd.f32 %v3642, %v3754
      %v3756 = vpop.f32.mrb[0].mxu0
      %v3757 = vadd.f32 %v3644, %v3756
      %v3758 = vpop.f32.mrb[0].mxu0
      %v3759 = vadd.f32 %v3646, %v3758
      %3760 = vmatprep.mubr.bf16.mxu0 %v901
      %3761 = vmatmul.mubr.bf16.gmra.mrb[0].mxu0 %v900
      %v3762 = vpop.f32.mrb[0].mxu0
      %v3763 = vadd.f32 %v3650, %v3762
      %v3764 = vpop.f32.mrb[0].mxu0
      %v3765 = vadd.f32 %v3652, %v3764
      %v3766 = vpop.f32.mrb[0].mxu0
      %v3767 = vadd.f32 %v3654, %v3766
      %v3768 = vpop.f32.mrb[0].mxu0
      %v3769 = vadd.f32 %v3656, %v3768
      %3770 = vmatprep.mubr.bf16.mxu0 %v906
      %3771 = vmatmul.mubr.bf16.gmra.mrb[0].mxu0 %v905
      %v3772 = vpop.f32.mrb[0].mxu0
      %v3773 = vadd.f32 %v3660, %v3772
      %v3774 = vpop.f32.mrb[0].mxu0
      %v3775 = vadd.f32 %v3662, %v3774
      %v3776 = vpop.f32.mrb[0].mxu0
      %v3777 = vadd.f32 %v3664, %v3776
      %v3778 = vpop.f32.mrb[0].mxu0
      %v3779 = vadd.f32 %v3666, %v3778
      %3780 = vmatprep.mubr.bf16.mxu0 %v911
      %3781 = vmatmul.mubr.bf16.gmra.mrb[0].mxu0 %v910
      %v3782 = vpop.f32.mrb[0].mxu0
      %v3783 = vadd.f32 %v3670, %v3782
      %v3784 = vpop.f32.mrb[0].mxu0
      %v3785 = vadd.f32 %v3672, %v3784
      %v3786 = vpop.f32.mrb[0].mxu0
      %v3787 = vadd.f32 %v3674, %v3786
      %v3788 = vpop.f32.mrb[0].mxu0
      %v3789 = vadd.f32 %v3676, %v3788
      %3790 = vmatprep.mubr.bf16.mxu0 %v916
      %3791 = vmatmul.mubr.bf16.gmra.mrb[0].mxu0 %v915
      %v3792 = vpop.f32.mrb[0].mxu0
      %v3793 = vadd.f32 %v3680, %v3792
      %v3794 = vpop.f32.mrb[0].mxu0
      %v3795 = vadd.f32 %v3682, %v3794
      %v3796 = vpop.f32.mrb[0].mxu0
      %v3797 = vadd.f32 %v3684, %v3796
      %v3798 = vpop.f32.mrb[0].mxu0
      %v3799 = vadd.f32 %v3686, %v3798
      %3800 = vdwg.mxu0
      %3801 = vmatprep.subr.bf16.mxu0 %v2181
      %3802 = vmatpush1.bf16.msra.mxu0 %v2180
      %3803 = vmatprep.subr.bf16.mxu0 %v2189
      %3804 = vmatpush1.bf16.msra.mxu0 %v2188
      %3805 = vmatprep.subr.bf16.mxu0 %v2197
      %3806 = vmatpush1.bf16.msra.mxu0 %v2196
      %3807 = vmatprep.subr.bf16.mxu0 %v2205
      %3808 = vmatpush1.bf16.msra.mxu0 %v2204
      %3809 = vmatprep.subr.bf16.mxu0 %v2213
      %3810 = vmatpush1.bf16.msra.mxu0 %v2212
      %3811 = vmatprep.subr.bf16.mxu0 %v2221
      %3812 = vmatpush1.bf16.msra.mxu0 %v2220
      %3813 = vmatprep.subr.bf16.mxu0 %v2229
      %3814 = vmatpush1.bf16.msra.mxu0 %v2228
      %3815 = vmatprep.subr.bf16.mxu0 %v2237
      %3816 = vmatpush1.bf16.msra.mxu0 %v2236
      %3817 = vmatprep.subr.bf16.mxu0 0
      %3818 = vmatpush1.bf16.msra.mxu0 0
      %3819 = vmatprep.subr.bf16.mxu0 0
      %3820 = vmatpush1.bf16.msra.mxu0 0
      %3821 = vmatprep.subr.bf16.mxu0 0
      %3822 = vmatpush1.bf16.msra.mxu0 0
      %3823 = vmatprep.subr.bf16.mxu0 0
      %3824 = vmatpush1.bf16.msra.mxu0 0
      %3825 = vmatprep.subr.bf16.mxu0 0
      %3826 = vmatpush1.bf16.msra.mxu0 0
      %3827 = vmatprep.subr.bf16.mxu0 0
      %3828 = vmatpush1.bf16.msra.mxu0 0
      %3829 = vmatprep.subr.bf16.mxu0 0
      %3830 = vmatpush1.bf16.msra.mxu0 0
      %3831 = vmatprep.subr.bf16.mxu0 0
      %3832 = vmatpush1.bf16.msra.mxu0 0
      %3833 = vmatprep.mubr.bf16.mxu0 0
      %3834 = vmatmul.mubr.bf16.gmra.mrb[0].mxu0 %v882
      %v3835 = vpop.f32.mrb[0].mxu0
      %v3836 = vadd.f32 %v3723, %v3835
      %v3837 = vpop.f32.mrb[0].mxu0
      %v3838 = vadd.f32 %v3725, %v3837
      %v3839 = vpop.f32.mrb[0].mxu0
      %v3840 = vadd.f32 %v3727, %v3839
      %v3841 = vpop.f32.mrb[0].mxu0
      %v3842 = vadd.f32 %v3729, %v3841
      %3843 = vmatprep.mubr.bf16.mxu0 0
      %3844 = vmatmul.mubr.bf16.gmra.mrb[0].mxu0 %v887
      %v3845 = vpop.f32.mrb[0].mxu0
      %v3846 = vadd.f32 %v3733, %v3845
      %v3847 = vpop.f32.mrb[0].mxu0
      %v3848 = vadd.f32 %v3735, %v3847
      %v3849 = vpop.f32.mrb[0].mxu0
      %v3850 = vadd.f32 %v3737, %v3849
      %v3851 = vpop.f32.mrb[0].mxu0
      %v3852 = vadd.f32 %v3739, %v3851
      %3853 = vmatprep.mubr.bf16.mxu0 0
      %3854 = vmatmul.mubr.bf16.gmra.mrb[0].mxu0 %v892
      %v3855 = vpop.f32.mrb[0].mxu0
      %v3856 = vadd.f32 %v3743, %v3855
      %v3857 = vpop.f32.mrb[0].mxu0
      %v3858 = vadd.f32 %v3745, %v3857
      %v3859 = vpop.f32.mrb[0].mxu0
      %v3860 = vadd.f32 %v3747, %v3859
      %v3861 = vpop.f32.mrb[0].mxu0
      %v3862 = vadd.f32 %v3749, %v3861
      %3863 = vmatprep.mubr.bf16.mxu0 0
      %3864 = vmatmul.mubr.bf16.gmra.mrb[0].mxu0 %v897
      %v3865 = vpop.f32.mrb[0].mxu0
      %v3866 = vadd.f32 %v3753, %v3865
      %v3867 = vpop.f32.mrb[0].mxu0
      %v3868 = vadd.f32 %v3755, %v3867
      %v3869 = vpop.f32.mrb[0].mxu0
      %v3870 = vadd.f32 %v3757, %v3869
      %v3871 = vpop.f32.mrb[0].mxu0
      %v3872 = vadd.f32 %v3759, %v3871
      %3873 = vmatprep.mubr.bf16.mxu0 0
      %3874 = vmatmul.mubr.bf16.gmra.mrb[0].mxu0 %v902
      %v3875 = vpop.f32.mrb[0].mxu0
      %v3876 = vadd.f32 %v3763, %v3875
      %v3877 = vpop.f32.mrb[0].mxu0
      %v3878 = vadd.f32 %v3765, %v3877
      %v3879 = vpop.f32.mrb[0].mxu0
      %v3880 = vadd.f32 %v3767, %v3879
      %v3881 = vpop.f32.mrb[0].mxu0
      %v3882 = vadd.f32 %v3769, %v3881
      %3883 = vmatprep.mubr.bf16.mxu0 0
      %3884 = vmatmul.mubr.bf16.gmra.mrb[0].mxu0 %v907
      %v3885 = vpop.f32.mrb[0].mxu0
      %v3886 = vadd.f32 %v3773, %v3885
      %v3887 = vpop.f32.mrb[0].mxu0
      %v3888 = vadd.f32 %v3775, %v3887
      %v3889 = vpop.f32.mrb[0].mxu0
      %v3890 = vadd.f32 %v3777, %v3889
      %v3891 = vpop.f32.mrb[0].mxu0
      %v3892 = vadd.f32 %v3779, %v3891
      %3893 = vmatprep.mubr.bf16.mxu0 0
      %3894 = vmatmul.mubr.bf16.gmra.mrb[0].mxu0 %v912
      %v3895 = vpop.f32.mrb[0].mxu0
      %v3896 = vadd.f32 %v3783, %v3895
      %v3897 = vpop.f32.mrb[0].mxu0
      %v3898 = vadd.f32 %v3785, %v3897
      %v3899 = vpop.f32.mrb[0].mxu0
      %v3900 = vadd.f32 %v3787, %v3899
      %v3901 = vpop.f32.mrb[0].mxu0
      %v3902 = vadd.f32 %v3789, %v3901
      %3903 = vmatprep.mubr.bf16.mxu0 0
      %3904 = vmatmul.mubr.bf16.gmra.mrb[0].mxu0 %v917
      %v3905 = vpop.f32.mrb[0].mxu0
      %v3906 = vadd.f32 %v3793, %v3905
      %v3907 = vpop.f32.mrb[0].mxu0
      %v3908 = vadd.f32 %v3795, %v3907
      %v3909 = vpop.f32.mrb[0].mxu0
      %v3910 = vadd.f32 %v3797, %v3909
      %v3911 = vpop.f32.mrb[0].mxu0
      %v3912 = vadd.f32 %v3799, %v3911
      %3913 = vdwg.mxu0
      %v3914 = vmax.f32 %v2819, 0.0
      %v3915 = vmax.f32 %v2821, 0.0
      %v3916 = vmax.f32 %v3158, 0.0
      %v3917 = vmax.f32 %v3160, 0.0
      %v3918 = vmax.f32 %v3497, 0.0
      %v3919 = vmax.f32 %v3499, 0.0
      %v3920 = vmax.f32 %v3836, 0.0
      %v3921 = vmax.f32 %v3838, 0.0
      %v3922 = vmax.f32 %v2823, 0.0
      %v3923 = vmax.f32 %v2825, 0.0
      %v3924 = vmax.f32 %v3162, 0.0
      %v3925 = vmax.f32 %v3164, 0.0
      %v3926 = vmax.f32 %v3501, 0.0
      %v3927 = vmax.f32 %v3503, 0.0
      %v3928 = vmax.f32 %v3840, 0.0
      %v3929 = vmax.f32 %v3842, 0.0
      %v3930 = vmax.f32 %v2829, 0.0
      %v3931 = vmax.f32 %v2831, 0.0
      %v3932 = vmax.f32 %v3168, 0.0
      %v3933 = vmax.f32 %v3170, 0.0
      %v3934 = vmax.f32 %v3507, 0.0
      %v3935 = vmax.f32 %v3509, 0.0
      %v3936 = vmax.f32 %v3846, 0.0
      %v3937 = vmax.f32 %v3848, 0.0
      %v3938 = vmax.f32 %v2833, 0.0
      %v3939 = vmax.f32 %v2835, 0.0
      %v3940 = vmax.f32 %v3172, 0.0
      %v3941 = vmax.f32 %v3174, 0.0
      %v3942 = vmax.f32 %v3511, 0.0
      %v3943 = vmax.f32 %v3513, 0.0
      %v3944 = vmax.f32 %v3850, 0.0
      %v3945 = vmax.f32 %v3852, 0.0
      %v3946 = vmax.f32 %v2839, 0.0
      %v3947 = vmax.f32 %v2841, 0.0
      %v3948 = vmax.f32 %v3178, 0.0
      %v3949 = vmax.f32 %v3180, 0.0
      %v3950 = vmax.f32 %v3517, 0.0
      %v3951 = vmax.f32 %v3519, 0.0
      %v3952 = vmax.f32 %v3856, 0.0
      %v3953 = vmax.f32 %v3858, 0.0
      %v3954 = vmax.f32 %v2843, 0.0
      %v3955 = vmax.f32 %v2845, 0.0
      %v3956 = vmax.f32 %v3182, 0.0
      %v3957 = vmax.f32 %v3184, 0.0
      %v3958 = vmax.f32 %v3521, 0.0
      %v3959 = vmax.f32 %v3523, 0.0
      %v3960 = vmax.f32 %v3860, 0.0
      %v3961 = vmax.f32 %v3862, 0.0
      %v3962 = vmax.f32 %v2849, 0.0
      %v3963 = vmax.f32 %v2851, 0.0
      %v3964 = vmax.f32 %v3188, 0.0
      %v3965 = vmax.f32 %v3190, 0.0
      %v3966 = vmax.f32 %v3527, 0.0
      %v3967 = vmax.f32 %v3529, 0.0
      %v3968 = vmax.f32 %v3866, 0.0
      %v3969 = vmax.f32 %v3868, 0.0
      %v3970 = vmax.f32 %v2853, 0.0
      %v3971 = vmax.f32 %v2855, 0.0
      %v3972 = vmax.f32 %v3192, 0.0
      %v3973 = vmax.f32 %v3194, 0.0
      %v3974 = vmax.f32 %v3531, 0.0
      %v3975 = vmax.f32 %v3533, 0.0
      %v3976 = vmax.f32 %v3870, 0.0
      %v3977 = vmax.f32 %v3872, 0.0
      %v3978 = vmax.f32 %v2859, 0.0
      %v3979 = vmax.f32 %v2861, 0.0
      %v3980 = vmax.f32 %v3198, 0.0
      %v3981 = vmax.f32 %v3200, 0.0
      %v3982 = vmax.f32 %v3537, 0.0
      %v3983 = vmax.f32 %v3539, 0.0
      %v3984 = vmax.f32 %v3876, 0.0
      %v3985 = vmax.f32 %v3878, 0.0
      %v3986 = vmax.f32 %v2863, 0.0
      %v3987 = vmax.f32 %v2865, 0.0
      %v3988 = vmax.f32 %v3202, 0.0
      %v3989 = vmax.f32 %v3204, 0.0
      %v3990 = vmax.f32 %v3541, 0.0
      %v3991 = vmax.f32 %v3543, 0.0
      %v3992 = vmax.f32 %v3880, 0.0
      %v3993 = vmax.f32 %v3882, 0.0
      %v3994 = vmax.f32 %v2869, 0.0
      %v3995 = vmax.f32 %v2871, 0.0
      %v3996 = vmax.f32 %v3208, 0.0
      %v3997 = vmax.f32 %v3210, 0.0
      %v3998 = vmax.f32 %v3547, 0.0
      %v3999 = vmax.f32 %v3549, 0.0
      %v4000 = vmax.f32 %v3886, 0.0
      %v4001 = vmax.f32 %v3888, 0.0
      %v4002 = vmax.f32 %v2873, 0.0
      %v4003 = vmax.f32 %v2875, 0.0
      %v4004 = vmax.f32 %v3212, 0.0
      %v4005 = vmax.f32 %v3214, 0.0
      %v4006 = vmax.f32 %v3551, 0.0
      %v4007 = vmax.f32 %v3553, 0.0
      %v4008 = vmax.f32 %v3890, 0.0
      %v4009 = vmax.f32 %v3892, 0.0
      %v4010 = vmax.f32 %v2879, 0.0
      %v4011 = vmax.f32 %v2881, 0.0
      %v4012 = vmax.f32 %v3218, 0.0
      %v4013 = vmax.f32 %v3220, 0.0
      %v4014 = vmax.f32 %v3557, 0.0
      %v4015 = vmax.f32 %v3559, 0.0
      %v4016 = vmax.f32 %v3896, 0.0
      %v4017 = vmax.f32 %v3898, 0.0
      %v4018 = vmax.f32 %v2883, 0.0
      %v4019 = vmax.f32 %v2885, 0.0
      %v4020 = vmax.f32 %v3222, 0.0
      %v4021 = vmax.f32 %v3224, 0.0
      %v4022 = vmax.f32 %v3561, 0.0
      %v4023 = vmax.f32 %v3563, 0.0
      %v4024 = vmax.f32 %v3900, 0.0
      %v4025 = vmax.f32 %v3902, 0.0
      %v4026 = vmax.f32 %v2889, 0.0
      %v4027 = vmax.f32 %v2891, 0.0
      %v4028 = vmax.f32 %v3228, 0.0
      %v4029 = vmax.f32 %v3230, 0.0
      %v4030 = vmax.f32 %v3567, 0.0
      %v4031 = vmax.f32 %v3569, 0.0
      %v4032 = vmax.f32 %v3906, 0.0
      %v4033 = vmax.f32 %v3908, 0.0
      %v4034 = vmax.f32 %v2893, 0.0
      %v4035 = vmax.f32 %v2895, 0.0
      %v4036 = vmax.f32 %v3232, 0.0
      %v4037 = vmax.f32 %v3234, 0.0
      %v4038 = vmax.f32 %v3571, 0.0
      %v4039 = vmax.f32 %v3573, 0.0
      %v4040 = vmax.f32 %v3910, 0.0
      %v4041 = vmax.f32 %v3912, 0.0
      %v4042 = vpack.c.bf16 %v3922, %v3914
      %v4043 = vpack.c.bf16 %v3923, %v3915
      %v4044 = vpack.c.bf16 %v3924, %v3916
      %v4045 = vpack.c.bf16 %v3925, %v3917
      %v4046 = vpack.c.bf16 %v3926, %v3918
      %v4047 = vpack.c.bf16 %v3927, %v3919
      %v4048 = vpack.c.bf16 %v3928, %v3920
      %v4049 = vpack.c.bf16 %v3929, %v3921
      %v4050 = vpack.c.bf16 %v3938, %v3930
      %v4051 = vpack.c.bf16 %v3939, %v3931
      %v4052 = vpack.c.bf16 %v3940, %v3932
      %v4053 = vpack.c.bf16 %v3941, %v3933
      %v4054 = vpack.c.bf16 %v3942, %v3934
      %v4055 = vpack.c.bf16 %v3943, %v3935
      %v4056 = vpack.c.bf16 %v3944, %v3936
      %v4057 = vpack.c.bf16 %v3945, %v3937
      %v4058 = vpack.c.bf16 %v3954, %v3946
      %v4059 = vpack.c.bf16 %v3955, %v3947
      %v4060 = vpack.c.bf16 %v3956, %v3948
      %v4061 = vpack.c.bf16 %v3957, %v3949
      %v4062 = vpack.c.bf16 %v3958, %v3950
      %v4063 = vpack.c.bf16 %v3959, %v3951
      %v4064 = vpack.c.bf16 %v3960, %v3952
      %v4065 = vpack.c.bf16 %v3961, %v3953
      %v4066 = vpack.c.bf16 %v3970, %v3962
      %v4067 = vpack.c.bf16 %v3971, %v3963
      %v4068 = vpack.c.bf16 %v3972, %v3964
      %v4069 = vpack.c.bf16 %v3973, %v3965
      %v4070 = vpack.c.bf16 %v3974, %v3966
      %v4071 = vpack.c.bf16 %v3975, %v3967
      %v4072 = vpack.c.bf16 %v3976, %v3968
      %v4073 = vpack.c.bf16 %v3977, %v3969
      %v4074 = vpack.c.bf16 %v3986, %v3978
      %v4075 = vpack.c.bf16 %v3987, %v3979
      %v4076 = vpack.c.bf16 %v3988, %v3980
      %v4077 = vpack.c.bf16 %v3989, %v3981
      %v4078 = vpack.c.bf16 %v3990, %v3982
      %v4079 = vpack.c.bf16 %v3991, %v3983
      %v4080 = vpack.c.bf16 %v3992, %v3984
      %v4081 = vpack.c.bf16 %v3993, %v3985
      %v4082 = vpack.c.bf16 %v4002, %v3994
      %v4083 = vpack.c.bf16 %v4003, %v3995
      %v4084 = vpack.c.bf16 %v4004, %v3996
      %v4085 = vpack.c.bf16 %v4005, %v3997
      %v4086 = vpack.c.bf16 %v4006, %v3998
      %v4087 = vpack.c.bf16 %v4007, %v3999
      %v4088 = vpack.c.bf16 %v4008, %v4000
      %v4089 = vpack.c.bf16 %v4009, %v4001
      %v4090 = vpack.c.bf16 %v4018, %v4010
      %v4091 = vpack.c.bf16 %v4019, %v4011
      %v4092 = vpack.c.bf16 %v4020, %v4012
      %v4093 = vpack.c.bf16 %v4021, %v4013
      %v4094 = vpack.c.bf16 %v4022, %v4014
      %v4095 = vpack.c.bf16 %v4023, %v4015
      %v4096 = vpack.c.bf16 %v4024, %v4016
      %v4097 = vpack.c.bf16 %v4025, %v4017
      %v4098 = vpack.c.bf16 %v4034, %v4026
      %v4099 = vpack.c.bf16 %v4035, %v4027
      %v4100 = vpack.c.bf16 %v4036, %v4028
      %v4101 = vpack.c.bf16 %v4037, %v4029
      %v4102 = vpack.c.bf16 %v4038, %v4030
      %v4103 = vpack.c.bf16 %v4039, %v4031
      %v4104 = vpack.c.bf16 %v4040, %v4032
      %v4105 = vpack.c.bf16 %v4041, %v4033
      %v4106 = vld [vmem:[%s3] sm:$0xff]
      %v4107 = vld [vmem:[%s3 + $0x8] sm:$0xff]
      %v4108 = vld [vmem:[%s3 + $0x10] sm:$0xff]
      %v4109 = vld [vmem:[%s3 + $0x18] sm:$0xff]
      %v4110 = vld [vmem:[%s3 + $0x20] sm:$0xff]
      %v4111 = vld [vmem:[%s3 + $0x28] sm:$0xff]
      %v4112 = vld [vmem:[%s3 + $0x30] sm:$0xff]
      %v4113 = vld [vmem:[%s3 + $0x38] sm:$0xff]
      %v4114 = vld [vmem:[%s3 + $0x40] sm:$0xff]
      %v4115 = vld [vmem:[%s3 + $0x48] sm:$0xff]
      %v4116 = vld [vmem:[%s3 + $0x50] sm:$0xff]
      %v4117 = vld [vmem:[%s3 + $0x58] sm:$0xff]
      %v4118 = vld [vmem:[%s3 + $0x60] sm:$0xff]
      %v4119 = vld [vmem:[%s3 + $0x68] sm:$0xff]
      %v4120 = vld [vmem:[%s3 + $0x70] sm:$0xff]
      %v4121 = vld [vmem:[%s3 + $0x78] sm:$0xff]
      %v4122 = vld [vmem:[%s3 + $0x80] sm:$0xff]
      %v4123 = vld [vmem:[%s3 + $0x88] sm:$0xff]
      %v4124 = vld [vmem:[%s3 + $0x90] sm:$0xff]
      %v4125 = vld [vmem:[%s3 + $0x98] sm:$0xff]
      %v4126 = vld [vmem:[%s3 + $0xa0] sm:$0xff]
      %v4127 = vld [vmem:[%s3 + $0xa8] sm:$0xff]
      %v4128 = vld [vmem:[%s3 + $0xb0] sm:$0xff]
      %v4129 = vld [vmem:[%s3 + $0xb8] sm:$0xff]
      %v4130 = vld [vmem:[%s3 + $0xc0] sm:$0xff]
      %v4131 = vld [vmem:[%s3 + $0xc8] sm:$0xff]
      %v4132 = vld [vmem:[%s3 + $0xd0] sm:$0xff]
      %v4133 = vld [vmem:[%s3 + $0xd8] sm:$0xff]
      %v4134 = vld [vmem:[%s3 + $0xe0] sm:$0xff]
      %v4135 = vld [vmem:[%s3 + $0xe8] sm:$0xff]
      %v4136 = vld [vmem:[%s3 + $0xf0] sm:$0xff]
      %v4137 = vld [vmem:[%s3 + $0xf8] sm:$0xff]
      %v4138 = vld [vmem:[%s3 + $0x100] sm:$0xff]
      %v4139 = vld [vmem:[%s3 + $0x108] sm:$0xff]
      %v4140 = vld [vmem:[%s3 + $0x110] sm:$0xff]
      %v4141 = vld [vmem:[%s3 + $0x118] sm:$0xff]
      %v4142 = vld [vmem:[%s3 + $0x120] sm:$0xff]
      %v4143 = vld [vmem:[%s3 + $0x128] sm:$0xff]
      %v4144 = vld [vmem:[%s3 + $0x130] sm:$0xff]
      %v4145 = vld [vmem:[%s3 + $0x138] sm:$0xff]
      %v4146 = vld [vmem:[%s3 + $0x140] sm:$0xff]
      %v4147 = vld [vmem:[%s3 + $0x148] sm:$0xff]
      %v4148 = vld [vmem:[%s3 + $0x150] sm:$0xff]
      %v4149 = vld [vmem:[%s3 + $0x158] sm:$0xff]
      %v4150 = vld [vmem:[%s3 + $0x160] sm:$0xff]
      %v4151 = vld [vmem:[%s3 + $0x168] sm:$0xff]
      %v4152 = vld [vmem:[%s3 + $0x170] sm:$0xff]
      %v4153 = vld [vmem:[%s3 + $0x178] sm:$0xff]
      %v4154 = vld [vmem:[%s3 + $0x180] sm:$0xff]
      %v4155 = vld [vmem:[%s3 + $0x188] sm:$0xff]
      %v4156 = vld [vmem:[%s3 + $0x190] sm:$0xff]
      %v4157 = vld [vmem:[%s3 + $0x198] sm:$0xff]
      %v4158 = vld [vmem:[%s3 + $0x1a0] sm:$0xff]
      %v4159 = vld [vmem:[%s3 + $0x1a8] sm:$0xff]
      %v4160 = vld [vmem:[%s3 + $0x1b0] sm:$0xff]
      %v4161 = vld [vmem:[%s3 + $0x1b8] sm:$0xff]
      %v4162 = vld [vmem:[%s3 + $0x1c0] sm:$0xff]
      %v4163 = vld [vmem:[%s3 + $0x1c8] sm:$0xff]
      %v4164 = vld [vmem:[%s3 + $0x1d0] sm:$0xff]
      %v4165 = vld [vmem:[%s3 + $0x1d8] sm:$0xff]
      %v4166 = vld [vmem:[%s3 + $0x1e0] sm:$0xff]
      %v4167 = vld [vmem:[%s3 + $0x1e8] sm:$0xff]
      %v4168 = vld [vmem:[%s3 + $0x1f0] sm:$0xff]
      %v4169 = vld [vmem:[%s3 + $0x1f8] sm:$0xff]
      %v4170 = vld [vmem:[%s3 + $0x200] sm:$0xff]
      %v4171 = vld [vmem:[%s3 + $0x208] sm:$0xff]
      %v4172 = vld [vmem:[%s3 + $0x210] sm:$0xff]
      %v4173 = vld [vmem:[%s3 + $0x218] sm:$0xff]
      %v4174 = vld [vmem:[%s3 + $0x220] sm:$0xff]
      %v4175 = vld [vmem:[%s3 + $0x228] sm:$0xff]
      %v4176 = vld [vmem:[%s3 + $0x230] sm:$0xff]
      %v4177 = vld [vmem:[%s3 + $0x238] sm:$0xff]
      %v4178 = vld [vmem:[%s3 + $0x240] sm:$0xff]
      %v4179 = vld [vmem:[%s3 + $0x248] sm:$0xff]
      %v4180 = vld [vmem:[%s3 + $0x250] sm:$0xff]
      %v4181 = vld [vmem:[%s3 + $0x258] sm:$0xff]
      %v4182 = vld [vmem:[%s3 + $0x260] sm:$0xff]
      %v4183 = vld [vmem:[%s3 + $0x268] sm:$0xff]
      %v4184 = vld [vmem:[%s3 + $0x270] sm:$0xff]
      %v4185 = vld [vmem:[%s3 + $0x278] sm:$0xff]
      %v4186 = vld [vmem:[%s3 + $0x280] sm:$0xff]
      %v4187 = vld [vmem:[%s3 + $0x288] sm:$0xff]
      %v4188 = vld [vmem:[%s3 + $0x290] sm:$0xff]
      %v4189 = vld [vmem:[%s3 + $0x298] sm:$0xff]
      %v4190 = vld [vmem:[%s3 + $0x2a0] sm:$0xff]
      %v4191 = vld [vmem:[%s3 + $0x2a8] sm:$0xff]
      %v4192 = vld [vmem:[%s3 + $0x2b0] sm:$0xff]
      %v4193 = vld [vmem:[%s3 + $0x2b8] sm:$0xff]
      %v4194 = vld [vmem:[%s3 + $0x2c0] sm:$0xff]
      %v4195 = vld [vmem:[%s3 + $0x2c8] sm:$0xff]
      %v4196 = vld [vmem:[%s3 + $0x2d0] sm:$0xff]
      %v4197 = vld [vmem:[%s3 + $0x2d8] sm:$0xff]
      %v4198 = vld [vmem:[%s3 + $0x2e0] sm:$0xff]
      %v4199 = vld [vmem:[%s3 + $0x2e8] sm:$0xff]
      %v4200 = vld [vmem:[%s3 + $0x2f0] sm:$0xff]
      %v4201 = vld [vmem:[%s3 + $0x2f8] sm:$0xff]
      %v4202 = vld [vmem:[%s3 + $0x300] sm:$0xff]
      %v4203 = vld [vmem:[%s3 + $0x308] sm:$0xff]
      %v4204 = vld [vmem:[%s3 + $0x310] sm:$0xff]
      %v4205 = vld [vmem:[%s3 + $0x318] sm:$0xff]
      %v4206 = vld [vmem:[%s3 + $0x320] sm:$0xff]
      %v4207 = vld [vmem:[%s3 + $0x328] sm:$0xff]
      %v4208 = vld [vmem:[%s3 + $0x330] sm:$0xff]
      %v4209 = vld [vmem:[%s3 + $0x338] sm:$0xff]
      %v4210 = vld [vmem:[%s3 + $0x340] sm:$0xff]
      %v4211 = vld [vmem:[%s3 + $0x348] sm:$0xff]
      %v4212 = vld [vmem:[%s3 + $0x350] sm:$0xff]
      %v4213 = vld [vmem:[%s3 + $0x358] sm:$0xff]
      %v4214 = vld [vmem:[%s3 + $0x360] sm:$0xff]
      %v4215 = vld [vmem:[%s3 + $0x368] sm:$0xff]
      %v4216 = vld [vmem:[%s3 + $0x370] sm:$0xff]
      %v4217 = vld [vmem:[%s3 + $0x378] sm:$0xff]
      %v4218 = vld [vmem:[%s3 + $0x380] sm:$0xff]
      %v4219 = vld [vmem:[%s3 + $0x388] sm:$0xff]
      %v4220 = vld [vmem:[%s3 + $0x390] sm:$0xff]
      %v4221 = vld [vmem:[%s3 + $0x398] sm:$0xff]
      %v4222 = vld [vmem:[%s3 + $0x3a0] sm:$0xff]
      %v4223 = vld [vmem:[%s3 + $0x3a8] sm:$0xff]
      %v4224 = vld [vmem:[%s3 + $0x3b0] sm:$0xff]
      %v4225 = vld [vmem:[%s3 + $0x3b8] sm:$0xff]
      %v4226 = vld [vmem:[%s3 + $0x3c0] sm:$0xff]
      %v4227 = vld [vmem:[%s3 + $0x3c8] sm:$0xff]
      %v4228 = vld [vmem:[%s3 + $0x3d0] sm:$0xff]
      %v4229 = vld [vmem:[%s3 + $0x3d8] sm:$0xff]
      %v4230 = vld [vmem:[%s3 + $0x3e0] sm:$0xff]
      %v4231 = vld [vmem:[%s3 + $0x3e8] sm:$0xff]
      %v4232 = vld [vmem:[%s3 + $0x3f0] sm:$0xff]
      %v4233 = vld [vmem:[%s3 + $0x3f8] sm:$0xff]
      %v4234 = vld [vmem:[%s3 + $0x400] sm:$0xff]
      %v4235 = vld [vmem:[%s3 + $0x408] sm:$0xff]
      %v4236 = vld [vmem:[%s3 + $0x410] sm:$0xff]
      %v4237 = vld [vmem:[%s3 + $0x418] sm:$0xff]
      %v4238 = vld [vmem:[%s3 + $0x420] sm:$0xff]
      %v4239 = vld [vmem:[%s3 + $0x428] sm:$0xff]
      %v4240 = vld [vmem:[%s3 + $0x430] sm:$0xff]
      %v4241 = vld [vmem:[%s3 + $0x438] sm:$0xff]
      %v4242 = vld [vmem:[%s3 + $0x440] sm:$0xff]
      %v4243 = vld [vmem:[%s3 + $0x448] sm:$0xff]
      %v4244 = vld [vmem:[%s3 + $0x450] sm:$0xff]
      %v4245 = vld [vmem:[%s3 + $0x458] sm:$0xff]
      %v4246 = vld [vmem:[%s3 + $0x460] sm:$0xff]
      %v4247 = vld [vmem:[%s3 + $0x468] sm:$0xff]
      %v4248 = vld [vmem:[%s3 + $0x470] sm:$0xff]
      %v4249 = vld [vmem:[%s3 + $0x478] sm:$0xff]
      %v4250 = vld [vmem:[%s3 + $0x480] sm:$0xff]
      %v4251 = vld [vmem:[%s3 + $0x488] sm:$0xff]
      %v4252 = vld [vmem:[%s3 + $0x490] sm:$0xff]
      %v4253 = vld [vmem:[%s3 + $0x498] sm:$0xff]
      %v4254 = vld [vmem:[%s3 + $0x4a0] sm:$0xff]
      %v4255 = vld [vmem:[%s3 + $0x4a8] sm:$0xff]
      %v4256 = vld [vmem:[%s3 + $0x4b0] sm:$0xff]
      %v4257 = vld [vmem:[%s3 + $0x4b8] sm:$0xff]
      %v4258 = vld [vmem:[%s3 + $0x4c0] sm:$0xff]
      %v4259 = vld [vmem:[%s3 + $0x4c8] sm:$0xff]
      %v4260 = vld [vmem:[%s3 + $0x4d0] sm:$0xff]
      %v4261 = vld [vmem:[%s3 + $0x4d8] sm:$0xff]
      %v4262 = vld [vmem:[%s3 + $0x4e0] sm:$0xff]
      %v4263 = vld [vmem:[%s3 + $0x4e8] sm:$0xff]
      %v4264 = vld [vmem:[%s3 + $0x4f0] sm:$0xff]
      %v4265 = vld [vmem:[%s3 + $0x4f8] sm:$0xff]
      %v4266 = vld [vmem:[%s3 + $0x500] sm:$0xff]
      %v4267 = vld [vmem:[%s3 + $0x508] sm:$0xff]
      %v4268 = vld [vmem:[%s3 + $0x510] sm:$0xff]
      %v4269 = vld [vmem:[%s3 + $0x518] sm:$0xff]
      %v4270 = vld [vmem:[%s3 + $0x520] sm:$0xff]
      %v4271 = vld [vmem:[%s3 + $0x528] sm:$0xff]
      %v4272 = vld [vmem:[%s3 + $0x530] sm:$0xff]
      %v4273 = vld [vmem:[%s3 + $0x538] sm:$0xff]
      %v4274 = vld [vmem:[%s3 + $0x540] sm:$0xff]
      %v4275 = vld [vmem:[%s3 + $0x548] sm:$0xff]
      %v4276 = vld [vmem:[%s3 + $0x550] sm:$0xff]
      %v4277 = vld [vmem:[%s3 + $0x558] sm:$0xff]
      %v4278 = vld [vmem:[%s3 + $0x560] sm:$0xff]
      %v4279 = vld [vmem:[%s3 + $0x568] sm:$0xff]
      %v4280 = vld [vmem:[%s3 + $0x570] sm:$0xff]
      %v4281 = vld [vmem:[%s3 + $0x578] sm:$0xff]
      %v4282 = vld [vmem:[%s3 + $0x580] sm:$0xff]
      %v4283 = vld [vmem:[%s3 + $0x588] sm:$0xff]
      %v4284 = vld [vmem:[%s3 + $0x590] sm:$0xff]
      %v4285 = vld [vmem:[%s3 + $0x598] sm:$0xff]
      %v4286 = vld [vmem:[%s3 + $0x5a0] sm:$0xff]
      %v4287 = vld [vmem:[%s3 + $0x5a8] sm:$0xff]
      %v4288 = vld [vmem:[%s3 + $0x5b0] sm:$0xff]
      %v4289 = vld [vmem:[%s3 + $0x5b8] sm:$0xff]
      %v4290 = vld [vmem:[%s3 + $0x5c0] sm:$0xff]
      %v4291 = vld [vmem:[%s3 + $0x5c8] sm:$0xff]
      %v4292 = vld [vmem:[%s3 + $0x5d0] sm:$0xff]
      %v4293 = vld [vmem:[%s3 + $0x5d8] sm:$0xff]
      %v4294 = vld [vmem:[%s3 + $0x5e0] sm:$0xff]
      %v4295 = vld [vmem:[%s3 + $0x5e8] sm:$0xff]
      %v4296 = vld [vmem:[%s3 + $0x5f0] sm:$0xff]
      %v4297 = vld [vmem:[%s3 + $0x5f8] sm:$0xff]
      %v4298 = vld [vmem:[%s3 + $0x600] sm:$0xff]
      %v4299 = vld [vmem:[%s3 + $0x608] sm:$0xff]
      %v4300 = vld [vmem:[%s3 + $0x610] sm:$0xff]
      %v4301 = vld [vmem:[%s3 + $0x618] sm:$0xff]
      %v4302 = vld [vmem:[%s3 + $0x620] sm:$0xff]
      %v4303 = vld [vmem:[%s3 + $0x628] sm:$0xff]
      %v4304 = vld [vmem:[%s3 + $0x630] sm:$0xff]
      %v4305 = vld [vmem:[%s3 + $0x638] sm:$0xff]
      %v4306 = vld [vmem:[%s3 + $0x640] sm:$0xff]
      %v4307 = vld [vmem:[%s3 + $0x648] sm:$0xff]
      %v4308 = vld [vmem:[%s3 + $0x650] sm:$0xff]
      %v4309 = vld [vmem:[%s3 + $0x658] sm:$0xff]
      %v4310 = vld [vmem:[%s3 + $0x660] sm:$0xff]
      %v4311 = vld [vmem:[%s3 + $0x668] sm:$0xff]
      %v4312 = vld [vmem:[%s3 + $0x670] sm:$0xff]
      %v4313 = vld [vmem:[%s3 + $0x678] sm:$0xff]
      %v4314 = vld [vmem:[%s3 + $0x680] sm:$0xff]
      %v4315 = vld [vmem:[%s3 + $0x688] sm:$0xff]
      %v4316 = vld [vmem:[%s3 + $0x690] sm:$0xff]
      %v4317 = vld [vmem:[%s3 + $0x698] sm:$0xff]
      %v4318 = vld [vmem:[%s3 + $0x6a0] sm:$0xff]
      %v4319 = vld [vmem:[%s3 + $0x6a8] sm:$0xff]
      %v4320 = vld [vmem:[%s3 + $0x6b0] sm:$0xff]
      %v4321 = vld [vmem:[%s3 + $0x6b8] sm:$0xff]
      %v4322 = vld [vmem:[%s3 + $0x6c0] sm:$0xff]
      %v4323 = vld [vmem:[%s3 + $0x6c8] sm:$0xff]
      %v4324 = vld [vmem:[%s3 + $0x6d0] sm:$0xff]
      %v4325 = vld [vmem:[%s3 + $0x6d8] sm:$0xff]
      %v4326 = vld [vmem:[%s3 + $0x6e0] sm:$0xff]
      %v4327 = vld [vmem:[%s3 + $0x6e8] sm:$0xff]
      %v4328 = vld [vmem:[%s3 + $0x6f0] sm:$0xff]
      %v4329 = vld [vmem:[%s3 + $0x6f8] sm:$0xff]
      %v4330 = vld [vmem:[%s3 + $0x700] sm:$0xff]
      %v4331 = vld [vmem:[%s3 + $0x708] sm:$0xff]
      %v4332 = vld [vmem:[%s3 + $0x710] sm:$0xff]
      %v4333 = vld [vmem:[%s3 + $0x718] sm:$0xff]
      %v4334 = vld [vmem:[%s3 + $0x720] sm:$0xff]
      %v4335 = vld [vmem:[%s3 + $0x728] sm:$0xff]
      %v4336 = vld [vmem:[%s3 + $0x730] sm:$0xff]
      %v4337 = vld [vmem:[%s3 + $0x738] sm:$0xff]
      %v4338 = vld [vmem:[%s3 + $0x740] sm:$0xff]
      %v4339 = vld [vmem:[%s3 + $0x748] sm:$0xff]
      %v4340 = vld [vmem:[%s3 + $0x750] sm:$0xff]
      %v4341 = vld [vmem:[%s3 + $0x758] sm:$0xff]
      %v4342 = vld [vmem:[%s3 + $0x760] sm:$0xff]
      %v4343 = vld [vmem:[%s3 + $0x768] sm:$0xff]
      %v4344 = vld [vmem:[%s3 + $0x770] sm:$0xff]
      %v4345 = vld [vmem:[%s3 + $0x778] sm:$0xff]
      %v4346 = vld [vmem:[%s3 + $0x780] sm:$0xff]
      %v4347 = vld [vmem:[%s3 + $0x788] sm:$0xff]
      %v4348 = vld [vmem:[%s3 + $0x790] sm:$0xff]
      %v4349 = vld [vmem:[%s3 + $0x798] sm:$0xff]
      %v4350 = vld [vmem:[%s3 + $0x7a0] sm:$0xff]
      %v4351 = vld [vmem:[%s3 + $0x7a8] sm:$0xff]
      %v4352 = vld [vmem:[%s3 + $0x7b0] sm:$0xff]
      %v4353 = vld [vmem:[%s3 + $0x7b8] sm:$0xff]
      %v4354 = vld [vmem:[%s3 + $0x7c0] sm:$0xff]
      %v4355 = vld [vmem:[%s3 + $0x7c8] sm:$0xff]
      %v4356 = vld [vmem:[%s3 + $0x7d0] sm:$0xff]
      %v4357 = vld [vmem:[%s3 + $0x7d8] sm:$0xff]
      %v4358 = vld [vmem:[%s3 + $0x7e0] sm:$0xff]
      %v4359 = vld [vmem:[%s3 + $0x7e8] sm:$0xff]
      %v4360 = vld [vmem:[%s3 + $0x7f0] sm:$0xff]
      %v4361 = vld [vmem:[%s3 + $0x7f8] sm:$0xff]
      %v4362 = vld [vmem:[%s4] sm:$0xf]
      %v4364 = vlaneseq
      %v4365 = vshrl.u32 %v4364, 7
      %v4366 = vsub.s32 0, %v4365
      %v4367 = vrot.slane %v4362, %v4366
      %v4368 = vlaneseq
      %v4369 = vshrl.u32 %v4368, 7
      %v4370 = vsub.s32 1, %v4369
      %v4371 = vrot.slane %v4362, %v4370
      %v4372 = vlaneseq
      %v4373 = vshrl.u32 %v4372, 7
      %v4374 = vsub.s32 2, %v4373
      %v4375 = vrot.slane %v4362, %v4374
      %v4376 = vlaneseq
      %v4377 = vshrl.u32 %v4376, 7
      %v4378 = vsub.s32 3, %v4377
      %v4379 = vrot.slane %v4362, %v4378
      %v4640 = vunpack.c.l.b16 %v4106
      %v4641 = vunpack.c.h.b16 %v4106
      %v4642 = vunpack.c.l.b16 %v4107
      %v4643 = vunpack.c.h.b16 %v4107
      %v4644 = vunpack.c.l.b16 %v4108
      %v4645 = vunpack.c.h.b16 %v4108
      %v4646 = vunpack.c.l.b16 %v4109
      %v4647 = vunpack.c.h.b16 %v4109
      %v4648 = vunpack.c.l.b16 %v4110
      %v4649 = vunpack.c.h.b16 %v4110
      %v4650 = vunpack.c.l.b16 %v4111
      %v4651 = vunpack.c.h.b16 %v4111
      %v4652 = vunpack.c.l.b16 %v4112
      %v4653 = vunpack.c.h.b16 %v4112
      %v4654 = vunpack.c.l.b16 %v4113
      %v4655 = vunpack.c.h.b16 %v4113
      %v4656 = vunpack.c.l.b16 %v4114
      %v4657 = vunpack.c.h.b16 %v4114
      %v4658 = vunpack.c.l.b16 %v4115
      %v4659 = vunpack.c.h.b16 %v4115
      %v4660 = vunpack.c.l.b16 %v4116
      %v4661 = vunpack.c.h.b16 %v4116
      %v4662 = vunpack.c.l.b16 %v4117
      %v4663 = vunpack.c.h.b16 %v4117
      %v4664 = vunpack.c.l.b16 %v4118
      %v4665 = vunpack.c.h.b16 %v4118
      %v4666 = vunpack.c.l.b16 %v4119
      %v4667 = vunpack.c.h.b16 %v4119
      %v4668 = vunpack.c.l.b16 %v4120
      %v4669 = vunpack.c.h.b16 %v4120
      %v4670 = vunpack.c.l.b16 %v4121
      %v4671 = vunpack.c.h.b16 %v4121
      %v4672 = vunpack.c.l.b16 %v4122
      %v4673 = vunpack.c.h.b16 %v4122
      %v4674 = vunpack.c.l.b16 %v4123
      %v4675 = vunpack.c.h.b16 %v4123
      %v4676 = vunpack.c.l.b16 %v4124
      %v4677 = vunpack.c.h.b16 %v4124
      %v4678 = vunpack.c.l.b16 %v4125
      %v4679 = vunpack.c.h.b16 %v4125
      %v4680 = vunpack.c.l.b16 %v4126
      %v4681 = vunpack.c.h.b16 %v4126
      %v4682 = vunpack.c.l.b16 %v4127
      %v4683 = vunpack.c.h.b16 %v4127
      %v4684 = vunpack.c.l.b16 %v4128
      %v4685 = vunpack.c.h.b16 %v4128
      %v4686 = vunpack.c.l.b16 %v4129
      %v4687 = vunpack.c.h.b16 %v4129
      %v4688 = vunpack.c.l.b16 %v4130
      %v4689 = vunpack.c.h.b16 %v4130
      %v4690 = vunpack.c.l.b16 %v4131
      %v4691 = vunpack.c.h.b16 %v4131
      %v4692 = vunpack.c.l.b16 %v4132
      %v4693 = vunpack.c.h.b16 %v4132
      %v4694 = vunpack.c.l.b16 %v4133
      %v4695 = vunpack.c.h.b16 %v4133
      %v4696 = vunpack.c.l.b16 %v4134
      %v4697 = vunpack.c.h.b16 %v4134
      %v4698 = vunpack.c.l.b16 %v4135
      %v4699 = vunpack.c.h.b16 %v4135
      %v4700 = vunpack.c.l.b16 %v4136
      %v4701 = vunpack.c.h.b16 %v4136
      %v4702 = vunpack.c.l.b16 %v4137
      %v4703 = vunpack.c.h.b16 %v4137
      %v4704 = vunpack.c.l.b16 %v4138
      %v4705 = vunpack.c.h.b16 %v4138
      %v4706 = vunpack.c.l.b16 %v4139
      %v4707 = vunpack.c.h.b16 %v4139
      %v4708 = vunpack.c.l.b16 %v4140
      %v4709 = vunpack.c.h.b16 %v4140
      %v4710 = vunpack.c.l.b16 %v4141
      %v4711 = vunpack.c.h.b16 %v4141
      %v4712 = vunpack.c.l.b16 %v4142
      %v4713 = vunpack.c.h.b16 %v4142
      %v4714 = vunpack.c.l.b16 %v4143
      %v4715 = vunpack.c.h.b16 %v4143
      %v4716 = vunpack.c.l.b16 %v4144
      %v4717 = vunpack.c.h.b16 %v4144
      %v4718 = vunpack.c.l.b16 %v4145
      %v4719 = vunpack.c.h.b16 %v4145
      %v4720 = vunpack.c.l.b16 %v4146
      %v4721 = vunpack.c.h.b16 %v4146
      %v4722 = vunpack.c.l.b16 %v4147
      %v4723 = vunpack.c.h.b16 %v4147
      %v4724 = vunpack.c.l.b16 %v4148
      %v4725 = vunpack.c.h.b16 %v4148
      %v4726 = vunpack.c.l.b16 %v4149
      %v4727 = vunpack.c.h.b16 %v4149
      %v4728 = vunpack.c.l.b16 %v4150
      %v4729 = vunpack.c.h.b16 %v4150
      %v4730 = vunpack.c.l.b16 %v4151
      %v4731 = vunpack.c.h.b16 %v4151
      %v4732 = vunpack.c.l.b16 %v4152
      %v4733 = vunpack.c.h.b16 %v4152
      %v4734 = vunpack.c.l.b16 %v4153
      %v4735 = vunpack.c.h.b16 %v4153
      %v4736 = vunpack.c.l.b16 %v4154
      %v4737 = vunpack.c.h.b16 %v4154
      %v4738 = vunpack.c.l.b16 %v4155
      %v4739 = vunpack.c.h.b16 %v4155
      %v4740 = vunpack.c.l.b16 %v4156
      %v4741 = vunpack.c.h.b16 %v4156
      %v4742 = vunpack.c.l.b16 %v4157
      %v4743 = vunpack.c.h.b16 %v4157
      %v4744 = vunpack.c.l.b16 %v4158
      %v4745 = vunpack.c.h.b16 %v4158
      %v4746 = vunpack.c.l.b16 %v4159
      %v4747 = vunpack.c.h.b16 %v4159
      %v4748 = vunpack.c.l.b16 %v4160
      %v4749 = vunpack.c.h.b16 %v4160
      %v4750 = vunpack.c.l.b16 %v4161
      %v4751 = vunpack.c.h.b16 %v4161
      %v4752 = vunpack.c.l.b16 %v4162
      %v4753 = vunpack.c.h.b16 %v4162
      %v4754 = vunpack.c.l.b16 %v4163
      %v4755 = vunpack.c.h.b16 %v4163
      %v4756 = vunpack.c.l.b16 %v4164
      %v4757 = vunpack.c.h.b16 %v4164
      %v4758 = vunpack.c.l.b16 %v4165
      %v4759 = vunpack.c.h.b16 %v4165
      %v4760 = vunpack.c.l.b16 %v4166
      %v4761 = vunpack.c.h.b16 %v4166
      %v4762 = vunpack.c.l.b16 %v4167
      %v4763 = vunpack.c.h.b16 %v4167
      %v4764 = vunpack.c.l.b16 %v4168
      %v4765 = vunpack.c.h.b16 %v4168
      %v4766 = vunpack.c.l.b16 %v4169
      %v4767 = vunpack.c.h.b16 %v4169
      %v4768 = vunpack.c.l.b16 %v4170
      %v4769 = vunpack.c.h.b16 %v4170
      %v4770 = vunpack.c.l.b16 %v4171
      %v4771 = vunpack.c.h.b16 %v4171
      %v4772 = vunpack.c.l.b16 %v4172
      %v4773 = vunpack.c.h.b16 %v4172
      %v4774 = vunpack.c.l.b16 %v4173
      %v4775 = vunpack.c.h.b16 %v4173
      %v4776 = vunpack.c.l.b16 %v4174
      %v4777 = vunpack.c.h.b16 %v4174
      %v4778 = vunpack.c.l.b16 %v4175
      %v4779 = vunpack.c.h.b16 %v4175
      %v4780 = vunpack.c.l.b16 %v4176
      %v4781 = vunpack.c.h.b16 %v4176
      %v4782 = vunpack.c.l.b16 %v4177
      %v4783 = vunpack.c.h.b16 %v4177
      %v4784 = vunpack.c.l.b16 %v4178
      %v4785 = vunpack.c.h.b16 %v4178
      %v4786 = vunpack.c.l.b16 %v4179
      %v4787 = vunpack.c.h.b16 %v4179
      %v4788 = vunpack.c.l.b16 %v4180
      %v4789 = vunpack.c.h.b16 %v4180
      %v4790 = vunpack.c.l.b16 %v4181
      %v4791 = vunpack.c.h.b16 %v4181
      %v4792 = vunpack.c.l.b16 %v4182
      %v4793 = vunpack.c.h.b16 %v4182
      %v4794 = vunpack.c.l.b16 %v4183
      %v4795 = vunpack.c.h.b16 %v4183
      %v4796 = vunpack.c.l.b16 %v4184
      %v4797 = vunpack.c.h.b16 %v4184
      %v4798 = vunpack.c.l.b16 %v4185
      %v4799 = vunpack.c.h.b16 %v4185
      %v4800 = vunpack.c.l.b16 %v4186
      %v4801 = vunpack.c.h.b16 %v4186
      %v4802 = vunpack.c.l.b16 %v4187
      %v4803 = vunpack.c.h.b16 %v4187
      %v4804 = vunpack.c.l.b16 %v4188
      %v4805 = vunpack.c.h.b16 %v4188
      %v4806 = vunpack.c.l.b16 %v4189
      %v4807 = vunpack.c.h.b16 %v4189
      %v4808 = vunpack.c.l.b16 %v4190
      %v4809 = vunpack.c.h.b16 %v4190
      %v4810 = vunpack.c.l.b16 %v4191
      %v4811 = vunpack.c.h.b16 %v4191
      %v4812 = vunpack.c.l.b16 %v4192
      %v4813 = vunpack.c.h.b16 %v4192
      %v4814 = vunpack.c.l.b16 %v4193
      %v4815 = vunpack.c.h.b16 %v4193
      %v4816 = vunpack.c.l.b16 %v4194
      %v4817 = vunpack.c.h.b16 %v4194
      %v4818 = vunpack.c.l.b16 %v4195
      %v4819 = vunpack.c.h.b16 %v4195
      %v4820 = vunpack.c.l.b16 %v4196
      %v4821 = vunpack.c.h.b16 %v4196
      %v4822 = vunpack.c.l.b16 %v4197
      %v4823 = vunpack.c.h.b16 %v4197
      %v4824 = vunpack.c.l.b16 %v4198
      %v4825 = vunpack.c.h.b16 %v4198
      %v4826 = vunpack.c.l.b16 %v4199
      %v4827 = vunpack.c.h.b16 %v4199
      %v4828 = vunpack.c.l.b16 %v4200
      %v4829 = vunpack.c.h.b16 %v4200
      %v4830 = vunpack.c.l.b16 %v4201
      %v4831 = vunpack.c.h.b16 %v4201
      %v4832 = vunpack.c.l.b16 %v4202
      %v4833 = vunpack.c.h.b16 %v4202
      %v4834 = vunpack.c.l.b16 %v4203
      %v4835 = vunpack.c.h.b16 %v4203
      %v4836 = vunpack.c.l.b16 %v4204
      %v4837 = vunpack.c.h.b16 %v4204
      %v4838 = vunpack.c.l.b16 %v4205
      %v4839 = vunpack.c.h.b16 %v4205
      %v4840 = vunpack.c.l.b16 %v4206
      %v4841 = vunpack.c.h.b16 %v4206
      %v4842 = vunpack.c.l.b16 %v4207
      %v4843 = vunpack.c.h.b16 %v4207
      %v4844 = vunpack.c.l.b16 %v4208
      %v4845 = vunpack.c.h.b16 %v4208
      %v4846 = vunpack.c.l.b16 %v4209
      %v4847 = vunpack.c.h.b16 %v4209
      %v4848 = vunpack.c.l.b16 %v4210
      %v4849 = vunpack.c.h.b16 %v4210
      %v4850 = vunpack.c.l.b16 %v4211
      %v4851 = vunpack.c.h.b16 %v4211
      %v4852 = vunpack.c.l.b16 %v4212
      %v4853 = vunpack.c.h.b16 %v4212
      %v4854 = vunpack.c.l.b16 %v4213
      %v4855 = vunpack.c.h.b16 %v4213
      %v4856 = vunpack.c.l.b16 %v4214
      %v4857 = vunpack.c.h.b16 %v4214
      %v4858 = vunpack.c.l.b16 %v4215
      %v4859 = vunpack.c.h.b16 %v4215
      %v4860 = vunpack.c.l.b16 %v4216
      %v4861 = vunpack.c.h.b16 %v4216
      %v4862 = vunpack.c.l.b16 %v4217
      %v4863 = vunpack.c.h.b16 %v4217
      %v4864 = vunpack.c.l.b16 %v4218
      %v4865 = vunpack.c.h.b16 %v4218
      %v4866 = vunpack.c.l.b16 %v4219
      %v4867 = vunpack.c.h.b16 %v4219
      %v4868 = vunpack.c.l.b16 %v4220
      %v4869 = vunpack.c.h.b16 %v4220
      %v4870 = vunpack.c.l.b16 %v4221
      %v4871 = vunpack.c.h.b16 %v4221
      %v4872 = vunpack.c.l.b16 %v4222
      %v4873 = vunpack.c.h.b16 %v4222
      %v4874 = vunpack.c.l.b16 %v4223
      %v4875 = vunpack.c.h.b16 %v4223
      %v4876 = vunpack.c.l.b16 %v4224
      %v4877 = vunpack.c.h.b16 %v4224
      %v4878 = vunpack.c.l.b16 %v4225
      %v4879 = vunpack.c.h.b16 %v4225
      %v4880 = vunpack.c.l.b16 %v4226
      %v4881 = vunpack.c.h.b16 %v4226
      %v4882 = vunpack.c.l.b16 %v4227
      %v4883 = vunpack.c.h.b16 %v4227
      %v4884 = vunpack.c.l.b16 %v4228
      %v4885 = vunpack.c.h.b16 %v4228
      %v4886 = vunpack.c.l.b16 %v4229
      %v4887 = vunpack.c.h.b16 %v4229
      %v4888 = vunpack.c.l.b16 %v4230
      %v4889 = vunpack.c.h.b16 %v4230
      %v4890 = vunpack.c.l.b16 %v4231
      %v4891 = vunpack.c.h.b16 %v4231
      %v4892 = vunpack.c.l.b16 %v4232
      %v4893 = vunpack.c.h.b16 %v4232
      %v4894 = vunpack.c.l.b16 %v4233
      %v4895 = vunpack.c.h.b16 %v4233
      %v4896 = vunpack.c.l.b16 %v4234
      %v4897 = vunpack.c.h.b16 %v4234
      %v4898 = vunpack.c.l.b16 %v4235
      %v4899 = vunpack.c.h.b16 %v4235
      %v4900 = vunpack.c.l.b16 %v4236
      %v4901 = vunpack.c.h.b16 %v4236
      %v4902 = vunpack.c.l.b16 %v4237
      %v4903 = vunpack.c.h.b16 %v4237
      %v4904 = vunpack.c.l.b16 %v4238
      %v4905 = vunpack.c.h.b16 %v4238
      %v4906 = vunpack.c.l.b16 %v4239
      %v4907 = vunpack.c.h.b16 %v4239
      %v4908 = vunpack.c.l.b16 %v4240
      %v4909 = vunpack.c.h.b16 %v4240
      %v4910 = vunpack.c.l.b16 %v4241
      %v4911 = vunpack.c.h.b16 %v4241
      %v4912 = vunpack.c.l.b16 %v4242
      %v4913 = vunpack.c.h.b16 %v4242
      %v4914 = vunpack.c.l.b16 %v4243
      %v4915 = vunpack.c.h.b16 %v4243
      %v4916 = vunpack.c.l.b16 %v4244
      %v4917 = vunpack.c.h.b16 %v4244
      %v4918 = vunpack.c.l.b16 %v4245
      %v4919 = vunpack.c.h.b16 %v4245
      %v4920 = vunpack.c.l.b16 %v4246
      %v4921 = vunpack.c.h.b16 %v4246
      %v4922 = vunpack.c.l.b16 %v4247
      %v4923 = vunpack.c.h.b16 %v4247
      %v4924 = vunpack.c.l.b16 %v4248
      %v4925 = vunpack.c.h.b16 %v4248
      %v4926 = vunpack.c.l.b16 %v4249
      %v4927 = vunpack.c.h.b16 %v4249
      %v4928 = vunpack.c.l.b16 %v4250
      %v4929 = vunpack.c.h.b16 %v4250
      %v4930 = vunpack.c.l.b16 %v4251
      %v4931 = vunpack.c.h.b16 %v4251
      %v4932 = vunpack.c.l.b16 %v4252
      %v4933 = vunpack.c.h.b16 %v4252
      %v4934 = vunpack.c.l.b16 %v4253
      %v4935 = vunpack.c.h.b16 %v4253
      %v4936 = vunpack.c.l.b16 %v4254
      %v4937 = vunpack.c.h.b16 %v4254
      %v4938 = vunpack.c.l.b16 %v4255
      %v4939 = vunpack.c.h.b16 %v4255
      %v4940 = vunpack.c.l.b16 %v4256
      %v4941 = vunpack.c.h.b16 %v4256
      %v4942 = vunpack.c.l.b16 %v4257
      %v4943 = vunpack.c.h.b16 %v4257
      %v4944 = vunpack.c.l.b16 %v4258
      %v4945 = vunpack.c.h.b16 %v4258
      %v4946 = vunpack.c.l.b16 %v4259
      %v4947 = vunpack.c.h.b16 %v4259
      %v4948 = vunpack.c.l.b16 %v4260
      %v4949 = vunpack.c.h.b16 %v4260
      %v4950 = vunpack.c.l.b16 %v4261
      %v4951 = vunpack.c.h.b16 %v4261
      %v4952 = vunpack.c.l.b16 %v4262
      %v4953 = vunpack.c.h.b16 %v4262
      %v4954 = vunpack.c.l.b16 %v4263
      %v4955 = vunpack.c.h.b16 %v4263
      %v4956 = vunpack.c.l.b16 %v4264
      %v4957 = vunpack.c.h.b16 %v4264
      %v4958 = vunpack.c.l.b16 %v4265
      %v4959 = vunpack.c.h.b16 %v4265
      %v4960 = vunpack.c.l.b16 %v4266
      %v4961 = vunpack.c.h.b16 %v4266
      %v4962 = vunpack.c.l.b16 %v4267
      %v4963 = vunpack.c.h.b16 %v4267
      %v4964 = vunpack.c.l.b16 %v4268
      %v4965 = vunpack.c.h.b16 %v4268
      %v4966 = vunpack.c.l.b16 %v4269
      %v4967 = vunpack.c.h.b16 %v4269
      %v4968 = vunpack.c.l.b16 %v4270
      %v4969 = vunpack.c.h.b16 %v4270
      %v4970 = vunpack.c.l.b16 %v4271
      %v4971 = vunpack.c.h.b16 %v4271
      %v4972 = vunpack.c.l.b16 %v4272
      %v4973 = vunpack.c.h.b16 %v4272
      %v4974 = vunpack.c.l.b16 %v4273
      %v4975 = vunpack.c.h.b16 %v4273
      %v4976 = vunpack.c.l.b16 %v4274
      %v4977 = vunpack.c.h.b16 %v4274
      %v4978 = vunpack.c.l.b16 %v4275
      %v4979 = vunpack.c.h.b16 %v4275
      %v4980 = vunpack.c.l.b16 %v4276
      %v4981 = vunpack.c.h.b16 %v4276
      %v4982 = vunpack.c.l.b16 %v4277
      %v4983 = vunpack.c.h.b16 %v4277
      %v4984 = vunpack.c.l.b16 %v4278
      %v4985 = vunpack.c.h.b16 %v4278
      %v4986 = vunpack.c.l.b16 %v4279
      %v4987 = vunpack.c.h.b16 %v4279
      %v4988 = vunpack.c.l.b16 %v4280
      %v4989 = vunpack.c.h.b16 %v4280
      %v4990 = vunpack.c.l.b16 %v4281
      %v4991 = vunpack.c.h.b16 %v4281
      %v4992 = vunpack.c.l.b16 %v4282
      %v4993 = vunpack.c.h.b16 %v4282
      %v4994 = vunpack.c.l.b16 %v4283
      %v4995 = vunpack.c.h.b16 %v4283
      %v4996 = vunpack.c.l.b16 %v4284
      %v4997 = vunpack.c.h.b16 %v4284
      %v4998 = vunpack.c.l.b16 %v4285
      %v4999 = vunpack.c.h.b16 %v4285
      %v5000 = vunpack.c.l.b16 %v4286
      %v5001 = vunpack.c.h.b16 %v4286
      %v5002 = vunpack.c.l.b16 %v4287
      %v5003 = vunpack.c.h.b16 %v4287
      %v5004 = vunpack.c.l.b16 %v4288
      %v5005 = vunpack.c.h.b16 %v4288
      %v5006 = vunpack.c.l.b16 %v4289
      %v5007 = vunpack.c.h.b16 %v4289
      %v5008 = vunpack.c.l.b16 %v4290
      %v5009 = vunpack.c.h.b16 %v4290
      %v5010 = vunpack.c.l.b16 %v4291
      %v5011 = vunpack.c.h.b16 %v4291
      %v5012 = vunpack.c.l.b16 %v4292
      %v5013 = vunpack.c.h.b16 %v4292
      %v5014 = vunpack.c.l.b16 %v4293
      %v5015 = vunpack.c.h.b16 %v4293
      %v5016 = vunpack.c.l.b16 %v4294
      %v5017 = vunpack.c.h.b16 %v4294
      %v5018 = vunpack.c.l.b16 %v4295
      %v5019 = vunpack.c.h.b16 %v4295
      %v5020 = vunpack.c.l.b16 %v4296
      %v5021 = vunpack.c.h.b16 %v4296
      %v5022 = vunpack.c.l.b16 %v4297
      %v5023 = vunpack.c.h.b16 %v4297
      %v5024 = vunpack.c.l.b16 %v4298
      %v5025 = vunpack.c.h.b16 %v4298
      %v5026 = vunpack.c.l.b16 %v4299
      %v5027 = vunpack.c.h.b16 %v4299
      %v5028 = vunpack.c.l.b16 %v4300
      %v5029 = vunpack.c.h.b16 %v4300
      %v5030 = vunpack.c.l.b16 %v4301
      %v5031 = vunpack.c.h.b16 %v4301
      %v5032 = vunpack.c.l.b16 %v4302
      %v5033 = vunpack.c.h.b16 %v4302
      %v5034 = vunpack.c.l.b16 %v4303
      %v5035 = vunpack.c.h.b16 %v4303
      %v5036 = vunpack.c.l.b16 %v4304
      %v5037 = vunpack.c.h.b16 %v4304
      %v5038 = vunpack.c.l.b16 %v4305
      %v5039 = vunpack.c.h.b16 %v4305
      %v5040 = vunpack.c.l.b16 %v4306
      %v5041 = vunpack.c.h.b16 %v4306
      %v5042 = vunpack.c.l.b16 %v4307
      %v5043 = vunpack.c.h.b16 %v4307
      %v5044 = vunpack.c.l.b16 %v4308
      %v5045 = vunpack.c.h.b16 %v4308
      %v5046 = vunpack.c.l.b16 %v4309
      %v5047 = vunpack.c.h.b16 %v4309
      %v5048 = vunpack.c.l.b16 %v4310
      %v5049 = vunpack.c.h.b16 %v4310
      %v5050 = vunpack.c.l.b16 %v4311
      %v5051 = vunpack.c.h.b16 %v4311
      %v5052 = vunpack.c.l.b16 %v4312
      %v5053 = vunpack.c.h.b16 %v4312
      %v5054 = vunpack.c.l.b16 %v4313
      %v5055 = vunpack.c.h.b16 %v4313
      %v5056 = vunpack.c.l.b16 %v4314
      %v5057 = vunpack.c.h.b16 %v4314
      %v5058 = vunpack.c.l.b16 %v4315
      %v5059 = vunpack.c.h.b16 %v4315
      %v5060 = vunpack.c.l.b16 %v4316
      %v5061 = vunpack.c.h.b16 %v4316
      %v5062 = vunpack.c.l.b16 %v4317
      %v5063 = vunpack.c.h.b16 %v4317
      %v5064 = vunpack.c.l.b16 %v4318
      %v5065 = vunpack.c.h.b16 %v4318
      %v5066 = vunpack.c.l.b16 %v4319
      %v5067 = vunpack.c.h.b16 %v4319
      %v5068 = vunpack.c.l.b16 %v4320
      %v5069 = vunpack.c.h.b16 %v4320
      %v5070 = vunpack.c.l.b16 %v4321
      %v5071 = vunpack.c.h.b16 %v4321
      %v5072 = vunpack.c.l.b16 %v4322
      %v5073 = vunpack.c.h.b16 %v4322
      %v5074 = vunpack.c.l.b16 %v4323
      %v5075 = vunpack.c.h.b16 %v4323
      %v5076 = vunpack.c.l.b16 %v4324
      %v5077 = vunpack.c.h.b16 %v4324
      %v5078 = vunpack.c.l.b16 %v4325
      %v5079 = vunpack.c.h.b16 %v4325
      %v5080 = vunpack.c.l.b16 %v4326
      %v5081 = vunpack.c.h.b16 %v4326
      %v5082 = vunpack.c.l.b16 %v4327
      %v5083 = vunpack.c.h.b16 %v4327
      %v5084 = vunpack.c.l.b16 %v4328
      %v5085 = vunpack.c.h.b16 %v4328
      %v5086 = vunpack.c.l.b16 %v4329
      %v5087 = vunpack.c.h.b16 %v4329
      %v5088 = vunpack.c.l.b16 %v4330
      %v5089 = vunpack.c.h.b16 %v4330
      %v5090 = vunpack.c.l.b16 %v4331
      %v5091 = vunpack.c.h.b16 %v4331
      %v5092 = vunpack.c.l.b16 %v4332
      %v5093 = vunpack.c.h.b16 %v4332
      %v5094 = vunpack.c.l.b16 %v4333
      %v5095 = vunpack.c.h.b16 %v4333
      %v5096 = vunpack.c.l.b16 %v4334
      %v5097 = vunpack.c.h.b16 %v4334
      %v5098 = vunpack.c.l.b16 %v4335
      %v5099 = vunpack.c.h.b16 %v4335
      %v5100 = vunpack.c.l.b16 %v4336
      %v5101 = vunpack.c.h.b16 %v4336
      %v5102 = vunpack.c.l.b16 %v4337
      %v5103 = vunpack.c.h.b16 %v4337
      %v5104 = vunpack.c.l.b16 %v4338
      %v5105 = vunpack.c.h.b16 %v4338
      %v5106 = vunpack.c.l.b16 %v4339
      %v5107 = vunpack.c.h.b16 %v4339
      %v5108 = vunpack.c.l.b16 %v4340
      %v5109 = vunpack.c.h.b16 %v4340
      %v5110 = vunpack.c.l.b16 %v4341
      %v5111 = vunpack.c.h.b16 %v4341
      %v5112 = vunpack.c.l.b16 %v4342
      %v5113 = vunpack.c.h.b16 %v4342
      %v5114 = vunpack.c.l.b16 %v4343
      %v5115 = vunpack.c.h.b16 %v4343
      %v5116 = vunpack.c.l.b16 %v4344
      %v5117 = vunpack.c.h.b16 %v4344
      %v5118 = vunpack.c.l.b16 %v4345
      %v5119 = vunpack.c.h.b16 %v4345
      %v5120 = vunpack.c.l.b16 %v4346
      %v5121 = vunpack.c.h.b16 %v4346
      %v5122 = vunpack.c.l.b16 %v4347
      %v5123 = vunpack.c.h.b16 %v4347
      %v5124 = vunpack.c.l.b16 %v4348
      %v5125 = vunpack.c.h.b16 %v4348
      %v5126 = vunpack.c.l.b16 %v4349
      %v5127 = vunpack.c.h.b16 %v4349
      %v5128 = vunpack.c.l.b16 %v4350
      %v5129 = vunpack.c.h.b16 %v4350
      %v5130 = vunpack.c.l.b16 %v4351
      %v5131 = vunpack.c.h.b16 %v4351
      %v5132 = vunpack.c.l.b16 %v4352
      %v5133 = vunpack.c.h.b16 %v4352
      %v5134 = vunpack.c.l.b16 %v4353
      %v5135 = vunpack.c.h.b16 %v4353
      %v5136 = vunpack.c.l.b16 %v4354
      %v5137 = vunpack.c.h.b16 %v4354
      %v5138 = vunpack.c.l.b16 %v4355
      %v5139 = vunpack.c.h.b16 %v4355
      %v5140 = vunpack.c.l.b16 %v4356
      %v5141 = vunpack.c.h.b16 %v4356
      %v5142 = vunpack.c.l.b16 %v4357
      %v5143 = vunpack.c.h.b16 %v4357
      %v5144 = vunpack.c.l.b16 %v4358
      %v5145 = vunpack.c.h.b16 %v4358
      %v5146 = vunpack.c.l.b16 %v4359
      %v5147 = vunpack.c.h.b16 %v4359
      %v5148 = vunpack.c.l.b16 %v4360
      %v5149 = vunpack.c.h.b16 %v4360
      %v5150 = vunpack.c.l.b16 %v4361
      %v5151 = vunpack.c.h.b16 %v4361
      %v5152 = vpack.c.b16 %v4644, %v4640
      %v5153 = vpack.c.b16 %v4645, %v4641
      %v5154 = vpack.c.b16 %v4646, %v4642
      %v5155 = vpack.c.b16 %v4647, %v4643
      %v5156 = vpack.c.b16 %v4652, %v4648
      %v5157 = vpack.c.b16 %v4653, %v4649
      %v5158 = vpack.c.b16 %v4654, %v4650
      %v5159 = vpack.c.b16 %v4655, %v4651
      %v5160 = vpack.c.b16 %v4660, %v4656
      %v5161 = vpack.c.b16 %v4661, %v4657
      %v5162 = vpack.c.b16 %v4662, %v4658
      %v5163 = vpack.c.b16 %v4663, %v4659
      %v5164 = vpack.c.b16 %v4668, %v4664
      %v5165 = vpack.c.b16 %v4669, %v4665
      %v5166 = vpack.c.b16 %v4670, %v4666
      %v5167 = vpack.c.b16 %v4671, %v4667
      %v5168 = vpack.c.b16 %v4676, %v4672
      %v5169 = vpack.c.b16 %v4677, %v4673
      %v5170 = vpack.c.b16 %v4678, %v4674
      %v5171 = vpack.c.b16 %v4679, %v4675
      %v5172 = vpack.c.b16 %v4684, %v4680
      %v5173 = vpack.c.b16 %v4685, %v4681
      %v5174 = vpack.c.b16 %v4686, %v4682
      %v5175 = vpack.c.b16 %v4687, %v4683
      %v5176 = vpack.c.b16 %v4692, %v4688
      %v5177 = vpack.c.b16 %v4693, %v4689
      %v5178 = vpack.c.b16 %v4694, %v4690
      %v5179 = vpack.c.b16 %v4695, %v4691
      %v5180 = vpack.c.b16 %v4700, %v4696
      %v5181 = vpack.c.b16 %v4701, %v4697
      %v5182 = vpack.c.b16 %v4702, %v4698
      %v5183 = vpack.c.b16 %v4703, %v4699
      %v5184 = vpack.c.b16 %v4708, %v4704
      %v5185 = vpack.c.b16 %v4709, %v4705
      %v5186 = vpack.c.b16 %v4710, %v4706
      %v5187 = vpack.c.b16 %v4711, %v4707
      %v5188 = vpack.c.b16 %v4716, %v4712
      %v5189 = vpack.c.b16 %v4717, %v4713
      %v5190 = vpack.c.b16 %v4718, %v4714
      %v5191 = vpack.c.b16 %v4719, %v4715
      %v5192 = vpack.c.b16 %v4724, %v4720
      %v5193 = vpack.c.b16 %v4725, %v4721
      %v5194 = vpack.c.b16 %v4726, %v4722
      %v5195 = vpack.c.b16 %v4727, %v4723
      %v5196 = vpack.c.b16 %v4732, %v4728
      %v5197 = vpack.c.b16 %v4733, %v4729
      %v5198 = vpack.c.b16 %v4734, %v4730
      %v5199 = vpack.c.b16 %v4735, %v4731
      %v5200 = vpack.c.b16 %v4740, %v4736
      %v5201 = vpack.c.b16 %v4741, %v4737
      %v5202 = vpack.c.b16 %v4742, %v4738
      %v5203 = vpack.c.b16 %v4743, %v4739
      %v5204 = vpack.c.b16 %v4748, %v4744
      %v5205 = vpack.c.b16 %v4749, %v4745
      %v5206 = vpack.c.b16 %v4750, %v4746
      %v5207 = vpack.c.b16 %v4751, %v4747
      %v5208 = vpack.c.b16 %v4756, %v4752
      %v5209 = vpack.c.b16 %v4757, %v4753
      %v5210 = vpack.c.b16 %v4758, %v4754
      %v5211 = vpack.c.b16 %v4759, %v4755
      %v5212 = vpack.c.b16 %v4764, %v4760
      %v5213 = vpack.c.b16 %v4765, %v4761
      %v5214 = vpack.c.b16 %v4766, %v4762
      %v5215 = vpack.c.b16 %v4767, %v4763
      %v5216 = vpack.c.b16 %v4772, %v4768
      %v5217 = vpack.c.b16 %v4773, %v4769
      %v5218 = vpack.c.b16 %v4774, %v4770
      %v5219 = vpack.c.b16 %v4775, %v4771
      %v5220 = vpack.c.b16 %v4780, %v4776
      %v5221 = vpack.c.b16 %v4781, %v4777
      %v5222 = vpack.c.b16 %v4782, %v4778
      %v5223 = vpack.c.b16 %v4783, %v4779
      %v5224 = vpack.c.b16 %v4788, %v4784
      %v5225 = vpack.c.b16 %v4789, %v4785
      %v5226 = vpack.c.b16 %v4790, %v4786
      %v5227 = vpack.c.b16 %v4791, %v4787
      %v5228 = vpack.c.b16 %v4796, %v4792
      %v5229 = vpack.c.b16 %v4797, %v4793
      %v5230 = vpack.c.b16 %v4798, %v4794
      %v5231 = vpack.c.b16 %v4799, %v4795
      %v5232 = vpack.c.b16 %v4804, %v4800
      %v5233 = vpack.c.b16 %v4805, %v4801
      %v5234 = vpack.c.b16 %v4806, %v4802
      %v5235 = vpack.c.b16 %v4807, %v4803
      %v5236 = vpack.c.b16 %v4812, %v4808
      %v5237 = vpack.c.b16 %v4813, %v4809
      %v5238 = vpack.c.b16 %v4814, %v4810
      %v5239 = vpack.c.b16 %v4815, %v4811
      %v5240 = vpack.c.b16 %v4820, %v4816
      %v5241 = vpack.c.b16 %v4821, %v4817
      %v5242 = vpack.c.b16 %v4822, %v4818
      %v5243 = vpack.c.b16 %v4823, %v4819
      %v5244 = vpack.c.b16 %v4828, %v4824
      %v5245 = vpack.c.b16 %v4829, %v4825
      %v5246 = vpack.c.b16 %v4830, %v4826
      %v5247 = vpack.c.b16 %v4831, %v4827
      %v5248 = vpack.c.b16 %v4836, %v4832
      %v5249 = vpack.c.b16 %v4837, %v4833
      %v5250 = vpack.c.b16 %v4838, %v4834
      %v5251 = vpack.c.b16 %v4839, %v4835
      %v5252 = vpack.c.b16 %v4844, %v4840
      %v5253 = vpack.c.b16 %v4845, %v4841
      %v5254 = vpack.c.b16 %v4846, %v4842
      %v5255 = vpack.c.b16 %v4847, %v4843
      %v5256 = vpack.c.b16 %v4852, %v4848
      %v5257 = vpack.c.b16 %v4853, %v4849
      %v5258 = vpack.c.b16 %v4854, %v4850
      %v5259 = vpack.c.b16 %v4855, %v4851
      %v5260 = vpack.c.b16 %v4860, %v4856
      %v5261 = vpack.c.b16 %v4861, %v4857
      %v5262 = vpack.c.b16 %v4862, %v4858
      %v5263 = vpack.c.b16 %v4863, %v4859
      %v5264 = vpack.c.b16 %v4868, %v4864
      %v5265 = vpack.c.b16 %v4869, %v4865
      %v5266 = vpack.c.b16 %v4870, %v4866
      %v5267 = vpack.c.b16 %v4871, %v4867
      %v5268 = vpack.c.b16 %v4876, %v4872
      %v5269 = vpack.c.b16 %v4877, %v4873
      %v5270 = vpack.c.b16 %v4878, %v4874
      %v5271 = vpack.c.b16 %v4879, %v4875
      %v5272 = vpack.c.b16 %v4884, %v4880
      %v5273 = vpack.c.b16 %v4885, %v4881
      %v5274 = vpack.c.b16 %v4886, %v4882
      %v5275 = vpack.c.b16 %v4887, %v4883
      %v5276 = vpack.c.b16 %v4892, %v4888
      %v5277 = vpack.c.b16 %v4893, %v4889
      %v5278 = vpack.c.b16 %v4894, %v4890
      %v5279 = vpack.c.b16 %v4895, %v4891
      %v5280 = vpack.c.b16 %v4900, %v4896
      %v5281 = vpack.c.b16 %v4901, %v4897
      %v5282 = vpack.c.b16 %v4902, %v4898
      %v5283 = vpack.c.b16 %v4903, %v4899
      %v5284 = vpack.c.b16 %v4908, %v4904
      %v5285 = vpack.c.b16 %v4909, %v4905
      %v5286 = vpack.c.b16 %v4910, %v4906
      %v5287 = vpack.c.b16 %v4911, %v4907
      %v5288 = vpack.c.b16 %v4916, %v4912
      %v5289 = vpack.c.b16 %v4917, %v4913
      %v5290 = vpack.c.b16 %v4918, %v4914
      %v5291 = vpack.c.b16 %v4919, %v4915
      %v5292 = vpack.c.b16 %v4924, %v4920
      %v5293 = vpack.c.b16 %v4925, %v4921
      %v5294 = vpack.c.b16 %v4926, %v4922
      %v5295 = vpack.c.b16 %v4927, %v4923
      %v5296 = vpack.c.b16 %v4932, %v4928
      %v5297 = vpack.c.b16 %v4933, %v4929
      %v5298 = vpack.c.b16 %v4934, %v4930
      %v5299 = vpack.c.b16 %v4935, %v4931
      %v5300 = vpack.c.b16 %v4940, %v4936
      %v5301 = vpack.c.b16 %v4941, %v4937
      %v5302 = vpack.c.b16 %v4942, %v4938
      %v5303 = vpack.c.b16 %v4943, %v4939
      %v5304 = vpack.c.b16 %v4948, %v4944
      %v5305 = vpack.c.b16 %v4949, %v4945
      %v5306 = vpack.c.b16 %v4950, %v4946
      %v5307 = vpack.c.b16 %v4951, %v4947
      %v5308 = vpack.c.b16 %v4956, %v4952
      %v5309 = vpack.c.b16 %v4957, %v4953
      %v5310 = vpack.c.b16 %v4958, %v4954
      %v5311 = vpack.c.b16 %v4959, %v4955
      %v5312 = vpack.c.b16 %v4964, %v4960
      %v5313 = vpack.c.b16 %v4965, %v4961
      %v5314 = vpack.c.b16 %v4966, %v4962
      %v5315 = vpack.c.b16 %v4967, %v4963
      %v5316 = vpack.c.b16 %v4972, %v4968
      %v5317 = vpack.c.b16 %v4973, %v4969
      %v5318 = vpack.c.b16 %v4974, %v4970
      %v5319 = vpack.c.b16 %v4975, %v4971
      %v5320 = vpack.c.b16 %v4980, %v4976
      %v5321 = vpack.c.b16 %v4981, %v4977
      %v5322 = vpack.c.b16 %v4982, %v4978
      %v5323 = vpack.c.b16 %v4983, %v4979
      %v5324 = vpack.c.b16 %v4988, %v4984
      %v5325 = vpack.c.b16 %v4989, %v4985
      %v5326 = vpack.c.b16 %v4990, %v4986
      %v5327 = vpack.c.b16 %v4991, %v4987
      %v5328 = vpack.c.b16 %v4996, %v4992
      %v5329 = vpack.c.b16 %v4997, %v4993
      %v5330 = vpack.c.b16 %v4998, %v4994
      %v5331 = vpack.c.b16 %v4999, %v4995
      %v5332 = vpack.c.b16 %v5004, %v5000
      %v5333 = vpack.c.b16 %v5005, %v5001
      %v5334 = vpack.c.b16 %v5006, %v5002
      %v5335 = vpack.c.b16 %v5007, %v5003
      %v5336 = vpack.c.b16 %v5012, %v5008
      %v5337 = vpack.c.b16 %v5013, %v5009
      %v5338 = vpack.c.b16 %v5014, %v5010
      %v5339 = vpack.c.b16 %v5015, %v5011
      %v5340 = vpack.c.b16 %v5020, %v5016
      %v5341 = vpack.c.b16 %v5021, %v5017
      %v5342 = vpack.c.b16 %v5022, %v5018
      %v5343 = vpack.c.b16 %v5023, %v5019
      %v5344 = vpack.c.b16 %v5028, %v5024
      %v5345 = vpack.c.b16 %v5029, %v5025
      %v5346 = vpack.c.b16 %v5030, %v5026
      %v5347 = vpack.c.b16 %v5031, %v5027
      %v5348 = vpack.c.b16 %v5036, %v5032
      %v5349 = vpack.c.b16 %v5037, %v5033
      %v5350 = vpack.c.b16 %v5038, %v5034
      %v5351 = vpack.c.b16 %v5039, %v5035
      %v5352 = vpack.c.b16 %v5044, %v5040
      %v5353 = vpack.c.b16 %v5045, %v5041
      %v5354 = vpack.c.b16 %v5046, %v5042
      %v5355 = vpack.c.b16 %v5047, %v5043
      %v5356 = vpack.c.b16 %v5052, %v5048
      %v5357 = vpack.c.b16 %v5053, %v5049
      %v5358 = vpack.c.b16 %v5054, %v5050
      %v5359 = vpack.c.b16 %v5055, %v5051
      %v5360 = vpack.c.b16 %v5060, %v5056
      %v5361 = vpack.c.b16 %v5061, %v5057
      %v5362 = vpack.c.b16 %v5062, %v5058
      %v5363 = vpack.c.b16 %v5063, %v5059
      %v5364 = vpack.c.b16 %v5068, %v5064
      %v5365 = vpack.c.b16 %v5069, %v5065
      %v5366 = vpack.c.b16 %v5070, %v5066
      %v5367 = vpack.c.b16 %v5071, %v5067
      %v5368 = vpack.c.b16 %v5076, %v5072
      %v5369 = vpack.c.b16 %v5077, %v5073
      %v5370 = vpack.c.b16 %v5078, %v5074
      %v5371 = vpack.c.b16 %v5079, %v5075
      %v5372 = vpack.c.b16 %v5084, %v5080
      %v5373 = vpack.c.b16 %v5085, %v5081
      %v5374 = vpack.c.b16 %v5086, %v5082
      %v5375 = vpack.c.b16 %v5087, %v5083
      %v5376 = vpack.c.b16 %v5092, %v5088
      %v5377 = vpack.c.b16 %v5093, %v5089
      %v5378 = vpack.c.b16 %v5094, %v5090
      %v5379 = vpack.c.b16 %v5095, %v5091
      %v5380 = vpack.c.b16 %v5100, %v5096
      %v5381 = vpack.c.b16 %v5101, %v5097
      %v5382 = vpack.c.b16 %v5102, %v5098
      %v5383 = vpack.c.b16 %v5103, %v5099
      %v5384 = vpack.c.b16 %v5108, %v5104
      %v5385 = vpack.c.b16 %v5109, %v5105
      %v5386 = vpack.c.b16 %v5110, %v5106
      %v5387 = vpack.c.b16 %v5111, %v5107
      %v5388 = vpack.c.b16 %v5116, %v5112
      %v5389 = vpack.c.b16 %v5117, %v5113
      %v5390 = vpack.c.b16 %v5118, %v5114
      %v5391 = vpack.c.b16 %v5119, %v5115
      %v5392 = vpack.c.b16 %v5124, %v5120
      %v5393 = vpack.c.b16 %v5125, %v5121
      %v5394 = vpack.c.b16 %v5126, %v5122
      %v5395 = vpack.c.b16 %v5127, %v5123
      %v5396 = vpack.c.b16 %v5132, %v5128
      %v5397 = vpack.c.b16 %v5133, %v5129
      %v5398 = vpack.c.b16 %v5134, %v5130
      %v5399 = vpack.c.b16 %v5135, %v5131
      %v5400 = vpack.c.b16 %v5140, %v5136
      %v5401 = vpack.c.b16 %v5141, %v5137
      %v5402 = vpack.c.b16 %v5142, %v5138
      %v5403 = vpack.c.b16 %v5143, %v5139
      %v5404 = vpack.c.b16 %v5148, %v5144
      %v5405 = vpack.c.b16 %v5149, %v5145
      %v5406 = vpack.c.b16 %v5150, %v5146
      %v5407 = vpack.c.b16 %v5151, %v5147
      %5664 = vmatprep.subr.bf16.mxu0 %v5153
      %5665 = vmatpush1.bf16.msra.mxu0 %v5152
      %5666 = vmatprep.subr.bf16.mxu0 %v5157
      %5667 = vmatpush1.bf16.msra.mxu0 %v5156
      %5668 = vmatprep.subr.bf16.mxu0 %v5161
      %5669 = vmatpush1.bf16.msra.mxu0 %v5160
      %5670 = vmatprep.subr.bf16.mxu0 %v5165
      %5671 = vmatpush1.bf16.msra.mxu0 %v5164
      %5672 = vmatprep.subr.bf16.mxu0 %v5169
      %5673 = vmatpush1.bf16.msra.mxu0 %v5168
      %5674 = vmatprep.subr.bf16.mxu0 %v5173
      %5675 = vmatpush1.bf16.msra.mxu0 %v5172
      %5676 = vmatprep.subr.bf16.mxu0 %v5177
      %5677 = vmatpush1.bf16.msra.mxu0 %v5176
      %5678 = vmatprep.subr.bf16.mxu0 %v5181
      %5679 = vmatpush1.bf16.msra.mxu0 %v5180
      %5680 = vmatprep.subr.bf16.mxu0 %v5185
      %5681 = vmatpush1.bf16.msra.mxu0 %v5184
      %5682 = vmatprep.subr.bf16.mxu0 %v5189
      %5683 = vmatpush1.bf16.msra.mxu0 %v5188
      %5684 = vmatprep.subr.bf16.mxu0 %v5193
      %5685 = vmatpush1.bf16.msra.mxu0 %v5192
      %5686 = vmatprep.subr.bf16.mxu0 %v5197
      %5687 = vmatpush1.bf16.msra.mxu0 %v5196
      %5688 = vmatprep.subr.bf16.mxu0 %v5201
      %5689 = vmatpush1.bf16.msra.mxu0 %v5200
      %5690 = vmatprep.subr.bf16.mxu0 %v5205
      %5691 = vmatpush1.bf16.msra.mxu0 %v5204
      %5692 = vmatprep.subr.bf16.mxu0 %v5209
      %5693 = vmatpush1.bf16.msra.mxu0 %v5208
      %5694 = vmatprep.subr.bf16.mxu0 %v5213
      %5695 = vmatpush1.bf16.msra.mxu0 %v5212
      %5696 = vmatprep.mubr.bf16.mxu0 %v4043
      %5697 = vmatmul.mubr.bf16.gmra.mrb[0].mxu0 %v4042
      %v5698 = vpop.f32.mrb[0].mxu0
      %v5699 = vadd.f32 %v4367, %v5698
      %v5700 = vpop.f32.mrb[0].mxu0
      %v5701 = vadd.f32 %v4371, %v5700
      %v5702 = vpop.f32.mrb[0].mxu0
      %v5703 = vadd.f32 %v4367, %v5702
      %v5704 = vpop.f32.mrb[0].mxu0
      %v5705 = vadd.f32 %v4371, %v5704
      %5706 = vmatprep.mubr.bf16.mxu0 %v4051
      %5707 = vmatmul.mubr.bf16.gmra.mrb[0].mxu0 %v4050
      %v5708 = vpop.f32.mrb[0].mxu0
      %v5709 = vadd.f32 %v4367, %v5708
      %v5710 = vpop.f32.mrb[0].mxu0
      %v5711 = vadd.f32 %v4371, %v5710
      %v5712 = vpop.f32.mrb[0].mxu0
      %v5713 = vadd.f32 %v4367, %v5712
      %v5714 = vpop.f32.mrb[0].mxu0
      %v5715 = vadd.f32 %v4371, %v5714
      %5716 = vmatprep.mubr.bf16.mxu0 %v4059
      %5717 = vmatmul.mubr.bf16.gmra.mrb[0].mxu0 %v4058
      %v5718 = vpop.f32.mrb[0].mxu0
      %v5719 = vadd.f32 %v4367, %v5718
      %v5720 = vpop.f32.mrb[0].mxu0
      %v5721 = vadd.f32 %v4371, %v5720
      %v5722 = vpop.f32.mrb[0].mxu0
      %v5723 = vadd.f32 %v4367, %v5722
      %v5724 = vpop.f32.mrb[0].mxu0
      %v5725 = vadd.f32 %v4371, %v5724
      %5726 = vmatprep.mubr.bf16.mxu0 %v4067
      %5727 = vmatmul.mubr.bf16.gmra.mrb[0].mxu0 %v4066
      %v5728 = vpop.f32.mrb[0].mxu0
      %v5729 = vadd.f32 %v4367, %v5728
      %v5730 = vpop.f32.mrb[0].mxu0
      %v5731 = vadd.f32 %v4371, %v5730
      %v5732 = vpop.f32.mrb[0].mxu0
      %v5733 = vadd.f32 %v4367, %v5732
      %v5734 = vpop.f32.mrb[0].mxu0
      %v5735 = vadd.f32 %v4371, %v5734
      %5736 = vmatprep.mubr.bf16.mxu0 %v4075
      %5737 = vmatmul.mubr.bf16.gmra.mrb[0].mxu0 %v4074
      %v5738 = vpop.f32.mrb[0].mxu0
      %v5739 = vadd.f32 %v4367, %v5738
      %v5740 = vpop.f32.mrb[0].mxu0
      %v5741 = vadd.f32 %v4371, %v5740
      %v5742 = vpop.f32.mrb[0].mxu0
      %v5743 = vadd.f32 %v4367, %v5742
      %v5744 = vpop.f32.mrb[0].mxu0
      %v5745 = vadd.f32 %v4371, %v5744
      %5746 = vmatprep.mubr.bf16.mxu0 %v4083
      %5747 = vmatmul.mubr.bf16.gmra.mrb[0].mxu0 %v4082
      %v5748 = vpop.f32.mrb[0].mxu0
      %v5749 = vadd.f32 %v4367, %v5748
      %v5750 = vpop.f32.mrb[0].mxu0
      %v5751 = vadd.f32 %v4371, %v5750
      %v5752 = vpop.f32.mrb[0].mxu0
      %v5753 = vadd.f32 %v4367, %v5752
      %v5754 = vpop.f32.mrb[0].mxu0
      %v5755 = vadd.f32 %v4371, %v5754
      %5756 = vmatprep.mubr.bf16.mxu0 %v4091
      %5757 = vmatmul.mubr.bf16.gmra.mrb[0].mxu0 %v4090
      %v5758 = vpop.f32.mrb[0].mxu0
      %v5759 = vadd.f32 %v4367, %v5758
      %v5760 = vpop.f32.mrb[0].mxu0
      %v5761 = vadd.f32 %v4371, %v5760
      %v5762 = vpop.f32.mrb[0].mxu0
      %v5763 = vadd.f32 %v4367, %v5762
      %v5764 = vpop.f32.mrb[0].mxu0
      %v5765 = vadd.f32 %v4371, %v5764
      %5766 = vmatprep.mubr.bf16.mxu0 %v4099
      %5767 = vmatmul.mubr.bf16.gmra.mrb[0].mxu0 %v4098
      %v5768 = vpop.f32.mrb[0].mxu0
      %v5769 = vadd.f32 %v4367, %v5768
      %v5770 = vpop.f32.mrb[0].mxu0
      %v5771 = vadd.f32 %v4371, %v5770
      %v5772 = vpop.f32.mrb[0].mxu0
      %v5773 = vadd.f32 %v4367, %v5772
      %v5774 = vpop.f32.mrb[0].mxu0
      %v5775 = vadd.f32 %v4371, %v5774
      %5776 = vdwg.mxu0
      %5777 = vmatprep.subr.bf16.mxu0 %v5217
      %5778 = vmatpush1.bf16.msra.mxu0 %v5216
      %5779 = vmatprep.subr.bf16.mxu0 %v5221
      %5780 = vmatpush1.bf16.msra.mxu0 %v5220
      %5781 = vmatprep.subr.bf16.mxu0 %v5225
      %5782 = vmatpush1.bf16.msra.mxu0 %v5224
      %5783 = vmatprep.subr.bf16.mxu0 %v5229
      %5784 = vmatpush1.bf16.msra.mxu0 %v5228
      %5785 = vmatprep.subr.bf16.mxu0 %v5233
      %5786 = vmatpush1.bf16.msra.mxu0 %v5232
      %5787 = vmatprep.subr.bf16.mxu0 %v5237
      %5788 = vmatpush1.bf16.msra.mxu0 %v5236
      %5789 = vmatprep.subr.bf16.mxu0 %v5241
      %5790 = vmatpush1.bf16.msra.mxu0 %v5240
      %5791 = vmatprep.subr.bf16.mxu0 %v5245
      %5792 = vmatpush1.bf16.msra.mxu0 %v5244
      %5793 = vmatprep.subr.bf16.mxu0 %v5249
      %5794 = vmatpush1.bf16.msra.mxu0 %v5248
      %5795 = vmatprep.subr.bf16.mxu0 %v5253
      %5796 = vmatpush1.bf16.msra.mxu0 %v5252
      %5797 = vmatprep.subr.bf16.mxu0 %v5257
      %5798 = vmatpush1.bf16.msra.mxu0 %v5256
      %5799 = vmatprep.subr.bf16.mxu0 %v5261
      %5800 = vmatpush1.bf16.msra.mxu0 %v5260
      %5801 = vmatprep.subr.bf16.mxu0 %v5265
      %5802 = vmatpush1.bf16.msra.mxu0 %v5264
      %5803 = vmatprep.subr.bf16.mxu0 %v5269
      %5804 = vmatpush1.bf16.msra.mxu0 %v5268
      %5805 = vmatprep.subr.bf16.mxu0 %v5273
      %5806 = vmatpush1.bf16.msra.mxu0 %v5272
      %5807 = vmatprep.subr.bf16.mxu0 %v5277
      %5808 = vmatpush1.bf16.msra.mxu0 %v5276
      %5809 = vmatprep.mubr.bf16.mxu0 %v4045
      %5810 = vmatmul.mubr.bf16.gmra.mrb[0].mxu0 %v4044
      %v5811 = vpop.f32.mrb[0].mxu0
      %v5812 = vadd.f32 %v5699, %v5811
      %v5813 = vpop.f32.mrb[0].mxu0
      %v5814 = vadd.f32 %v5701, %v5813
      %v5815 = vpop.f32.mrb[0].mxu0
      %v5816 = vadd.f32 %v5703, %v5815
      %v5817 = vpop.f32.mrb[0].mxu0
      %v5818 = vadd.f32 %v5705, %v5817
      %5819 = vmatprep.mubr.bf16.mxu0 %v4053
      %5820 = vmatmul.mubr.bf16.gmra.mrb[0].mxu0 %v4052
      %v5821 = vpop.f32.mrb[0].mxu0
      %v5822 = vadd.f32 %v5709, %v5821
      %v5823 = vpop.f32.mrb[0].mxu0
      %v5824 = vadd.f32 %v5711, %v5823
      %v5825 = vpop.f32.mrb[0].mxu0
      %v5826 = vadd.f32 %v5713, %v5825
      %v5827 = vpop.f32.mrb[0].mxu0
      %v5828 = vadd.f32 %v5715, %v5827
      %5829 = vmatprep.mubr.bf16.mxu0 %v4061
      %5830 = vmatmul.mubr.bf16.gmra.mrb[0].mxu0 %v4060
      %v5831 = vpop.f32.mrb[0].mxu0
      %v5832 = vadd.f32 %v5719, %v5831
      %v5833 = vpop.f32.mrb[0].mxu0
      %v5834 = vadd.f32 %v5721, %v5833
      %v5835 = vpop.f32.mrb[0].mxu0
      %v5836 = vadd.f32 %v5723, %v5835
      %v5837 = vpop.f32.mrb[0].mxu0
      %v5838 = vadd.f32 %v5725, %v5837
      %5839 = vmatprep.mubr.bf16.mxu0 %v4069
      %5840 = vmatmul.mubr.bf16.gmra.mrb[0].mxu0 %v4068
      %v5841 = vpop.f32.mrb[0].mxu0
      %v5842 = vadd.f32 %v5729, %v5841
      %v5843 = vpop.f32.mrb[0].mxu0
      %v5844 = vadd.f32 %v5731, %v5843
      %v5845 = vpop.f32.mrb[0].mxu0
      %v5846 = vadd.f32 %v5733, %v5845
      %v5847 = vpop.f32.mrb[0].mxu0
      %v5848 = vadd.f32 %v5735, %v5847
      %5849 = vmatprep.mubr.bf16.mxu0 %v4077
      %5850 = vmatmul.mubr.bf16.gmra.mrb[0].mxu0 %v4076
      %v5851 = vpop.f32.mrb[0].mxu0
      %v5852 = vadd.f32 %v5739, %v5851
      %v5853 = vpop.f32.mrb[0].mxu0
      %v5854 = vadd.f32 %v5741, %v5853
      %v5855 = vpop.f32.mrb[0].mxu0
      %v5856 = vadd.f32 %v5743, %v5855
      %v5857 = vpop.f32.mrb[0].mxu0
      %v5858 = vadd.f32 %v5745, %v5857
      %5859 = vmatprep.mubr.bf16.mxu0 %v4085
      %5860 = vmatmul.mubr.bf16.gmra.mrb[0].mxu0 %v4084
      %v5861 = vpop.f32.mrb[0].mxu0
      %v5862 = vadd.f32 %v5749, %v5861
      %v5863 = vpop.f32.mrb[0].mxu0
      %v5864 = vadd.f32 %v5751, %v5863
      %v5865 = vpop.f32.mrb[0].mxu0
      %v5866 = vadd.f32 %v5753, %v5865
      %v5867 = vpop.f32.mrb[0].mxu0
      %v5868 = vadd.f32 %v5755, %v5867
      %5869 = vmatprep.mubr.bf16.mxu0 %v4093
      %5870 = vmatmul.mubr.bf16.gmra.mrb[0].mxu0 %v4092
      %v5871 = vpop.f32.mrb[0].mxu0
      %v5872 = vadd.f32 %v5759, %v5871
      %v5873 = vpop.f32.mrb[0].mxu0
      %v5874 = vadd.f32 %v5761, %v5873
      %v5875 = vpop.f32.mrb[0].mxu0
      %v5876 = vadd.f32 %v5763, %v5875
      %v5877 = vpop.f32.mrb[0].mxu0
      %v5878 = vadd.f32 %v5765, %v5877
      %5879 = vmatprep.mubr.bf16.mxu0 %v4101
      %5880 = vmatmul.mubr.bf16.gmra.mrb[0].mxu0 %v4100
      %v5881 = vpop.f32.mrb[0].mxu0
      %v5882 = vadd.f32 %v5769, %v5881
      %v5883 = vpop.f32.mrb[0].mxu0
      %v5884 = vadd.f32 %v5771, %v5883
      %v5885 = vpop.f32.mrb[0].mxu0
      %v5886 = vadd.f32 %v5773, %v5885
      %v5887 = vpop.f32.mrb[0].mxu0
      %v5888 = vadd.f32 %v5775, %v5887
      %5889 = vdwg.mxu0
      %5890 = vmatprep.subr.bf16.mxu0 %v5281
      %5891 = vmatpush1.bf16.msra.mxu0 %v5280
      %5892 = vmatprep.subr.bf16.mxu0 %v5285
      %5893 = vmatpush1.bf16.msra.mxu0 %v5284
      %5894 = vmatprep.subr.bf16.mxu0 %v5289
      %5895 = vmatpush1.bf16.msra.mxu0 %v5288
      %5896 = vmatprep.subr.bf16.mxu0 %v5293
      %5897 = vmatpush1.bf16.msra.mxu0 %v5292
      %5898 = vmatprep.subr.bf16.mxu0 %v5297
      %5899 = vmatpush1.bf16.msra.mxu0 %v5296
      %5900 = vmatprep.subr.bf16.mxu0 %v5301
      %5901 = vmatpush1.bf16.msra.mxu0 %v5300
      %5902 = vmatprep.subr.bf16.mxu0 %v5305
      %5903 = vmatpush1.bf16.msra.mxu0 %v5304
      %5904 = vmatprep.subr.bf16.mxu0 %v5309
      %5905 = vmatpush1.bf16.msra.mxu0 %v5308
      %5906 = vmatprep.subr.bf16.mxu0 %v5313
      %5907 = vmatpush1.bf16.msra.mxu0 %v5312
      %5908 = vmatprep.subr.bf16.mxu0 %v5317
      %5909 = vmatpush1.bf16.msra.mxu0 %v5316
      %5910 = vmatprep.subr.bf16.mxu0 %v5321
      %5911 = vmatpush1.bf16.msra.mxu0 %v5320
      %5912 = vmatprep.subr.bf16.mxu0 %v5325
      %5913 = vmatpush1.bf16.msra.mxu0 %v5324
      %5914 = vmatprep.subr.bf16.mxu0 %v5329
      %5915 = vmatpush1.bf16.msra.mxu0 %v5328
      %5916 = vmatprep.subr.bf16.mxu0 %v5333
      %5917 = vmatpush1.bf16.msra.mxu0 %v5332
      %5918 = vmatprep.subr.bf16.mxu0 %v5337
      %5919 = vmatpush1.bf16.msra.mxu0 %v5336
      %5920 = vmatprep.subr.bf16.mxu0 %v5341
      %5921 = vmatpush1.bf16.msra.mxu0 %v5340
      %5922 = vmatprep.mubr.bf16.mxu0 %v4047
      %5923 = vmatmul.mubr.bf16.gmra.mrb[0].mxu0 %v4046
      %v5924 = vpop.f32.mrb[0].mxu0
      %v5925 = vadd.f32 %v5812, %v5924
      %v5926 = vpop.f32.mrb[0].mxu0
      %v5927 = vadd.f32 %v5814, %v5926
      %v5928 = vpop.f32.mrb[0].mxu0
      %v5929 = vadd.f32 %v5816, %v5928
      %v5930 = vpop.f32.mrb[0].mxu0
      %v5931 = vadd.f32 %v5818, %v5930
      %5932 = vmatprep.mubr.bf16.mxu0 %v4055
      %5933 = vmatmul.mubr.bf16.gmra.mrb[0].mxu0 %v4054
      %v5934 = vpop.f32.mrb[0].mxu0
      %v5935 = vadd.f32 %v5822, %v5934
      %v5936 = vpop.f32.mrb[0].mxu0
      %v5937 = vadd.f32 %v5824, %v5936
      %v5938 = vpop.f32.mrb[0].mxu0
      %v5939 = vadd.f32 %v5826, %v5938
      %v5940 = vpop.f32.mrb[0].mxu0
      %v5941 = vadd.f32 %v5828, %v5940
      %5942 = vmatprep.mubr.bf16.mxu0 %v4063
      %5943 = vmatmul.mubr.bf16.gmra.mrb[0].mxu0 %v4062
      %v5944 = vpop.f32.mrb[0].mxu0
      %v5945 = vadd.f32 %v5832, %v5944
      %v5946 = vpop.f32.mrb[0].mxu0
      %v5947 = vadd.f32 %v5834, %v5946
      %v5948 = vpop.f32.mrb[0].mxu0
      %v5949 = vadd.f32 %v5836, %v5948
      %v5950 = vpop.f32.mrb[0].mxu0
      %v5951 = vadd.f32 %v5838, %v5950
      %5952 = vmatprep.mubr.bf16.mxu0 %v4071
      %5953 = vmatmul.mubr.bf16.gmra.mrb[0].mxu0 %v4070
      %v5954 = vpop.f32.mrb[0].mxu0
      %v5955 = vadd.f32 %v5842, %v5954
      %v5956 = vpop.f32.mrb[0].mxu0
      %v5957 = vadd.f32 %v5844, %v5956
      %v5958 = vpop.f32.mrb[0].mxu0
      %v5959 = vadd.f32 %v5846, %v5958
      %v5960 = vpop.f32.mrb[0].mxu0
      %v5961 = vadd.f32 %v5848, %v5960
      %5962 = vmatprep.mubr.bf16.mxu0 %v4079
      %5963 = vmatmul.mubr.bf16.gmra.mrb[0].mxu0 %v4078
      %v5964 = vpop.f32.mrb[0].mxu0
      %v5965 = vadd.f32 %v5852, %v5964
      %v5966 = vpop.f32.mrb[0].mxu0
      %v5967 = vadd.f32 %v5854, %v5966
      %v5968 = vpop.f32.mrb[0].mxu0
      %v5969 = vadd.f32 %v5856, %v5968
      %v5970 = vpop.f32.mrb[0].mxu0
      %v5971 = vadd.f32 %v5858, %v5970
      %5972 = vmatprep.mubr.bf16.mxu0 %v4087
      %5973 = vmatmul.mubr.bf16.gmra.mrb[0].mxu0 %v4086
      %v5974 = vpop.f32.mrb[0].mxu0
      %v5975 = vadd.f32 %v5862, %v5974
      %v5976 = vpop.f32.mrb[0].mxu0
      %v5977 = vadd.f32 %v5864, %v5976
      %v5978 = vpop.f32.mrb[0].mxu0
      %v5979 = vadd.f32 %v5866, %v5978
      %v5980 = vpop.f32.mrb[0].mxu0
      %v5981 = vadd.f32 %v5868, %v5980
      %5982 = vmatprep.mubr.bf16.mxu0 %v4095
      %5983 = vmatmul.mubr.bf16.gmra.mrb[0].mxu0 %v4094
      %v5984 = vpop.f32.mrb[0].mxu0
      %v5985 = vadd.f32 %v5872, %v5984
      %v5986 = vpop.f32.mrb[0].mxu0
      %v5987 = vadd.f32 %v5874, %v5986
      %v5988 = vpop.f32.mrb[0].mxu0
      %v5989 = vadd.f32 %v5876, %v5988
      %v5990 = vpop.f32.mrb[0].mxu0
      %v5991 = vadd.f32 %v5878, %v5990
      %5992 = vmatprep.mubr.bf16.mxu0 %v4103
      %5993 = vmatmul.mubr.bf16.gmra.mrb[0].mxu0 %v4102
      %v5994 = vpop.f32.mrb[0].mxu0
      %v5995 = vadd.f32 %v5882, %v5994
      %v5996 = vpop.f32.mrb[0].mxu0
      %v5997 = vadd.f32 %v5884, %v5996
      %v5998 = vpop.f32.mrb[0].mxu0
      %v5999 = vadd.f32 %v5886, %v5998
      %v6000 = vpop.f32.mrb[0].mxu0
      %v6001 = vadd.f32 %v5888, %v6000
      %6002 = vdwg.mxu0
      %6003 = vmatprep.subr.bf16.mxu0 %v5345
      %6004 = vmatpush1.bf16.msra.mxu0 %v5344
      %6005 = vmatprep.subr.bf16.mxu0 %v5349
      %6006 = vmatpush1.bf16.msra.mxu0 %v5348
      %6007 = vmatprep.subr.bf16.mxu0 %v5353
      %6008 = vmatpush1.bf16.msra.mxu0 %v5352
      %6009 = vmatprep.subr.bf16.mxu0 %v5357
      %6010 = vmatpush1.bf16.msra.mxu0 %v5356
      %6011 = vmatprep.subr.bf16.mxu0 %v5361
      %6012 = vmatpush1.bf16.msra.mxu0 %v5360
      %6013 = vmatprep.subr.bf16.mxu0 %v5365
      %6014 = vmatpush1.bf16.msra.mxu0 %v5364
      %6015 = vmatprep.subr.bf16.mxu0 %v5369
      %6016 = vmatpush1.bf16.msra.mxu0 %v5368
      %6017 = vmatprep.subr.bf16.mxu0 %v5373
      %6018 = vmatpush1.bf16.msra.mxu0 %v5372
      %6019 = vmatprep.subr.bf16.mxu0 %v5377
      %6020 = vmatpush1.bf16.msra.mxu0 %v5376
      %6021 = vmatprep.subr.bf16.mxu0 %v5381
      %6022 = vmatpush1.bf16.msra.mxu0 %v5380
      %6023 = vmatprep.subr.bf16.mxu0 %v5385
      %6024 = vmatpush1.bf16.msra.mxu0 %v5384
      %6025 = vmatprep.subr.bf16.mxu0 %v5389
      %6026 = vmatpush1.bf16.msra.mxu0 %v5388
      %6027 = vmatprep.subr.bf16.mxu0 %v5393
      %6028 = vmatpush1.bf16.msra.mxu0 %v5392
      %6029 = vmatprep.subr.bf16.mxu0 %v5397
      %6030 = vmatpush1.bf16.msra.mxu0 %v5396
      %6031 = vmatprep.subr.bf16.mxu0 %v5401
      %6032 = vmatpush1.bf16.msra.mxu0 %v5400
      %6033 = vmatprep.subr.bf16.mxu0 %v5405
      %6034 = vmatpush1.bf16.msra.mxu0 %v5404
      %6035 = vmatprep.mubr.bf16.mxu0 %v4049
      %6036 = vmatmul.mubr.bf16.gmra.mrb[0].mxu0 %v4048
      %v6037 = vpop.f32.mrb[0].mxu0
      %v6038 = vadd.f32 %v5925, %v6037
      %v6039 = vpop.f32.mrb[0].mxu0
      %v6040 = vadd.f32 %v5927, %v6039
      %v6041 = vpop.f32.mrb[0].mxu0
      %v6042 = vadd.f32 %v5929, %v6041
      %v6043 = vpop.f32.mrb[0].mxu0
      %v6044 = vadd.f32 %v5931, %v6043
      %6045 = vmatprep.mubr.bf16.mxu0 %v4057
      %6046 = vmatmul.mubr.bf16.gmra.mrb[0].mxu0 %v4056
      %v6047 = vpop.f32.mrb[0].mxu0
      %v6048 = vadd.f32 %v5935, %v6047
      %v6049 = vpop.f32.mrb[0].mxu0
      %v6050 = vadd.f32 %v5937, %v6049
      %v6051 = vpop.f32.mrb[0].mxu0
      %v6052 = vadd.f32 %v5939, %v6051
      %v6053 = vpop.f32.mrb[0].mxu0
      %v6054 = vadd.f32 %v5941, %v6053
      %6055 = vmatprep.mubr.bf16.mxu0 %v4065
      %6056 = vmatmul.mubr.bf16.gmra.mrb[0].mxu0 %v4064
      %v6057 = vpop.f32.mrb[0].mxu0
      %v6058 = vadd.f32 %v5945, %v6057
      %v6059 = vpop.f32.mrb[0].mxu0
      %v6060 = vadd.f32 %v5947, %v6059
      %v6061 = vpop.f32.mrb[0].mxu0
      %v6062 = vadd.f32 %v5949, %v6061
      %v6063 = vpop.f32.mrb[0].mxu0
      %v6064 = vadd.f32 %v5951, %v6063
      %6065 = vmatprep.mubr.bf16.mxu0 %v4073
      %6066 = vmatmul.mubr.bf16.gmra.mrb[0].mxu0 %v4072
      %v6067 = vpop.f32.mrb[0].mxu0
      %v6068 = vadd.f32 %v5955, %v6067
      %v6069 = vpop.f32.mrb[0].mxu0
      %v6070 = vadd.f32 %v5957, %v6069
      %v6071 = vpop.f32.mrb[0].mxu0
      %v6072 = vadd.f32 %v5959, %v6071
      %v6073 = vpop.f32.mrb[0].mxu0
      %v6074 = vadd.f32 %v5961, %v6073
      %6075 = vmatprep.mubr.bf16.mxu0 %v4081
      %6076 = vmatmul.mubr.bf16.gmra.mrb[0].mxu0 %v4080
      %v6077 = vpop.f32.mrb[0].mxu0
      %v6078 = vadd.f32 %v5965, %v6077
      %v6079 = vpop.f32.mrb[0].mxu0
      %v6080 = vadd.f32 %v5967, %v6079
      %v6081 = vpop.f32.mrb[0].mxu0
      %v6082 = vadd.f32 %v5969, %v6081
      %v6083 = vpop.f32.mrb[0].mxu0
      %v6084 = vadd.f32 %v5971, %v6083
      %6085 = vmatprep.mubr.bf16.mxu0 %v4089
      %6086 = vmatmul.mubr.bf16.gmra.mrb[0].mxu0 %v4088
      %v6087 = vpop.f32.mrb[0].mxu0
      %v6088 = vadd.f32 %v5975, %v6087
      %v6089 = vpop.f32.mrb[0].mxu0
      %v6090 = vadd.f32 %v5977, %v6089
      %v6091 = vpop.f32.mrb[0].mxu0
      %v6092 = vadd.f32 %v5979, %v6091
      %v6093 = vpop.f32.mrb[0].mxu0
      %v6094 = vadd.f32 %v5981, %v6093
      %6095 = vmatprep.mubr.bf16.mxu0 %v4097
      %6096 = vmatmul.mubr.bf16.gmra.mrb[0].mxu0 %v4096
      %v6097 = vpop.f32.mrb[0].mxu0
      %v6098 = vadd.f32 %v5985, %v6097
      %v6099 = vpop.f32.mrb[0].mxu0
      %v6100 = vadd.f32 %v5987, %v6099
      %v6101 = vpop.f32.mrb[0].mxu0
      %v6102 = vadd.f32 %v5989, %v6101
      %v6103 = vpop.f32.mrb[0].mxu0
      %v6104 = vadd.f32 %v5991, %v6103
      %6105 = vmatprep.mubr.bf16.mxu0 %v4105
      %6106 = vmatmul.mubr.bf16.gmra.mrb[0].mxu0 %v4104
      %v6107 = vpop.f32.mrb[0].mxu0
      %v6108 = vadd.f32 %v5995, %v6107
      %v6109 = vpop.f32.mrb[0].mxu0
      %v6110 = vadd.f32 %v5997, %v6109
      %v6111 = vpop.f32.mrb[0].mxu0
      %v6112 = vadd.f32 %v5999, %v6111
      %v6113 = vpop.f32.mrb[0].mxu0
      %v6114 = vadd.f32 %v6001, %v6113
      %6115 = vdwg.mxu0
      %6116 = vmatprep.subr.bf16.mxu0 %v5155
      %6117 = vmatpush1.bf16.msra.mxu0 %v5154
      %6118 = vmatprep.subr.bf16.mxu0 %v5159
      %6119 = vmatpush1.bf16.msra.mxu0 %v5158
      %6120 = vmatprep.subr.bf16.mxu0 %v5163
      %6121 = vmatpush1.bf16.msra.mxu0 %v5162
      %6122 = vmatprep.subr.bf16.mxu0 %v5167
      %6123 = vmatpush1.bf16.msra.mxu0 %v5166
      %6124 = vmatprep.subr.bf16.mxu0 %v5171
      %6125 = vmatpush1.bf16.msra.mxu0 %v5170
      %6126 = vmatprep.subr.bf16.mxu0 %v5175
      %6127 = vmatpush1.bf16.msra.mxu0 %v5174
      %6128 = vmatprep.subr.bf16.mxu0 %v5179
      %6129 = vmatpush1.bf16.msra.mxu0 %v5178
      %6130 = vmatprep.subr.bf16.mxu0 %v5183
      %6131 = vmatpush1.bf16.msra.mxu0 %v5182
      %6132 = vmatprep.subr.bf16.mxu0 %v5187
      %6133 = vmatpush1.bf16.msra.mxu0 %v5186
      %6134 = vmatprep.subr.bf16.mxu0 %v5191
      %6135 = vmatpush1.bf16.msra.mxu0 %v5190
      %6136 = vmatprep.subr.bf16.mxu0 %v5195
      %6137 = vmatpush1.bf16.msra.mxu0 %v5194
      %6138 = vmatprep.subr.bf16.mxu0 %v5199
      %6139 = vmatpush1.bf16.msra.mxu0 %v5198
      %6140 = vmatprep.subr.bf16.mxu0 %v5203
      %6141 = vmatpush1.bf16.msra.mxu0 %v5202
      %6142 = vmatprep.subr.bf16.mxu0 %v5207
      %6143 = vmatpush1.bf16.msra.mxu0 %v5206
      %6144 = vmatprep.subr.bf16.mxu0 %v5211
      %6145 = vmatpush1.bf16.msra.mxu0 %v5210
      %6146 = vmatprep.subr.bf16.mxu0 %v5215
      %6147 = vmatpush1.bf16.msra.mxu0 %v5214
      %6148 = vmatprep.mubr.bf16.mxu0 %v4043
      %6149 = vmatmul.mubr.bf16.gmra.mrb[0].mxu0 %v4042
      %v6150 = vpop.f32.mrb[0].mxu0
      %v6151 = vadd.f32 %v4375, %v6150
      %v6152 = vpop.f32.mrb[0].mxu0
      %v6153 = vadd.f32 %v4379, %v6152
      %v6154 = vpop.f32.mrb[0].mxu0
      %v6155 = vadd.f32 %v4375, %v6154
      %v6156 = vpop.f32.mrb[0].mxu0
      %v6157 = vadd.f32 %v4379, %v6156
      %6158 = vmatprep.mubr.bf16.mxu0 %v4051
      %6159 = vmatmul.mubr.bf16.gmra.mrb[0].mxu0 %v4050
      %v6160 = vpop.f32.mrb[0].mxu0
      %v6161 = vadd.f32 %v4375, %v6160
      %v6162 = vpop.f32.mrb[0].mxu0
      %v6163 = vadd.f32 %v4379, %v6162
      %v6164 = vpop.f32.mrb[0].mxu0
      %v6165 = vadd.f32 %v4375, %v6164
      %v6166 = vpop.f32.mrb[0].mxu0
      %v6167 = vadd.f32 %v4379, %v6166
      %6168 = vmatprep.mubr.bf16.mxu0 %v4059
      %6169 = vmatmul.mubr.bf16.gmra.mrb[0].mxu0 %v4058
      %v6170 = vpop.f32.mrb[0].mxu0
      %v6171 = vadd.f32 %v4375, %v6170
      %v6172 = vpop.f32.mrb[0].mxu0
      %v6173 = vadd.f32 %v4379, %v6172
      %v6174 = vpop.f32.mrb[0].mxu0
      %v6175 = vadd.f32 %v4375, %v6174
      %v6176 = vpop.f32.mrb[0].mxu0
      %v6177 = vadd.f32 %v4379, %v6176
      %6178 = vmatprep.mubr.bf16.mxu0 %v4067
      %6179 = vmatmul.mubr.bf16.gmra.mrb[0].mxu0 %v4066
      %v6180 = vpop.f32.mrb[0].mxu0
      %v6181 = vadd.f32 %v4375, %v6180
      %v6182 = vpop.f32.mrb[0].mxu0
      %v6183 = vadd.f32 %v4379, %v6182
      %v6184 = vpop.f32.mrb[0].mxu0
      %v6185 = vadd.f32 %v4375, %v6184
      %v6186 = vpop.f32.mrb[0].mxu0
      %v6187 = vadd.f32 %v4379, %v6186
      %6188 = vmatprep.mubr.bf16.mxu0 %v4075
      %6189 = vmatmul.mubr.bf16.gmra.mrb[0].mxu0 %v4074
      %v6190 = vpop.f32.mrb[0].mxu0
      %v6191 = vadd.f32 %v4375, %v6190
      %v6192 = vpop.f32.mrb[0].mxu0
      %v6193 = vadd.f32 %v4379, %v6192
      %v6194 = vpop.f32.mrb[0].mxu0
      %v6195 = vadd.f32 %v4375, %v6194
      %v6196 = vpop.f32.mrb[0].mxu0
      %v6197 = vadd.f32 %v4379, %v6196
      %6198 = vmatprep.mubr.bf16.mxu0 %v4083
      %6199 = vmatmul.mubr.bf16.gmra.mrb[0].mxu0 %v4082
      %v6200 = vpop.f32.mrb[0].mxu0
      %v6201 = vadd.f32 %v4375, %v6200
      %v6202 = vpop.f32.mrb[0].mxu0
      %v6203 = vadd.f32 %v4379, %v6202
      %v6204 = vpop.f32.mrb[0].mxu0
      %v6205 = vadd.f32 %v4375, %v6204
      %v6206 = vpop.f32.mrb[0].mxu0
      %v6207 = vadd.f32 %v4379, %v6206
      %6208 = vmatprep.mubr.bf16.mxu0 %v4091
      %6209 = vmatmul.mubr.bf16.gmra.mrb[0].mxu0 %v4090
      %v6210 = vpop.f32.mrb[0].mxu0
      %v6211 = vadd.f32 %v4375, %v6210
      %v6212 = vpop.f32.mrb[0].mxu0
      %v6213 = vadd.f32 %v4379, %v6212
      %v6214 = vpop.f32.mrb[0].mxu0
      %v6215 = vadd.f32 %v4375, %v6214
      %v6216 = vpop.f32.mrb[0].mxu0
      %v6217 = vadd.f32 %v4379, %v6216
      %6218 = vmatprep.mubr.bf16.mxu0 %v4099
      %6219 = vmatmul.mubr.bf16.gmra.mrb[0].mxu0 %v4098
      %v6220 = vpop.f32.mrb[0].mxu0
      %v6221 = vadd.f32 %v4375, %v6220
      %v6222 = vpop.f32.mrb[0].mxu0
      %v6223 = vadd.f32 %v4379, %v6222
      %v6224 = vpop.f32.mrb[0].mxu0
      %v6225 = vadd.f32 %v4375, %v6224
      %v6226 = vpop.f32.mrb[0].mxu0
      %v6227 = vadd.f32 %v4379, %v6226
      %6228 = vdwg.mxu0
      %6229 = vmatprep.subr.bf16.mxu0 %v5219
      %6230 = vmatpush1.bf16.msra.mxu0 %v5218
      %6231 = vmatprep.subr.bf16.mxu0 %v5223
      %6232 = vmatpush1.bf16.msra.mxu0 %v5222
      %6233 = vmatprep.subr.bf16.mxu0 %v5227
      %6234 = vmatpush1.bf16.msra.mxu0 %v5226
      %6235 = vmatprep.subr.bf16.mxu0 %v5231
      %6236 = vmatpush1.bf16.msra.mxu0 %v5230
      %6237 = vmatprep.subr.bf16.mxu0 %v5235
      %6238 = vmatpush1.bf16.msra.mxu0 %v5234
      %6239 = vmatprep.subr.bf16.mxu0 %v5239
      %6240 = vmatpush1.bf16.msra.mxu0 %v5238
      %6241 = vmatprep.subr.bf16.mxu0 %v5243
      %6242 = vmatpush1.bf16.msra.mxu0 %v5242
      %6243 = vmatprep.subr.bf16.mxu0 %v5247
      %6244 = vmatpush1.bf16.msra.mxu0 %v5246
      %6245 = vmatprep.subr.bf16.mxu0 %v5251
      %6246 = vmatpush1.bf16.msra.mxu0 %v5250
      %6247 = vmatprep.subr.bf16.mxu0 %v5255
      %6248 = vmatpush1.bf16.msra.mxu0 %v5254
      %6249 = vmatprep.subr.bf16.mxu0 %v5259
      %6250 = vmatpush1.bf16.msra.mxu0 %v5258
      %6251 = vmatprep.subr.bf16.mxu0 %v5263
      %6252 = vmatpush1.bf16.msra.mxu0 %v5262
      %6253 = vmatprep.subr.bf16.mxu0 %v5267
      %6254 = vmatpush1.bf16.msra.mxu0 %v5266
      %6255 = vmatprep.subr.bf16.mxu0 %v5271
      %6256 = vmatpush1.bf16.msra.mxu0 %v5270
      %6257 = vmatprep.subr.bf16.mxu0 %v5275
      %6258 = vmatpush1.bf16.msra.mxu0 %v5274
      %6259 = vmatprep.subr.bf16.mxu0 %v5279
      %6260 = vmatpush1.bf16.msra.mxu0 %v5278
      %6261 = vmatprep.mubr.bf16.mxu0 %v4045
      %6262 = vmatmul.mubr.bf16.gmra.mrb[0].mxu0 %v4044
      %v6263 = vpop.f32.mrb[0].mxu0
      %v6264 = vadd.f32 %v6151, %v6263
      %v6265 = vpop.f32.mrb[0].mxu0
      %v6266 = vadd.f32 %v6153, %v6265
      %v6267 = vpop.f32.mrb[0].mxu0
      %v6268 = vadd.f32 %v6155, %v6267
      %v6269 = vpop.f32.mrb[0].mxu0
      %v6270 = vadd.f32 %v6157, %v6269
      %6271 = vmatprep.mubr.bf16.mxu0 %v4053
      %6272 = vmatmul.mubr.bf16.gmra.mrb[0].mxu0 %v4052
      %v6273 = vpop.f32.mrb[0].mxu0
      %v6274 = vadd.f32 %v6161, %v6273
      %v6275 = vpop.f32.mrb[0].mxu0
      %v6276 = vadd.f32 %v6163, %v6275
      %v6277 = vpop.f32.mrb[0].mxu0
      %v6278 = vadd.f32 %v6165, %v6277
      %v6279 = vpop.f32.mrb[0].mxu0
      %v6280 = vadd.f32 %v6167, %v6279
      %6281 = vmatprep.mubr.bf16.mxu0 %v4061
      %6282 = vmatmul.mubr.bf16.gmra.mrb[0].mxu0 %v4060
      %v6283 = vpop.f32.mrb[0].mxu0
      %v6284 = vadd.f32 %v6171, %v6283
      %v6285 = vpop.f32.mrb[0].mxu0
      %v6286 = vadd.f32 %v6173, %v6285
      %v6287 = vpop.f32.mrb[0].mxu0
      %v6288 = vadd.f32 %v6175, %v6287
      %v6289 = vpop.f32.mrb[0].mxu0
      %v6290 = vadd.f32 %v6177, %v6289
      %6291 = vmatprep.mubr.bf16.mxu0 %v4069
      %6292 = vmatmul.mubr.bf16.gmra.mrb[0].mxu0 %v4068
      %v6293 = vpop.f32.mrb[0].mxu0
      %v6294 = vadd.f32 %v6181, %v6293
      %v6295 = vpop.f32.mrb[0].mxu0
      %v6296 = vadd.f32 %v6183, %v6295
      %v6297 = vpop.f32.mrb[0].mxu0
      %v6298 = vadd.f32 %v6185, %v6297
      %v6299 = vpop.f32.mrb[0].mxu0
      %v6300 = vadd.f32 %v6187, %v6299
      %6301 = vmatprep.mubr.bf16.mxu0 %v4077
      %6302 = vmatmul.mubr.bf16.gmra.mrb[0].mxu0 %v4076
      %v6303 = vpop.f32.mrb[0].mxu0
      %v6304 = vadd.f32 %v6191, %v6303
      %v6305 = vpop.f32.mrb[0].mxu0
      %v6306 = vadd.f32 %v6193, %v6305
      %v6307 = vpop.f32.mrb[0].mxu0
      %v6308 = vadd.f32 %v6195, %v6307
      %v6309 = vpop.f32.mrb[0].mxu0
      %v6310 = vadd.f32 %v6197, %v6309
      %6311 = vmatprep.mubr.bf16.mxu0 %v4085
      %6312 = vmatmul.mubr.bf16.gmra.mrb[0].mxu0 %v4084
      %v6313 = vpop.f32.mrb[0].mxu0
      %v6314 = vadd.f32 %v6201, %v6313
      %v6315 = vpop.f32.mrb[0].mxu0
      %v6316 = vadd.f32 %v6203, %v6315
      %v6317 = vpop.f32.mrb[0].mxu0
      %v6318 = vadd.f32 %v6205, %v6317
      %v6319 = vpop.f32.mrb[0].mxu0
      %v6320 = vadd.f32 %v6207, %v6319
      %6321 = vmatprep.mubr.bf16.mxu0 %v4093
      %6322 = vmatmul.mubr.bf16.gmra.mrb[0].mxu0 %v4092
      %v6323 = vpop.f32.mrb[0].mxu0
      %v6324 = vadd.f32 %v6211, %v6323
      %v6325 = vpop.f32.mrb[0].mxu0
      %v6326 = vadd.f32 %v6213, %v6325
      %v6327 = vpop.f32.mrb[0].mxu0
      %v6328 = vadd.f32 %v6215, %v6327
      %v6329 = vpop.f32.mrb[0].mxu0
      %v6330 = vadd.f32 %v6217, %v6329
      %6331 = vmatprep.mubr.bf16.mxu0 %v4101
      %6332 = vmatmul.mubr.bf16.gmra.mrb[0].mxu0 %v4100
      %v6333 = vpop.f32.mrb[0].mxu0
      %v6334 = vadd.f32 %v6221, %v6333
      %v6335 = vpop.f32.mrb[0].mxu0
      %v6336 = vadd.f32 %v6223, %v6335
      %v6337 = vpop.f32.mrb[0].mxu0
      %v6338 = vadd.f32 %v6225, %v6337
      %v6339 = vpop.f32.mrb[0].mxu0
      %v6340 = vadd.f32 %v6227, %v6339
      %6341 = vdwg.mxu0
      %6342 = vmatprep.subr.bf16.mxu0 %v5283
      %6343 = vmatpush1.bf16.msra.mxu0 %v5282
      %6344 = vmatprep.subr.bf16.mxu0 %v5287
      %6345 = vmatpush1.bf16.msra.mxu0 %v5286
      %6346 = vmatprep.subr.bf16.mxu0 %v5291
      %6347 = vmatpush1.bf16.msra.mxu0 %v5290
      %6348 = vmatprep.subr.bf16.mxu0 %v5295
      %6349 = vmatpush1.bf16.msra.mxu0 %v5294
      %6350 = vmatprep.subr.bf16.mxu0 %v5299
      %6351 = vmatpush1.bf16.msra.mxu0 %v5298
      %6352 = vmatprep.subr.bf16.mxu0 %v5303
      %6353 = vmatpush1.bf16.msra.mxu0 %v5302
      %6354 = vmatprep.subr.bf16.mxu0 %v5307
      %6355 = vmatpush1.bf16.msra.mxu0 %v5306
      %6356 = vmatprep.subr.bf16.mxu0 %v5311
      %6357 = vmatpush1.bf16.msra.mxu0 %v5310
      %6358 = vmatprep.subr.bf16.mxu0 %v5315
      %6359 = vmatpush1.bf16.msra.mxu0 %v5314
      %6360 = vmatprep.subr.bf16.mxu0 %v5319
      %6361 = vmatpush1.bf16.msra.mxu0 %v5318
      %6362 = vmatprep.subr.bf16.mxu0 %v5323
      %6363 = vmatpush1.bf16.msra.mxu0 %v5322
      %6364 = vmatprep.subr.bf16.mxu0 %v5327
      %6365 = vmatpush1.bf16.msra.mxu0 %v5326
      %6366 = vmatprep.subr.bf16.mxu0 %v5331
      %6367 = vmatpush1.bf16.msra.mxu0 %v5330
      %6368 = vmatprep.subr.bf16.mxu0 %v5335
      %6369 = vmatpush1.bf16.msra.mxu0 %v5334
      %6370 = vmatprep.subr.bf16.mxu0 %v5339
      %6371 = vmatpush1.bf16.msra.mxu0 %v5338
      %6372 = vmatprep.subr.bf16.mxu0 %v5343
      %6373 = vmatpush1.bf16.msra.mxu0 %v5342
      %6374 = vmatprep.mubr.bf16.mxu0 %v4047
      %6375 = vmatmul.mubr.bf16.gmra.mrb[0].mxu0 %v4046
      %v6376 = vpop.f32.mrb[0].mxu0
      %v6377 = vadd.f32 %v6264, %v6376
      %v6378 = vpop.f32.mrb[0].mxu0
      %v6379 = vadd.f32 %v6266, %v6378
      %v6380 = vpop.f32.mrb[0].mxu0
      %v6381 = vadd.f32 %v6268, %v6380
      %v6382 = vpop.f32.mrb[0].mxu0
      %v6383 = vadd.f32 %v6270, %v6382
      %6384 = vmatprep.mubr.bf16.mxu0 %v4055
      %6385 = vmatmul.mubr.bf16.gmra.mrb[0].mxu0 %v4054
      %v6386 = vpop.f32.mrb[0].mxu0
      %v6387 = vadd.f32 %v6274, %v6386
      %v6388 = vpop.f32.mrb[0].mxu0
      %v6389 = vadd.f32 %v6276, %v6388
      %v6390 = vpop.f32.mrb[0].mxu0
      %v6391 = vadd.f32 %v6278, %v6390
      %v6392 = vpop.f32.mrb[0].mxu0
      %v6393 = vadd.f32 %v6280, %v6392
      %6394 = vmatprep.mubr.bf16.mxu0 %v4063
      %6395 = vmatmul.mubr.bf16.gmra.mrb[0].mxu0 %v4062
      %v6396 = vpop.f32.mrb[0].mxu0
      %v6397 = vadd.f32 %v6284, %v6396
      %v6398 = vpop.f32.mrb[0].mxu0
      %v6399 = vadd.f32 %v6286, %v6398
      %v6400 = vpop.f32.mrb[0].mxu0
      %v6401 = vadd.f32 %v6288, %v6400
      %v6402 = vpop.f32.mrb[0].mxu0
      %v6403 = vadd.f32 %v6290, %v6402
      %6404 = vmatprep.mubr.bf16.mxu0 %v4071
      %6405 = vmatmul.mubr.bf16.gmra.mrb[0].mxu0 %v4070
      %v6406 = vpop.f32.mrb[0].mxu0
      %v6407 = vadd.f32 %v6294, %v6406
      %v6408 = vpop.f32.mrb[0].mxu0
      %v6409 = vadd.f32 %v6296, %v6408
      %v6410 = vpop.f32.mrb[0].mxu0
      %v6411 = vadd.f32 %v6298, %v6410
      %v6412 = vpop.f32.mrb[0].mxu0
      %v6413 = vadd.f32 %v6300, %v6412
      %6414 = vmatprep.mubr.bf16.mxu0 %v4079
      %6415 = vmatmul.mubr.bf16.gmra.mrb[0].mxu0 %v4078
      %v6416 = vpop.f32.mrb[0].mxu0
      %v6417 = vadd.f32 %v6304, %v6416
      %v6418 = vpop.f32.mrb[0].mxu0
      %v6419 = vadd.f32 %v6306, %v6418
      %v6420 = vpop.f32.mrb[0].mxu0
      %v6421 = vadd.f32 %v6308, %v6420
      %v6422 = vpop.f32.mrb[0].mxu0
      %v6423 = vadd.f32 %v6310, %v6422
      %6424 = vmatprep.mubr.bf16.mxu0 %v4087
      %6425 = vmatmul.mubr.bf16.gmra.mrb[0].mxu0 %v4086
      %v6426 = vpop.f32.mrb[0].mxu0
      %v6427 = vadd.f32 %v6314, %v6426
      %v6428 = vpop.f32.mrb[0].mxu0
      %v6429 = vadd.f32 %v6316, %v6428
      %v6430 = vpop.f32.mrb[0].mxu0
      %v6431 = vadd.f32 %v6318, %v6430
      %v6432 = vpop.f32.mrb[0].mxu0
      %v6433 = vadd.f32 %v6320, %v6432
      %6434 = vmatprep.mubr.bf16.mxu0 %v4095
      %6435 = vmatmul.mubr.bf16.gmra.mrb[0].mxu0 %v4094
      %v6436 = vpop.f32.mrb[0].mxu0
      %v6437 = vadd.f32 %v6324, %v6436
      %v6438 = vpop.f32.mrb[0].mxu0
      %v6439 = vadd.f32 %v6326, %v6438
      %v6440 = vpop.f32.mrb[0].mxu0
      %v6441 = vadd.f32 %v6328, %v6440
      %v6442 = vpop.f32.mrb[0].mxu0
      %v6443 = vadd.f32 %v6330, %v6442
      %6444 = vmatprep.mubr.bf16.mxu0 %v4103
      %6445 = vmatmul.mubr.bf16.gmra.mrb[0].mxu0 %v4102
      %v6446 = vpop.f32.mrb[0].mxu0
      %v6447 = vadd.f32 %v6334, %v6446
      %v6448 = vpop.f32.mrb[0].mxu0
      %v6449 = vadd.f32 %v6336, %v6448
      %v6450 = vpop.f32.mrb[0].mxu0
      %v6451 = vadd.f32 %v6338, %v6450
      %v6452 = vpop.f32.mrb[0].mxu0
      %v6453 = vadd.f32 %v6340, %v6452
      %6454 = vdwg.mxu0
      %6455 = vmatprep.subr.bf16.mxu0 %v5347
      %6456 = vmatpush1.bf16.msra.mxu0 %v5346
      %6457 = vmatprep.subr.bf16.mxu0 %v5351
      %6458 = vmatpush1.bf16.msra.mxu0 %v5350
      %6459 = vmatprep.subr.bf16.mxu0 %v5355
      %6460 = vmatpush1.bf16.msra.mxu0 %v5354
      %6461 = vmatprep.subr.bf16.mxu0 %v5359
      %6462 = vmatpush1.bf16.msra.mxu0 %v5358
      %6463 = vmatprep.subr.bf16.mxu0 %v5363
      %6464 = vmatpush1.bf16.msra.mxu0 %v5362
      %6465 = vmatprep.subr.bf16.mxu0 %v5367
      %6466 = vmatpush1.bf16.msra.mxu0 %v5366
      %6467 = vmatprep.subr.bf16.mxu0 %v5371
      %6468 = vmatpush1.bf16.msra.mxu0 %v5370
      %6469 = vmatprep.subr.bf16.mxu0 %v5375
      %6470 = vmatpush1.bf16.msra.mxu0 %v5374
      %6471 = vmatprep.subr.bf16.mxu0 %v5379
      %6472 = vmatpush1.bf16.msra.mxu0 %v5378
      %6473 = vmatprep.subr.bf16.mxu0 %v5383
      %6474 = vmatpush1.bf16.msra.mxu0 %v5382
      %6475 = vmatprep.subr.bf16.mxu0 %v5387
      %6476 = vmatpush1.bf16.msra.mxu0 %v5386
      %6477 = vmatprep.subr.bf16.mxu0 %v5391
      %6478 = vmatpush1.bf16.msra.mxu0 %v5390
      %6479 = vmatprep.subr.bf16.mxu0 %v5395
      %6480 = vmatpush1.bf16.msra.mxu0 %v5394
      %6481 = vmatprep.subr.bf16.mxu0 %v5399
      %6482 = vmatpush1.bf16.msra.mxu0 %v5398
      %6483 = vmatprep.subr.bf16.mxu0 %v5403
      %6484 = vmatpush1.bf16.msra.mxu0 %v5402
      %6485 = vmatprep.subr.bf16.mxu0 %v5407
      %6486 = vmatpush1.bf16.msra.mxu0 %v5406
      %6487 = vmatprep.mubr.bf16.mxu0 %v4049
      %6488 = vmatmul.mubr.bf16.gmra.mrb[0].mxu0 %v4048
      %v6489 = vpop.f32.mrb[0].mxu0
      %v6490 = vadd.f32 %v6377, %v6489
      %v6491 = vpop.f32.mrb[0].mxu0
      %v6492 = vadd.f32 %v6379, %v6491
      %v6493 = vpop.f32.mrb[0].mxu0
      %v6494 = vadd.f32 %v6381, %v6493
      %v6495 = vpop.f32.mrb[0].mxu0
      %v6496 = vadd.f32 %v6383, %v6495
      %6497 = vmatprep.mubr.bf16.mxu0 %v4057
      %6498 = vmatmul.mubr.bf16.gmra.mrb[0].mxu0 %v4056
      %v6499 = vpop.f32.mrb[0].mxu0
      %v6500 = vadd.f32 %v6387, %v6499
      %v6501 = vpop.f32.mrb[0].mxu0
      %v6502 = vadd.f32 %v6389, %v6501
      %v6503 = vpop.f32.mrb[0].mxu0
      %v6504 = vadd.f32 %v6391, %v6503
      %v6505 = vpop.f32.mrb[0].mxu0
      %v6506 = vadd.f32 %v6393, %v6505
      %6507 = vmatprep.mubr.bf16.mxu0 %v4065
      %6508 = vmatmul.mubr.bf16.gmra.mrb[0].mxu0 %v4064
      %v6509 = vpop.f32.mrb[0].mxu0
      %v6510 = vadd.f32 %v6397, %v6509
      %v6511 = vpop.f32.mrb[0].mxu0
      %v6512 = vadd.f32 %v6399, %v6511
      %v6513 = vpop.f32.mrb[0].mxu0
      %v6514 = vadd.f32 %v6401, %v6513
      %v6515 = vpop.f32.mrb[0].mxu0
      %v6516 = vadd.f32 %v6403, %v6515
      %6517 = vmatprep.mubr.bf16.mxu0 %v4073
      %6518 = vmatmul.mubr.bf16.gmra.mrb[0].mxu0 %v4072
      %v6519 = vpop.f32.mrb[0].mxu0
      %v6520 = vadd.f32 %v6407, %v6519
      %v6521 = vpop.f32.mrb[0].mxu0
      %v6522 = vadd.f32 %v6409, %v6521
      %v6523 = vpop.f32.mrb[0].mxu0
      %v6524 = vadd.f32 %v6411, %v6523
      %v6525 = vpop.f32.mrb[0].mxu0
      %v6526 = vadd.f32 %v6413, %v6525
      %6527 = vmatprep.mubr.bf16.mxu0 %v4081
      %6528 = vmatmul.mubr.bf16.gmra.mrb[0].mxu0 %v4080
      %v6529 = vpop.f32.mrb[0].mxu0
      %v6530 = vadd.f32 %v6417, %v6529
      %v6531 = vpop.f32.mrb[0].mxu0
      %v6532 = vadd.f32 %v6419, %v6531
      %v6533 = vpop.f32.mrb[0].mxu0
      %v6534 = vadd.f32 %v6421, %v6533
      %v6535 = vpop.f32.mrb[0].mxu0
      %v6536 = vadd.f32 %v6423, %v6535
      %6537 = vmatprep.mubr.bf16.mxu0 %v4089
      %6538 = vmatmul.mubr.bf16.gmra.mrb[0].mxu0 %v4088
      %v6539 = vpop.f32.mrb[0].mxu0
      %v6540 = vadd.f32 %v6427, %v6539
      %v6541 = vpop.f32.mrb[0].mxu0
      %v6542 = vadd.f32 %v6429, %v6541
      %v6543 = vpop.f32.mrb[0].mxu0
      %v6544 = vadd.f32 %v6431, %v6543
      %v6545 = vpop.f32.mrb[0].mxu0
      %v6546 = vadd.f32 %v6433, %v6545
      %6547 = vmatprep.mubr.bf16.mxu0 %v4097
      %6548 = vmatmul.mubr.bf16.gmra.mrb[0].mxu0 %v4096
      %v6549 = vpop.f32.mrb[0].mxu0
      %v6550 = vadd.f32 %v6437, %v6549
      %v6551 = vpop.f32.mrb[0].mxu0
      %v6552 = vadd.f32 %v6439, %v6551
      %v6553 = vpop.f32.mrb[0].mxu0
      %v6554 = vadd.f32 %v6441, %v6553
      %v6555 = vpop.f32.mrb[0].mxu0
      %v6556 = vadd.f32 %v6443, %v6555
      %6557 = vmatprep.mubr.bf16.mxu0 %v4105
      %6558 = vmatmul.mubr.bf16.gmra.mrb[0].mxu0 %v4104
      %v6559 = vpop.f32.mrb[0].mxu0
      %v6560 = vadd.f32 %v6447, %v6559
      %v6561 = vpop.f32.mrb[0].mxu0
      %v6562 = vadd.f32 %v6449, %v6561
      %v6563 = vpop.f32.mrb[0].mxu0
      %v6564 = vadd.f32 %v6451, %v6563
      %v6565 = vpop.f32.mrb[0].mxu0
      %v6566 = vadd.f32 %v6453, %v6565
      %6567 = vdwg.mxu0
      %v6568 = vmax.f32 %v6038, 0.0
      %v6569 = vmax.f32 %v6040, 0.0
      %v6570 = vmax.f32 %v6490, 0.0
      %v6571 = vmax.f32 %v6492, 0.0
      %v6572 = vmax.f32 %v6042, 0.0
      %v6573 = vmax.f32 %v6044, 0.0
      %v6574 = vmax.f32 %v6494, 0.0
      %v6575 = vmax.f32 %v6496, 0.0
      %v6576 = vmax.f32 %v6048, 0.0
      %v6577 = vmax.f32 %v6050, 0.0
      %v6578 = vmax.f32 %v6500, 0.0
      %v6579 = vmax.f32 %v6502, 0.0
      %v6580 = vmax.f32 %v6052, 0.0
      %v6581 = vmax.f32 %v6054, 0.0
      %v6582 = vmax.f32 %v6504, 0.0
      %v6583 = vmax.f32 %v6506, 0.0
      %v6584 = vmax.f32 %v6058, 0.0
      %v6585 = vmax.f32 %v6060, 0.0
      %v6586 = vmax.f32 %v6510, 0.0
      %v6587 = vmax.f32 %v6512, 0.0
      %v6588 = vmax.f32 %v6062, 0.0
      %v6589 = vmax.f32 %v6064, 0.0
      %v6590 = vmax.f32 %v6514, 0.0
      %v6591 = vmax.f32 %v6516, 0.0
      %v6592 = vmax.f32 %v6068, 0.0
      %v6593 = vmax.f32 %v6070, 0.0
      %v6594 = vmax.f32 %v6520, 0.0
      %v6595 = vmax.f32 %v6522, 0.0
      %v6596 = vmax.f32 %v6072, 0.0
      %v6597 = vmax.f32 %v6074, 0.0
      %v6598 = vmax.f32 %v6524, 0.0
      %v6599 = vmax.f32 %v6526, 0.0
      %v6600 = vmax.f32 %v6078, 0.0
      %v6601 = vmax.f32 %v6080, 0.0
      %v6602 = vmax.f32 %v6530, 0.0
      %v6603 = vmax.f32 %v6532, 0.0
      %v6604 = vmax.f32 %v6082, 0.0
      %v6605 = vmax.f32 %v6084, 0.0
      %v6606 = vmax.f32 %v6534, 0.0
      %v6607 = vmax.f32 %v6536, 0.0
      %v6608 = vmax.f32 %v6088, 0.0
      %v6609 = vmax.f32 %v6090, 0.0
      %v6610 = vmax.f32 %v6540, 0.0
      %v6611 = vmax.f32 %v6542, 0.0
      %v6612 = vmax.f32 %v6092, 0.0
      %v6613 = vmax.f32 %v6094, 0.0
      %v6614 = vmax.f32 %v6544, 0.0
      %v6615 = vmax.f32 %v6546, 0.0
      %v6616 = vmax.f32 %v6098, 0.0
      %v6617 = vmax.f32 %v6100, 0.0
      %v6618 = vmax.f32 %v6550, 0.0
      %v6619 = vmax.f32 %v6552, 0.0
      %v6620 = vmax.f32 %v6102, 0.0
      %v6621 = vmax.f32 %v6104, 0.0
      %v6622 = vmax.f32 %v6554, 0.0
      %v6623 = vmax.f32 %v6556, 0.0
      %v6624 = vmax.f32 %v6108, 0.0
      %v6625 = vmax.f32 %v6110, 0.0
      %v6626 = vmax.f32 %v6560, 0.0
      %v6627 = vmax.f32 %v6562, 0.0
      %v6628 = vmax.f32 %v6112, 0.0
      %v6629 = vmax.f32 %v6114, 0.0
      %v6630 = vmax.f32 %v6564, 0.0
      %v6631 = vmax.f32 %v6566, 0.0
      %v6632 = vpack.c.bf16 %v6572, %v6568
      %v6633 = vpack.c.bf16 %v6573, %v6569
      %v6634 = vpack.c.bf16 %v6574, %v6570
      %v6635 = vpack.c.bf16 %v6575, %v6571
      %v6636 = vpack.c.bf16 %v6580, %v6576
      %v6637 = vpack.c.bf16 %v6581, %v6577
      %v6638 = vpack.c.bf16 %v6582, %v6578
      %v6639 = vpack.c.bf16 %v6583, %v6579
      %v6640 = vpack.c.bf16 %v6588, %v6584
      %v6641 = vpack.c.bf16 %v6589, %v6585
      %v6642 = vpack.c.bf16 %v6590, %v6586
      %v6643 = vpack.c.bf16 %v6591, %v6587
      %v6644 = vpack.c.bf16 %v6596, %v6592
      %v6645 = vpack.c.bf16 %v6597, %v6593
      %v6646 = vpack.c.bf16 %v6598, %v6594
      %v6647 = vpack.c.bf16 %v6599, %v6595
      %v6648 = vpack.c.bf16 %v6604, %v6600
      %v6649 = vpack.c.bf16 %v6605, %v6601
      %v6650 = vpack.c.bf16 %v6606, %v6602
      %v6651 = vpack.c.bf16 %v6607, %v6603
      %v6652 = vpack.c.bf16 %v6612, %v6608
      %v6653 = vpack.c.bf16 %v6613, %v6609
      %v6654 = vpack.c.bf16 %v6614, %v6610
      %v6655 = vpack.c.bf16 %v6615, %v6611
      %v6656 = vpack.c.bf16 %v6620, %v6616
      %v6657 = vpack.c.bf16 %v6621, %v6617
      %v6658 = vpack.c.bf16 %v6622, %v6618
      %v6659 = vpack.c.bf16 %v6623, %v6619
      %v6660 = vpack.c.bf16 %v6628, %v6624
      %v6661 = vpack.c.bf16 %v6629, %v6625
      %v6662 = vpack.c.bf16 %v6630, %v6626
      %v6663 = vpack.c.bf16 %v6631, %v6627
      %v6664 = vld [vmem:[%s5] sm:$0xff]
      %v6665 = vld [vmem:[%s5 + $0x8] sm:$0xff]
      %v6666 = vld [vmem:[%s5 + $0x10] sm:$0xff]
      %v6667 = vld [vmem:[%s5 + $0x18] sm:$0xff]
      %v6668 = vld [vmem:[%s5 + $0x20] sm:$0xff]
      %v6669 = vld [vmem:[%s5 + $0x28] sm:$0xff]
      %v6670 = vld [vmem:[%s5 + $0x30] sm:$0xff]
      %v6671 = vld [vmem:[%s5 + $0x38] sm:$0xff]
      %v6672 = vld [vmem:[%s5 + $0x40] sm:$0xff]
      %v6673 = vld [vmem:[%s5 + $0x48] sm:$0xff]
      %v6674 = vld [vmem:[%s5 + $0x50] sm:$0xff]
      %v6675 = vld [vmem:[%s5 + $0x58] sm:$0xff]
      %v6676 = vld [vmem:[%s5 + $0x60] sm:$0xff]
      %v6677 = vld [vmem:[%s5 + $0x68] sm:$0xff]
      %v6678 = vld [vmem:[%s5 + $0x70] sm:$0xff]
      %v6679 = vld [vmem:[%s5 + $0x78] sm:$0xff]
      %v6680 = vld [vmem:[%s5 + $0x80] sm:$0xff]
      %v6681 = vld [vmem:[%s5 + $0x88] sm:$0xff]
      %v6682 = vld [vmem:[%s5 + $0x90] sm:$0xff]
      %v6683 = vld [vmem:[%s5 + $0x98] sm:$0xff]
      %v6684 = vld [vmem:[%s5 + $0xa0] sm:$0xff]
      %v6685 = vld [vmem:[%s5 + $0xa8] sm:$0xff]
      %v6686 = vld [vmem:[%s5 + $0xb0] sm:$0xff]
      %v6687 = vld [vmem:[%s5 + $0xb8] sm:$0xff]
      %v6688 = vld [vmem:[%s5 + $0xc0] sm:$0xff]
      %v6689 = vld [vmem:[%s5 + $0xc8] sm:$0xff]
      %v6690 = vld [vmem:[%s5 + $0xd0] sm:$0xff]
      %v6691 = vld [vmem:[%s5 + $0xd8] sm:$0xff]
      %v6692 = vld [vmem:[%s5 + $0xe0] sm:$0xff]
      %v6693 = vld [vmem:[%s5 + $0xe8] sm:$0xff]
      %v6694 = vld [vmem:[%s5 + $0xf0] sm:$0xff]
      %v6695 = vld [vmem:[%s5 + $0xf8] sm:$0xff]
      %v6696 = vld [vmem:[%s5 + $0x100] sm:$0xff]
      %v6697 = vld [vmem:[%s5 + $0x108] sm:$0xff]
      %v6698 = vld [vmem:[%s5 + $0x110] sm:$0xff]
      %v6699 = vld [vmem:[%s5 + $0x118] sm:$0xff]
      %v6700 = vld [vmem:[%s5 + $0x120] sm:$0xff]
      %v6701 = vld [vmem:[%s5 + $0x128] sm:$0xff]
      %v6702 = vld [vmem:[%s5 + $0x130] sm:$0xff]
      %v6703 = vld [vmem:[%s5 + $0x138] sm:$0xff]
      %v6704 = vld [vmem:[%s5 + $0x140] sm:$0xff]
      %v6705 = vld [vmem:[%s5 + $0x148] sm:$0xff]
      %v6706 = vld [vmem:[%s5 + $0x150] sm:$0xff]
      %v6707 = vld [vmem:[%s5 + $0x158] sm:$0xff]
      %v6708 = vld [vmem:[%s5 + $0x160] sm:$0xff]
      %v6709 = vld [vmem:[%s5 + $0x168] sm:$0xff]
      %v6710 = vld [vmem:[%s5 + $0x170] sm:$0xff]
      %v6711 = vld [vmem:[%s5 + $0x178] sm:$0xff]
      %v6712 = vld [vmem:[%s5 + $0x180] sm:$0xff]
      %v6713 = vld [vmem:[%s5 + $0x188] sm:$0xff]
      %v6714 = vld [vmem:[%s5 + $0x190] sm:$0xff]
      %v6715 = vld [vmem:[%s5 + $0x198] sm:$0xff]
      %v6716 = vld [vmem:[%s5 + $0x1a0] sm:$0xff]
      %v6717 = vld [vmem:[%s5 + $0x1a8] sm:$0xff]
      %v6718 = vld [vmem:[%s5 + $0x1b0] sm:$0xff]
      %v6719 = vld [vmem:[%s5 + $0x1b8] sm:$0xff]
      %v6720 = vld [vmem:[%s5 + $0x1c0] sm:$0xff]
      %v6721 = vld [vmem:[%s5 + $0x1c8] sm:$0xff]
      %v6722 = vld [vmem:[%s5 + $0x1d0] sm:$0xff]
      %v6723 = vld [vmem:[%s5 + $0x1d8] sm:$0xff]
      %v6724 = vld [vmem:[%s5 + $0x1e0] sm:$0xff]
      %v6725 = vld [vmem:[%s5 + $0x1e8] sm:$0xff]
      %v6726 = vld [vmem:[%s5 + $0x1f0] sm:$0xff]
      %v6727 = vld [vmem:[%s5 + $0x1f8] sm:$0xff]
      %v6728 = vld [vmem:[%s6] sm:$0x3]
      %v6730 = vlaneseq
      %v6731 = vshrl.u32 %v6730, 7
      %v6732 = vsub.s32 0, %v6731
      %v6733 = vrot.slane %v6728, %v6732
      %v6734 = vlaneseq
      %v6735 = vshrl.u32 %v6734, 7
      %v6736 = vsub.s32 1, %v6735
      %v6737 = vrot.slane %v6728, %v6736
      %v6804 = vunpack.c.l.b16 %v6664
      %v6805 = vunpack.c.h.b16 %v6664
      %v6806 = vunpack.c.l.b16 %v6665
      %v6807 = vunpack.c.h.b16 %v6665
      %v6808 = vunpack.c.l.b16 %v6666
      %v6809 = vunpack.c.h.b16 %v6666
      %v6810 = vunpack.c.l.b16 %v6667
      %v6811 = vunpack.c.h.b16 %v6667
      %v6812 = vunpack.c.l.b16 %v6668
      %v6813 = vunpack.c.h.b16 %v6668
      %v6814 = vunpack.c.l.b16 %v6669
      %v6815 = vunpack.c.h.b16 %v6669
      %v6816 = vunpack.c.l.b16 %v6670
      %v6817 = vunpack.c.h.b16 %v6670
      %v6818 = vunpack.c.l.b16 %v6671
      %v6819 = vunpack.c.h.b16 %v6671
      %v6820 = vunpack.c.l.b16 %v6672
      %v6821 = vunpack.c.h.b16 %v6672
      %v6822 = vunpack.c.l.b16 %v6673
      %v6823 = vunpack.c.h.b16 %v6673
      %v6824 = vunpack.c.l.b16 %v6674
      %v6825 = vunpack.c.h.b16 %v6674
      %v6826 = vunpack.c.l.b16 %v6675
      %v6827 = vunpack.c.h.b16 %v6675
      %v6828 = vunpack.c.l.b16 %v6676
      %v6829 = vunpack.c.h.b16 %v6676
      %v6830 = vunpack.c.l.b16 %v6677
      %v6831 = vunpack.c.h.b16 %v6677
      %v6832 = vunpack.c.l.b16 %v6678
      %v6833 = vunpack.c.h.b16 %v6678
      %v6834 = vunpack.c.l.b16 %v6679
      %v6835 = vunpack.c.h.b16 %v6679
      %v6836 = vunpack.c.l.b16 %v6680
      %v6837 = vunpack.c.h.b16 %v6680
      %v6838 = vunpack.c.l.b16 %v6681
      %v6839 = vunpack.c.h.b16 %v6681
      %v6840 = vunpack.c.l.b16 %v6682
      %v6841 = vunpack.c.h.b16 %v6682
      %v6842 = vunpack.c.l.b16 %v6683
      %v6843 = vunpack.c.h.b16 %v6683
      %v6844 = vunpack.c.l.b16 %v6684
      %v6845 = vunpack.c.h.b16 %v6684
      %v6846 = vunpack.c.l.b16 %v6685
      %v6847 = vunpack.c.h.b16 %v6685
      %v6848 = vunpack.c.l.b16 %v6686
      %v6849 = vunpack.c.h.b16 %v6686
      %v6850 = vunpack.c.l.b16 %v6687
      %v6851 = vunpack.c.h.b16 %v6687
      %v6852 = vunpack.c.l.b16 %v6688
      %v6853 = vunpack.c.h.b16 %v6688
      %v6854 = vunpack.c.l.b16 %v6689
      %v6855 = vunpack.c.h.b16 %v6689
      %v6856 = vunpack.c.l.b16 %v6690
      %v6857 = vunpack.c.h.b16 %v6690
      %v6858 = vunpack.c.l.b16 %v6691
      %v6859 = vunpack.c.h.b16 %v6691
      %v6860 = vunpack.c.l.b16 %v6692
      %v6861 = vunpack.c.h.b16 %v6692
      %v6862 = vunpack.c.l.b16 %v6693
      %v6863 = vunpack.c.h.b16 %v6693
      %v6864 = vunpack.c.l.b16 %v6694
      %v6865 = vunpack.c.h.b16 %v6694
      %v6866 = vunpack.c.l.b16 %v6695
      %v6867 = vunpack.c.h.b16 %v6695
      %v6868 = vunpack.c.l.b16 %v6696
      %v6869 = vunpack.c.h.b16 %v6696
      %v6870 = vunpack.c.l.b16 %v6697
      %v6871 = vunpack.c.h.b16 %v6697
      %v6872 = vunpack.c.l.b16 %v6698
      %v6873 = vunpack.c.h.b16 %v6698
      %v6874 = vunpack.c.l.b16 %v6699
      %v6875 = vunpack.c.h.b16 %v6699
      %v6876 = vunpack.c.l.b16 %v6700
      %v6877 = vunpack.c.h.b16 %v6700
      %v6878 = vunpack.c.l.b16 %v6701
      %v6879 = vunpack.c.h.b16 %v6701
      %v6880 = vunpack.c.l.b16 %v6702
      %v6881 = vunpack.c.h.b16 %v6702
      %v6882 = vunpack.c.l.b16 %v6703
      %v6883 = vunpack.c.h.b16 %v6703
      %v6884 = vunpack.c.l.b16 %v6704
      %v6885 = vunpack.c.h.b16 %v6704
      %v6886 = vunpack.c.l.b16 %v6705
      %v6887 = vunpack.c.h.b16 %v6705
      %v6888 = vunpack.c.l.b16 %v6706
      %v6889 = vunpack.c.h.b16 %v6706
      %v6890 = vunpack.c.l.b16 %v6707
      %v6891 = vunpack.c.h.b16 %v6707
      %v6892 = vunpack.c.l.b16 %v6708
      %v6893 = vunpack.c.h.b16 %v6708
      %v6894 = vunpack.c.l.b16 %v6709
      %v6895 = vunpack.c.h.b16 %v6709
      %v6896 = vunpack.c.l.b16 %v6710
      %v6897 = vunpack.c.h.b16 %v6710
      %v6898 = vunpack.c.l.b16 %v6711
      %v6899 = vunpack.c.h.b16 %v6711
      %v6900 = vunpack.c.l.b16 %v6712
      %v6901 = vunpack.c.h.b16 %v6712
      %v6902 = vunpack.c.l.b16 %v6713
      %v6903 = vunpack.c.h.b16 %v6713
      %v6904 = vunpack.c.l.b16 %v6714
      %v6905 = vunpack.c.h.b16 %v6714
      %v6906 = vunpack.c.l.b16 %v6715
      %v6907 = vunpack.c.h.b16 %v6715
      %v6908 = vunpack.c.l.b16 %v6716
      %v6909 = vunpack.c.h.b16 %v6716
      %v6910 = vunpack.c.l.b16 %v6717
      %v6911 = vunpack.c.h.b16 %v6717
      %v6912 = vunpack.c.l.b16 %v6718
      %v6913 = vunpack.c.h.b16 %v6718
      %v6914 = vunpack.c.l.b16 %v6719
      %v6915 = vunpack.c.h.b16 %v6719
      %v6916 = vunpack.c.l.b16 %v6720
      %v6917 = vunpack.c.h.b16 %v6720
      %v6918 = vunpack.c.l.b16 %v6721
      %v6919 = vunpack.c.h.b16 %v6721
      %v6920 = vunpack.c.l.b16 %v6722
      %v6921 = vunpack.c.h.b16 %v6722
      %v6922 = vunpack.c.l.b16 %v6723
      %v6923 = vunpack.c.h.b16 %v6723
      %v6924 = vunpack.c.l.b16 %v6724
      %v6925 = vunpack.c.h.b16 %v6724
      %v6926 = vunpack.c.l.b16 %v6725
      %v6927 = vunpack.c.h.b16 %v6725
      %v6928 = vunpack.c.l.b16 %v6726
      %v6929 = vunpack.c.h.b16 %v6726
      %v6930 = vunpack.c.l.b16 %v6727
      %v6931 = vunpack.c.h.b16 %v6727
      %v6932 = vpack.c.b16 %v6806, %v6804
      %v6933 = vpack.c.b16 %v6807, %v6805
      %v6934 = vpack.c.b16 %v6810, %v6808
      %v6935 = vpack.c.b16 %v6811, %v6809
      %v6936 = vpack.c.b16 %v6814, %v6812
      %v6937 = vpack.c.b16 %v6815, %v6813
      %v6938 = vpack.c.b16 %v6818, %v6816
      %v6939 = vpack.c.b16 %v6819, %v6817
      %v6940 = vpack.c.b16 %v6822, %v6820
      %v6941 = vpack.c.b16 %v6823, %v6821
      %v6942 = vpack.c.b16 %v6826, %v6824
      %v6943 = vpack.c.b16 %v6827, %v6825
      %v6944 = vpack.c.b16 %v6830, %v6828
      %v6945 = vpack.c.b16 %v6831, %v6829
      %v6946 = vpack.c.b16 %v6834, %v6832
      %v6947 = vpack.c.b16 %v6835, %v6833
      %v6948 = vpack.c.b16 %v6838, %v6836
      %v6949 = vpack.c.b16 %v6839, %v6837
      %v6950 = vpack.c.b16 %v6842, %v6840
      %v6951 = vpack.c.b16 %v6843, %v6841
      %v6952 = vpack.c.b16 %v6846, %v6844
      %v6953 = vpack.c.b16 %v6847, %v6845
      %v6954 = vpack.c.b16 %v6850, %v6848
      %v6955 = vpack.c.b16 %v6851, %v6849
      %v6956 = vpack.c.b16 %v6854, %v6852
      %v6957 = vpack.c.b16 %v6855, %v6853
      %v6958 = vpack.c.b16 %v6858, %v6856
      %v6959 = vpack.c.b16 %v6859, %v6857
      %v6960 = vpack.c.b16 %v6862, %v6860
      %v6961 = vpack.c.b16 %v6863, %v6861
      %v6962 = vpack.c.b16 %v6866, %v6864
      %v6963 = vpack.c.b16 %v6867, %v6865
      %v6964 = vpack.c.b16 %v6870, %v6868
      %v6965 = vpack.c.b16 %v6871, %v6869
      %v6966 = vpack.c.b16 %v6874, %v6872
      %v6967 = vpack.c.b16 %v6875, %v6873
      %v6968 = vpack.c.b16 %v6878, %v6876
      %v6969 = vpack.c.b16 %v6879, %v6877
      %v6970 = vpack.c.b16 %v6882, %v6880
      %v6971 = vpack.c.b16 %v6883, %v6881
      %v6972 = vpack.c.b16 %v6886, %v6884
      %v6973 = vpack.c.b16 %v6887, %v6885
      %v6974 = vpack.c.b16 %v6890, %v6888
      %v6975 = vpack.c.b16 %v6891, %v6889
      %v6976 = vpack.c.b16 %v6894, %v6892
      %v6977 = vpack.c.b16 %v6895, %v6893
      %v6978 = vpack.c.b16 %v6898, %v6896
      %v6979 = vpack.c.b16 %v6899, %v6897
      %v6980 = vpack.c.b16 %v6902, %v6900
      %v6981 = vpack.c.b16 %v6903, %v6901
      %v6982 = vpack.c.b16 %v6906, %v6904
      %v6983 = vpack.c.b16 %v6907, %v6905
      %v6984 = vpack.c.b16 %v6910, %v6908
      %v6985 = vpack.c.b16 %v6911, %v6909
      %v6986 = vpack.c.b16 %v6914, %v6912
      %v6987 = vpack.c.b16 %v6915, %v6913
      %v6988 = vpack.c.b16 %v6918, %v6916
      %v6989 = vpack.c.b16 %v6919, %v6917
      %v6990 = vpack.c.b16 %v6922, %v6920
      %v6991 = vpack.c.b16 %v6923, %v6921
      %v6992 = vpack.c.b16 %v6926, %v6924
      %v6993 = vpack.c.b16 %v6927, %v6925
      %v6994 = vpack.c.b16 %v6930, %v6928
      %v6995 = vpack.c.b16 %v6931, %v6929
      %7060 = vmatprep.subr.bf16.mxu0 %v6933
      %7061 = vmatpush1.bf16.msra.mxu0 %v6932
      %7062 = vmatprep.subr.bf16.mxu0 %v6935
      %7063 = vmatpush1.bf16.msra.mxu0 %v6934
      %7064 = vmatprep.subr.bf16.mxu0 %v6937
      %7065 = vmatpush1.bf16.msra.mxu0 %v6936
      %7066 = vmatprep.subr.bf16.mxu0 %v6939
      %7067 = vmatpush1.bf16.msra.mxu0 %v6938
      %7068 = vmatprep.subr.bf16.mxu0 %v6941
      %7069 = vmatpush1.bf16.msra.mxu0 %v6940
      %7070 = vmatprep.subr.bf16.mxu0 %v6943
      %7071 = vmatpush1.bf16.msra.mxu0 %v6942
      %7072 = vmatprep.subr.bf16.mxu0 %v6945
      %7073 = vmatpush1.bf16.msra.mxu0 %v6944
      %7074 = vmatprep.subr.bf16.mxu0 %v6947
      %7075 = vmatpush1.bf16.msra.mxu0 %v6946
      %7076 = vmatprep.subr.bf16.mxu0 %v6949
      %7077 = vmatpush1.bf16.msra.mxu0 %v6948
      %7078 = vmatprep.subr.bf16.mxu0 %v6951
      %7079 = vmatpush1.bf16.msra.mxu0 %v6950
      %7080 = vmatprep.subr.bf16.mxu0 %v6953
      %7081 = vmatpush1.bf16.msra.mxu0 %v6952
      %7082 = vmatprep.subr.bf16.mxu0 %v6955
      %7083 = vmatpush1.bf16.msra.mxu0 %v6954
      %7084 = vmatprep.subr.bf16.mxu0 %v6957
      %7085 = vmatpush1.bf16.msra.mxu0 %v6956
      %7086 = vmatprep.subr.bf16.mxu0 %v6959
      %7087 = vmatpush1.bf16.msra.mxu0 %v6958
      %7088 = vmatprep.subr.bf16.mxu0 %v6961
      %7089 = vmatpush1.bf16.msra.mxu0 %v6960
      %7090 = vmatprep.subr.bf16.mxu0 %v6963
      %7091 = vmatpush1.bf16.msra.mxu0 %v6962
      %7092 = vmatprep.mubr.bf16.mxu0 %v6633
      %7093 = vmatmul.mubr.bf16.gmra.mrb[0].mxu0 %v6632
      %v7094 = vpop.f32.mrb[0].mxu0
      %v7095 = vadd.f32 %v6733, %v7094
      %v7096 = vpop.f32.mrb[0].mxu0
      %v7097 = vadd.f32 %v6737, %v7096
      %v7098 = vpop.f32.mrb[0].mxu0
      %v7099 = vadd.f32 %v6733, %v7098
      %v7100 = vpop.f32.mrb[0].mxu0
      %v7101 = vadd.f32 %v6737, %v7100
      %7102 = vmatprep.mubr.bf16.mxu0 %v6637
      %7103 = vmatmul.mubr.bf16.gmra.mrb[0].mxu0 %v6636
      %v7104 = vpop.f32.mrb[0].mxu0
      %v7105 = vadd.f32 %v6733, %v7104
      %v7106 = vpop.f32.mrb[0].mxu0
      %v7107 = vadd.f32 %v6737, %v7106
      %v7108 = vpop.f32.mrb[0].mxu0
      %v7109 = vadd.f32 %v6733, %v7108
      %v7110 = vpop.f32.mrb[0].mxu0
      %v7111 = vadd.f32 %v6737, %v7110
      %7112 = vmatprep.mubr.bf16.mxu0 %v6641
      %7113 = vmatmul.mubr.bf16.gmra.mrb[0].mxu0 %v6640
      %v7114 = vpop.f32.mrb[0].mxu0
      %v7115 = vadd.f32 %v6733, %v7114
      %v7116 = vpop.f32.mrb[0].mxu0
      %v7117 = vadd.f32 %v6737, %v7116
      %v7118 = vpop.f32.mrb[0].mxu0
      %v7119 = vadd.f32 %v6733, %v7118
      %v7120 = vpop.f32.mrb[0].mxu0
      %v7121 = vadd.f32 %v6737, %v7120
      %7122 = vmatprep.mubr.bf16.mxu0 %v6645
      %7123 = vmatmul.mubr.bf16.gmra.mrb[0].mxu0 %v6644
      %v7124 = vpop.f32.mrb[0].mxu0
      %v7125 = vadd.f32 %v6733, %v7124
      %v7126 = vpop.f32.mrb[0].mxu0
      %v7127 = vadd.f32 %v6737, %v7126
      %v7128 = vpop.f32.mrb[0].mxu0
      %v7129 = vadd.f32 %v6733, %v7128
      %v7130 = vpop.f32.mrb[0].mxu0
      %v7131 = vadd.f32 %v6737, %v7130
      %7132 = vmatprep.mubr.bf16.mxu0 %v6649
      %7133 = vmatmul.mubr.bf16.gmra.mrb[0].mxu0 %v6648
      %v7134 = vpop.f32.mrb[0].mxu0
      %v7135 = vadd.f32 %v6733, %v7134
      %v7136 = vpop.f32.mrb[0].mxu0
      %v7137 = vadd.f32 %v6737, %v7136
      %v7138 = vpop.f32.mrb[0].mxu0
      %v7139 = vadd.f32 %v6733, %v7138
      %v7140 = vpop.f32.mrb[0].mxu0
      %v7141 = vadd.f32 %v6737, %v7140
      %7142 = vmatprep.mubr.bf16.mxu0 %v6653
      %7143 = vmatmul.mubr.bf16.gmra.mrb[0].mxu0 %v6652
      %v7144 = vpop.f32.mrb[0].mxu0
      %v7145 = vadd.f32 %v6733, %v7144
      %v7146 = vpop.f32.mrb[0].mxu0
      %v7147 = vadd.f32 %v6737, %v7146
      %v7148 = vpop.f32.mrb[0].mxu0
      %v7149 = vadd.f32 %v6733, %v7148
      %v7150 = vpop.f32.mrb[0].mxu0
      %v7151 = vadd.f32 %v6737, %v7150
      %7152 = vmatprep.mubr.bf16.mxu0 %v6657
      %7153 = vmatmul.mubr.bf16.gmra.mrb[0].mxu0 %v6656
      %v7154 = vpop.f32.mrb[0].mxu0
      %v7155 = vadd.f32 %v6733, %v7154
      %v7156 = vpop.f32.mrb[0].mxu0
      %v7157 = vadd.f32 %v6737, %v7156
      %v7158 = vpop.f32.mrb[0].mxu0
      %v7159 = vadd.f32 %v6733, %v7158
      %v7160 = vpop.f32.mrb[0].mxu0
      %v7161 = vadd.f32 %v6737, %v7160
      %7162 = vmatprep.mubr.bf16.mxu0 %v6661
      %7163 = vmatmul.mubr.bf16.gmra.mrb[0].mxu0 %v6660
      %v7164 = vpop.f32.mrb[0].mxu0
      %v7165 = vadd.f32 %v6733, %v7164
      %v7166 = vpop.f32.mrb[0].mxu0
      %v7167 = vadd.f32 %v6737, %v7166
      %v7168 = vpop.f32.mrb[0].mxu0
      %v7169 = vadd.f32 %v6733, %v7168
      %v7170 = vpop.f32.mrb[0].mxu0
      %v7171 = vadd.f32 %v6737, %v7170
      %7172 = vdwg.mxu0
      %7173 = vmatprep.subr.bf16.mxu0 %v6965
      %7174 = vmatpush1.bf16.msra.mxu0 %v6964
      %7175 = vmatprep.subr.bf16.mxu0 %v6967
      %7176 = vmatpush1.bf16.msra.mxu0 %v6966
      %7177 = vmatprep.subr.bf16.mxu0 %v6969
      %7178 = vmatpush1.bf16.msra.mxu0 %v6968
      %7179 = vmatprep.subr.bf16.mxu0 %v6971
      %7180 = vmatpush1.bf16.msra.mxu0 %v6970
      %7181 = vmatprep.subr.bf16.mxu0 %v6973
      %7182 = vmatpush1.bf16.msra.mxu0 %v6972
      %7183 = vmatprep.subr.bf16.mxu0 %v6975
      %7184 = vmatpush1.bf16.msra.mxu0 %v6974
      %7185 = vmatprep.subr.bf16.mxu0 %v6977
      %7186 = vmatpush1.bf16.msra.mxu0 %v6976
      %7187 = vmatprep.subr.bf16.mxu0 %v6979
      %7188 = vmatpush1.bf16.msra.mxu0 %v6978
      %7189 = vmatprep.subr.bf16.mxu0 %v6981
      %7190 = vmatpush1.bf16.msra.mxu0 %v6980
      %7191 = vmatprep.subr.bf16.mxu0 %v6983
      %7192 = vmatpush1.bf16.msra.mxu0 %v6982
      %7193 = vmatprep.subr.bf16.mxu0 %v6985
      %7194 = vmatpush1.bf16.msra.mxu0 %v6984
      %7195 = vmatprep.subr.bf16.mxu0 %v6987
      %7196 = vmatpush1.bf16.msra.mxu0 %v6986
      %7197 = vmatprep.subr.bf16.mxu0 %v6989
      %7198 = vmatpush1.bf16.msra.mxu0 %v6988
      %7199 = vmatprep.subr.bf16.mxu0 %v6991
      %7200 = vmatpush1.bf16.msra.mxu0 %v6990
      %7201 = vmatprep.subr.bf16.mxu0 %v6993
      %7202 = vmatpush1.bf16.msra.mxu0 %v6992
      %7203 = vmatprep.subr.bf16.mxu0 %v6995
      %7204 = vmatpush1.bf16.msra.mxu0 %v6994
      %7205 = vmatprep.mubr.bf16.mxu0 %v6635
      %7206 = vmatmul.mubr.bf16.gmra.mrb[0].mxu0 %v6634
      %v7207 = vpop.f32.mrb[0].mxu0
      %v7208 = vadd.f32 %v7095, %v7207
      %v7209 = vpop.f32.mrb[0].mxu0
      %v7210 = vadd.f32 %v7097, %v7209
      %v7211 = vpop.f32.mrb[0].mxu0
      %v7212 = vadd.f32 %v7099, %v7211
      %v7213 = vpop.f32.mrb[0].mxu0
      %v7214 = vadd.f32 %v7101, %v7213
      %7215 = vmatprep.mubr.bf16.mxu0 %v6639
      %7216 = vmatmul.mubr.bf16.gmra.mrb[0].mxu0 %v6638
      %v7217 = vpop.f32.mrb[0].mxu0
      %v7218 = vadd.f32 %v7105, %v7217
      %v7219 = vpop.f32.mrb[0].mxu0
      %v7220 = vadd.f32 %v7107, %v7219
      %v7221 = vpop.f32.mrb[0].mxu0
      %v7222 = vadd.f32 %v7109, %v7221
      %v7223 = vpop.f32.mrb[0].mxu0
      %v7224 = vadd.f32 %v7111, %v7223
      %7225 = vmatprep.mubr.bf16.mxu0 %v6643
      %7226 = vmatmul.mubr.bf16.gmra.mrb[0].mxu0 %v6642
      %v7227 = vpop.f32.mrb[0].mxu0
      %v7228 = vadd.f32 %v7115, %v7227
      %v7229 = vpop.f32.mrb[0].mxu0
      %v7230 = vadd.f32 %v7117, %v7229
      %v7231 = vpop.f32.mrb[0].mxu0
      %v7232 = vadd.f32 %v7119, %v7231
      %v7233 = vpop.f32.mrb[0].mxu0
      %v7234 = vadd.f32 %v7121, %v7233
      %7235 = vmatprep.mubr.bf16.mxu0 %v6647
      %7236 = vmatmul.mubr.bf16.gmra.mrb[0].mxu0 %v6646
      %v7237 = vpop.f32.mrb[0].mxu0
      %v7238 = vadd.f32 %v7125, %v7237
      %v7239 = vpop.f32.mrb[0].mxu0
      %v7240 = vadd.f32 %v7127, %v7239
      %v7241 = vpop.f32.mrb[0].mxu0
      %v7242 = vadd.f32 %v7129, %v7241
      %v7243 = vpop.f32.mrb[0].mxu0
      %v7244 = vadd.f32 %v7131, %v7243
      %7245 = vmatprep.mubr.bf16.mxu0 %v6651
      %7246 = vmatmul.mubr.bf16.gmra.mrb[0].mxu0 %v6650
      %v7247 = vpop.f32.mrb[0].mxu0
      %v7248 = vadd.f32 %v7135, %v7247
      %v7249 = vpop.f32.mrb[0].mxu0
      %v7250 = vadd.f32 %v7137, %v7249
      %v7251 = vpop.f32.mrb[0].mxu0
      %v7252 = vadd.f32 %v7139, %v7251
      %v7253 = vpop.f32.mrb[0].mxu0
      %v7254 = vadd.f32 %v7141, %v7253
      %7255 = vmatprep.mubr.bf16.mxu0 %v6655
      %7256 = vmatmul.mubr.bf16.gmra.mrb[0].mxu0 %v6654
      %v7257 = vpop.f32.mrb[0].mxu0
      %v7258 = vadd.f32 %v7145, %v7257
      %v7259 = vpop.f32.mrb[0].mxu0
      %v7260 = vadd.f32 %v7147, %v7259
      %v7261 = vpop.f32.mrb[0].mxu0
      %v7262 = vadd.f32 %v7149, %v7261
      %v7263 = vpop.f32.mrb[0].mxu0
      %v7264 = vadd.f32 %v7151, %v7263
      %7265 = vmatprep.mubr.bf16.mxu0 %v6659
      %7266 = vmatmul.mubr.bf16.gmra.mrb[0].mxu0 %v6658
      %v7267 = vpop.f32.mrb[0].mxu0
      %v7268 = vadd.f32 %v7155, %v7267
      %v7269 = vpop.f32.mrb[0].mxu0
      %v7270 = vadd.f32 %v7157, %v7269
      %v7271 = vpop.f32.mrb[0].mxu0
      %v7272 = vadd.f32 %v7159, %v7271
      %v7273 = vpop.f32.mrb[0].mxu0
      %v7274 = vadd.f32 %v7161, %v7273
      %7275 = vmatprep.mubr.bf16.mxu0 %v6663
      %7276 = vmatmul.mubr.bf16.gmra.mrb[0].mxu0 %v6662
      %v7277 = vpop.f32.mrb[0].mxu0
      %v7278 = vadd.f32 %v7165, %v7277
      %v7279 = vpop.f32.mrb[0].mxu0
      %v7280 = vadd.f32 %v7167, %v7279
      %v7281 = vpop.f32.mrb[0].mxu0
      %v7282 = vadd.f32 %v7169, %v7281
      %v7283 = vpop.f32.mrb[0].mxu0
      %v7284 = vadd.f32 %v7171, %v7283
      %7285 = vdwg.mxu0
      %v7286 = vmax.f32 %v7208, 0.0
      %v7287 = vmax.f32 %v7210, 0.0
      %v7288 = vmax.f32 %v7212, 0.0
      %v7289 = vmax.f32 %v7214, 0.0
      %v7290 = vmax.f32 %v7218, 0.0
      %v7291 = vmax.f32 %v7220, 0.0
      %v7292 = vmax.f32 %v7222, 0.0
      %v7293 = vmax.f32 %v7224, 0.0
      %v7294 = vmax.f32 %v7228, 0.0
      %v7295 = vmax.f32 %v7230, 0.0
      %v7296 = vmax.f32 %v7232, 0.0
      %v7297 = vmax.f32 %v7234, 0.0
      %v7298 = vmax.f32 %v7238, 0.0
      %v7299 = vmax.f32 %v7240, 0.0
      %v7300 = vmax.f32 %v7242, 0.0
      %v7301 = vmax.f32 %v7244, 0.0
      %v7302 = vmax.f32 %v7248, 0.0
      %v7303 = vmax.f32 %v7250, 0.0
      %v7304 = vmax.f32 %v7252, 0.0
      %v7305 = vmax.f32 %v7254, 0.0
      %v7306 = vmax.f32 %v7258, 0.0
      %v7307 = vmax.f32 %v7260, 0.0
      %v7308 = vmax.f32 %v7262, 0.0
      %v7309 = vmax.f32 %v7264, 0.0
      %v7310 = vmax.f32 %v7268, 0.0
      %v7311 = vmax.f32 %v7270, 0.0
      %v7312 = vmax.f32 %v7272, 0.0
      %v7313 = vmax.f32 %v7274, 0.0
      %v7314 = vmax.f32 %v7278, 0.0
      %v7315 = vmax.f32 %v7280, 0.0
      %v7316 = vmax.f32 %v7282, 0.0
      %v7317 = vmax.f32 %v7284, 0.0
      %v7318 = vpack.c.bf16 %v7288, %v7286
      %v7319 = vpack.c.bf16 %v7289, %v7287
      %v7320 = vpack.c.bf16 %v7292, %v7290
      %v7321 = vpack.c.bf16 %v7293, %v7291
      %v7322 = vpack.c.bf16 %v7296, %v7294
      %v7323 = vpack.c.bf16 %v7297, %v7295
      %v7324 = vpack.c.bf16 %v7300, %v7298
      %v7325 = vpack.c.bf16 %v7301, %v7299
      %v7326 = vpack.c.bf16 %v7304, %v7302
      %v7327 = vpack.c.bf16 %v7305, %v7303
      %v7328 = vpack.c.bf16 %v7308, %v7306
      %v7329 = vpack.c.bf16 %v7309, %v7307
      %v7330 = vpack.c.bf16 %v7312, %v7310
      %v7331 = vpack.c.bf16 %v7313, %v7311
      %v7332 = vpack.c.bf16 %v7316, %v7314
      %v7333 = vpack.c.bf16 %v7317, %v7315
      %v7334 = vld [vmem:[%s7] sm:$0xf]
      %v7335 = vld [vmem:[%s7 + $0x4] sm:$0xf]
      %v7336 = vld [vmem:[%s7 + $0x8] sm:$0xf]
      %v7337 = vld [vmem:[%s7 + $0xc] sm:$0xf]
      %v7338 = vld [vmem:[%s7 + $0x10] sm:$0xf]
      %v7339 = vld [vmem:[%s7 + $0x14] sm:$0xf]
      %v7340 = vld [vmem:[%s7 + $0x18] sm:$0xf]
      %v7341 = vld [vmem:[%s7 + $0x1c] sm:$0xf]
      %v7342 = vld [vmem:[%s7 + $0x20] sm:$0xf]
      %v7343 = vld [vmem:[%s7 + $0x24] sm:$0xf]
      %v7344 = vld [vmem:[%s7 + $0x28] sm:$0xf]
      %v7345 = vld [vmem:[%s7 + $0x2c] sm:$0xf]
      %v7346 = vld [vmem:[%s7 + $0x30] sm:$0xf]
      %v7347 = vld [vmem:[%s7 + $0x34] sm:$0xf]
      %v7348 = vld [vmem:[%s7 + $0x38] sm:$0xf]
      %v7349 = vld [vmem:[%s7 + $0x3c] sm:$0xf]
      %v7350 = vld [vmem:[%s7 + $0x40] sm:$0xf]
      %v7351 = vld [vmem:[%s7 + $0x44] sm:$0xf]
      %v7352 = vld [vmem:[%s7 + $0x48] sm:$0xf]
      %v7353 = vld [vmem:[%s7 + $0x4c] sm:$0xf]
      %v7354 = vld [vmem:[%s7 + $0x50] sm:$0xf]
      %v7355 = vld [vmem:[%s7 + $0x54] sm:$0xf]
      %v7356 = vld [vmem:[%s7 + $0x58] sm:$0xf]
      %v7357 = vld [vmem:[%s7 + $0x5c] sm:$0xf]
      %v7358 = vld [vmem:[%s7 + $0x60] sm:$0xf]
      %v7359 = vld [vmem:[%s7 + $0x64] sm:$0xf]
      %v7360 = vld [vmem:[%s7 + $0x68] sm:$0xf]
      %v7361 = vld [vmem:[%s7 + $0x6c] sm:$0xf]
      %v7362 = vld [vmem:[%s7 + $0x70] sm:$0xf]
      %v7363 = vld [vmem:[%s7 + $0x74] sm:$0xf]
      %v7364 = vld [vmem:[%s7 + $0x78] sm:$0xf]
      %v7365 = vld [vmem:[%s7 + $0x7c] sm:$0xf]
      %v7366 = vld [vmem:[%s8] sm:$0x1]
      %v7368 = vlaneseq
      %v7369 = vshrl.u32 %v7368, 7
      %v7370 = vsub.s32 0, %v7369
      %v7371 = vrot.slane %v7366, %v7370
      %v7405 = vunpack.c.l.b16 %v7334
      %v7406 = vunpack.c.l.b16 %v7335
      %v7407 = vunpack.c.l.b16 %v7336
      %v7408 = vunpack.c.l.b16 %v7337
      %v7409 = vunpack.c.l.b16 %v7338
      %v7410 = vunpack.c.l.b16 %v7339
      %v7411 = vunpack.c.l.b16 %v7340
      %v7412 = vunpack.c.l.b16 %v7341
      %v7413 = vunpack.c.l.b16 %v7342
      %v7414 = vunpack.c.l.b16 %v7343
      %v7415 = vunpack.c.l.b16 %v7344
      %v7416 = vunpack.c.l.b16 %v7345
      %v7417 = vunpack.c.l.b16 %v7346
      %v7418 = vunpack.c.l.b16 %v7347
      %v7419 = vunpack.c.l.b16 %v7348
      %v7420 = vunpack.c.l.b16 %v7349
      %v7421 = vunpack.c.l.b16 %v7350
      %v7422 = vunpack.c.l.b16 %v7351
      %v7423 = vunpack.c.l.b16 %v7352
      %v7424 = vunpack.c.l.b16 %v7353
      %v7425 = vunpack.c.l.b16 %v7354
      %v7426 = vunpack.c.l.b16 %v7355
      %v7427 = vunpack.c.l.b16 %v7356
      %v7428 = vunpack.c.l.b16 %v7357
      %v7429 = vunpack.c.l.b16 %v7358
      %v7430 = vunpack.c.l.b16 %v7359
      %v7431 = vunpack.c.l.b16 %v7360
      %v7432 = vunpack.c.l.b16 %v7361
      %v7433 = vunpack.c.l.b16 %v7362
      %v7434 = vunpack.c.l.b16 %v7363
      %v7435 = vunpack.c.l.b16 %v7364
      %v7436 = vunpack.c.l.b16 %v7365
      %v7437 = vpack.c.b16 %v7406, %v7405
      %v7438 = vpack.c.b16 %v7408, %v7407
      %v7439 = vpack.c.b16 %v7410, %v7409
      %v7440 = vpack.c.b16 %v7412, %v7411
      %v7441 = vpack.c.b16 %v7414, %v7413
      %v7442 = vpack.c.b16 %v7416, %v7415
      %v7443 = vpack.c.b16 %v7418, %v7417
      %v7444 = vpack.c.b16 %v7420, %v7419
      %v7445 = vpack.c.b16 %v7422, %v7421
      %v7446 = vpack.c.b16 %v7424, %v7423
      %v7447 = vpack.c.b16 %v7426, %v7425
      %v7448 = vpack.c.b16 %v7428, %v7427
      %v7449 = vpack.c.b16 %v7430, %v7429
      %v7450 = vpack.c.b16 %v7432, %v7431
      %v7451 = vpack.c.b16 %v7434, %v7433
      %v7452 = vpack.c.b16 %v7436, %v7435
      %7469 = vmatprep.subr.bf16.mxu0 0
      %7470 = vmatpush1.bf16.msra.mxu0 %v7437
      %7471 = vmatprep.subr.bf16.mxu0 0
      %7472 = vmatpush1.bf16.msra.mxu0 %v7438
      %7473 = vmatprep.subr.bf16.mxu0 0
      %7474 = vmatpush1.bf16.msra.mxu0 %v7439
      %7475 = vmatprep.subr.bf16.mxu0 0
      %7476 = vmatpush1.bf16.msra.mxu0 %v7440
      %7477 = vmatprep.subr.bf16.mxu0 0
      %7478 = vmatpush1.bf16.msra.mxu0 %v7441
      %7479 = vmatprep.subr.bf16.mxu0 0
      %7480 = vmatpush1.bf16.msra.mxu0 %v7442
      %7481 = vmatprep.subr.bf16.mxu0 0
      %7482 = vmatpush1.bf16.msra.mxu0 %v7443
      %7483 = vmatprep.subr.bf16.mxu0 0
      %7484 = vmatpush1.bf16.msra.mxu0 %v7444
      %7485 = vmatprep.subr.bf16.mxu0 0
      %7486 = vmatpush1.bf16.msra.mxu0 %v7445
      %7487 = vmatprep.subr.bf16.mxu0 0
      %7488 = vmatpush1.bf16.msra.mxu0 %v7446
      %7489 = vmatprep.subr.bf16.mxu0 0
      %7490 = vmatpush1.bf16.msra.mxu0 %v7447
      %7491 = vmatprep.subr.bf16.mxu0 0
      %7492 = vmatpush1.bf16.msra.mxu0 %v7448
      %7493 = vmatprep.subr.bf16.mxu0 0
      %7494 = vmatpush1.bf16.msra.mxu0 %v7449
      %7495 = vmatprep.subr.bf16.mxu0 0
      %7496 = vmatpush1.bf16.msra.mxu0 %v7450
      %7497 = vmatprep.subr.bf16.mxu0 0
      %7498 = vmatpush1.bf16.msra.mxu0 %v7451
      %7499 = vmatprep.subr.bf16.mxu0 0
      %7500 = vmatpush1.bf16.msra.mxu0 %v7452
      %7501 = vmatprep.mubr.bf16.mxu0 %v7319
      %7502 = vmatmul.mubr.bf16.gmra.mrb[0].mxu0 %v7318
      %v7503 = vpop.f32.mrb[0].mxu0
      %v7504 = vadd.f32 %v7371, %v7503
      %v7505 = vpop.f32.mrb[0].mxu0
      %v7506 = vpop.f32.mrb[0].mxu0
      %v7507 = vadd.f32 %v7371, %v7506
      %v7508 = vpop.f32.mrb[0].mxu0
      %7509 = vmatprep.mubr.bf16.mxu0 %v7321
      %7510 = vmatmul.mubr.bf16.gmra.mrb[0].mxu0 %v7320
      %v7511 = vpop.f32.mrb[0].mxu0
      %v7512 = vadd.f32 %v7371, %v7511
      %v7513 = vpop.f32.mrb[0].mxu0
      %v7514 = vpop.f32.mrb[0].mxu0
      %v7515 = vadd.f32 %v7371, %v7514
      %v7516 = vpop.f32.mrb[0].mxu0
      %7517 = vmatprep.mubr.bf16.mxu0 %v7323
      %7518 = vmatmul.mubr.bf16.gmra.mrb[0].mxu0 %v7322
      %v7519 = vpop.f32.mrb[0].mxu0
      %v7520 = vadd.f32 %v7371, %v7519
      %v7521 = vpop.f32.mrb[0].mxu0
      %v7522 = vpop.f32.mrb[0].mxu0
      %v7523 = vadd.f32 %v7371, %v7522
      %v7524 = vpop.f32.mrb[0].mxu0
      %7525 = vmatprep.mubr.bf16.mxu0 %v7325
      %7526 = vmatmul.mubr.bf16.gmra.mrb[0].mxu0 %v7324
      %v7527 = vpop.f32.mrb[0].mxu0
      %v7528 = vadd.f32 %v7371, %v7527
      %v7529 = vpop.f32.mrb[0].mxu0
      %v7530 = vpop.f32.mrb[0].mxu0
      %v7531 = vadd.f32 %v7371, %v7530
      %v7532 = vpop.f32.mrb[0].mxu0
      %7533 = vmatprep.mubr.bf16.mxu0 %v7327
      %7534 = vmatmul.mubr.bf16.gmra.mrb[0].mxu0 %v7326
      %v7535 = vpop.f32.mrb[0].mxu0
      %v7536 = vadd.f32 %v7371, %v7535
      %v7537 = vpop.f32.mrb[0].mxu0
      %v7538 = vpop.f32.mrb[0].mxu0
      %v7539 = vadd.f32 %v7371, %v7538
      %v7540 = vpop.f32.mrb[0].mxu0
      %7541 = vmatprep.mubr.bf16.mxu0 %v7329
      %7542 = vmatmul.mubr.bf16.gmra.mrb[0].mxu0 %v7328
      %v7543 = vpop.f32.mrb[0].mxu0
      %v7544 = vadd.f32 %v7371, %v7543
      %v7545 = vpop.f32.mrb[0].mxu0
      %v7546 = vpop.f32.mrb[0].mxu0
      %v7547 = vadd.f32 %v7371, %v7546
      %v7548 = vpop.f32.mrb[0].mxu0
      %7549 = vmatprep.mubr.bf16.mxu0 %v7331
      %7550 = vmatmul.mubr.bf16.gmra.mrb[0].mxu0 %v7330
      %v7551 = vpop.f32.mrb[0].mxu0
      %v7552 = vadd.f32 %v7371, %v7551
      %v7553 = vpop.f32.mrb[0].mxu0
      %v7554 = vpop.f32.mrb[0].mxu0
      %v7555 = vadd.f32 %v7371, %v7554
      %v7556 = vpop.f32.mrb[0].mxu0
      %7557 = vmatprep.mubr.bf16.mxu0 %v7333
      %7558 = vmatmul.mubr.bf16.gmra.mrb[0].mxu0 %v7332
      %v7559 = vpop.f32.mrb[0].mxu0
      %v7560 = vadd.f32 %v7371, %v7559
      %v7561 = vpop.f32.mrb[0].mxu0
      %v7562 = vpop.f32.mrb[0].mxu0
      %v7563 = vadd.f32 %v7371, %v7562
      %v7564 = vpop.f32.mrb[0].mxu0
      %7565 = vdwg.mxu0
      %7566 = vmax.xlane.f32.xlu0 %v7504
      %v7567 = vpop.xlane.xlu0 %7566
      %7568 = vmax.xlane.f32.xlu0 %v7507
      %v7569 = vpop.xlane.xlu0 %7568
      %7570 = vmax.xlane.f32.xlu0 %v7512
      %v7571 = vpop.xlane.xlu0 %7570
      %7572 = vmax.xlane.f32.xlu0 %v7515
      %v7573 = vpop.xlane.xlu0 %7572
      %7574 = vmax.xlane.f32.xlu0 %v7520
      %v7575 = vpop.xlane.xlu0 %7574
      %7576 = vmax.xlane.f32.xlu0 %v7523
      %v7577 = vpop.xlane.xlu0 %7576
      %7578 = vmax.xlane.f32.xlu0 %v7528
      %v7579 = vpop.xlane.xlu0 %7578
      %7580 = vmax.xlane.f32.xlu0 %v7531
      %v7581 = vpop.xlane.xlu0 %7580
      %7582 = vmax.xlane.f32.xlu0 %v7536
      %v7583 = vpop.xlane.xlu0 %7582
      %7584 = vmax.xlane.f32.xlu0 %v7539
      %v7585 = vpop.xlane.xlu0 %7584
      %7586 = vmax.xlane.f32.xlu0 %v7544
      %v7587 = vpop.xlane.xlu0 %7586
      %7588 = vmax.xlane.f32.xlu0 %v7547
      %v7589 = vpop.xlane.xlu0 %7588
      %7590 = vmax.xlane.f32.xlu0 %v7552
      %v7591 = vpop.xlane.xlu0 %7590
      %7592 = vmax.xlane.f32.xlu0 %v7555
      %v7593 = vpop.xlane.xlu0 %7592
      %7594 = vmax.xlane.f32.xlu0 %v7560
      %v7595 = vpop.xlane.xlu0 %7594
      %7596 = vmax.xlane.f32.xlu0 %v7563
      %v7597 = vpop.xlane.xlu0 %7596
      %v7598 = vsub.f32 %v7504, %v7567
      %v7599 = vsub.f32 %v7507, %v7569
      %v7600 = vsub.f32 %v7512, %v7571
      %v7601 = vsub.f32 %v7515, %v7573
      %v7602 = vsub.f32 %v7520, %v7575
      %v7603 = vsub.f32 %v7523, %v7577
      %v7604 = vsub.f32 %v7528, %v7579
      %v7605 = vsub.f32 %v7531, %v7581
      %v7606 = vsub.f32 %v7536, %v7583
      %v7607 = vsub.f32 %v7539, %v7585
      %v7608 = vsub.f32 %v7544, %v7587
      %v7609 = vsub.f32 %v7547, %v7589
      %v7610 = vsub.f32 %v7552, %v7591
      %v7611 = vsub.f32 %v7555, %v7593
      %v7612 = vsub.f32 %v7560, %v7595
      %v7613 = vsub.f32 %v7563, %v7597
      %v7614 = vmul.f32 %v7598, 1.442695
      %v7615 = vpow.pop %v7614
      %v7616 = vmul.f32 %v7599, 1.442695
      %v7617 = vpow.pop %v7616
      %v7618 = vmul.f32 %v7600, 1.442695
      %v7619 = vpow.pop %v7618
      %v7620 = vmul.f32 %v7601, 1.442695
      %v7621 = vpow.pop %v7620
      %v7622 = vmul.f32 %v7602, 1.442695
      %v7623 = vpow.pop %v7622
      %v7624 = vmul.f32 %v7603, 1.442695
      %v7625 = vpow.pop %v7624
      %v7626 = vmul.f32 %v7604, 1.442695
      %v7627 = vpow.pop %v7626
      %v7628 = vmul.f32 %v7605, 1.442695
      %v7629 = vpow.pop %v7628
      %v7630 = vmul.f32 %v7606, 1.442695
      %v7631 = vpow.pop %v7630
      %v7632 = vmul.f32 %v7607, 1.442695
      %v7633 = vpow.pop %v7632
      %v7634 = vmul.f32 %v7608, 1.442695
      %v7635 = vpow.pop %v7634
      %v7636 = vmul.f32 %v7609, 1.442695
      %v7637 = vpow.pop %v7636
      %v7638 = vmul.f32 %v7610, 1.442695
      %v7639 = vpow.pop %v7638
      %v7640 = vmul.f32 %v7611, 1.442695
      %v7641 = vpow.pop %v7640
      %v7642 = vmul.f32 %v7612, 1.442695
      %v7643 = vpow.pop %v7642
      %v7644 = vmul.f32 %v7613, 1.442695
      %v7645 = vpow.pop %v7644
      %7646 = vadd.xlane.f32.xlu0 %v7615
      %v7647 = vpop.xlane.xlu0 %7646
      %7648 = vadd.xlane.f32.xlu0 %v7617
      %v7649 = vpop.xlane.xlu0 %7648
      %7650 = vadd.xlane.f32.xlu0 %v7619
      %v7651 = vpop.xlane.xlu0 %7650
      %7652 = vadd.xlane.f32.xlu0 %v7621
      %v7653 = vpop.xlane.xlu0 %7652
      %7654 = vadd.xlane.f32.xlu0 %v7623
      %v7655 = vpop.xlane.xlu0 %7654
      %7656 = vadd.xlane.f32.xlu0 %v7625
      %v7657 = vpop.xlane.xlu0 %7656
      %7658 = vadd.xlane.f32.xlu0 %v7627
      %v7659 = vpop.xlane.xlu0 %7658
      %7660 = vadd.xlane.f32.xlu0 %v7629
      %v7661 = vpop.xlane.xlu0 %7660
      %7662 = vadd.xlane.f32.xlu0 %v7631
      %v7663 = vpop.xlane.xlu0 %7662
      %7664 = vadd.xlane.f32.xlu0 %v7633
      %v7665 = vpop.xlane.xlu0 %7664
      %7666 = vadd.xlane.f32.xlu0 %v7635
      %v7667 = vpop.xlane.xlu0 %7666
      %7668 = vadd.xlane.f32.xlu0 %v7637
      %v7669 = vpop.xlane.xlu0 %7668
      %7670 = vadd.xlane.f32.xlu0 %v7639
      %v7671 = vpop.xlane.xlu0 %7670
      %7672 = vadd.xlane.f32.xlu0 %v7641
      %v7673 = vpop.xlane.xlu0 %7672
      %7674 = vadd.xlane.f32.xlu0 %v7643
      %v7675 = vpop.xlane.xlu0 %7674
      %7676 = vadd.xlane.f32.xlu0 %v7645
      %v7677 = vpop.xlane.xlu0 %7676
      %v7678 = vlog2.pop %v7647
      %v7679 = vmul.f32 %v7678, 0.6931472
      %v7680 = vlog2.pop %v7649
      %v7681 = vmul.f32 %v7680, 0.6931472
      %v7682 = vlog2.pop %v7651
      %v7683 = vmul.f32 %v7682, 0.6931472
      %v7684 = vlog2.pop %v7653
      %v7685 = vmul.f32 %v7684, 0.6931472
      %v7686 = vlog2.pop %v7655
      %v7687 = vmul.f32 %v7686, 0.6931472
      %v7688 = vlog2.pop %v7657
      %v7689 = vmul.f32 %v7688, 0.6931472
      %v7690 = vlog2.pop %v7659
      %v7691 = vmul.f32 %v7690, 0.6931472
      %v7692 = vlog2.pop %v7661
      %v7693 = vmul.f32 %v7692, 0.6931472
      %v7694 = vlog2.pop %v7663
      %v7695 = vmul.f32 %v7694, 0.6931472
      %v7696 = vlog2.pop %v7665
      %v7697 = vmul.f32 %v7696, 0.6931472
      %v7698 = vlog2.pop %v7667
      %v7699 = vmul.f32 %v7698, 0.6931472
      %v7700 = vlog2.pop %v7669
      %v7701 = vmul.f32 %v7700, 0.6931472
      %v7702 = vlog2.pop %v7671
      %v7703 = vmul.f32 %v7702, 0.6931472
      %v7704 = vlog2.pop %v7673
      %v7705 = vmul.f32 %v7704, 0.6931472
      %v7706 = vlog2.pop %v7675
      %v7707 = vmul.f32 %v7706, 0.6931472
      %v7708 = vlog2.pop %v7677
      %v7709 = vmul.f32 %v7708, 0.6931472
      %v7710 = vsub.f32 %v7598, %v7679
      %v7711 = vsub.f32 %v7599, %v7681
      %v7712 = vsub.f32 %v7600, %v7683
      %v7713 = vsub.f32 %v7601, %v7685
      %v7714 = vsub.f32 %v7602, %v7687
      %v7715 = vsub.f32 %v7603, %v7689
      %v7716 = vsub.f32 %v7604, %v7691
      %v7717 = vsub.f32 %v7605, %v7693
      %v7718 = vsub.f32 %v7606, %v7695
      %v7719 = vsub.f32 %v7607, %v7697
      %v7720 = vsub.f32 %v7608, %v7699
      %v7721 = vsub.f32 %v7609, %v7701
      %v7722 = vsub.f32 %v7610, %v7703
      %v7723 = vsub.f32 %v7611, %v7705
      %v7724 = vsub.f32 %v7612, %v7707
      %v7725 = vsub.f32 %v7613, %v7709
      %7726 = vst [vmem:[%s337] sm:$0xff] %v7710
      %7727 = vst [vmem:[%s337 + $0x8] sm:$0xff] %v7711
      %7728 = vst [vmem:[%s337 + $0x10] sm:$0xff] %v7712
      %7729 = vst [vmem:[%s337 + $0x18] sm:$0xff] %v7713
      %7730 = vst [vmem:[%s337 + $0x20] sm:$0xff] %v7714
      %7731 = vst [vmem:[%s337 + $0x28] sm:$0xff] %v7715
      %7732 = vst [vmem:[%s337 + $0x30] sm:$0xff] %v7716
      %7733 = vst [vmem:[%s337 + $0x38] sm:$0xff] %v7717
      %7734 = vst [vmem:[%s337 + $0x40] sm:$0xff] %v7718
      %7735 = vst [vmem:[%s337 + $0x48] sm:$0xff] %v7719
      %7736 = vst [vmem:[%s337 + $0x50] sm:$0xff] %v7720
      %7737 = vst [vmem:[%s337 + $0x58] sm:$0xff] %v7721
      %7738 = vst [vmem:[%s337 + $0x60] sm:$0xff] %v7722
      %7739 = vst [vmem:[%s337 + $0x68] sm:$0xff] %v7723
      %7740 = vst [vmem:[%s337 + $0x70] sm:$0xff] %v7724
      %7741 = vst [vmem:[%s337 + $0x78] sm:$0xff] %v7725
      %s7742 = smul.u32 16, %s20
      %p7743 = scmp.lt.s32.totalorder %s7742, 31
      %s7744 = scalar_select %p7743, %s7742, 31
      %s7745 = smul.addr %s7744, 8
      %s7746 = scalar_lea.vmem %s9, %s7745
      // Predicated region
      $region57: #{net_forward.1} parent=55 // pred_check
        %p7747 = pneg %p232
      $region58: #{net_forward.1} parent=55 // pred_check_branch
        %7749 = sbr.rel (%p7747) target = $region60
      $region59: #{net_forward.1} parent=55 // pred_region
        %s7750 = smul.u32 16, %s20
      $region60: #{net_forward.1} parent=55 // pred_fallthru
        _
    $region56: #{net_forward.1} parent=5 // pred_fallthru
      _
    %p7751 = scmp.le.s32.totalorder 2, %s15
    // Predicated region
    $region61: #{net_forward.1} parent=5 // pred_check
      %p7752 = pneg %p7751
    $region62: #{net_forward.1} parent=5 // pred_check_branch
      %7754 = sbr.rel (%p7752) target = $region64
    $region63: #{net_forward.1} parent=5 // pred_region
      %s7755 = ssub.s32 %s15, 2
      // Predicated region
      $region65: #{net_forward.1} parent=63 // pred_check
        %p7756 = pneg %p238
      $region66: #{net_forward.1} parent=63 // pred_check_branch
        %7758 = sbr.rel (%p7756) target = $region68
      $region67: #{net_forward.1} parent=63 // pred_region
        %s7759 = smul.u32 16, %s21
        %p7760 = scmp.lt.s32.totalorder %s7759, 31
        %s7761 = scalar_select %p7760, %s7759, 31
        %s7762 = smul.addr %s7761, 8
        %s7763 = scalar_lea.vmem %s9, %s7762
      $region68: #{net_forward.1} parent=63 // pred_fallthru
        _
    $region64: #{net_forward.1} parent=5 // pred_fallthru
      _
  $region6: #{net_forward.1} parent=0 // loop_footer
    %s19 = sadd.s32 1, %s15
  $region7: #{net_forward.1} parent=0 // loop_footer_branch
    %14 = sbr.rel target = $region3
  $region8: #{net_forward.1} parent=0 // loop_exit
    _

</llo_original>
